<compile_context>
chip_gen: v5e
topology: v5e:2x2
jax: 0.10.0
libtpu: 0.0.40
codegen_flags: <defaults>
</compile_context>

<pallas_src>
import functools

import jax
import jax.numpy as jnp
from jax.experimental import pallas as pl
from jax.experimental.pallas import tpu as pltpu


# ----------------------------- Pallas kernels ------------------------------

def _mm_affine_kernel(x_ref, w_ref, s_ref, b_ref, o_ref, *, relu):
    # o = (x @ w) * s + b   [optionally relu];  x/w are bf16, accumulate in f32.
    y = jnp.dot(x_ref[...], w_ref[...], preferred_element_type=jnp.float32)
    y = y * s_ref[...] + b_ref[...]
    if relu:
        y = jnp.maximum(y, 0.0)
    o_ref[...] = y.astype(o_ref.dtype)


def _norm_mm_res_kernel(x_ref, w_ref, s2_ref, b2_ref, s3_ref, b3_ref, r_ref, o_ref):
    # o = relu(((relu(x*s2 + b2)) @ w) * s3 + b3 + residual)
    h = jnp.maximum(x_ref[...] * s2_ref[...] + b2_ref[...], 0.0)
    y = jnp.dot(h.astype(w_ref.dtype), w_ref[...], preferred_element_type=jnp.float32)
    y = y * s3_ref[...] + b3_ref[...] + r_ref[...]
    o_ref[...] = jnp.maximum(y, 0.0).astype(o_ref.dtype)


def _softmax_fuse_kernel(cor_ref, x_ref, o_ref):
    # softmax over axis 0 (temporal) of cor, then weighted sum of x over axis 0.
    cor = cor_ref[...]                                   # (T, BL)
    x = x_ref[...]                                       # (T, BL)
    m = jnp.max(cor, axis=0, keepdims=True)
    e = jnp.exp(cor - m)
    denom = jnp.sum(e, axis=0, keepdims=True)
    num = jnp.sum(e * x, axis=0, keepdims=True)
    o_ref[...] = (num * pl.reciprocal(denom, approx=True)).astype(o_ref.dtype)


# ----------------------------- Pallas wrappers ------------------------------

def _pick_bm(m, desired):
    """Largest row-block <= desired that divides m (prefers multiples of 128/16/8)."""
    if m <= desired:
        return m
    for step in (128, 16, 8):
        for bm in range(desired - desired % step, 0, -step):
            if m % bm == 0:
                return bm
    return m


def _pick_lane_block(length, cap):
    if length <= cap:
        return length
    for bl in range(cap - cap % 128, 0, -128):
        if length % bl == 0:
            return bl
    return length


def matmul_affine(x, w, scale, bias, relu=False, block_m=512):
    """(x @ w) * scale + bias [+relu], row-tiled; x/w expected bf16."""
    M, K = x.shape
    Kw, N = w.shape
    assert K == Kw
    bm = _pick_bm(M, block_m)
    kern = functools.partial(_mm_affine_kernel, relu=relu)
    return pl.pallas_call(
        kern,
        out_shape=jax.ShapeDtypeStruct((M, N), jnp.float32),
        grid=(M // bm,),
        in_specs=[
            pl.BlockSpec((bm, K), lambda i: (i, 0)),
            pl.BlockSpec((K, N), lambda i: (0, 0)),
            pl.BlockSpec((1, N), lambda i: (0, 0)),
            pl.BlockSpec((1, N), lambda i: (0, 0)),
        ],
        out_specs=pl.BlockSpec((bm, N), lambda i: (i, 0)),
        compiler_params=pltpu.CompilerParams(dimension_semantics=("parallel",)),
    )(x, w,
      scale.reshape(1, N).astype(jnp.float32),
      bias.reshape(1, N).astype(jnp.float32))


def norm_matmul_res_relu(x, w, s_pre, b_pre, s_post, b_post, res, block_m=512):
    """relu(((relu(x*s_pre+b_pre)) @ w) * s_post + b_post + res), row-tiled."""
    M, K = x.shape
    _, N = w.shape
    bm = _pick_bm(M, block_m)
    return pl.pallas_call(
        _norm_mm_res_kernel,
        out_shape=jax.ShapeDtypeStruct((M, N), jnp.float32),
        grid=(M // bm,),
        in_specs=[
            pl.BlockSpec((bm, K), lambda i: (i, 0)),
            pl.BlockSpec((K, N), lambda i: (0, 0)),
            pl.BlockSpec((1, K), lambda i: (0, 0)),
            pl.BlockSpec((1, K), lambda i: (0, 0)),
            pl.BlockSpec((1, N), lambda i: (0, 0)),
            pl.BlockSpec((1, N), lambda i: (0, 0)),
            pl.BlockSpec((bm, N), lambda i: (i, 0)),
        ],
        out_specs=pl.BlockSpec((bm, N), lambda i: (i, 0)),
        compiler_params=pltpu.CompilerParams(dimension_semantics=("parallel",)),
    )(x, w,
      s_pre.reshape(1, K).astype(jnp.float32), b_pre.reshape(1, K).astype(jnp.float32),
      s_post.reshape(1, N).astype(jnp.float32), b_post.reshape(1, N).astype(jnp.float32),
      res)


def softmax_fuse(cor, x_flat, lane_cap=16384):
    """fused[i] = sum_t softmax_t(cor[i])[t] * x_flat[t].

    cor: (Ti, T, L), x_flat: (T, L) -> (Ti, L).  Lane axis tiled; grid (Ti, L/BL).
    """
    Ti, T, L = cor.shape
    bl = _pick_lane_block(L, lane_cap)
    res = pl.pallas_call(
        _softmax_fuse_kernel,
        out_shape=jax.ShapeDtypeStruct((Ti, 1, L), jnp.float32),
        grid=(Ti, L // bl),
        in_specs=[
            pl.BlockSpec((None, T, bl), lambda i, j: (i, 0, j)),
            pl.BlockSpec((T, bl), lambda i, j: (0, j)),
        ],
        out_specs=pl.BlockSpec((None, 1, bl), lambda i, j: (i, 0, j)),
        compiler_params=pltpu.CompilerParams(
            dimension_semantics=("parallel", "parallel")),
    )(cor, x_flat)
    return res.reshape(Ti, L)


# --------------------------------- glue -------------------------------------

def im2col_3x3_cl(x):
    """Channels-last im2col for 3x3 / pad=1 / stride=1.
    x: (B, H, W, C) -> (B*H*W, 9*C); column index = tap*C + c, tap = ky*3 + kx."""
    B, H, W, C = x.shape
    xp = jnp.pad(x, ((0, 0), (1, 1), (1, 1), (0, 0)))
    taps = [xp[:, ky:ky + H, kx:kx + W, :] for ky in range(3) for kx in range(3)]
    return jnp.concatenate(taps, axis=-1).reshape(B * H * W, 9 * C)


def deform_im2col_3x3_cl(x, offset, mask, groups, c_pad):
    """Modulated deformable im2col (3x3, pad=1, stride=1), channels-last.

    x: (B, H, W, C); offset: (B, H, W, G, 9, 2) with (y, x) interleaved per tap (the
    layout mmcv's CUDA kernel assigns to the concatenated (o1, o2) tensor);
    mask: (B, H, W, G, 9).  Returns masked columns (B*H*W, 9*c_pad) in bf16, tap-major.
    """
    # TODO(synk): the bilinear gather has no clean Pallas TPU equivalent (data-dependent
    # per-pixel addresses); it stays in XLA and is only traced when conv_offset weights
    # are non-zero (never for the module's own zero initialisation).
    B, H, W, C = x.shape
    G = groups
    cpg = C // G
    kys = jnp.repeat(jnp.arange(3, dtype=jnp.float32), 3)          # tap = ky*3 + kx
    kxs = jnp.tile(jnp.arange(3, dtype=jnp.float32), 3)
    base_y = jnp.arange(H, dtype=jnp.float32)[:, None] - 1.0 + kys[None, :]   # (H, 9)
    base_x = jnp.arange(W, dtype=jnp.float32)[:, None] - 1.0 + kxs[None, :]   # (W, 9)
    sy = base_y[None, :, None, None, :] + offset[..., 0]            # (B, H, W, G, 9)
    sx = base_x[None, None, :, None, :] + offset[..., 1]

    def sample(img, ys, xs, ms):
        # img: (H, W, cpg); ys/xs/ms: (H, W, 9) -> (H, W, 9, cpg) bilinear, zero pad.
        y0 = jnp.floor(ys)
        x0 = jnp.floor(xs)

        def gat(yi, xi):
            valid = (yi >= 0) & (yi < H) & (xi >= 0) & (xi < W)
            yc = jnp.clip(yi, 0, H - 1).astype(jnp.int32)
            xc = jnp.clip(xi, 0, W - 1).astype(jnp.int32)
            return img[yc, xc] * valid[..., None]

        wy1, wx1 = ys - y0, xs - x0
        wy0, wx0 = 1.0 - wy1, 1.0 - wx1
        v = (gat(y0, x0) * (wy0 * wx0)[..., None]
             + gat(y0, x0 + 1.0) * (wy0 * wx1)[..., None]
             + gat(y0 + 1.0, x0) * (wy1 * wx0)[..., None]
             + gat(y0 + 1.0, x0 + 1.0) * (wy1 * wx1)[..., None])
        return v * ms[..., None]

    xg = x.reshape(B, H, W, G, cpg)
    per_group = jax.vmap(sample, in_axes=(2, 2, 2, 2), out_axes=2)          # over G
    samp = jax.vmap(per_group, in_axes=(0, 0, 0, 0))(xg, sy, sx, mask)      # (B,H,W,G,9,cpg)
    cols = jnp.transpose(samp, (0, 1, 2, 4, 3, 5)).reshape(B, H, W, 9, C)
    if c_pad != C:
        cols = jnp.pad(cols, ((0, 0), (0, 0), (0, 0), (0, 0), (0, c_pad - C)))
    return cols.reshape(B * H * W, 9 * c_pad).astype(jnp.bfloat16)


# ------------------------------ parameters ----------------------------------

def _rup128(n):
    return ((n + 127) // 128) * 128


def _pad1(a, n):
    return jnp.pad(a, (0, n - a.shape[0])).astype(jnp.float32)


def _pad2(a, rows, cols):
    r, c = a.shape
    return jnp.pad(a, ((0, rows - r), (0, cols - c)))


def _conv3_to_mat(w, cin_pad, cout_pad):
    """(Cout, Cin, 3, 3) conv weight -> (9*cin_pad, cout_pad) matmul weight matching the
    tap-major im2col column order (column = tap*cin_pad + c)."""
    cout, cin, _, _ = w.shape
    wt = jnp.transpose(w, (2, 3, 1, 0))                              # (3, 3, Cin, Cout)
    wt = jnp.pad(wt, ((0, 0), (0, 0), (0, cin_pad - cin), (0, cout_pad - cout)))
    return wt.reshape(9 * cin_pad, cout_pad)


def init_params(key, inplanes, planes, deform_groups=8, eps=1e-5):
    """Random module parameters; BatchNorms are eval-mode and stored folded (scale, shift)."""
    C = planes
    ks = jax.random.split(key, 12)

    def bn(k, c):
        k1, k2, k3, k4 = jax.random.split(k, 4)
        gamma = 1.0 + 0.1 * jax.random.normal(k1, (c,))
        beta = 0.1 * jax.random.normal(k2, (c,))
        mean = 0.1 * jax.random.normal(k3, (c,))
        var = jax.random.uniform(k4, (c,), minval=0.5, maxval=1.5)
        scale = gamma / jnp.sqrt(var + eps)
        shift = beta - mean * scale
        return scale.astype(jnp.float32), shift.astype(jnp.float32)

    p = {"planes": planes, "deform_groups": deform_groups}
    p["w1"] = 0.1 * jax.random.normal(ks[0], (C, inplanes))            # conv1 1x1, no bias
    p["bn1_scale"], p["bn1_shift"] = bn(ks[1], C)
    p["w_off"] = 0.05 * jax.random.normal(ks[2], (C, 2 * C, 3, 3))     # offset_conv, no bias
    nco = deform_groups * 3 * 9
    p["w_co"] = jnp.zeros((nco, C, 3, 3), jnp.float32)                 # conv_offset: zero init
    p["b_co"] = jnp.zeros((nco,), jnp.float32)
    p["w_dcn"] = 0.05 * jax.random.normal(ks[3], (C, C, 3, 3))         # DCN main weight
    p["b_dcn"] = 0.05 * jax.random.normal(ks[4], (C,))
    p["w_emb"] = 0.05 * jax.random.normal(ks[5], (C, C, 3, 3))         # emb_conv, no bias
    p["bn2_scale"], p["bn2_shift"] = bn(ks[6], C)
    p["w3"] = 0.1 * jax.random.normal(ks[7], (4 * C, C))               # conv3 1x1, no bias
    p["bn3_scale"], p["bn3_shift"] = bn(ks[8], 4 * C)
    return p


def prepare_params(params):
    """Build device-ready (lane-padded, transposed, bf16) matmul weights + folded BN."""
    C = params["planes"]
    G = params["deform_groups"]
    Cin = params["w1"].shape[1]
    Cp, C4p = _rup128(C), _rup128(4 * C)
    nco = 3 * G * 9
    bf = jnp.bfloat16

    prep = dict(C=C, Cp=Cp, C4p=C4p, Cin=Cin, G=G)
    prep["zero_offset"] = (not bool(jnp.any(params["w_co"]))) and \
                          (not bool(jnp.any(params["b_co"])))

    # conv1 (1x1) + folded norm1
    prep["w1"] = _pad2(params["w1"].T, Cin, Cp).astype(bf)
    prep["s1"] = _pad1(params["bn1_scale"], Cp)
    prep["b1"] = _pad1(params["bn1_shift"], Cp)
    # offset_conv split into the `out` half and the reference-frame half (hoist)
    w_off = params["w_off"]
    prep["w_off_cat"] = jnp.concatenate(
        [_conv3_to_mat(w_off[:, :C], Cp, Cp), _conv3_to_mat(w_off[:, C:], Cp, Cp)],
        axis=1).astype(bf)
    # dcn_pack.conv_offset (zero-initialised by the module) + main DCN weight
    prep["w_co"] = _conv3_to_mat(params["w_co"], Cp, nco).astype(bf)
    prep["b_co"] = params["b_co"].astype(jnp.float32)
    prep["w_dcn"] = _conv3_to_mat(params["w_dcn"], Cp, Cp).astype(bf)
    prep["b_dcn"] = _pad1(params["b_dcn"], Cp)
    prep["w_emb"] = _conv3_to_mat(params["w_emb"], Cp, Cp).astype(bf)
    # norm2 / conv3 / norm3
    prep["s2"] = _pad1(params["bn2_scale"], Cp)
    prep["b2"] = _pad1(params["bn2_shift"], Cp)
    prep["w3"] = _pad2(params["w3"].T, Cp, C4p).astype(bf)
    prep["s3"] = _pad1(params["bn3_scale"], C4p)
    prep["b3"] = _pad1(params["bn3_shift"], C4p)
    return prep


# -------------------------------- forward -----------------------------------

def layer_denoising_forward(x, prep):
    """x: (T, inplanes, H, W) float32 NCHW, exactly as the PyTorch module sees it."""
    T, Cin, H, W = x.shape
    C, Cp, C4p, G = prep["C"], prep["Cp"], prep["C4p"], prep["G"]
    assert Cin == 4 * C, "residual add requires inplanes == planes * expansion"
    M = T * H * W

    # --- module boundary: NCHW -> channels-last rows (only layout conversion points) ---
    x_cl = jnp.transpose(x, (0, 2, 3, 1))                            # (T, H, W, Cin)
    rows_x = x_cl.reshape(M, Cin).astype(jnp.bfloat16)

    # conv1 (1x1) + norm1 + relu  -> out: (T, H, W, Cp); padded channels stay 0.
    out_rows = matmul_affine(rows_x, prep["w1"], prep["s1"], prep["b1"], relu=True)
    out = out_rows.reshape(T, H, W, Cp)

    cols_out = im2col_3x3_cl(out.astype(jnp.bfloat16))               # (M, 9*Cp) bf16

    if prep["zero_offset"]:
        # conv_offset is zero-initialised: offsets == 0, mask == sigmoid(0) == 0.5, so the
        # modulated deformable conv reduces to 0.5*conv3x3(out, w_dcn) + b_dcn, which is
        # independent of the reference frame i -> computed once, outside the temporal loop.
        xdcn_rows = matmul_affine(cols_out, prep["w_dcn"],
                                  jnp.full((Cp,), 0.5, jnp.float32), prep["b_dcn"])
        x_dcn = xdcn_rows.reshape(T, H, W, Cp)
        prod = x_dcn[None, :] * out[:, None]                         # (Ti, T, H, W, Cp)
    else:
        # -------- general ModulatedDCNPack path (non-zero conv_offset weights) --------
        nco = 3 * G * 9
        # offset_conv(cat([out, out[i]])): the `out` half is i-invariant -> one matmul
        parts = matmul_affine(cols_out, prep["w_off_cat"],
                              jnp.ones((2 * Cp,), jnp.float32),
                              jnp.zeros((2 * Cp,), jnp.float32))     # (M, 2*Cp)
        top = parts[:, :Cp].reshape(T, H, W, Cp)                     # varies with frame t
        bot = parts[:, Cp:].reshape(T, H, W, Cp)                     # varies with ref i
        x_set = (top[None, :] + bot[:, None]).reshape(T * T, H, W, Cp)
        co = matmul_affine(im2col_3x3_cl(x_set.astype(jnp.bfloat16)), prep["w_co"],
                           jnp.ones((nco,), jnp.float32), prep["b_co"])
        co = co.reshape(T * T, H, W, nco)
        o1 = co[..., :G * 9]
        o2 = co[..., G * 9:2 * G * 9]
        mask = jax.nn.sigmoid(co[..., 2 * G * 9:]).reshape(T * T, H, W, G, 9)
        offset = jnp.concatenate([o1, o2], axis=-1).reshape(T * T, H, W, G, 9, 2)
        x_rep = jnp.broadcast_to(out[None, ..., :C], (T, T, H, W, C)).reshape(T * T, H, W, C)
        dcols = deform_im2col_3x3_cl(x_rep, offset, mask, G, Cp)     # (T*T*H*W, 9*Cp)
        xdcn_rows = matmul_affine(dcols, prep["w_dcn"],
                                  jnp.ones((Cp,), jnp.float32), prep["b_dcn"])
        x_dcn = xdcn_rows.reshape(T, T, H, W, Cp)
        prod = x_dcn * out[:, None]                                  # (Ti, T, H, W, Cp)

    # emb_conv(x_dcn * x_ref) for all (i, t) frame pairs in ONE batched pallas_call.
    cols_prod = im2col_3x3_cl(prod.reshape(T * T, H, W, Cp).astype(jnp.bfloat16))
    xcor_rows = matmul_affine(cols_prod, prep["w_emb"],
                              jnp.ones((Cp,), jnp.float32), jnp.zeros((Cp,), jnp.float32))
    x_cor = xcor_rows.reshape(T, T, H * W * Cp)                      # (Ti, T, L)

    # softmax over the temporal axis + weighted sum with `out`, all i at once.
    fused = softmax_fuse(x_cor, out.reshape(T, H * W * Cp))          # (Ti, L)
    fused_rows = fused.reshape(M, Cp)

    # norm2 + relu (prologue) + conv3 (1x1) + norm3 + residual add + relu (one kernel).
    res_rows = x_cl.reshape(M, Cin)
    if C4p != Cin:
        res_rows = jnp.pad(res_rows, ((0, 0), (0, C4p - Cin)))
    y_rows = norm_matmul_res_relu(fused_rows, prep["w3"], prep["s2"], prep["b2"],
                                  prep["s3"], prep["b3"], res_rows)  # (M, C4p)
    y = y_rows.reshape(T, H, W, C4p)[..., :Cin]
    return jnp.transpose(y, (0, 3, 1, 2))                            # back to NCHW


# --------------------------------- main --------------------------------------

if __name__ == "__main__":
    # planes must be divisible by deform_groups (8); inplanes = planes*expansion so the
    # residual add is valid (as in the original module's usage).
    T, H, W = 2, 8, 8
    planes = 8
    inplanes = planes * 4                                            # 32

    key = jax.random.PRNGKey(0)
    k_x, k_p = jax.random.split(key)
    x = jax.random.normal(k_x, (T, inplanes, H, W), dtype=jnp.float32)
    params = init_params(k_p, inplanes, planes, deform_groups=8)
    prep = prepare_params(params)

    fwd = jax.jit(lambda xs: layer_denoising_forward(xs, prep))
    out = jax.block_until_ready(fwd(x))
    assert out.shape == (T, inplanes, H, W)
    assert bool(jnp.all(jnp.isfinite(out)))
    print("KERNEL_OK")
</pallas_src>

<mosaic_0001>
module attributes {stable_mosaic.version = 11 : i64} {
  func.func @_mm_affine_kernel(%arg0: i32, %arg1: memref<128x32xbf16, #tpu.memory_space<vmem>>, %arg2: memref<32x128xbf16, #tpu.memory_space<vmem>>, %arg3: memref<1x128xf32, #tpu.memory_space<vmem>>, %arg4: memref<1x128xf32, #tpu.memory_space<vmem>>, %arg5: memref<128x128xf32, #tpu.memory_space<vmem>>) attributes {dimension_semantics = [#tpu.dimension_semantics<parallel>], iteration_bounds = array<i64: 1>, scalar_prefetch = 0 : i64, scratch_operands = 0 : i64, tpu.core_type = #tpu.core_type<tc>, window_params = [{transform_indices = @transform_0, window_bounds = array<i64: 128, 32>}, {pipeline_mode = #tpu.pipeline_mode<synchronous>, transform_indices = @transform_1, window_bounds = array<i64: 32, 128>}, {pipeline_mode = #tpu.pipeline_mode<synchronous>, transform_indices = @transform_2, window_bounds = array<i64: 1, 128>}, {pipeline_mode = #tpu.pipeline_mode<synchronous>, transform_indices = @transform_3, window_bounds = array<i64: 1, 128>}, {transform_indices = @transform_4, window_bounds = array<i64: 128, 128>}]} {
    %c0 = arith.constant 0 : index
    %c0_0 = arith.constant 0 : index
    %0 = vector.load %arg1[%c0, %c0_0] : memref<128x32xbf16, #tpu.memory_space<vmem>>, vector<128x32xbf16>
    %c0_1 = arith.constant 0 : index
    %c0_2 = arith.constant 0 : index
    %1 = vector.load %arg2[%c0_1, %c0_2] : memref<32x128xbf16, #tpu.memory_space<vmem>>, vector<32x128xbf16>
    %cst = arith.constant dense<0.000000e+00> : vector<128x128xf32>
    %2 = tpu.matmul %0, %1, %cst {dimension_numbers = #tpu.dot_dimension_numbers<[1], [0], [0], [1], [0, 0, 1, 1], [], []>} : vector<128x32xbf16>, vector<32x128xbf16>, vector<128x128xf32> -> vector<128x128xf32>
    %c0_3 = arith.constant 0 : index
    %c0_4 = arith.constant 0 : index
    %3 = vector.load %arg3[%c0_3, %c0_4] : memref<1x128xf32, #tpu.memory_space<vmem>>, vector<1x128xf32>
    %4 = vector.broadcast %3 : vector<1x128xf32> to vector<128x128xf32>
    %5 = arith.mulf %2, %4 : vector<128x128xf32>
    %c0_5 = arith.constant 0 : index
    %c0_6 = arith.constant 0 : index
    %6 = vector.load %arg4[%c0_5, %c0_6] : memref<1x128xf32, #tpu.memory_space<vmem>>, vector<1x128xf32>
    %7 = vector.broadcast %6 : vector<1x128xf32> to vector<128x128xf32>
    %8 = arith.addf %5, %7 : vector<128x128xf32>
    %cst_7 = arith.constant 0.000000e+00 : f32
    %9 = vector.broadcast %cst_7 : f32 to vector<128x128xf32>
    %10 = arith.maximumf %8, %9 : vector<128x128xf32>
    %c0_8 = arith.constant 0 : index
    %c0_9 = arith.constant 0 : index
    %11 = vector.load %arg5[%c0_8, %c0_9] : memref<128x128xf32, #tpu.memory_space<vmem>>, vector<128x128xf32>
    tpu.vector_store %arg5[%c0_8, %c0_9], %10 {strides = array<i32>} : memref<128x128xf32, #tpu.memory_space<vmem>>, vector<128x128xf32>,
    return
  }
  func.func @transform_0(%arg0: i32) -> (i32, i32) {
    %c0_i32 = arith.constant 0 : i32
    %c0_i32_0 = arith.constant 0 : i32
    return %arg0, %c0_i32 : i32, i32
  }
  func.func @transform_1(%arg0: i32) -> (i32, i32) {
    %c0_i32 = arith.constant 0 : i32
    %c0_i32_0 = arith.constant 0 : i32
    %c0_i32_1 = arith.constant 0 : i32
    return %c0_i32, %c0_i32_0 : i32, i32
  }
  func.func @transform_2(%arg0: i32) -> (i32, i32) {
    %c0_i32 = arith.constant 0 : i32
    %c0_i32_0 = arith.constant 0 : i32
    %c0_i32_1 = arith.constant 0 : i32
    return %c0_i32, %c0_i32_0 : i32, i32
  }
  func.func @transform_3(%arg0: i32) -> (i32, i32) {
    %c0_i32 = arith.constant 0 : i32
    %c0_i32_0 = arith.constant 0 : i32
    %c0_i32_1 = arith.constant 0 : i32
    return %c0_i32, %c0_i32_0 : i32, i32
  }
  func.func @transform_4(%arg0: i32) -> (i32, i32) {
    %c0_i32 = arith.constant 0 : i32
    %c0_i32_0 = arith.constant 0 : i32
    return %arg0, %c0_i32 : i32, i32
  }
}

module attributes {stable_mosaic.version = 11 : i64} {
  func.func @_mm_affine_kernel(%arg0: i32, %arg1: memref<128x1152xbf16, #tpu.memory_space<vmem>>, %arg2: memref<1152x128xbf16, #tpu.memory_space<vmem>>, %arg3: memref<1x128xf32, #tpu.memory_space<vmem>>, %arg4: memref<1x128xf32, #tpu.memory_space<vmem>>, %arg5: memref<128x128xf32, #tpu.memory_space<vmem>>) attributes {dimension_semantics = [#tpu.dimension_semantics<parallel>], iteration_bounds = array<i64: 1>, scalar_prefetch = 0 : i64, scratch_operands = 0 : i64, tpu.core_type = #tpu.core_type<tc>, window_params = [{transform_indices = @transform_0, window_bounds = array<i64: 128, 1152>}, {pipeline_mode = #tpu.pipeline_mode<synchronous>, transform_indices = @transform_1, window_bounds = array<i64: 1152, 128>}, {pipeline_mode = #tpu.pipeline_mode<synchronous>, transform_indices = @transform_2, window_bounds = array<i64: 1, 128>}, {pipeline_mode = #tpu.pipeline_mode<synchronous>, transform_indices = @transform_3, window_bounds = array<i64: 1, 128>}, {transform_indices = @transform_4, window_bounds = array<i64: 128, 128>}]} {
    %c0 = arith.constant 0 : index
    %c0_0 = arith.constant 0 : index
    %0 = vector.load %arg1[%c0, %c0_0] : memref<128x1152xbf16, #tpu.memory_space<vmem>>, vector<128x1152xbf16>
    %c0_1 = arith.constant 0 : index
    %c0_2 = arith.constant 0 : index
    %1 = vector.load %arg2[%c0_1, %c0_2] : memref<1152x128xbf16, #tpu.memory_space<vmem>>, vector<1152x128xbf16>
    %cst = arith.constant dense<0.000000e+00> : vector<128x128xf32>
    %2 = tpu.matmul %0, %1, %cst {dimension_numbers = #tpu.dot_dimension_numbers<[1], [0], [0], [1], [0, 0, 1, 1], [], []>} : vector<128x1152xbf16>, vector<1152x128xbf16>, vector<128x128xf32> -> vector<128x128xf32>
    %c0_3 = arith.constant 0 : index
    %c0_4 = arith.constant 0 : index
    %3 = vector.load %arg3[%c0_3, %c0_4] : memref<1x128xf32, #tpu.memory_space<vmem>>, vector<1x128xf32>
    %4 = vector.broadcast %3 : vector<1x128xf32> to vector<128x128xf32>
    %5 = arith.mulf %2, %4 : vector<128x128xf32>
    %c0_5 = arith.constant 0 : index
    %c0_6 = arith.constant 0 : index
    %6 = vector.load %arg4[%c0_5, %c0_6] : memref<1x128xf32, #tpu.memory_space<vmem>>, vector<1x128xf32>
    %7 = vector.broadcast %6 : vector<1x128xf32> to vector<128x128xf32>
    %8 = arith.addf %5, %7 : vector<128x128xf32>
    %c0_7 = arith.constant 0 : index
    %c0_8 = arith.constant 0 : index
    %9 = vector.load %arg5[%c0_7, %c0_8] : memref<128x128xf32, #tpu.memory_space<vmem>>, vector<128x128xf32>
    tpu.vector_store %arg5[%c0_7, %c0_8], %8 {strides = array<i32>} : memref<128x128xf32, #tpu.memory_space<vmem>>, vector<128x128xf32>,
    return
  }
  func.func @transform_0(%arg0: i32) -> (i32, i32) {
    %c0_i32 = arith.constant 0 : i32
    %c0_i32_0 = arith.constant 0 : i32
    return %arg0, %c0_i32 : i32, i32
  }
  func.func @transform_1(%arg0: i32) -> (i32, i32) {
    %c0_i32 = arith.constant 0 : i32
    %c0_i32_0 = arith.constant 0 : i32
    %c0_i32_1 = arith.constant 0 : i32
    return %c0_i32, %c0_i32_0 : i32, i32
  }
  func.func @transform_2(%arg0: i32) -> (i32, i32) {
    %c0_i32 = arith.constant 0 : i32
    %c0_i32_0 = arith.constant 0 : i32
    %c0_i32_1 = arith.constant 0 : i32
    return %c0_i32, %c0_i32_0 : i32, i32
  }
  func.func @transform_3(%arg0: i32) -> (i32, i32) {
    %c0_i32 = arith.constant 0 : i32
    %c0_i32_0 = arith.constant 0 : i32
    %c0_i32_1 = arith.constant 0 : i32
    return %c0_i32, %c0_i32_0 : i32, i32
  }
  func.func @transform_4(%arg0: i32) -> (i32, i32) {
    %c0_i32 = arith.constant 0 : i32
    %c0_i32_0 = arith.constant 0 : i32
    return %arg0, %c0_i32 : i32, i32
  }
}

module attributes {stable_mosaic.version = 11 : i64} {
  func.func @_mm_affine_kernel(%arg0: i32, %arg1: memref<256x1152xbf16, #tpu.memory_space<vmem>>, %arg2: memref<1152x128xbf16, #tpu.memory_space<vmem>>, %arg3: memref<1x128xf32, #tpu.memory_space<vmem>>, %arg4: memref<1x128xf32, #tpu.memory_space<vmem>>, %arg5: memref<256x128xf32, #tpu.memory_space<vmem>>) attributes {dimension_semantics = [#tpu.dimension_semantics<parallel>], iteration_bounds = array<i64: 1>, scalar_prefetch = 0 : i64, scratch_operands = 0 : i64, tpu.core_type = #tpu.core_type<tc>, window_params = [{transform_indices = @transform_0, window_bounds = array<i64: 256, 1152>}, {pipeline_mode = #tpu.pipeline_mode<synchronous>, transform_indices = @transform_1, window_bounds = array<i64: 1152, 128>}, {pipeline_mode = #tpu.pipeline_mode<synchronous>, transform_indices = @transform_2, window_bounds = array<i64: 1, 128>}, {pipeline_mode = #tpu.pipeline_mode<synchronous>, transform_indices = @transform_3, window_bounds = array<i64: 1, 128>}, {transform_indices = @transform_4, window_bounds = array<i64: 256, 128>}]} {
    %c0 = arith.constant 0 : index
    %c0_0 = arith.constant 0 : index
    %0 = vector.load %arg1[%c0, %c0_0] : memref<256x1152xbf16, #tpu.memory_space<vmem>>, vector<256x1152xbf16>
    %c0_1 = arith.constant 0 : index
    %c0_2 = arith.constant 0 : index
    %1 = vector.load %arg2[%c0_1, %c0_2] : memref<1152x128xbf16, #tpu.memory_space<vmem>>, vector<1152x128xbf16>
    %cst = arith.constant dense<0.000000e+00> : vector<256x128xf32>
    %2 = tpu.matmul %0, %1, %cst {dimension_numbers = #tpu.dot_dimension_numbers<[1], [0], [0], [1], [0, 0, 1, 1], [], []>} : vector<256x1152xbf16>, vector<1152x128xbf16>, vector<256x128xf32> -> vector<256x128xf32>
    %c0_3 = arith.constant 0 : index
    %c0_4 = arith.constant 0 : index
    %3 = vector.load %arg3[%c0_3, %c0_4] : memref<1x128xf32, #tpu.memory_space<vmem>>, vector<1x128xf32>
    %4 = vector.broadcast %3 : vector<1x128xf32> to vector<256x128xf32>
    %5 = arith.mulf %2, %4 : vector<256x128xf32>
    %c0_5 = arith.constant 0 : index
    %c0_6 = arith.constant 0 : index
    %6 = vector.load %arg4[%c0_5, %c0_6] : memref<1x128xf32, #tpu.memory_space<vmem>>, vector<1x128xf32>
    %7 = vector.broadcast %6 : vector<1x128xf32> to vector<256x128xf32>
    %8 = arith.addf %5, %7 : vector<256x128xf32>
    %c0_7 = arith.constant 0 : index
    %c0_8 = arith.constant 0 : index
    %9 = vector.load %arg5[%c0_7, %c0_8] : memref<256x128xf32, #tpu.memory_space<vmem>>, vector<256x128xf32>
    tpu.vector_store %arg5[%c0_7, %c0_8], %8 {strides = array<i32>} : memref<256x128xf32, #tpu.memory_space<vmem>>, vector<256x128xf32>,
    return
  }
  func.func @transform_0(%arg0: i32) -> (i32, i32) {
    %c0_i32 = arith.constant 0 : i32
    %c0_i32_0 = arith.constant 0 : i32
    return %arg0, %c0_i32 : i32, i32
  }
  func.func @transform_1(%arg0: i32) -> (i32, i32) {
    %c0_i32 = arith.constant 0 : i32
    %c0_i32_0 = arith.constant 0 : i32
    %c0_i32_1 = arith.constant 0 : i32
    return %c0_i32, %c0_i32_0 : i32, i32
  }
  func.func @transform_2(%arg0: i32) -> (i32, i32) {
    %c0_i32 = arith.constant 0 : i32
    %c0_i32_0 = arith.constant 0 : i32
    %c0_i32_1 = arith.constant 0 : i32
    return %c0_i32, %c0_i32_0 : i32, i32
  }
  func.func @transform_3(%arg0: i32) -> (i32, i32) {
    %c0_i32 = arith.constant 0 : i32
    %c0_i32_0 = arith.constant 0 : i32
    %c0_i32_1 = arith.constant 0 : i32
    return %c0_i32, %c0_i32_0 : i32, i32
  }
  func.func @transform_4(%arg0: i32) -> (i32, i32) {
    %c0_i32 = arith.constant 0 : i32
    %c0_i32_0 = arith.constant 0 : i32
    return %arg0, %c0_i32 : i32, i32
  }
}

module attributes {stable_mosaic.version = 11 : i64} {
  func.func @_softmax_fuse_kernel(%arg0: i32, %arg1: i32, %arg2: memref<1x2x8192xf32, #tpu.memory_space<vmem>>, %arg3: memref<2x8192xf32, #tpu.memory_space<vmem>>, %arg4: memref<1x1x8192xf32, #tpu.memory_space<vmem>>) attributes {dimension_semantics = [#tpu.dimension_semantics<parallel>, #tpu.dimension_semantics<parallel>], iteration_bounds = array<i64: 2, 1>, scalar_prefetch = 0 : i64, scratch_operands = 0 : i64, tpu.core_type = #tpu.core_type<tc>, window_params = [{transform_indices = @transform_0, window_bounds = array<i64: 1, 2, 8192>}, {transform_indices = @transform_1, window_bounds = array<i64: 2, 8192>}, {transform_indices = @transform_2, window_bounds = array<i64: 1, 1, 8192>}]} {
    %c0 = arith.constant 0 : index
    %c0_0 = arith.constant 0 : index
    %c0_1 = arith.constant 0 : index
    %0 = vector.load %arg2[%c0, %c0_0, %c0_1] : memref<1x2x8192xf32, #tpu.memory_space<vmem>>, vector<1x2x8192xf32>
    %1 = vector.shape_cast %0 : vector<1x2x8192xf32> to vector<2x8192xf32>
    %c0_2 = arith.constant 0 : index
    %c0_3 = arith.constant 0 : index
    %2 = vector.load %arg3[%c0_2, %c0_3] : memref<2x8192xf32, #tpu.memory_space<vmem>>, vector<2x8192xf32>
    %cst = arith.constant dense<0xFF800000> : vector<8192xf32>
    %3 = vector.multi_reduction <maximumf>, %1, %cst [0] : vector<2x8192xf32> to vector<8192xf32>
    %4 = vector.shape_cast %3 : vector<8192xf32> to vector<1x8192xf32>
    %5 = vector.broadcast %4 : vector<1x8192xf32> to vector<2x8192xf32>
    %6 = arith.subf %1, %5 : vector<2x8192xf32>
    %7 = math.exp %6 : vector<2x8192xf32>
    %cst_4 = arith.constant dense<0.000000e+00> : vector<8192xf32>
    %8 = vector.multi_reduction <add>, %7, %cst_4 [0] : vector<2x8192xf32> to vector<8192xf32>
    %9 = vector.shape_cast %8 : vector<8192xf32> to vector<1x8192xf32>
    %10 = arith.mulf %7, %2 : vector<2x8192xf32>
    %cst_5 = arith.constant dense<0.000000e+00> : vector<8192xf32>
    %11 = vector.multi_reduction <add>, %10, %cst_5 [0] : vector<2x8192xf32> to vector<8192xf32>
    %12 = vector.shape_cast %11 : vector<8192xf32> to vector<1x8192xf32>
    %13 = tpu.reciprocal %9 {approx = true} : vector<1x8192xf32> -> vector<1x8192xf32>
    %14 = arith.mulf %12, %13 : vector<1x8192xf32>
    %c0_6 = arith.constant 0 : index
    %c0_7 = arith.constant 0 : index
    %c0_8 = arith.constant 0 : index
    %15 = vector.load %arg4[%c0_6, %c0_7, %c0_8] : memref<1x1x8192xf32, #tpu.memory_space<vmem>>, vector<1x1x8192xf32>
    %16 = vector.shape_cast %15 : vector<1x1x8192xf32> to vector<1x8192xf32>
    %17 = vector.shape_cast %14 : vector<1x8192xf32> to vector<1x1x8192xf32>
    tpu.vector_store %arg4[%c0_6, %c0_7, %c0_8], %17 {strides = array<i32>} : memref<1x1x8192xf32, #tpu.memory_space<vmem>>, vector<1x1x8192xf32>,
    return
  }
  func.func @transform_0(%arg0: i32, %arg1: i32) -> (i32, i32, i32) {
    %c0_i32 = arith.constant 0 : i32
    %c0_i32_0 = arith.constant 0 : i32
    return %arg0, %c0_i32, %arg1 : i32, i32, i32
  }
  func.func @transform_1(%arg0: i32, %arg1: i32) -> (i32, i32) {
    %c0_i32 = arith.constant 0 : i32
    %c0_i32_0 = arith.constant 0 : i32
    return %c0_i32, %arg1 : i32, i32
  }
  func.func @transform_2(%arg0: i32, %arg1: i32) -> (i32, i32, i32) {
    %c0_i32 = arith.constant 0 : i32
    %c0_i32_0 = arith.constant 0 : i32
    return %arg0, %c0_i32, %arg1 : i32, i32, i32
  }
}

module attributes {stable_mosaic.version = 11 : i64} {
  func.func @_norm_mm_res_kernel(%arg0: i32, %arg1: memref<128x128xf32, #tpu.memory_space<vmem>>, %arg2: memref<128x128xbf16, #tpu.memory_space<vmem>>, %arg3: memref<1x128xf32, #tpu.memory_space<vmem>>, %arg4: memref<1x128xf32, #tpu.memory_space<vmem>>, %arg5: memref<1x128xf32, #tpu.memory_space<vmem>>, %arg6: memref<1x128xf32, #tpu.memory_space<vmem>>, %arg7: memref<128x128xf32, #tpu.memory_space<vmem>>, %arg8: memref<128x128xf32, #tpu.memory_space<vmem>>) attributes {dimension_semantics = [#tpu.dimension_semantics<parallel>], iteration_bounds = array<i64: 1>, scalar_prefetch = 0 : i64, scratch_operands = 0 : i64, tpu.core_type = #tpu.core_type<tc>, window_params = [{transform_indices = @transform_0, window_bounds = array<i64: 128, 128>}, {pipeline_mode = #tpu.pipeline_mode<synchronous>, transform_indices = @transform_1, window_bounds = array<i64: 128, 128>}, {pipeline_mode = #tpu.pipeline_mode<synchronous>, transform_indices = @transform_2, window_bounds = array<i64: 1, 128>}, {pipeline_mode = #tpu.pipeline_mode<synchronous>, transform_indices = @transform_3, window_bounds = array<i64: 1, 128>}, {pipeline_mode = #tpu.pipeline_mode<synchronous>, transform_indices = @transform_4, window_bounds = array<i64: 1, 128>}, {pipeline_mode = #tpu.pipeline_mode<synchronous>, transform_indices = @transform_5, window_bounds = array<i64: 1, 128>}, {transform_indices = @transform_6, window_bounds = array<i64: 128, 128>}, {transform_indices = @transform_7, window_bounds = array<i64: 128, 128>}]} {
    %c0 = arith.constant 0 : index
    %c0_0 = arith.constant 0 : index
    %0 = vector.load %arg1[%c0, %c0_0] : memref<128x128xf32, #tpu.memory_space<vmem>>, vector<128x128xf32>
    %c0_1 = arith.constant 0 : index
    %c0_2 = arith.constant 0 : index
    %1 = vector.load %arg3[%c0_1, %c0_2] : memref<1x128xf32, #tpu.memory_space<vmem>>, vector<1x128xf32>
    %2 = vector.broadcast %1 : vector<1x128xf32> to vector<128x128xf32>
    %3 = arith.mulf %0, %2 : vector<128x128xf32>
    %c0_3 = arith.constant 0 : index
    %c0_4 = arith.constant 0 : index
    %4 = vector.load %arg4[%c0_3, %c0_4] : memref<1x128xf32, #tpu.memory_space<vmem>>, vector<1x128xf32>
    %5 = vector.broadcast %4 : vector<1x128xf32> to vector<128x128xf32>
    %6 = arith.addf %3, %5 : vector<128x128xf32>
    %cst = arith.constant 0.000000e+00 : f32
    %7 = vector.broadcast %cst : f32 to vector<128x128xf32>
    %8 = arith.maximumf %6, %7 : vector<128x128xf32>
    %9 = arith.truncf %8 : vector<128x128xf32> to vector<128x128xbf16>
    %c0_5 = arith.constant 0 : index
    %c0_6 = arith.constant 0 : index
    %10 = vector.load %arg2[%c0_5, %c0_6] : memref<128x128xbf16, #tpu.memory_space<vmem>>, vector<128x128xbf16>
    %cst_7 = arith.constant dense<0.000000e+00> : vector<128x128xf32>
    %11 = tpu.matmul %9, %10, %cst_7 {dimension_numbers = #tpu.dot_dimension_numbers<[1], [0], [0], [1], [0, 0, 1, 1], [], []>} : vector<128x128xbf16>, vector<128x128xbf16>, vector<128x128xf32> -> vector<128x128xf32>
    %c0_8 = arith.constant 0 : index
    %c0_9 = arith.constant 0 : index
    %12 = vector.load %arg5[%c0_8, %c0_9] : memref<1x128xf32, #tpu.memory_space<vmem>>, vector<1x128xf32>
    %13 = vector.broadcast %12 : vector<1x128xf32> to vector<128x128xf32>
    %14 = arith.mulf %11, %13 : vector<128x128xf32>
    %c0_10 = arith.constant 0 : index
    %c0_11 = arith.constant 0 : index
    %15 = vector.load %arg6[%c0_10, %c0_11] : memref<1x128xf32, #tpu.memory_space<vmem>>, vector<1x128xf32>
    %16 = vector.broadcast %15 : vector<1x128xf32> to vector<128x128xf32>
    %17 = arith.addf %14, %16 : vector<128x128xf32>
    %c0_12 = arith.constant 0 : index
    %c0_13 = arith.constant 0 : index
    %18 = vector.load %arg7[%c0_12, %c0_13] : memref<128x128xf32, #tpu.memory_space<vmem>>, vector<128x128xf32>
    %19 = arith.addf %17, %18 : vector<128x128xf32>
    %cst_14 = arith.constant 0.000000e+00 : f32
    %20 = vector.broadcast %cst_14 : f32 to vector<128x128xf32>
    %21 = arith.maximumf %19, %20 : vector<128x128xf32>
    %c0_15 = arith.constant 0 : index
    %c0_16 = arith.constant 0 : index
    %22 = vector.load %arg8[%c0_15, %c0_16] : memref<128x128xf32, #tpu.memory_space<vmem>>, vector<128x128xf32>
    tpu.vector_store %arg8[%c0_15, %c0_16], %21 {strides = array<i32>} : memref<128x128xf32, #tpu.memory_space<vmem>>, vector<128x128xf32>,
    return
  }
  func.func @transform_0(%arg0: i32) -> (i32, i32) {
    %c0_i32 = arith.constant 0 : i32
    %c0_i32_0 = arith.constant 0 : i32
    return %arg0, %c0_i32 : i32, i32
  }
  func.func @transform_1(%arg0: i32) -> (i32, i32) {
    %c0_i32 = arith.constant 0 : i32
    %c0_i32_0 = arith.constant 0 : i32
    %c0_i32_1 = arith.constant 0 : i32
    return %c0_i32, %c0_i32_0 : i32, i32
  }
  func.func @transform_2(%arg0: i32) -> (i32, i32) {
    %c0_i32 = arith.constant 0 : i32
    %c0_i32_0 = arith.constant 0 : i32
    %c0_i32_1 = arith.constant 0 : i32
    return %c0_i32, %c0_i32_0 : i32, i32
  }
  func.func @transform_3(%arg0: i32) -> (i32, i32) {
    %c0_i32 = arith.constant 0 : i32
    %c0_i32_0 = arith.constant 0 : i32
    %c0_i32_1 = arith.constant 0 : i32
    return %c0_i32, %c0_i32_0 : i32, i32
  }
  func.func @transform_4(%arg0: i32) -> (i32, i32) {
    %c0_i32 = arith.constant 0 : i32
    %c0_i32_0 = arith.constant 0 : i32
    %c0_i32_1 = arith.constant 0 : i32
    return %c0_i32, %c0_i32_0 : i32, i32
  }
  func.func @transform_5(%arg0: i32) -> (i32, i32) {
    %c0_i32 = arith.constant 0 : i32
    %c0_i32_0 = arith.constant 0 : i32
    %c0_i32_1 = arith.constant 0 : i32
    return %c0_i32, %c0_i32_0 : i32, i32
  }
  func.func @transform_6(%arg0: i32) -> (i32, i32) {
    %c0_i32 = arith.constant 0 : i32
    %c0_i32_0 = arith.constant 0 : i32
    return %arg0, %c0_i32 : i32, i32
  }
  func.func @transform_7(%arg0: i32) -> (i32, i32) {
    %c0_i32 = arith.constant 0 : i32
    %c0_i32_0 = arith.constant 0 : i32
    return %arg0, %c0_i32 : i32, i32
  }
}

</mosaic_0001>

<llo_original>
// kernel: _lambda_.5
$region0: #{_lambda_.5}
  #allocation0 [shape = 'u32[]', space=smem, size = 0x4, offset = 0x4, fixed_abs, tag = 'smem constant byte address 0x4 - core index']
  #allocation1 [shape = 'u32[72,128]{1,0:T(1,128)}', space=vmem, size = 0x9000, scoped, tag = 'internal scratch']
  %s0 = inlined_call_operand.vmem [shape: bf16[128,32], index: 0, kind: input, shape index: {}]
  %s1 = inlined_call_operand.vmem [shape: bf16[32,128], index: 1, kind: input, shape index: {}]
  %s2 = inlined_call_operand.vmem [shape: f32[1,128], index: 2, kind: input, shape index: {}]
  %s3 = inlined_call_operand.vmem [shape: f32[1,128], index: 3, kind: input, shape index: {}]
  %s4 = inlined_call_operand.vmem [shape: f32[128,128], index: 4, kind: output, shape index: {}]
  %s5 = sld [smem:[#allocation0]]
  $region26: #{_lambda_.5} parent=0
    _
  %s7 = ssub.s32 1, %s5
  %s8 = scalar_select 0, %s7, %s5
  // Predicated region
  $region2: #{_lambda_.5} parent=0 // pred_check
    _
  $region3: #{_lambda_.5} parent=0 // pred_check_branch
    %10 = sbr.rel (0) target = $region5
  $region4: #{_lambda_.5} parent=0 // pred_region
    _
  $region5: #{_lambda_.5} parent=0 // pred_fallthru
    _
  // Predicated region
  $region6: #{_lambda_.5} parent=0 // pred_check
    _
  $region7: #{_lambda_.5} parent=0 // pred_check_branch
    %12 = sbr.rel (0) target = $region9
  $region8: #{_lambda_.5} parent=0 // pred_region
    _
  $region9: #{_lambda_.5} parent=0 // pred_fallthru
    _
  // Predicated region
  $region10: #{_lambda_.5} parent=0 // pred_check
    _
  $region11: #{_lambda_.5} parent=0 // pred_check_branch
    %14 = sbr.rel (0) target = $region13
  $region12: #{_lambda_.5} parent=0 // pred_region
    _
  $region13: #{_lambda_.5} parent=0 // pred_fallthru
    _
  // Predicated region
  $region14: #{_lambda_.5} parent=0 // pred_check
    _
  $region15: #{_lambda_.5} parent=0 // pred_check_branch
    %16 = sbr.rel (0) target = $region17
  $region16: #{_lambda_.5} parent=0 // pred_region
    _
  $region17: #{_lambda_.5} parent=0 // pred_fallthru
    _
  %v18 = vld [vmem:[%s0] sm:$0xf]
  %v19 = vld [vmem:[%s0 + $0x4] sm:$0xf]
  %v20 = vld [vmem:[%s0 + $0x8] sm:$0xf]
  %v21 = vld [vmem:[%s0 + $0xc] sm:$0xf]
  %v22 = vld [vmem:[%s0 + $0x10] sm:$0xf]
  %v23 = vld [vmem:[%s0 + $0x14] sm:$0xf]
  %v24 = vld [vmem:[%s0 + $0x18] sm:$0xf]
  %v25 = vld [vmem:[%s0 + $0x1c] sm:$0xf]
  %v26 = vld [vmem:[%s0 + $0x20] sm:$0xf]
  %v27 = vld [vmem:[%s0 + $0x24] sm:$0xf]
  %v28 = vld [vmem:[%s0 + $0x28] sm:$0xf]
  %v29 = vld [vmem:[%s0 + $0x2c] sm:$0xf]
  %v30 = vld [vmem:[%s0 + $0x30] sm:$0xf]
  %v31 = vld [vmem:[%s0 + $0x34] sm:$0xf]
  %v32 = vld [vmem:[%s0 + $0x38] sm:$0xf]
  %v33 = vld [vmem:[%s0 + $0x3c] sm:$0xf]
  %v34 = vld [vmem:[%s1] sm:$0xf]
  %v35 = vld [vmem:[%s1 + $0x4] sm:$0xf]
  %v36 = vld [vmem:[%s1 + $0x8] sm:$0xf]
  %v37 = vld [vmem:[%s1 + $0xc] sm:$0xf]
  %v54 = vunpack.c.l.b16 %v18
  %v55 = vunpack.c.l.b16 %v19
  %v56 = vunpack.c.l.b16 %v20
  %v57 = vunpack.c.l.b16 %v21
  %v58 = vunpack.c.l.b16 %v22
  %v59 = vunpack.c.l.b16 %v23
  %v60 = vunpack.c.l.b16 %v24
  %v61 = vunpack.c.l.b16 %v25
  %v62 = vunpack.c.l.b16 %v26
  %v63 = vunpack.c.l.b16 %v27
  %v64 = vunpack.c.l.b16 %v28
  %v65 = vunpack.c.l.b16 %v29
  %v66 = vunpack.c.l.b16 %v30
  %v67 = vunpack.c.l.b16 %v31
  %v68 = vunpack.c.l.b16 %v32
  %v69 = vunpack.c.l.b16 %v33
  %v70 = vpack.c.b16 %v55, %v54
  %v71 = vpack.c.b16 %v57, %v56
  %v72 = vpack.c.b16 %v59, %v58
  %v73 = vpack.c.b16 %v61, %v60
  %v74 = vpack.c.b16 %v63, %v62
  %v75 = vpack.c.b16 %v65, %v64
  %v76 = vpack.c.b16 %v67, %v66
  %v77 = vpack.c.b16 %v69, %v68
  %v82 = vunpack.c.l.b16 %v34
  %v83 = vunpack.c.l.b16 %v35
  %v84 = vunpack.c.l.b16 %v36
  %v85 = vunpack.c.l.b16 %v37
  %v86 = vpack.c.b16 %v83, %v82
  %v87 = vpack.c.b16 %v85, %v84
  %vm90 = vcmask 261120
  %v92 = vsel %vm90, %v70, 0
  %v95 = vsel %vm90, %v71, 0
  %v98 = vsel %vm90, %v72, 0
  %v101 = vsel %vm90, %v73, 0
  %v104 = vsel %vm90, %v74, 0
  %v107 = vsel %vm90, %v75, 0
  %v110 = vsel %vm90, %v76, 0
  %v113 = vsel %vm90, %v77, 0
  %115 = vmatpush.bf16.msra.mxu0 0
  %116 = vmatpush.bf16.msra.mxu0 0
  %117 = vmatpush.bf16.msra.mxu0 0
  %118 = vmatpush.bf16.msra.mxu0 0
  %119 = vmatpush.bf16.msra.mxu0 0
  %120 = vmatpush.bf16.msra.mxu0 0
  %121 = vmatpush.bf16.msra.mxu0 %v87
  %122 = vmatpush.bf16.msra.mxu0 %v86
  %123 = vmatmul.bf16.gmra.mxu0 %v92
  %v124 = vpop.f32.mrf.mxu0
  %v125 = vadd.f32 0.0, %v124
  %v126 = vpop.f32.mrf.mxu0
  %v127 = vadd.f32 0.0, %v126
  %128 = vmatmul.bf16.gmra.mxu0 %v95
  %v129 = vpop.f32.mrf.mxu0
  %v130 = vadd.f32 0.0, %v129
  %v131 = vpop.f32.mrf.mxu0
  %v132 = vadd.f32 0.0, %v131
  %133 = vmatmul.bf16.gmra.mxu0 %v98
  %v134 = vpop.f32.mrf.mxu0
  %v135 = vadd.f32 0.0, %v134
  %v136 = vpop.f32.mrf.mxu0
  %v137 = vadd.f32 0.0, %v136
  %138 = vmatmul.bf16.gmra.mxu0 %v101
  %v139 = vpop.f32.mrf.mxu0
  %v140 = vadd.f32 0.0, %v139
  %v141 = vpop.f32.mrf.mxu0
  %v142 = vadd.f32 0.0, %v141
  %143 = vmatmul.bf16.gmra.mxu0 %v104
  %v144 = vpop.f32.mrf.mxu0
  %v145 = vadd.f32 0.0, %v144
  %v146 = vpop.f32.mrf.mxu0
  %v147 = vadd.f32 0.0, %v146
  %148 = vmatmul.bf16.gmra.mxu0 %v107
  %v149 = vpop.f32.mrf.mxu0
  %v150 = vadd.f32 0.0, %v149
  %v151 = vpop.f32.mrf.mxu0
  %v152 = vadd.f32 0.0, %v151
  %153 = vmatmul.bf16.gmra.mxu0 %v110
  %v154 = vpop.f32.mrf.mxu0
  %v155 = vadd.f32 0.0, %v154
  %v156 = vpop.f32.mrf.mxu0
  %v157 = vadd.f32 0.0, %v156
  %158 = vmatmul.bf16.gmra.mxu0 %v113
  %v159 = vpop.f32.mrf.mxu0
  %v160 = vadd.f32 0.0, %v159
  %v161 = vpop.f32.mrf.mxu0
  %v162 = vadd.f32 0.0, %v161
  %163 = vdwg.mxu0
  %v164 = vld [vmem:[%s2] sm:$0x1]
  %v166 = vperm.slane %v164, 0
  %v168 = vmul.f32 %v125, %v166
  %v169 = vmul.f32 %v127, %v166
  %v170 = vmul.f32 %v130, %v166
  %v171 = vmul.f32 %v132, %v166
  %v172 = vmul.f32 %v135, %v166
  %v173 = vmul.f32 %v137, %v166
  %v174 = vmul.f32 %v140, %v166
  %v175 = vmul.f32 %v142, %v166
  %v176 = vmul.f32 %v145, %v166
  %v177 = vmul.f32 %v147, %v166
  %v178 = vmul.f32 %v150, %v166
  %v179 = vmul.f32 %v152, %v166
  %v180 = vmul.f32 %v155, %v166
  %v181 = vmul.f32 %v157, %v166
  %v182 = vmul.f32 %v160, %v166
  %v183 = vmul.f32 %v162, %v166
  %v184 = vld [vmem:[%s3] sm:$0x1]
  %v186 = vperm.slane %v184, 0
  %v188 = vadd.f32 %v168, %v186
  %v189 = vadd.f32 %v169, %v186
  %v190 = vadd.f32 %v170, %v186
  %v191 = vadd.f32 %v171, %v186
  %v192 = vadd.f32 %v172, %v186
  %v193 = vadd.f32 %v173, %v186
  %v194 = vadd.f32 %v174, %v186
  %v195 = vadd.f32 %v175, %v186
  %v196 = vadd.f32 %v176, %v186
  %v197 = vadd.f32 %v177, %v186
  %v198 = vadd.f32 %v178, %v186
  %v199 = vadd.f32 %v179, %v186
  %v200 = vadd.f32 %v180, %v186
  %v201 = vadd.f32 %v181, %v186
  %v202 = vadd.f32 %v182, %v186
  %v203 = vadd.f32 %v183, %v186
  %v204 = vmax.f32 %v188, 0.0
  %v205 = vmax.f32 %v189, 0.0
  %v206 = vmax.f32 %v190, 0.0
  %v207 = vmax.f32 %v191, 0.0
  %v208 = vmax.f32 %v192, 0.0
  %v209 = vmax.f32 %v193, 0.0
  %v210 = vmax.f32 %v194, 0.0
  %v211 = vmax.f32 %v195, 0.0
  %v212 = vmax.f32 %v196, 0.0
  %v213 = vmax.f32 %v197, 0.0
  %v214 = vmax.f32 %v198, 0.0
  %v215 = vmax.f32 %v199, 0.0
  %v216 = vmax.f32 %v200, 0.0
  %v217 = vmax.f32 %v201, 0.0
  %v218 = vmax.f32 %v202, 0.0
  %v219 = vmax.f32 %v203, 0.0
  %220 = vst [vmem:[%s4] sm:$0xff] %v204
  %221 = vst [vmem:[%s4 + $0x8] sm:$0xff] %v205
  %222 = vst [vmem:[%s4 + $0x10] sm:$0xff] %v206
  %223 = vst [vmem:[%s4 + $0x18] sm:$0xff] %v207
  %224 = vst [vmem:[%s4 + $0x20] sm:$0xff] %v208
  %225 = vst [vmem:[%s4 + $0x28] sm:$0xff] %v209
  %226 = vst [vmem:[%s4 + $0x30] sm:$0xff] %v210
  %227 = vst [vmem:[%s4 + $0x38] sm:$0xff] %v211
  %228 = vst [vmem:[%s4 + $0x40] sm:$0xff] %v212
  %229 = vst [vmem:[%s4 + $0x48] sm:$0xff] %v213
  %230 = vst [vmem:[%s4 + $0x50] sm:$0xff] %v214
  %231 = vst [vmem:[%s4 + $0x58] sm:$0xff] %v215
  %232 = vst [vmem:[%s4 + $0x60] sm:$0xff] %v216
  %233 = vst [vmem:[%s4 + $0x68] sm:$0xff] %v217
  %234 = vst [vmem:[%s4 + $0x70] sm:$0xff] %v218
  %235 = vst [vmem:[%s4 + $0x78] sm:$0xff] %v219
  // Predicated region
  $region18: #{_lambda_.5} parent=0 // pred_check
    _
  $region19: #{_lambda_.5} parent=0 // pred_check_branch
    %237 = sbr.rel (0) target = $region21
  $region20: #{_lambda_.5} parent=0 // pred_region
    _
  $region21: #{_lambda_.5} parent=0 // pred_fallthru
    _
  // Predicated region
  $region22: #{_lambda_.5} parent=0 // pred_check
    _
  $region23: #{_lambda_.5} parent=0 // pred_check_branch
    %239 = sbr.rel (0) target = $region25
  $region24: #{_lambda_.5} parent=0 // pred_region
    _
  $region25: #{_lambda_.5} parent=0 // pred_fallthru
    _

// kernel: _lambda_.6
$region0: #{_lambda_.6}
  #allocation0 [shape = 'u32[]', space=smem, size = 0x4, offset = 0x4, fixed_abs, tag = 'smem constant byte address 0x4 - core index']
  #allocation1 [shape = 'u32[72,128]{1,0:T(1,128)}', space=vmem, size = 0x9000, scoped, tag = 'internal scratch']
  %s0 = inlined_call_operand.vmem [shape: bf16[128,1152], index: 0, kind: input, shape index: {}]
  %s1 = inlined_call_operand.vmem [shape: bf16[1152,128], index: 1, kind: input, shape index: {}]
  %s2 = inlined_call_operand.vmem [shape: f32[1,128], index: 2, kind: input, shape index: {}]
  %s3 = inlined_call_operand.vmem [shape: f32[1,128], index: 3, kind: input, shape index: {}]
  %s4 = inlined_call_operand.vmem [shape: f32[128,128], index: 4, kind: output, shape index: {}]
  %s5 = sld [smem:[#allocation0]]
  $region26: #{_lambda_.6} parent=0
    _
  %s7 = ssub.s32 1, %s5
  %s8 = scalar_select 0, %s7, %s5
  // Predicated region
  $region2: #{_lambda_.6} parent=0 // pred_check
    _
  $region3: #{_lambda_.6} parent=0 // pred_check_branch
    %10 = sbr.rel (0) target = $region5
  $region4: #{_lambda_.6} parent=0 // pred_region
    _
  $region5: #{_lambda_.6} parent=0 // pred_fallthru
    _
  // Predicated region
  $region6: #{_lambda_.6} parent=0 // pred_check
    _
  $region7: #{_lambda_.6} parent=0 // pred_check_branch
    %12 = sbr.rel (0) target = $region9
  $region8: #{_lambda_.6} parent=0 // pred_region
    _
  $region9: #{_lambda_.6} parent=0 // pred_fallthru
    _
  // Predicated region
  $region10: #{_lambda_.6} parent=0 // pred_check
    _
  $region11: #{_lambda_.6} parent=0 // pred_check_branch
    %14 = sbr.rel (0) target = $region13
  $region12: #{_lambda_.6} parent=0 // pred_region
    _
  $region13: #{_lambda_.6} parent=0 // pred_fallthru
    _
  // Predicated region
  $region14: #{_lambda_.6} parent=0 // pred_check
    _
  $region15: #{_lambda_.6} parent=0 // pred_check_branch
    %16 = sbr.rel (0) target = $region17
  $region16: #{_lambda_.6} parent=0 // pred_region
    _
  $region17: #{_lambda_.6} parent=0 // pred_fallthru
    _
  %v17 = vld [vmem:[%s0] sm:$0xff]
  %v18 = vld [vmem:[%s0 + $0x8] sm:$0xff]
  %v19 = vld [vmem:[%s0 + $0x10] sm:$0xff]
  %v20 = vld [vmem:[%s0 + $0x18] sm:$0xff]
  %v21 = vld [vmem:[%s0 + $0x20] sm:$0xf]
  %v22 = vld [vmem:[%s0 + $0x24] sm:$0xff]
  %v23 = vld [vmem:[%s0 + $0x2c] sm:$0xff]
  %v24 = vld [vmem:[%s0 + $0x34] sm:$0xff]
  %v25 = vld [vmem:[%s0 + $0x3c] sm:$0xff]
  %v26 = vld [vmem:[%s0 + $0x44] sm:$0xf]
  %v27 = vld [vmem:[%s0 + $0x48] sm:$0xff]
  %v28 = vld [vmem:[%s0 + $0x50] sm:$0xff]
  %v29 = vld [vmem:[%s0 + $0x58] sm:$0xff]
  %v30 = vld [vmem:[%s0 + $0x60] sm:$0xff]
  %v31 = vld [vmem:[%s0 + $0x68] sm:$0xf]
  %v32 = vld [vmem:[%s0 + $0x6c] sm:$0xff]
  %v33 = vld [vmem:[%s0 + $0x74] sm:$0xff]
  %v34 = vld [vmem:[%s0 + $0x7c] sm:$0xff]
  %v35 = vld [vmem:[%s0 + $0x84] sm:$0xff]
  %v36 = vld [vmem:[%s0 + $0x8c] sm:$0xf]
  %v37 = vld [vmem:[%s0 + $0x90] sm:$0xff]
  %v38 = vld [vmem:[%s0 + $0x98] sm:$0xff]
  %v39 = vld [vmem:[%s0 + $0xa0] sm:$0xff]
  %v40 = vld [vmem:[%s0 + $0xa8] sm:$0xff]
  %v41 = vld [vmem:[%s0 + $0xb0] sm:$0xf]
  %v42 = vld [vmem:[%s0 + $0xb4] sm:$0xff]
  %v43 = vld [vmem:[%s0 + $0xbc] sm:$0xff]
  %v44 = vld [vmem:[%s0 + $0xc4] sm:$0xff]
  %v45 = vld [vmem:[%s0 + $0xcc] sm:$0xff]
  %v46 = vld [vmem:[%s0 + $0xd4] sm:$0xf]
  %v47 = vld [vmem:[%s0 + $0xd8] sm:$0xff]
  %v48 = vld [vmem:[%s0 + $0xe0] sm:$0xff]
  %v49 = vld [vmem:[%s0 + $0xe8] sm:$0xff]
  %v50 = vld [vmem:[%s0 + $0xf0] sm:$0xff]
  %v51 = vld [vmem:[%s0 + $0xf8] sm:$0xf]
  %v52 = vld [vmem:[%s0 + $0xfc] sm:$0xff]
  %v53 = vld [vmem:[%s0 + $0x104] sm:$0xff]
  %v54 = vld [vmem:[%s0 + $0x10c] sm:$0xff]
  %v55 = vld [vmem:[%s0 + $0x114] sm:$0xff]
  %v56 = vld [vmem:[%s0 + $0x11c] sm:$0xf]
  %v57 = vld [vmem:[%s0 + $0x120] sm:$0xff]
  %v58 = vld [vmem:[%s0 + $0x128] sm:$0xff]
  %v59 = vld [vmem:[%s0 + $0x130] sm:$0xff]
  %v60 = vld [vmem:[%s0 + $0x138] sm:$0xff]
  %v61 = vld [vmem:[%s0 + $0x140] sm:$0xf]
  %v62 = vld [vmem:[%s0 + $0x144] sm:$0xff]
  %v63 = vld [vmem:[%s0 + $0x14c] sm:$0xff]
  %v64 = vld [vmem:[%s0 + $0x154] sm:$0xff]
  %v65 = vld [vmem:[%s0 + $0x15c] sm:$0xff]
  %v66 = vld [vmem:[%s0 + $0x164] sm:$0xf]
  %v67 = vld [vmem:[%s0 + $0x168] sm:$0xff]
  %v68 = vld [vmem:[%s0 + $0x170] sm:$0xff]
  %v69 = vld [vmem:[%s0 + $0x178] sm:$0xff]
  %v70 = vld [vmem:[%s0 + $0x180] sm:$0xff]
  %v71 = vld [vmem:[%s0 + $0x188] sm:$0xf]
  %v72 = vld [vmem:[%s0 + $0x18c] sm:$0xff]
  %v73 = vld [vmem:[%s0 + $0x194] sm:$0xff]
  %v74 = vld [vmem:[%s0 + $0x19c] sm:$0xff]
  %v75 = vld [vmem:[%s0 + $0x1a4] sm:$0xff]
  %v76 = vld [vmem:[%s0 + $0x1ac] sm:$0xf]
  %v77 = vld [vmem:[%s0 + $0x1b0] sm:$0xff]
  %v78 = vld [vmem:[%s0 + $0x1b8] sm:$0xff]
  %v79 = vld [vmem:[%s0 + $0x1c0] sm:$0xff]
  %v80 = vld [vmem:[%s0 + $0x1c8] sm:$0xff]
  %v81 = vld [vmem:[%s0 + $0x1d0] sm:$0xf]
  %v82 = vld [vmem:[%s0 + $0x1d4] sm:$0xff]
  %v83 = vld [vmem:[%s0 + $0x1dc] sm:$0xff]
  %v84 = vld [vmem:[%s0 + $0x1e4] sm:$0xff]
  %v85 = vld [vmem:[%s0 + $0x1ec] sm:$0xff]
  %v86 = vld [vmem:[%s0 + $0x1f4] sm:$0xf]
  %v87 = vld [vmem:[%s0 + $0x1f8] sm:$0xff]
  %v88 = vld [vmem:[%s0 + $0x200] sm:$0xff]
  %v89 = vld [vmem:[%s0 + $0x208] sm:$0xff]
  %v90 = vld [vmem:[%s0 + $0x210] sm:$0xff]
  %v91 = vld [vmem:[%s0 + $0x218] sm:$0xf]
  %v92 = vld [vmem:[%s0 + $0x21c] sm:$0xff]
  %v93 = vld [vmem:[%s0 + $0x224] sm:$0xff]
  %v94 = vld [vmem:[%s0 + $0x22c] sm:$0xff]
  %v95 = vld [vmem:[%s0 + $0x234] sm:$0xff]
  %v96 = vld [vmem:[%s0 + $0x23c] sm:$0xf]
  %v97 = vld [vmem:[%s1] sm:$0xf]
  %v98 = vld [vmem:[%s1 + $0x4] sm:$0xf]
  %v99 = vld [vmem:[%s1 + $0x8] sm:$0xf]
  %v100 = vld [vmem:[%s1 + $0xc] sm:$0xf]
  %v101 = vld [vmem:[%s1 + $0x10] sm:$0xf]
  %v102 = vld [vmem:[%s1 + $0x14] sm:$0xf]
  %v103 = vld [vmem:[%s1 + $0x18] sm:$0xf]
  %v104 = vld [vmem:[%s1 + $0x1c] sm:$0xf]
  %v105 = vld [vmem:[%s1 + $0x20] sm:$0xf]
  %v106 = vld [vmem:[%s1 + $0x24] sm:$0xf]
  %v107 = vld [vmem:[%s1 + $0x28] sm:$0xf]
  %v108 = vld [vmem:[%s1 + $0x2c] sm:$0xf]
  %v109 = vld [vmem:[%s1 + $0x30] sm:$0xf]
  %v110 = vld [vmem:[%s1 + $0x34] sm:$0xf]
  %v111 = vld [vmem:[%s1 + $0x38] sm:$0xf]
  %v112 = vld [vmem:[%s1 + $0x3c] sm:$0xf]
  %v113 = vld [vmem:[%s1 + $0x40] sm:$0xf]
  %v114 = vld [vmem:[%s1 + $0x44] sm:$0xf]
  %v115 = vld [vmem:[%s1 + $0x48] sm:$0xf]
  %v116 = vld [vmem:[%s1 + $0x4c] sm:$0xf]
  %v117 = vld [vmem:[%s1 + $0x50] sm:$0xf]
  %v118 = vld [vmem:[%s1 + $0x54] sm:$0xf]
  %v119 = vld [vmem:[%s1 + $0x58] sm:$0xf]
  %v120 = vld [vmem:[%s1 + $0x5c] sm:$0xf]
  %v121 = vld [vmem:[%s1 + $0x60] sm:$0xf]
  %v122 = vld [vmem:[%s1 + $0x64] sm:$0xf]
  %v123 = vld [vmem:[%s1 + $0x68] sm:$0xf]
  %v124 = vld [vmem:[%s1 + $0x6c] sm:$0xf]
  %v125 = vld [vmem:[%s1 + $0x70] sm:$0xf]
  %v126 = vld [vmem:[%s1 + $0x74] sm:$0xf]
  %v127 = vld [vmem:[%s1 + $0x78] sm:$0xf]
  %v128 = vld [vmem:[%s1 + $0x7c] sm:$0xf]
  %v129 = vld [vmem:[%s1 + $0x80] sm:$0xf]
  %v130 = vld [vmem:[%s1 + $0x84] sm:$0xf]
  %v131 = vld [vmem:[%s1 + $0x88] sm:$0xf]
  %v132 = vld [vmem:[%s1 + $0x8c] sm:$0xf]
  %v133 = vld [vmem:[%s1 + $0x90] sm:$0xf]
  %v134 = vld [vmem:[%s1 + $0x94] sm:$0xf]
  %v135 = vld [vmem:[%s1 + $0x98] sm:$0xf]
  %v136 = vld [vmem:[%s1 + $0x9c] sm:$0xf]
  %v137 = vld [vmem:[%s1 + $0xa0] sm:$0xf]
  %v138 = vld [vmem:[%s1 + $0xa4] sm:$0xf]
  %v139 = vld [vmem:[%s1 + $0xa8] sm:$0xf]
  %v140 = vld [vmem:[%s1 + $0xac] sm:$0xf]
  %v141 = vld [vmem:[%s1 + $0xb0] sm:$0xf]
  %v142 = vld [vmem:[%s1 + $0xb4] sm:$0xf]
  %v143 = vld [vmem:[%s1 + $0xb8] sm:$0xf]
  %v144 = vld [vmem:[%s1 + $0xbc] sm:$0xf]
  %v145 = vld [vmem:[%s1 + $0xc0] sm:$0xf]
  %v146 = vld [vmem:[%s1 + $0xc4] sm:$0xf]
  %v147 = vld [vmem:[%s1 + $0xc8] sm:$0xf]
  %v148 = vld [vmem:[%s1 + $0xcc] sm:$0xf]
  %v149 = vld [vmem:[%s1 + $0xd0] sm:$0xf]
  %v150 = vld [vmem:[%s1 + $0xd4] sm:$0xf]
  %v151 = vld [vmem:[%s1 + $0xd8] sm:$0xf]
  %v152 = vld [vmem:[%s1 + $0xdc] sm:$0xf]
  %v153 = vld [vmem:[%s1 + $0xe0] sm:$0xf]
  %v154 = vld [vmem:[%s1 + $0xe4] sm:$0xf]
  %v155 = vld [vmem:[%s1 + $0xe8] sm:$0xf]
  %v156 = vld [vmem:[%s1 + $0xec] sm:$0xf]
  %v157 = vld [vmem:[%s1 + $0xf0] sm:$0xf]
  %v158 = vld [vmem:[%s1 + $0xf4] sm:$0xf]
  %v159 = vld [vmem:[%s1 + $0xf8] sm:$0xf]
  %v160 = vld [vmem:[%s1 + $0xfc] sm:$0xf]
  %v161 = vld [vmem:[%s1 + $0x100] sm:$0xf]
  %v162 = vld [vmem:[%s1 + $0x104] sm:$0xf]
  %v163 = vld [vmem:[%s1 + $0x108] sm:$0xf]
  %v164 = vld [vmem:[%s1 + $0x10c] sm:$0xf]
  %v165 = vld [vmem:[%s1 + $0x110] sm:$0xf]
  %v166 = vld [vmem:[%s1 + $0x114] sm:$0xf]
  %v167 = vld [vmem:[%s1 + $0x118] sm:$0xf]
  %v168 = vld [vmem:[%s1 + $0x11c] sm:$0xf]
  %v169 = vld [vmem:[%s1 + $0x120] sm:$0xf]
  %v170 = vld [vmem:[%s1 + $0x124] sm:$0xf]
  %v171 = vld [vmem:[%s1 + $0x128] sm:$0xf]
  %v172 = vld [vmem:[%s1 + $0x12c] sm:$0xf]
  %v173 = vld [vmem:[%s1 + $0x130] sm:$0xf]
  %v174 = vld [vmem:[%s1 + $0x134] sm:$0xf]
  %v175 = vld [vmem:[%s1 + $0x138] sm:$0xf]
  %v176 = vld [vmem:[%s1 + $0x13c] sm:$0xf]
  %v177 = vld [vmem:[%s1 + $0x140] sm:$0xf]
  %v178 = vld [vmem:[%s1 + $0x144] sm:$0xf]
  %v179 = vld [vmem:[%s1 + $0x148] sm:$0xf]
  %v180 = vld [vmem:[%s1 + $0x14c] sm:$0xf]
  %v181 = vld [vmem:[%s1 + $0x150] sm:$0xf]
  %v182 = vld [vmem:[%s1 + $0x154] sm:$0xf]
  %v183 = vld [vmem:[%s1 + $0x158] sm:$0xf]
  %v184 = vld [vmem:[%s1 + $0x15c] sm:$0xf]
  %v185 = vld [vmem:[%s1 + $0x160] sm:$0xf]
  %v186 = vld [vmem:[%s1 + $0x164] sm:$0xf]
  %v187 = vld [vmem:[%s1 + $0x168] sm:$0xf]
  %v188 = vld [vmem:[%s1 + $0x16c] sm:$0xf]
  %v189 = vld [vmem:[%s1 + $0x170] sm:$0xf]
  %v190 = vld [vmem:[%s1 + $0x174] sm:$0xf]
  %v191 = vld [vmem:[%s1 + $0x178] sm:$0xf]
  %v192 = vld [vmem:[%s1 + $0x17c] sm:$0xf]
  %v193 = vld [vmem:[%s1 + $0x180] sm:$0xf]
  %v194 = vld [vmem:[%s1 + $0x184] sm:$0xf]
  %v195 = vld [vmem:[%s1 + $0x188] sm:$0xf]
  %v196 = vld [vmem:[%s1 + $0x18c] sm:$0xf]
  %v197 = vld [vmem:[%s1 + $0x190] sm:$0xf]
  %v198 = vld [vmem:[%s1 + $0x194] sm:$0xf]
  %v199 = vld [vmem:[%s1 + $0x198] sm:$0xf]
  %v200 = vld [vmem:[%s1 + $0x19c] sm:$0xf]
  %v201 = vld [vmem:[%s1 + $0x1a0] sm:$0xf]
  %v202 = vld [vmem:[%s1 + $0x1a4] sm:$0xf]
  %v203 = vld [vmem:[%s1 + $0x1a8] sm:$0xf]
  %v204 = vld [vmem:[%s1 + $0x1ac] sm:$0xf]
  %v205 = vld [vmem:[%s1 + $0x1b0] sm:$0xf]
  %v206 = vld [vmem:[%s1 + $0x1b4] sm:$0xf]
  %v207 = vld [vmem:[%s1 + $0x1b8] sm:$0xf]
  %v208 = vld [vmem:[%s1 + $0x1bc] sm:$0xf]
  %v209 = vld [vmem:[%s1 + $0x1c0] sm:$0xf]
  %v210 = vld [vmem:[%s1 + $0x1c4] sm:$0xf]
  %v211 = vld [vmem:[%s1 + $0x1c8] sm:$0xf]
  %v212 = vld [vmem:[%s1 + $0x1cc] sm:$0xf]
  %v213 = vld [vmem:[%s1 + $0x1d0] sm:$0xf]
  %v214 = vld [vmem:[%s1 + $0x1d4] sm:$0xf]
  %v215 = vld [vmem:[%s1 + $0x1d8] sm:$0xf]
  %v216 = vld [vmem:[%s1 + $0x1dc] sm:$0xf]
  %v217 = vld [vmem:[%s1 + $0x1e0] sm:$0xf]
  %v218 = vld [vmem:[%s1 + $0x1e4] sm:$0xf]
  %v219 = vld [vmem:[%s1 + $0x1e8] sm:$0xf]
  %v220 = vld [vmem:[%s1 + $0x1ec] sm:$0xf]
  %v221 = vld [vmem:[%s1 + $0x1f0] sm:$0xf]
  %v222 = vld [vmem:[%s1 + $0x1f4] sm:$0xf]
  %v223 = vld [vmem:[%s1 + $0x1f8] sm:$0xf]
  %v224 = vld [vmem:[%s1 + $0x1fc] sm:$0xf]
  %v225 = vld [vmem:[%s1 + $0x200] sm:$0xf]
  %v226 = vld [vmem:[%s1 + $0x204] sm:$0xf]
  %v227 = vld [vmem:[%s1 + $0x208] sm:$0xf]
  %v228 = vld [vmem:[%s1 + $0x20c] sm:$0xf]
  %v229 = vld [vmem:[%s1 + $0x210] sm:$0xf]
  %v230 = vld [vmem:[%s1 + $0x214] sm:$0xf]
  %v231 = vld [vmem:[%s1 + $0x218] sm:$0xf]
  %v232 = vld [vmem:[%s1 + $0x21c] sm:$0xf]
  %v233 = vld [vmem:[%s1 + $0x220] sm:$0xf]
  %v234 = vld [vmem:[%s1 + $0x224] sm:$0xf]
  %v235 = vld [vmem:[%s1 + $0x228] sm:$0xf]
  %v236 = vld [vmem:[%s1 + $0x22c] sm:$0xf]
  %v237 = vld [vmem:[%s1 + $0x230] sm:$0xf]
  %v238 = vld [vmem:[%s1 + $0x234] sm:$0xf]
  %v239 = vld [vmem:[%s1 + $0x238] sm:$0xf]
  %v240 = vld [vmem:[%s1 + $0x23c] sm:$0xf]
  %v321 = vunpack.c.l.b16 %v17
  %v322 = vunpack.c.h.b16 %v17
  %v323 = vunpack.c.l.b16 %v18
  %v324 = vunpack.c.h.b16 %v18
  %v325 = vunpack.c.l.b16 %v19
  %v326 = vunpack.c.h.b16 %v19
  %v327 = vunpack.c.l.b16 %v20
  %v328 = vunpack.c.h.b16 %v20
  %v329 = vunpack.c.l.b16 %v21
  %v330 = vunpack.c.l.b16 %v22
  %v331 = vunpack.c.h.b16 %v22
  %v332 = vunpack.c.l.b16 %v23
  %v333 = vunpack.c.h.b16 %v23
  %v334 = vunpack.c.l.b16 %v24
  %v335 = vunpack.c.h.b16 %v24
  %v336 = vunpack.c.l.b16 %v25
  %v337 = vunpack.c.h.b16 %v25
  %v338 = vunpack.c.l.b16 %v26
  %v339 = vunpack.c.l.b16 %v27
  %v340 = vunpack.c.h.b16 %v27
  %v341 = vunpack.c.l.b16 %v28
  %v342 = vunpack.c.h.b16 %v28
  %v343 = vunpack.c.l.b16 %v29
  %v344 = vunpack.c.h.b16 %v29
  %v345 = vunpack.c.l.b16 %v30
  %v346 = vunpack.c.h.b16 %v30
  %v347 = vunpack.c.l.b16 %v31
  %v348 = vunpack.c.l.b16 %v32
  %v349 = vunpack.c.h.b16 %v32
  %v350 = vunpack.c.l.b16 %v33
  %v351 = vunpack.c.h.b16 %v33
  %v352 = vunpack.c.l.b16 %v34
  %v353 = vunpack.c.h.b16 %v34
  %v354 = vunpack.c.l.b16 %v35
  %v355 = vunpack.c.h.b16 %v35
  %v356 = vunpack.c.l.b16 %v36
  %v357 = vunpack.c.l.b16 %v37
  %v358 = vunpack.c.h.b16 %v37
  %v359 = vunpack.c.l.b16 %v38
  %v360 = vunpack.c.h.b16 %v38
  %v361 = vunpack.c.l.b16 %v39
  %v362 = vunpack.c.h.b16 %v39
  %v363 = vunpack.c.l.b16 %v40
  %v364 = vunpack.c.h.b16 %v40
  %v365 = vunpack.c.l.b16 %v41
  %v366 = vunpack.c.l.b16 %v42
  %v367 = vunpack.c.h.b16 %v42
  %v368 = vunpack.c.l.b16 %v43
  %v369 = vunpack.c.h.b16 %v43
  %v370 = vunpack.c.l.b16 %v44
  %v371 = vunpack.c.h.b16 %v44
  %v372 = vunpack.c.l.b16 %v45
  %v373 = vunpack.c.h.b16 %v45
  %v374 = vunpack.c.l.b16 %v46
  %v375 = vunpack.c.l.b16 %v47
  %v376 = vunpack.c.h.b16 %v47
  %v377 = vunpack.c.l.b16 %v48
  %v378 = vunpack.c.h.b16 %v48
  %v379 = vunpack.c.l.b16 %v49
  %v380 = vunpack.c.h.b16 %v49
  %v381 = vunpack.c.l.b16 %v50
  %v382 = vunpack.c.h.b16 %v50
  %v383 = vunpack.c.l.b16 %v51
  %v384 = vunpack.c.l.b16 %v52
  %v385 = vunpack.c.h.b16 %v52
  %v386 = vunpack.c.l.b16 %v53
  %v387 = vunpack.c.h.b16 %v53
  %v388 = vunpack.c.l.b16 %v54
  %v389 = vunpack.c.h.b16 %v54
  %v390 = vunpack.c.l.b16 %v55
  %v391 = vunpack.c.h.b16 %v55
  %v392 = vunpack.c.l.b16 %v56
  %v393 = vunpack.c.l.b16 %v57
  %v394 = vunpack.c.h.b16 %v57
  %v395 = vunpack.c.l.b16 %v58
  %v396 = vunpack.c.h.b16 %v58
  %v397 = vunpack.c.l.b16 %v59
  %v398 = vunpack.c.h.b16 %v59
  %v399 = vunpack.c.l.b16 %v60
  %v400 = vunpack.c.h.b16 %v60
  %v401 = vunpack.c.l.b16 %v61
  %v402 = vunpack.c.l.b16 %v62
  %v403 = vunpack.c.h.b16 %v62
  %v404 = vunpack.c.l.b16 %v63
  %v405 = vunpack.c.h.b16 %v63
  %v406 = vunpack.c.l.b16 %v64
  %v407 = vunpack.c.h.b16 %v64
  %v408 = vunpack.c.l.b16 %v65
  %v409 = vunpack.c.h.b16 %v65
  %v410 = vunpack.c.l.b16 %v66
  %v411 = vunpack.c.l.b16 %v67
  %v412 = vunpack.c.h.b16 %v67
  %v413 = vunpack.c.l.b16 %v68
  %v414 = vunpack.c.h.b16 %v68
  %v415 = vunpack.c.l.b16 %v69
  %v416 = vunpack.c.h.b16 %v69
  %v417 = vunpack.c.l.b16 %v70
  %v418 = vunpack.c.h.b16 %v70
  %v419 = vunpack.c.l.b16 %v71
  %v420 = vunpack.c.l.b16 %v72
  %v421 = vunpack.c.h.b16 %v72
  %v422 = vunpack.c.l.b16 %v73
  %v423 = vunpack.c.h.b16 %v73
  %v424 = vunpack.c.l.b16 %v74
  %v425 = vunpack.c.h.b16 %v74
  %v426 = vunpack.c.l.b16 %v75
  %v427 = vunpack.c.h.b16 %v75
  %v428 = vunpack.c.l.b16 %v76
  %v429 = vunpack.c.l.b16 %v77
  %v430 = vunpack.c.h.b16 %v77
  %v431 = vunpack.c.l.b16 %v78
  %v432 = vunpack.c.h.b16 %v78
  %v433 = vunpack.c.l.b16 %v79
  %v434 = vunpack.c.h.b16 %v79
  %v435 = vunpack.c.l.b16 %v80
  %v436 = vunpack.c.h.b16 %v80
  %v437 = vunpack.c.l.b16 %v81
  %v438 = vunpack.c.l.b16 %v82
  %v439 = vunpack.c.h.b16 %v82
  %v440 = vunpack.c.l.b16 %v83
  %v441 = vunpack.c.h.b16 %v83
  %v442 = vunpack.c.l.b16 %v84
  %v443 = vunpack.c.h.b16 %v84
  %v444 = vunpack.c.l.b16 %v85
  %v445 = vunpack.c.h.b16 %v85
  %v446 = vunpack.c.l.b16 %v86
  %v447 = vunpack.c.l.b16 %v87
  %v448 = vunpack.c.h.b16 %v87
  %v449 = vunpack.c.l.b16 %v88
  %v450 = vunpack.c.h.b16 %v88
  %v451 = vunpack.c.l.b16 %v89
  %v452 = vunpack.c.h.b16 %v89
  %v453 = vunpack.c.l.b16 %v90
  %v454 = vunpack.c.h.b16 %v90
  %v455 = vunpack.c.l.b16 %v91
  %v456 = vunpack.c.l.b16 %v92
  %v457 = vunpack.c.h.b16 %v92
  %v458 = vunpack.c.l.b16 %v93
  %v459 = vunpack.c.h.b16 %v93
  %v460 = vunpack.c.l.b16 %v94
  %v461 = vunpack.c.h.b16 %v94
  %v462 = vunpack.c.l.b16 %v95
  %v463 = vunpack.c.h.b16 %v95
  %v464 = vunpack.c.l.b16 %v96
  %v465 = vpack.c.b16 %v330, %v321
  %v466 = vpack.c.b16 %v331, %v322
  %v467 = vpack.c.b16 %v332, %v323
  %v468 = vpack.c.b16 %v333, %v324
  %v469 = vpack.c.b16 %v334, %v325
  %v470 = vpack.c.b16 %v335, %v326
  %v471 = vpack.c.b16 %v336, %v327
  %v472 = vpack.c.b16 %v337, %v328
  %v473 = vpack.c.b16 %v338, %v329
  %v474 = vpack.c.b16 %v348, %v339
  %v475 = vpack.c.b16 %v349, %v340
  %v476 = vpack.c.b16 %v350, %v341
  %v477 = vpack.c.b16 %v351, %v342
  %v478 = vpack.c.b16 %v352, %v343
  %v479 = vpack.c.b16 %v353, %v344
  %v480 = vpack.c.b16 %v354, %v345
  %v481 = vpack.c.b16 %v355, %v346
  %v482 = vpack.c.b16 %v356, %v347
  %v483 = vpack.c.b16 %v366, %v357
  %v484 = vpack.c.b16 %v367, %v358
  %v485 = vpack.c.b16 %v368, %v359
  %v486 = vpack.c.b16 %v369, %v360
  %v487 = vpack.c.b16 %v370, %v361
  %v488 = vpack.c.b16 %v371, %v362
  %v489 = vpack.c.b16 %v372, %v363
  %v490 = vpack.c.b16 %v373, %v364
  %v491 = vpack.c.b16 %v374, %v365
  %v492 = vpack.c.b16 %v384, %v375
  %v493 = vpack.c.b16 %v385, %v376
  %v494 = vpack.c.b16 %v386, %v377
  %v495 = vpack.c.b16 %v387, %v378
  %v496 = vpack.c.b16 %v388, %v379
  %v497 = vpack.c.b16 %v389, %v380
  %v498 = vpack.c.b16 %v390, %v381
  %v499 = vpack.c.b16 %v391, %v382
  %v500 = vpack.c.b16 %v392, %v383
  %v501 = vpack.c.b16 %v402, %v393
  %v502 = vpack.c.b16 %v403, %v394
  %v503 = vpack.c.b16 %v404, %v395
  %v504 = vpack.c.b16 %v405, %v396
  %v505 = vpack.c.b16 %v406, %v397
  %v506 = vpack.c.b16 %v407, %v398
  %v507 = vpack.c.b16 %v408, %v399
  %v508 = vpack.c.b16 %v409, %v400
  %v509 = vpack.c.b16 %v410, %v401
  %v510 = vpack.c.b16 %v420, %v411
  %v511 = vpack.c.b16 %v421, %v412
  %v512 = vpack.c.b16 %v422, %v413
  %v513 = vpack.c.b16 %v423, %v414
  %v514 = vpack.c.b16 %v424, %v415
  %v515 = vpack.c.b16 %v425, %v416
  %v516 = vpack.c.b16 %v426, %v417
  %v517 = vpack.c.b16 %v427, %v418
  %v518 = vpack.c.b16 %v428, %v419
  %v519 = vpack.c.b16 %v438, %v429
  %v520 = vpack.c.b16 %v439, %v430
  %v521 = vpack.c.b16 %v440, %v431
  %v522 = vpack.c.b16 %v441, %v432
  %v523 = vpack.c.b16 %v442, %v433
  %v524 = vpack.c.b16 %v443, %v434
  %v525 = vpack.c.b16 %v444, %v435
  %v526 = vpack.c.b16 %v445, %v436
  %v527 = vpack.c.b16 %v446, %v437
  %v528 = vpack.c.b16 %v456, %v447
  %v529 = vpack.c.b16 %v457, %v448
  %v530 = vpack.c.b16 %v458, %v449
  %v531 = vpack.c.b16 %v459, %v450
  %v532 = vpack.c.b16 %v460, %v451
  %v533 = vpack.c.b16 %v461, %v452
  %v534 = vpack.c.b16 %v462, %v453
  %v535 = vpack.c.b16 %v463, %v454
  %v536 = vpack.c.b16 %v464, %v455
  %v753 = vunpack.c.l.b16 %v97
  %v754 = vunpack.c.l.b16 %v98
  %v755 = vunpack.c.l.b16 %v99
  %v756 = vunpack.c.l.b16 %v100
  %v757 = vunpack.c.l.b16 %v101
  %v758 = vunpack.c.l.b16 %v102
  %v759 = vunpack.c.l.b16 %v103
  %v760 = vunpack.c.l.b16 %v104
  %v761 = vunpack.c.l.b16 %v105
  %v762 = vunpack.c.l.b16 %v106
  %v763 = vunpack.c.l.b16 %v107
  %v764 = vunpack.c.l.b16 %v108
  %v765 = vunpack.c.l.b16 %v109
  %v766 = vunpack.c.l.b16 %v110
  %v767 = vunpack.c.l.b16 %v111
  %v768 = vunpack.c.l.b16 %v112
  %v769 = vunpack.c.l.b16 %v113
  %v770 = vunpack.c.l.b16 %v114
  %v771 = vunpack.c.l.b16 %v115
  %v772 = vunpack.c.l.b16 %v116
  %v773 = vunpack.c.l.b16 %v117
  %v774 = vunpack.c.l.b16 %v118
  %v775 = vunpack.c.l.b16 %v119
  %v776 = vunpack.c.l.b16 %v120
  %v777 = vunpack.c.l.b16 %v121
  %v778 = vunpack.c.l.b16 %v122
  %v779 = vunpack.c.l.b16 %v123
  %v780 = vunpack.c.l.b16 %v124
  %v781 = vunpack.c.l.b16 %v125
  %v782 = vunpack.c.l.b16 %v126
  %v783 = vunpack.c.l.b16 %v127
  %v784 = vunpack.c.l.b16 %v128
  %v785 = vunpack.c.l.b16 %v129
  %v786 = vunpack.c.l.b16 %v130
  %v787 = vunpack.c.l.b16 %v131
  %v788 = vunpack.c.l.b16 %v132
  %v789 = vunpack.c.l.b16 %v133
  %v790 = vunpack.c.l.b16 %v134
  %v791 = vunpack.c.l.b16 %v135
  %v792 = vunpack.c.l.b16 %v136
  %v793 = vunpack.c.l.b16 %v137
  %v794 = vunpack.c.l.b16 %v138
  %v795 = vunpack.c.l.b16 %v139
  %v796 = vunpack.c.l.b16 %v140
  %v797 = vunpack.c.l.b16 %v141
  %v798 = vunpack.c.l.b16 %v142
  %v799 = vunpack.c.l.b16 %v143
  %v800 = vunpack.c.l.b16 %v144
  %v801 = vunpack.c.l.b16 %v145
  %v802 = vunpack.c.l.b16 %v146
  %v803 = vunpack.c.l.b16 %v147
  %v804 = vunpack.c.l.b16 %v148
  %v805 = vunpack.c.l.b16 %v149
  %v806 = vunpack.c.l.b16 %v150
  %v807 = vunpack.c.l.b16 %v151
  %v808 = vunpack.c.l.b16 %v152
  %v809 = vunpack.c.l.b16 %v153
  %v810 = vunpack.c.l.b16 %v154
  %v811 = vunpack.c.l.b16 %v155
  %v812 = vunpack.c.l.b16 %v156
  %v813 = vunpack.c.l.b16 %v157
  %v814 = vunpack.c.l.b16 %v158
  %v815 = vunpack.c.l.b16 %v159
  %v816 = vunpack.c.l.b16 %v160
  %v817 = vunpack.c.l.b16 %v161
  %v818 = vunpack.c.l.b16 %v162
  %v819 = vunpack.c.l.b16 %v163
  %v820 = vunpack.c.l.b16 %v164
  %v821 = vunpack.c.l.b16 %v165
  %v822 = vunpack.c.l.b16 %v166
  %v823 = vunpack.c.l.b16 %v167
  %v824 = vunpack.c.l.b16 %v168
  %v825 = vunpack.c.l.b16 %v169
  %v826 = vunpack.c.l.b16 %v170
  %v827 = vunpack.c.l.b16 %v171
  %v828 = vunpack.c.l.b16 %v172
  %v829 = vunpack.c.l.b16 %v173
  %v830 = vunpack.c.l.b16 %v174
  %v831 = vunpack.c.l.b16 %v175
  %v832 = vunpack.c.l.b16 %v176
  %v833 = vunpack.c.l.b16 %v177
  %v834 = vunpack.c.l.b16 %v178
  %v835 = vunpack.c.l.b16 %v179
  %v836 = vunpack.c.l.b16 %v180
  %v837 = vunpack.c.l.b16 %v181
  %v838 = vunpack.c.l.b16 %v182
  %v839 = vunpack.c.l.b16 %v183
  %v840 = vunpack.c.l.b16 %v184
  %v841 = vunpack.c.l.b16 %v185
  %v842 = vunpack.c.l.b16 %v186
  %v843 = vunpack.c.l.b16 %v187
  %v844 = vunpack.c.l.b16 %v188
  %v845 = vunpack.c.l.b16 %v189
  %v846 = vunpack.c.l.b16 %v190
  %v847 = vunpack.c.l.b16 %v191
  %v848 = vunpack.c.l.b16 %v192
  %v849 = vunpack.c.l.b16 %v193
  %v850 = vunpack.c.l.b16 %v194
  %v851 = vunpack.c.l.b16 %v195
  %v852 = vunpack.c.l.b16 %v196
  %v853 = vunpack.c.l.b16 %v197
  %v854 = vunpack.c.l.b16 %v198
  %v855 = vunpack.c.l.b16 %v199
  %v856 = vunpack.c.l.b16 %v200
  %v857 = vunpack.c.l.b16 %v201
  %v858 = vunpack.c.l.b16 %v202
  %v859 = vunpack.c.l.b16 %v203
  %v860 = vunpack.c.l.b16 %v204
  %v861 = vunpack.c.l.b16 %v205
  %v862 = vunpack.c.l.b16 %v206
  %v863 = vunpack.c.l.b16 %v207
  %v864 = vunpack.c.l.b16 %v208
  %v865 = vunpack.c.l.b16 %v209
  %v866 = vunpack.c.l.b16 %v210
  %v867 = vunpack.c.l.b16 %v211
  %v868 = vunpack.c.l.b16 %v212
  %v869 = vunpack.c.l.b16 %v213
  %v870 = vunpack.c.l.b16 %v214
  %v871 = vunpack.c.l.b16 %v215
  %v872 = vunpack.c.l.b16 %v216
  %v873 = vunpack.c.l.b16 %v217
  %v874 = vunpack.c.l.b16 %v218
  %v875 = vunpack.c.l.b16 %v219
  %v876 = vunpack.c.l.b16 %v220
  %v877 = vunpack.c.l.b16 %v221
  %v878 = vunpack.c.l.b16 %v222
  %v879 = vunpack.c.l.b16 %v223
  %v880 = vunpack.c.l.b16 %v224
  %v881 = vunpack.c.l.b16 %v225
  %v882 = vunpack.c.l.b16 %v226
  %v883 = vunpack.c.l.b16 %v227
  %v884 = vunpack.c.l.b16 %v228
  %v885 = vunpack.c.l.b16 %v229
  %v886 = vunpack.c.l.b16 %v230
  %v887 = vunpack.c.l.b16 %v231
  %v888 = vunpack.c.l.b16 %v232
  %v889 = vunpack.c.l.b16 %v233
  %v890 = vunpack.c.l.b16 %v234
  %v891 = vunpack.c.l.b16 %v235
  %v892 = vunpack.c.l.b16 %v236
  %v893 = vunpack.c.l.b16 %v237
  %v894 = vunpack.c.l.b16 %v238
  %v895 = vunpack.c.l.b16 %v239
  %v896 = vunpack.c.l.b16 %v240
  %v897 = vpack.c.b16 %v754, %v753
  %v898 = vpack.c.b16 %v756, %v755
  %v899 = vpack.c.b16 %v758, %v757
  %v900 = vpack.c.b16 %v760, %v759
  %v901 = vpack.c.b16 %v762, %v761
  %v902 = vpack.c.b16 %v764, %v763
  %v903 = vpack.c.b16 %v766, %v765
  %v904 = vpack.c.b16 %v768, %v767
  %v905 = vpack.c.b16 %v770, %v769
  %v906 = vpack.c.b16 %v772, %v771
  %v907 = vpack.c.b16 %v774, %v773
  %v908 = vpack.c.b16 %v776, %v775
  %v909 = vpack.c.b16 %v778, %v777
  %v910 = vpack.c.b16 %v780, %v779
  %v911 = vpack.c.b16 %v782, %v781
  %v912 = vpack.c.b16 %v784, %v783
  %v913 = vpack.c.b16 %v786, %v785
  %v914 = vpack.c.b16 %v788, %v787
  %v915 = vpack.c.b16 %v790, %v789
  %v916 = vpack.c.b16 %v792, %v791
  %v917 = vpack.c.b16 %v794, %v793
  %v918 = vpack.c.b16 %v796, %v795
  %v919 = vpack.c.b16 %v798, %v797
  %v920 = vpack.c.b16 %v800, %v799
  %v921 = vpack.c.b16 %v802, %v801
  %v922 = vpack.c.b16 %v804, %v803
  %v923 = vpack.c.b16 %v806, %v805
  %v924 = vpack.c.b16 %v808, %v807
  %v925 = vpack.c.b16 %v810, %v809
  %v926 = vpack.c.b16 %v812, %v811
  %v927 = vpack.c.b16 %v814, %v813
  %v928 = vpack.c.b16 %v816, %v815
  %v929 = vpack.c.b16 %v818, %v817
  %v930 = vpack.c.b16 %v820, %v819
  %v931 = vpack.c.b16 %v822, %v821
  %v932 = vpack.c.b16 %v824, %v823
  %v933 = vpack.c.b16 %v826, %v825
  %v934 = vpack.c.b16 %v828, %v827
  %v935 = vpack.c.b16 %v830, %v829
  %v936 = vpack.c.b16 %v832, %v831
  %v937 = vpack.c.b16 %v834, %v833
  %v938 = vpack.c.b16 %v836, %v835
  %v939 = vpack.c.b16 %v838, %v837
  %v940 = vpack.c.b16 %v840, %v839
  %v941 = vpack.c.b16 %v842, %v841
  %v942 = vpack.c.b16 %v844, %v843
  %v943 = vpack.c.b16 %v846, %v845
  %v944 = vpack.c.b16 %v848, %v847
  %v945 = vpack.c.b16 %v850, %v849
  %v946 = vpack.c.b16 %v852, %v851
  %v947 = vpack.c.b16 %v854, %v853
  %v948 = vpack.c.b16 %v856, %v855
  %v949 = vpack.c.b16 %v858, %v857
  %v950 = vpack.c.b16 %v860, %v859
  %v951 = vpack.c.b16 %v862, %v861
  %v952 = vpack.c.b16 %v864, %v863
  %v953 = vpack.c.b16 %v866, %v865
  %v954 = vpack.c.b16 %v868, %v867
  %v955 = vpack.c.b16 %v870, %v869
  %v956 = vpack.c.b16 %v872, %v871
  %v957 = vpack.c.b16 %v874, %v873
  %v958 = vpack.c.b16 %v876, %v875
  %v959 = vpack.c.b16 %v878, %v877
  %v960 = vpack.c.b16 %v880, %v879
  %v961 = vpack.c.b16 %v882, %v881
  %v962 = vpack.c.b16 %v884, %v883
  %v963 = vpack.c.b16 %v886, %v885
  %v964 = vpack.c.b16 %v888, %v887
  %v965 = vpack.c.b16 %v890, %v889
  %v966 = vpack.c.b16 %v892, %v891
  %v967 = vpack.c.b16 %v894, %v893
  %v968 = vpack.c.b16 %v896, %v895
  %1041 = vmatpush.bf16.msra.mxu0 %v904
  %1042 = vmatpush.bf16.msra.mxu0 %v903
  %1043 = vmatpush.bf16.msra.mxu0 %v902
  %1044 = vmatpush.bf16.msra.mxu0 %v901
  %1045 = vmatpush.bf16.msra.mxu0 %v900
  %1046 = vmatpush.bf16.msra.mxu0 %v899
  %1047 = vmatpush.bf16.msra.mxu0 %v898
  %1048 = vmatpush.bf16.msra.mxu0 %v897
  %1049 = vmatmul.bf16.gmra.mxu0 %v465
  %v1050 = vpop.f32.mrf.mxu0
  %v1051 = vadd.f32 0.0, %v1050
  %v1052 = vpop.f32.mrf.mxu0
  %v1053 = vadd.f32 0.0, %v1052
  %1054 = vmatmul.bf16.gmra.mxu0 %v474
  %v1055 = vpop.f32.mrf.mxu0
  %v1056 = vadd.f32 0.0, %v1055
  %v1057 = vpop.f32.mrf.mxu0
  %v1058 = vadd.f32 0.0, %v1057
  %1059 = vmatmul.bf16.gmra.mxu0 %v483
  %v1060 = vpop.f32.mrf.mxu0
  %v1061 = vadd.f32 0.0, %v1060
  %v1062 = vpop.f32.mrf.mxu0
  %v1063 = vadd.f32 0.0, %v1062
  %1064 = vmatmul.bf16.gmra.mxu0 %v492
  %v1065 = vpop.f32.mrf.mxu0
  %v1066 = vadd.f32 0.0, %v1065
  %v1067 = vpop.f32.mrf.mxu0
  %v1068 = vadd.f32 0.0, %v1067
  %1069 = vmatmul.bf16.gmra.mxu0 %v501
  %v1070 = vpop.f32.mrf.mxu0
  %v1071 = vadd.f32 0.0, %v1070
  %v1072 = vpop.f32.mrf.mxu0
  %v1073 = vadd.f32 0.0, %v1072
  %1074 = vmatmul.bf16.gmra.mxu0 %v510
  %v1075 = vpop.f32.mrf.mxu0
  %v1076 = vadd.f32 0.0, %v1075
  %v1077 = vpop.f32.mrf.mxu0
  %v1078 = vadd.f32 0.0, %v1077
  %1079 = vmatmul.bf16.gmra.mxu0 %v519
  %v1080 = vpop.f32.mrf.mxu0
  %v1081 = vadd.f32 0.0, %v1080
  %v1082 = vpop.f32.mrf.mxu0
  %v1083 = vadd.f32 0.0, %v1082
  %1084 = vmatmul.bf16.gmra.mxu0 %v528
  %v1085 = vpop.f32.mrf.mxu0
  %v1086 = vadd.f32 0.0, %v1085
  %v1087 = vpop.f32.mrf.mxu0
  %v1088 = vadd.f32 0.0, %v1087
  %1089 = vdwg.mxu0
  %1090 = vmatpush.bf16.msra.mxu0 %v912
  %1091 = vmatpush.bf16.msra.mxu0 %v911
  %1092 = vmatpush.bf16.msra.mxu0 %v910
  %1093 = vmatpush.bf16.msra.mxu0 %v909
  %1094 = vmatpush.bf16.msra.mxu0 %v908
  %1095 = vmatpush.bf16.msra.mxu0 %v907
  %1096 = vmatpush.bf16.msra.mxu0 %v906
  %1097 = vmatpush.bf16.msra.mxu0 %v905
  %1098 = vmatmul.bf16.gmra.mxu0 %v466
  %v1099 = vpop.f32.mrf.mxu0
  %v1100 = vadd.f32 %v1051, %v1099
  %v1101 = vpop.f32.mrf.mxu0
  %v1102 = vadd.f32 %v1053, %v1101
  %1103 = vmatmul.bf16.gmra.mxu0 %v475
  %v1104 = vpop.f32.mrf.mxu0
  %v1105 = vadd.f32 %v1056, %v1104
  %v1106 = vpop.f32.mrf.mxu0
  %v1107 = vadd.f32 %v1058, %v1106
  %1108 = vmatmul.bf16.gmra.mxu0 %v484
  %v1109 = vpop.f32.mrf.mxu0
  %v1110 = vadd.f32 %v1061, %v1109
  %v1111 = vpop.f32.mrf.mxu0
  %v1112 = vadd.f32 %v1063, %v1111
  %1113 = vmatmul.bf16.gmra.mxu0 %v493
  %v1114 = vpop.f32.mrf.mxu0
  %v1115 = vadd.f32 %v1066, %v1114
  %v1116 = vpop.f32.mrf.mxu0
  %v1117 = vadd.f32 %v1068, %v1116
  %1118 = vmatmul.bf16.gmra.mxu0 %v502
  %v1119 = vpop.f32.mrf.mxu0
  %v1120 = vadd.f32 %v1071, %v1119
  %v1121 = vpop.f32.mrf.mxu0
  %v1122 = vadd.f32 %v1073, %v1121
  %1123 = vmatmul.bf16.gmra.mxu0 %v511
  %v1124 = vpop.f32.mrf.mxu0
  %v1125 = vadd.f32 %v1076, %v1124
  %v1126 = vpop.f32.mrf.mxu0
  %v1127 = vadd.f32 %v1078, %v1126
  %1128 = vmatmul.bf16.gmra.mxu0 %v520
  %v1129 = vpop.f32.mrf.mxu0
  %v1130 = vadd.f32 %v1081, %v1129
  %v1131 = vpop.f32.mrf.mxu0
  %v1132 = vadd.f32 %v1083, %v1131
  %1133 = vmatmul.bf16.gmra.mxu0 %v529
  %v1134 = vpop.f32.mrf.mxu0
  %v1135 = vadd.f32 %v1086, %v1134
  %v1136 = vpop.f32.mrf.mxu0
  %v1137 = vadd.f32 %v1088, %v1136
  %1138 = vdwg.mxu0
  %1139 = vmatpush.bf16.msra.mxu0 %v920
  %1140 = vmatpush.bf16.msra.mxu0 %v919
  %1141 = vmatpush.bf16.msra.mxu0 %v918
  %1142 = vmatpush.bf16.msra.mxu0 %v917
  %1143 = vmatpush.bf16.msra.mxu0 %v916
  %1144 = vmatpush.bf16.msra.mxu0 %v915
  %1145 = vmatpush.bf16.msra.mxu0 %v914
  %1146 = vmatpush.bf16.msra.mxu0 %v913
  %1147 = vmatmul.bf16.gmra.mxu0 %v467
  %v1148 = vpop.f32.mrf.mxu0
  %v1149 = vadd.f32 %v1100, %v1148
  %v1150 = vpop.f32.mrf.mxu0
  %v1151 = vadd.f32 %v1102, %v1150
  %1152 = vmatmul.bf16.gmra.mxu0 %v476
  %v1153 = vpop.f32.mrf.mxu0
  %v1154 = vadd.f32 %v1105, %v1153
  %v1155 = vpop.f32.mrf.mxu0
  %v1156 = vadd.f32 %v1107, %v1155
  %1157 = vmatmul.bf16.gmra.mxu0 %v485
  %v1158 = vpop.f32.mrf.mxu0
  %v1159 = vadd.f32 %v1110, %v1158
  %v1160 = vpop.f32.mrf.mxu0
  %v1161 = vadd.f32 %v1112, %v1160
  %1162 = vmatmul.bf16.gmra.mxu0 %v494
  %v1163 = vpop.f32.mrf.mxu0
  %v1164 = vadd.f32 %v1115, %v1163
  %v1165 = vpop.f32.mrf.mxu0
  %v1166 = vadd.f32 %v1117, %v1165
  %1167 = vmatmul.bf16.gmra.mxu0 %v503
  %v1168 = vpop.f32.mrf.mxu0
  %v1169 = vadd.f32 %v1120, %v1168
  %v1170 = vpop.f32.mrf.mxu0
  %v1171 = vadd.f32 %v1122, %v1170
  %1172 = vmatmul.bf16.gmra.mxu0 %v512
  %v1173 = vpop.f32.mrf.mxu0
  %v1174 = vadd.f32 %v1125, %v1173
  %v1175 = vpop.f32.mrf.mxu0
  %v1176 = vadd.f32 %v1127, %v1175
  %1177 = vmatmul.bf16.gmra.mxu0 %v521
  %v1178 = vpop.f32.mrf.mxu0
  %v1179 = vadd.f32 %v1130, %v1178
  %v1180 = vpop.f32.mrf.mxu0
  %v1181 = vadd.f32 %v1132, %v1180
  %1182 = vmatmul.bf16.gmra.mxu0 %v530
  %v1183 = vpop.f32.mrf.mxu0
  %v1184 = vadd.f32 %v1135, %v1183
  %v1185 = vpop.f32.mrf.mxu0
  %v1186 = vadd.f32 %v1137, %v1185
  %1187 = vdwg.mxu0
  %1188 = vmatpush.bf16.msra.mxu0 %v928
  %1189 = vmatpush.bf16.msra.mxu0 %v927
  %1190 = vmatpush.bf16.msra.mxu0 %v926
  %1191 = vmatpush.bf16.msra.mxu0 %v925
  %1192 = vmatpush.bf16.msra.mxu0 %v924
  %1193 = vmatpush.bf16.msra.mxu0 %v923
  %1194 = vmatpush.bf16.msra.mxu0 %v922
  %1195 = vmatpush.bf16.msra.mxu0 %v921
  %1196 = vmatmul.bf16.gmra.mxu0 %v468
  %v1197 = vpop.f32.mrf.mxu0
  %v1198 = vadd.f32 %v1149, %v1197
  %v1199 = vpop.f32.mrf.mxu0
  %v1200 = vadd.f32 %v1151, %v1199
  %1201 = vmatmul.bf16.gmra.mxu0 %v477
  %v1202 = vpop.f32.mrf.mxu0
  %v1203 = vadd.f32 %v1154, %v1202
  %v1204 = vpop.f32.mrf.mxu0
  %v1205 = vadd.f32 %v1156, %v1204
  %1206 = vmatmul.bf16.gmra.mxu0 %v486
  %v1207 = vpop.f32.mrf.mxu0
  %v1208 = vadd.f32 %v1159, %v1207
  %v1209 = vpop.f32.mrf.mxu0
  %v1210 = vadd.f32 %v1161, %v1209
  %1211 = vmatmul.bf16.gmra.mxu0 %v495
  %v1212 = vpop.f32.mrf.mxu0
  %v1213 = vadd.f32 %v1164, %v1212
  %v1214 = vpop.f32.mrf.mxu0
  %v1215 = vadd.f32 %v1166, %v1214
  %1216 = vmatmul.bf16.gmra.mxu0 %v504
  %v1217 = vpop.f32.mrf.mxu0
  %v1218 = vadd.f32 %v1169, %v1217
  %v1219 = vpop.f32.mrf.mxu0
  %v1220 = vadd.f32 %v1171, %v1219
  %1221 = vmatmul.bf16.gmra.mxu0 %v513
  %v1222 = vpop.f32.mrf.mxu0
  %v1223 = vadd.f32 %v1174, %v1222
  %v1224 = vpop.f32.mrf.mxu0
  %v1225 = vadd.f32 %v1176, %v1224
  %1226 = vmatmul.bf16.gmra.mxu0 %v522
  %v1227 = vpop.f32.mrf.mxu0
  %v1228 = vadd.f32 %v1179, %v1227
  %v1229 = vpop.f32.mrf.mxu0
  %v1230 = vadd.f32 %v1181, %v1229
  %1231 = vmatmul.bf16.gmra.mxu0 %v531
  %v1232 = vpop.f32.mrf.mxu0
  %v1233 = vadd.f32 %v1184, %v1232
  %v1234 = vpop.f32.mrf.mxu0
  %v1235 = vadd.f32 %v1186, %v1234
  %1236 = vdwg.mxu0
  %1237 = vmatpush.bf16.msra.mxu0 %v936
  %1238 = vmatpush.bf16.msra.mxu0 %v935
  %1239 = vmatpush.bf16.msra.mxu0 %v934
  %1240 = vmatpush.bf16.msra.mxu0 %v933
  %1241 = vmatpush.bf16.msra.mxu0 %v932
  %1242 = vmatpush.bf16.msra.mxu0 %v931
  %1243 = vmatpush.bf16.msra.mxu0 %v930
  %1244 = vmatpush.bf16.msra.mxu0 %v929
  %1245 = vmatmul.bf16.gmra.mxu0 %v469
  %v1246 = vpop.f32.mrf.mxu0
  %v1247 = vadd.f32 %v1198, %v1246
  %v1248 = vpop.f32.mrf.mxu0
  %v1249 = vadd.f32 %v1200, %v1248
  %1250 = vmatmul.bf16.gmra.mxu0 %v478
  %v1251 = vpop.f32.mrf.mxu0
  %v1252 = vadd.f32 %v1203, %v1251
  %v1253 = vpop.f32.mrf.mxu0
  %v1254 = vadd.f32 %v1205, %v1253
  %1255 = vmatmul.bf16.gmra.mxu0 %v487
  %v1256 = vpop.f32.mrf.mxu0
  %v1257 = vadd.f32 %v1208, %v1256
  %v1258 = vpop.f32.mrf.mxu0
  %v1259 = vadd.f32 %v1210, %v1258
  %1260 = vmatmul.bf16.gmra.mxu0 %v496
  %v1261 = vpop.f32.mrf.mxu0
  %v1262 = vadd.f32 %v1213, %v1261
  %v1263 = vpop.f32.mrf.mxu0
  %v1264 = vadd.f32 %v1215, %v1263
  %1265 = vmatmul.bf16.gmra.mxu0 %v505
  %v1266 = vpop.f32.mrf.mxu0
  %v1267 = vadd.f32 %v1218, %v1266
  %v1268 = vpop.f32.mrf.mxu0
  %v1269 = vadd.f32 %v1220, %v1268
  %1270 = vmatmul.bf16.gmra.mxu0 %v514
  %v1271 = vpop.f32.mrf.mxu0
  %v1272 = vadd.f32 %v1223, %v1271
  %v1273 = vpop.f32.mrf.mxu0
  %v1274 = vadd.f32 %v1225, %v1273
  %1275 = vmatmul.bf16.gmra.mxu0 %v523
  %v1276 = vpop.f32.mrf.mxu0
  %v1277 = vadd.f32 %v1228, %v1276
  %v1278 = vpop.f32.mrf.mxu0
  %v1279 = vadd.f32 %v1230, %v1278
  %1280 = vmatmul.bf16.gmra.mxu0 %v532
  %v1281 = vpop.f32.mrf.mxu0
  %v1282 = vadd.f32 %v1233, %v1281
  %v1283 = vpop.f32.mrf.mxu0
  %v1284 = vadd.f32 %v1235, %v1283
  %1285 = vdwg.mxu0
  %1286 = vmatpush.bf16.msra.mxu0 %v944
  %1287 = vmatpush.bf16.msra.mxu0 %v943
  %1288 = vmatpush.bf16.msra.mxu0 %v942
  %1289 = vmatpush.bf16.msra.mxu0 %v941
  %1290 = vmatpush.bf16.msra.mxu0 %v940
  %1291 = vmatpush.bf16.msra.mxu0 %v939
  %1292 = vmatpush.bf16.msra.mxu0 %v938
  %1293 = vmatpush.bf16.msra.mxu0 %v937
  %1294 = vmatmul.bf16.gmra.mxu0 %v470
  %v1295 = vpop.f32.mrf.mxu0
  %v1296 = vadd.f32 %v1247, %v1295
  %v1297 = vpop.f32.mrf.mxu0
  %v1298 = vadd.f32 %v1249, %v1297
  %1299 = vmatmul.bf16.gmra.mxu0 %v479
  %v1300 = vpop.f32.mrf.mxu0
  %v1301 = vadd.f32 %v1252, %v1300
  %v1302 = vpop.f32.mrf.mxu0
  %v1303 = vadd.f32 %v1254, %v1302
  %1304 = vmatmul.bf16.gmra.mxu0 %v488
  %v1305 = vpop.f32.mrf.mxu0
  %v1306 = vadd.f32 %v1257, %v1305
  %v1307 = vpop.f32.mrf.mxu0
  %v1308 = vadd.f32 %v1259, %v1307
  %1309 = vmatmul.bf16.gmra.mxu0 %v497
  %v1310 = vpop.f32.mrf.mxu0
  %v1311 = vadd.f32 %v1262, %v1310
  %v1312 = vpop.f32.mrf.mxu0
  %v1313 = vadd.f32 %v1264, %v1312
  %1314 = vmatmul.bf16.gmra.mxu0 %v506
  %v1315 = vpop.f32.mrf.mxu0
  %v1316 = vadd.f32 %v1267, %v1315
  %v1317 = vpop.f32.mrf.mxu0
  %v1318 = vadd.f32 %v1269, %v1317
  %1319 = vmatmul.bf16.gmra.mxu0 %v515
  %v1320 = vpop.f32.mrf.mxu0
  %v1321 = vadd.f32 %v1272, %v1320
  %v1322 = vpop.f32.mrf.mxu0
  %v1323 = vadd.f32 %v1274, %v1322
  %1324 = vmatmul.bf16.gmra.mxu0 %v524
  %v1325 = vpop.f32.mrf.mxu0
  %v1326 = vadd.f32 %v1277, %v1325
  %v1327 = vpop.f32.mrf.mxu0
  %v1328 = vadd.f32 %v1279, %v1327
  %1329 = vmatmul.bf16.gmra.mxu0 %v533
  %v1330 = vpop.f32.mrf.mxu0
  %v1331 = vadd.f32 %v1282, %v1330
  %v1332 = vpop.f32.mrf.mxu0
  %v1333 = vadd.f32 %v1284, %v1332
  %1334 = vdwg.mxu0
  %1335 = vmatpush.bf16.msra.mxu0 %v952
  %1336 = vmatpush.bf16.msra.mxu0 %v951
  %1337 = vmatpush.bf16.msra.mxu0 %v950
  %1338 = vmatpush.bf16.msra.mxu0 %v949
  %1339 = vmatpush.bf16.msra.mxu0 %v948
  %1340 = vmatpush.bf16.msra.mxu0 %v947
  %1341 = vmatpush.bf16.msra.mxu0 %v946
  %1342 = vmatpush.bf16.msra.mxu0 %v945
  %1343 = vmatmul.bf16.gmra.mxu0 %v471
  %v1344 = vpop.f32.mrf.mxu0
  %v1345 = vadd.f32 %v1296, %v1344
  %v1346 = vpop.f32.mrf.mxu0
  %v1347 = vadd.f32 %v1298, %v1346
  %1348 = vmatmul.bf16.gmra.mxu0 %v480
  %v1349 = vpop.f32.mrf.mxu0
  %v1350 = vadd.f32 %v1301, %v1349
  %v1351 = vpop.f32.mrf.mxu0
  %v1352 = vadd.f32 %v1303, %v1351
  %1353 = vmatmul.bf16.gmra.mxu0 %v489
  %v1354 = vpop.f32.mrf.mxu0
  %v1355 = vadd.f32 %v1306, %v1354
  %v1356 = vpop.f32.mrf.mxu0
  %v1357 = vadd.f32 %v1308, %v1356
  %1358 = vmatmul.bf16.gmra.mxu0 %v498
  %v1359 = vpop.f32.mrf.mxu0
  %v1360 = vadd.f32 %v1311, %v1359
  %v1361 = vpop.f32.mrf.mxu0
  %v1362 = vadd.f32 %v1313, %v1361
  %1363 = vmatmul.bf16.gmra.mxu0 %v507
  %v1364 = vpop.f32.mrf.mxu0
  %v1365 = vadd.f32 %v1316, %v1364
  %v1366 = vpop.f32.mrf.mxu0
  %v1367 = vadd.f32 %v1318, %v1366
  %1368 = vmatmul.bf16.gmra.mxu0 %v516
  %v1369 = vpop.f32.mrf.mxu0
  %v1370 = vadd.f32 %v1321, %v1369
  %v1371 = vpop.f32.mrf.mxu0
  %v1372 = vadd.f32 %v1323, %v1371
  %1373 = vmatmul.bf16.gmra.mxu0 %v525
  %v1374 = vpop.f32.mrf.mxu0
  %v1375 = vadd.f32 %v1326, %v1374
  %v1376 = vpop.f32.mrf.mxu0
  %v1377 = vadd.f32 %v1328, %v1376
  %1378 = vmatmul.bf16.gmra.mxu0 %v534
  %v1379 = vpop.f32.mrf.mxu0
  %v1380 = vadd.f32 %v1331, %v1379
  %v1381 = vpop.f32.mrf.mxu0
  %v1382 = vadd.f32 %v1333, %v1381
  %1383 = vdwg.mxu0
  %1384 = vmatpush.bf16.msra.mxu0 %v960
  %1385 = vmatpush.bf16.msra.mxu0 %v959
  %1386 = vmatpush.bf16.msra.mxu0 %v958
  %1387 = vmatpush.bf16.msra.mxu0 %v957
  %1388 = vmatpush.bf16.msra.mxu0 %v956
  %1389 = vmatpush.bf16.msra.mxu0 %v955
  %1390 = vmatpush.bf16.msra.mxu0 %v954
  %1391 = vmatpush.bf16.msra.mxu0 %v953
  %1392 = vmatmul.bf16.gmra.mxu0 %v472
  %v1393 = vpop.f32.mrf.mxu0
  %v1394 = vadd.f32 %v1345, %v1393
  %v1395 = vpop.f32.mrf.mxu0
  %v1396 = vadd.f32 %v1347, %v1395
  %1397 = vmatmul.bf16.gmra.mxu0 %v481
  %v1398 = vpop.f32.mrf.mxu0
  %v1399 = vadd.f32 %v1350, %v1398
  %v1400 = vpop.f32.mrf.mxu0
  %v1401 = vadd.f32 %v1352, %v1400
  %1402 = vmatmul.bf16.gmra.mxu0 %v490
  %v1403 = vpop.f32.mrf.mxu0
  %v1404 = vadd.f32 %v1355, %v1403
  %v1405 = vpop.f32.mrf.mxu0
  %v1406 = vadd.f32 %v1357, %v1405
  %1407 = vmatmul.bf16.gmra.mxu0 %v499
  %v1408 = vpop.f32.mrf.mxu0
  %v1409 = vadd.f32 %v1360, %v1408
  %v1410 = vpop.f32.mrf.mxu0
  %v1411 = vadd.f32 %v1362, %v1410
  %1412 = vmatmul.bf16.gmra.mxu0 %v508
  %v1413 = vpop.f32.mrf.mxu0
  %v1414 = vadd.f32 %v1365, %v1413
  %v1415 = vpop.f32.mrf.mxu0
  %v1416 = vadd.f32 %v1367, %v1415
  %1417 = vmatmul.bf16.gmra.mxu0 %v517
  %v1418 = vpop.f32.mrf.mxu0
  %v1419 = vadd.f32 %v1370, %v1418
  %v1420 = vpop.f32.mrf.mxu0
  %v1421 = vadd.f32 %v1372, %v1420
  %1422 = vmatmul.bf16.gmra.mxu0 %v526
  %v1423 = vpop.f32.mrf.mxu0
  %v1424 = vadd.f32 %v1375, %v1423
  %v1425 = vpop.f32.mrf.mxu0
  %v1426 = vadd.f32 %v1377, %v1425
  %1427 = vmatmul.bf16.gmra.mxu0 %v535
  %v1428 = vpop.f32.mrf.mxu0
  %v1429 = vadd.f32 %v1380, %v1428
  %v1430 = vpop.f32.mrf.mxu0
  %v1431 = vadd.f32 %v1382, %v1430
  %1432 = vdwg.mxu0
  %1433 = vmatpush.bf16.msra.mxu0 %v968
  %1434 = vmatpush.bf16.msra.mxu0 %v967
  %1435 = vmatpush.bf16.msra.mxu0 %v966
  %1436 = vmatpush.bf16.msra.mxu0 %v965
  %1437 = vmatpush.bf16.msra.mxu0 %v964
  %1438 = vmatpush.bf16.msra.mxu0 %v963
  %1439 = vmatpush.bf16.msra.mxu0 %v962
  %1440 = vmatpush.bf16.msra.mxu0 %v961
  %1441 = vmatmul.bf16.gmra.mxu0 %v473
  %v1442 = vpop.f32.mrf.mxu0
  %v1443 = vadd.f32 %v1394, %v1442
  %v1444 = vpop.f32.mrf.mxu0
  %v1445 = vadd.f32 %v1396, %v1444
  %1446 = vmatmul.bf16.gmra.mxu0 %v482
  %v1447 = vpop.f32.mrf.mxu0
  %v1448 = vadd.f32 %v1399, %v1447
  %v1449 = vpop.f32.mrf.mxu0
  %v1450 = vadd.f32 %v1401, %v1449
  %1451 = vmatmul.bf16.gmra.mxu0 %v491
  %v1452 = vpop.f32.mrf.mxu0
  %v1453 = vadd.f32 %v1404, %v1452
  %v1454 = vpop.f32.mrf.mxu0
  %v1455 = vadd.f32 %v1406, %v1454
  %1456 = vmatmul.bf16.gmra.mxu0 %v500
  %v1457 = vpop.f32.mrf.mxu0
  %v1458 = vadd.f32 %v1409, %v1457
  %v1459 = vpop.f32.mrf.mxu0
  %v1460 = vadd.f32 %v1411, %v1459
  %1461 = vmatmul.bf16.gmra.mxu0 %v509
  %v1462 = vpop.f32.mrf.mxu0
  %v1463 = vadd.f32 %v1414, %v1462
  %v1464 = vpop.f32.mrf.mxu0
  %v1465 = vadd.f32 %v1416, %v1464
  %1466 = vmatmul.bf16.gmra.mxu0 %v518
  %v1467 = vpop.f32.mrf.mxu0
  %v1468 = vadd.f32 %v1419, %v1467
  %v1469 = vpop.f32.mrf.mxu0
  %v1470 = vadd.f32 %v1421, %v1469
  %1471 = vmatmul.bf16.gmra.mxu0 %v527
  %v1472 = vpop.f32.mrf.mxu0
  %v1473 = vadd.f32 %v1424, %v1472
  %v1474 = vpop.f32.mrf.mxu0
  %v1475 = vadd.f32 %v1426, %v1474
  %1476 = vmatmul.bf16.gmra.mxu0 %v536
  %v1477 = vpop.f32.mrf.mxu0
  %v1478 = vadd.f32 %v1429, %v1477
  %v1479 = vpop.f32.mrf.mxu0
  %v1480 = vadd.f32 %v1431, %v1479
  %1481 = vdwg.mxu0
  %v1482 = vld [vmem:[%s2] sm:$0x1]
  %v1484 = vperm.slane %v1482, 0
  %v1486 = vmul.f32 %v1443, %v1484
  %v1487 = vmul.f32 %v1445, %v1484
  %v1488 = vmul.f32 %v1448, %v1484
  %v1489 = vmul.f32 %v1450, %v1484
  %v1490 = vmul.f32 %v1453, %v1484
  %v1491 = vmul.f32 %v1455, %v1484
  %v1492 = vmul.f32 %v1458, %v1484
  %v1493 = vmul.f32 %v1460, %v1484
  %v1494 = vmul.f32 %v1463, %v1484
  %v1495 = vmul.f32 %v1465, %v1484
  %v1496 = vmul.f32 %v1468, %v1484
  %v1497 = vmul.f32 %v1470, %v1484
  %v1498 = vmul.f32 %v1473, %v1484
  %v1499 = vmul.f32 %v1475, %v1484
  %v1500 = vmul.f32 %v1478, %v1484
  %v1501 = vmul.f32 %v1480, %v1484
  %v1502 = vld [vmem:[%s3] sm:$0x1]
  %v1504 = vperm.slane %v1502, 0
  %v1506 = vadd.f32 %v1486, %v1504
  %v1507 = vadd.f32 %v1487, %v1504
  %v1508 = vadd.f32 %v1488, %v1504
  %v1509 = vadd.f32 %v1489, %v1504
  %v1510 = vadd.f32 %v1490, %v1504
  %v1511 = vadd.f32 %v1491, %v1504
  %v1512 = vadd.f32 %v1492, %v1504
  %v1513 = vadd.f32 %v1493, %v1504
  %v1514 = vadd.f32 %v1494, %v1504
  %v1515 = vadd.f32 %v1495, %v1504
  %v1516 = vadd.f32 %v1496, %v1504
  %v1517 = vadd.f32 %v1497, %v1504
  %v1518 = vadd.f32 %v1498, %v1504
  %v1519 = vadd.f32 %v1499, %v1504
  %v1520 = vadd.f32 %v1500, %v1504
  %v1521 = vadd.f32 %v1501, %v1504
  %1522 = vst [vmem:[%s4] sm:$0xff] %v1506
  %1523 = vst [vmem:[%s4 + $0x8] sm:$0xff] %v1507
  %1524 = vst [vmem:[%s4 + $0x10] sm:$0xff] %v1508
  %1525 = vst [vmem:[%s4 + $0x18] sm:$0xff] %v1509
  %1526 = vst [vmem:[%s4 + $0x20] sm:$0xff] %v1510
  %1527 = vst [vmem:[%s4 + $0x28] sm:$0xff] %v1511
  %1528 = vst [vmem:[%s4 + $0x30] sm:$0xff] %v1512
  %1529 = vst [vmem:[%s4 + $0x38] sm:$0xff] %v1513
  %1530 = vst [vmem:[%s4 + $0x40] sm:$0xff] %v1514
  %1531 = vst [vmem:[%s4 + $0x48] sm:$0xff] %v1515
  %1532 = vst [vmem:[%s4 + $0x50] sm:$0xff] %v1516
  %1533 = vst [vmem:[%s4 + $0x58] sm:$0xff] %v1517
  %1534 = vst [vmem:[%s4 + $0x60] sm:$0xff] %v1518
  %1535 = vst [vmem:[%s4 + $0x68] sm:$0xff] %v1519
  %1536 = vst [vmem:[%s4 + $0x70] sm:$0xff] %v1520
  %1537 = vst [vmem:[%s4 + $0x78] sm:$0xff] %v1521
  // Predicated region
  $region18: #{_lambda_.6} parent=0 // pred_check
    _
  $region19: #{_lambda_.6} parent=0 // pred_check_branch
    %1539 = sbr.rel (0) target = $region21
  $region20: #{_lambda_.6} parent=0 // pred_region
    _
  $region21: #{_lambda_.6} parent=0 // pred_fallthru
    _
  // Predicated region
  $region22: #{_lambda_.6} parent=0 // pred_check
    _
  $region23: #{_lambda_.6} parent=0 // pred_check_branch
    %1541 = sbr.rel (0) target = $region25
  $region24: #{_lambda_.6} parent=0 // pred_region
    _
  $region25: #{_lambda_.6} parent=0 // pred_fallthru
    _

// kernel: _lambda_.9
$region0: #{_lambda_.9}
  #allocation0 [shape = 'u32[]', space=smem, size = 0x4, offset = 0x4, fixed_abs, tag = 'smem constant byte address 0x4 - core index']
  #allocation1 [shape = 'u32[72,128]{1,0:T(1,128)}', space=vmem, size = 0x9000, scoped, tag = 'internal scratch']
  %s0 = inlined_call_operand.vmem [shape: f32[128,128], index: 0, kind: input, shape index: {}]
  %s1 = inlined_call_operand.vmem [shape: bf16[128,128], index: 1, kind: input, shape index: {}]
  %s2 = inlined_call_operand.vmem [shape: f32[1,128], index: 2, kind: input, shape index: {}]
  %s3 = inlined_call_operand.vmem [shape: f32[1,128], index: 3, kind: input, shape index: {}]
  %s4 = inlined_call_operand.vmem [shape: f32[1,128], index: 4, kind: input, shape index: {}]
  %s5 = inlined_call_operand.vmem [shape: f32[1,128], index: 5, kind: input, shape index: {}]
  %s6 = inlined_call_operand.vmem [shape: f32[128,128], index: 6, kind: input, shape index: {}]
  %s7 = inlined_call_operand.vmem [shape: f32[128,128], index: 7, kind: output, shape index: {}]
  %s8 = sld [smem:[#allocation0]]
  $region38: #{_lambda_.9} parent=0
    _
  %s10 = ssub.s32 1, %s8
  %s11 = scalar_select 0, %s10, %s8
  // Predicated region
  $region2: #{_lambda_.9} parent=0 // pred_check
    _
  $region3: #{_lambda_.9} parent=0 // pred_check_branch
    %13 = sbr.rel (0) target = $region5
  $region4: #{_lambda_.9} parent=0 // pred_region
    _
  $region5: #{_lambda_.9} parent=0 // pred_fallthru
    _
  // Predicated region
  $region6: #{_lambda_.9} parent=0 // pred_check
    _
  $region7: #{_lambda_.9} parent=0 // pred_check_branch
    %15 = sbr.rel (0) target = $region9
  $region8: #{_lambda_.9} parent=0 // pred_region
    _
  $region9: #{_lambda_.9} parent=0 // pred_fallthru
    _
  // Predicated region
  $region10: #{_lambda_.9} parent=0 // pred_check
    _
  $region11: #{_lambda_.9} parent=0 // pred_check_branch
    %17 = sbr.rel (0) target = $region13
  $region12: #{_lambda_.9} parent=0 // pred_region
    _
  $region13: #{_lambda_.9} parent=0 // pred_fallthru
    _
  // Predicated region
  $region14: #{_lambda_.9} parent=0 // pred_check
    _
  $region15: #{_lambda_.9} parent=0 // pred_check_branch
    %19 = sbr.rel (0) target = $region17
  $region16: #{_lambda_.9} parent=0 // pred_region
    _
  $region17: #{_lambda_.9} parent=0 // pred_fallthru
    _
  // Predicated region
  $region18: #{_lambda_.9} parent=0 // pred_check
    _
  $region19: #{_lambda_.9} parent=0 // pred_check_branch
    %21 = sbr.rel (0) target = $region21
  $region20: #{_lambda_.9} parent=0 // pred_region
    _
  $region21: #{_lambda_.9} parent=0 // pred_fallthru
    _
  // Predicated region
  $region22: #{_lambda_.9} parent=0 // pred_check
    _
  $region23: #{_lambda_.9} parent=0 // pred_check_branch
    %23 = sbr.rel (0) target = $region25
  $region24: #{_lambda_.9} parent=0 // pred_region
    _
  $region25: #{_lambda_.9} parent=0 // pred_fallthru
    _
  // Predicated region
  $region26: #{_lambda_.9} parent=0 // pred_check
    _
  $region27: #{_lambda_.9} parent=0 // pred_check_branch
    %25 = sbr.rel (0) target = $region29
  $region28: #{_lambda_.9} parent=0 // pred_region
    _
  $region29: #{_lambda_.9} parent=0 // pred_fallthru
    _
  %v26 = vld [vmem:[%s0] sm:$0xff]
  %v27 = vld [vmem:[%s0 + $0x8] sm:$0xff]
  %v28 = vld [vmem:[%s0 + $0x10] sm:$0xff]
  %v29 = vld [vmem:[%s0 + $0x18] sm:$0xff]
  %v30 = vld [vmem:[%s0 + $0x20] sm:$0xff]
  %v31 = vld [vmem:[%s0 + $0x28] sm:$0xff]
  %v32 = vld [vmem:[%s0 + $0x30] sm:$0xff]
  %v33 = vld [vmem:[%s0 + $0x38] sm:$0xff]
  %v34 = vld [vmem:[%s0 + $0x40] sm:$0xff]
  %v35 = vld [vmem:[%s0 + $0x48] sm:$0xff]
  %v36 = vld [vmem:[%s0 + $0x50] sm:$0xff]
  %v37 = vld [vmem:[%s0 + $0x58] sm:$0xff]
  %v38 = vld [vmem:[%s0 + $0x60] sm:$0xff]
  %v39 = vld [vmem:[%s0 + $0x68] sm:$0xff]
  %v40 = vld [vmem:[%s0 + $0x70] sm:$0xff]
  %v41 = vld [vmem:[%s0 + $0x78] sm:$0xff]
  %v42 = vld [vmem:[%s2] sm:$0x1]
  %v44 = vperm.slane %v42, 0
  %v46 = vmul.f32 %v26, %v44
  %v47 = vmul.f32 %v27, %v44
  %v48 = vmul.f32 %v28, %v44
  %v49 = vmul.f32 %v29, %v44
  %v50 = vmul.f32 %v30, %v44
  %v51 = vmul.f32 %v31, %v44
  %v52 = vmul.f32 %v32, %v44
  %v53 = vmul.f32 %v33, %v44
  %v54 = vmul.f32 %v34, %v44
  %v55 = vmul.f32 %v35, %v44
  %v56 = vmul.f32 %v36, %v44
  %v57 = vmul.f32 %v37, %v44
  %v58 = vmul.f32 %v38, %v44
  %v59 = vmul.f32 %v39, %v44
  %v60 = vmul.f32 %v40, %v44
  %v61 = vmul.f32 %v41, %v44
  %v62 = vld [vmem:[%s3] sm:$0x1]
  %v64 = vperm.slane %v62, 0
  %v66 = vadd.f32 %v46, %v64
  %v67 = vadd.f32 %v47, %v64
  %v68 = vadd.f32 %v48, %v64
  %v69 = vadd.f32 %v49, %v64
  %v70 = vadd.f32 %v50, %v64
  %v71 = vadd.f32 %v51, %v64
  %v72 = vadd.f32 %v52, %v64
  %v73 = vadd.f32 %v53, %v64
  %v74 = vadd.f32 %v54, %v64
  %v75 = vadd.f32 %v55, %v64
  %v76 = vadd.f32 %v56, %v64
  %v77 = vadd.f32 %v57, %v64
  %v78 = vadd.f32 %v58, %v64
  %v79 = vadd.f32 %v59, %v64
  %v80 = vadd.f32 %v60, %v64
  %v81 = vadd.f32 %v61, %v64
  %v82 = vmax.f32 %v66, 0.0
  %v83 = vmax.f32 %v67, 0.0
  %v84 = vmax.f32 %v68, 0.0
  %v85 = vmax.f32 %v69, 0.0
  %v86 = vmax.f32 %v70, 0.0
  %v87 = vmax.f32 %v71, 0.0
  %v88 = vmax.f32 %v72, 0.0
  %v89 = vmax.f32 %v73, 0.0
  %v90 = vmax.f32 %v74, 0.0
  %v91 = vmax.f32 %v75, 0.0
  %v92 = vmax.f32 %v76, 0.0
  %v93 = vmax.f32 %v77, 0.0
  %v94 = vmax.f32 %v78, 0.0
  %v95 = vmax.f32 %v79, 0.0
  %v96 = vmax.f32 %v80, 0.0
  %v97 = vmax.f32 %v81, 0.0
  %v98 = vpack.c.bf16 %v83, %v82
  %v99 = vpack.c.bf16 %v85, %v84
  %v100 = vpack.c.bf16 %v87, %v86
  %v101 = vpack.c.bf16 %v89, %v88
  %v102 = vpack.c.bf16 %v91, %v90
  %v103 = vpack.c.bf16 %v93, %v92
  %v104 = vpack.c.bf16 %v95, %v94
  %v105 = vpack.c.bf16 %v97, %v96
  %v106 = vld [vmem:[%s1] sm:$0xf]
  %v107 = vld [vmem:[%s1 + $0x4] sm:$0xf]
  %v108 = vld [vmem:[%s1 + $0x8] sm:$0xf]
  %v109 = vld [vmem:[%s1 + $0xc] sm:$0xf]
  %v110 = vld [vmem:[%s1 + $0x10] sm:$0xf]
  %v111 = vld [vmem:[%s1 + $0x14] sm:$0xf]
  %v112 = vld [vmem:[%s1 + $0x18] sm:$0xf]
  %v113 = vld [vmem:[%s1 + $0x1c] sm:$0xf]
  %v114 = vld [vmem:[%s1 + $0x20] sm:$0xf]
  %v115 = vld [vmem:[%s1 + $0x24] sm:$0xf]
  %v116 = vld [vmem:[%s1 + $0x28] sm:$0xf]
  %v117 = vld [vmem:[%s1 + $0x2c] sm:$0xf]
  %v118 = vld [vmem:[%s1 + $0x30] sm:$0xf]
  %v119 = vld [vmem:[%s1 + $0x34] sm:$0xf]
  %v120 = vld [vmem:[%s1 + $0x38] sm:$0xf]
  %v121 = vld [vmem:[%s1 + $0x3c] sm:$0xf]
  %v138 = vunpack.c.l.b16 %v106
  %v139 = vunpack.c.l.b16 %v107
  %v140 = vunpack.c.l.b16 %v108
  %v141 = vunpack.c.l.b16 %v109
  %v142 = vunpack.c.l.b16 %v110
  %v143 = vunpack.c.l.b16 %v111
  %v144 = vunpack.c.l.b16 %v112
  %v145 = vunpack.c.l.b16 %v113
  %v146 = vunpack.c.l.b16 %v114
  %v147 = vunpack.c.l.b16 %v115
  %v148 = vunpack.c.l.b16 %v116
  %v149 = vunpack.c.l.b16 %v117
  %v150 = vunpack.c.l.b16 %v118
  %v151 = vunpack.c.l.b16 %v119
  %v152 = vunpack.c.l.b16 %v120
  %v153 = vunpack.c.l.b16 %v121
  %v154 = vpack.c.b16 %v139, %v138
  %v155 = vpack.c.b16 %v141, %v140
  %v156 = vpack.c.b16 %v143, %v142
  %v157 = vpack.c.b16 %v145, %v144
  %v158 = vpack.c.b16 %v147, %v146
  %v159 = vpack.c.b16 %v149, %v148
  %v160 = vpack.c.b16 %v151, %v150
  %v161 = vpack.c.b16 %v153, %v152
  %170 = vmatpush.bf16.msra.mxu0 %v161
  %171 = vmatpush.bf16.msra.mxu0 %v160
  %172 = vmatpush.bf16.msra.mxu0 %v159
  %173 = vmatpush.bf16.msra.mxu0 %v158
  %174 = vmatpush.bf16.msra.mxu0 %v157
  %175 = vmatpush.bf16.msra.mxu0 %v156
  %176 = vmatpush.bf16.msra.mxu0 %v155
  %177 = vmatpush.bf16.msra.mxu0 %v154
  %178 = vmatmul.bf16.gmra.mxu0 %v98
  %v179 = vpop.f32.mrf.mxu0
  %v180 = vadd.f32 0.0, %v179
  %v181 = vpop.f32.mrf.mxu0
  %v182 = vadd.f32 0.0, %v181
  %183 = vmatmul.bf16.gmra.mxu0 %v99
  %v184 = vpop.f32.mrf.mxu0
  %v185 = vadd.f32 0.0, %v184
  %v186 = vpop.f32.mrf.mxu0
  %v187 = vadd.f32 0.0, %v186
  %188 = vmatmul.bf16.gmra.mxu0 %v100
  %v189 = vpop.f32.mrf.mxu0
  %v190 = vadd.f32 0.0, %v189
  %v191 = vpop.f32.mrf.mxu0
  %v192 = vadd.f32 0.0, %v191
  %193 = vmatmul.bf16.gmra.mxu0 %v101
  %v194 = vpop.f32.mrf.mxu0
  %v195 = vadd.f32 0.0, %v194
  %v196 = vpop.f32.mrf.mxu0
  %v197 = vadd.f32 0.0, %v196
  %198 = vmatmul.bf16.gmra.mxu0 %v102
  %v199 = vpop.f32.mrf.mxu0
  %v200 = vadd.f32 0.0, %v199
  %v201 = vpop.f32.mrf.mxu0
  %v202 = vadd.f32 0.0, %v201
  %203 = vmatmul.bf16.gmra.mxu0 %v103
  %v204 = vpop.f32.mrf.mxu0
  %v205 = vadd.f32 0.0, %v204
  %v206 = vpop.f32.mrf.mxu0
  %v207 = vadd.f32 0.0, %v206
  %208 = vmatmul.bf16.gmra.mxu0 %v104
  %v209 = vpop.f32.mrf.mxu0
  %v210 = vadd.f32 0.0, %v209
  %v211 = vpop.f32.mrf.mxu0
  %v212 = vadd.f32 0.0, %v211
  %213 = vmatmul.bf16.gmra.mxu0 %v105
  %v214 = vpop.f32.mrf.mxu0
  %v215 = vadd.f32 0.0, %v214
  %v216 = vpop.f32.mrf.mxu0
  %v217 = vadd.f32 0.0, %v216
  %218 = vdwg.mxu0
  %v219 = vld [vmem:[%s4] sm:$0x1]
  %v221 = vperm.slane %v219, 0
  %v223 = vmul.f32 %v180, %v221
  %v224 = vmul.f32 %v182, %v221
  %v225 = vmul.f32 %v185, %v221
  %v226 = vmul.f32 %v187, %v221
  %v227 = vmul.f32 %v190, %v221
  %v228 = vmul.f32 %v192, %v221
  %v229 = vmul.f32 %v195, %v221
  %v230 = vmul.f32 %v197, %v221
  %v231 = vmul.f32 %v200, %v221
  %v232 = vmul.f32 %v202, %v221
  %v233 = vmul.f32 %v205, %v221
  %v234 = vmul.f32 %v207, %v221
  %v235 = vmul.f32 %v210, %v221
  %v236 = vmul.f32 %v212, %v221
  %v237 = vmul.f32 %v215, %v221
  %v238 = vmul.f32 %v217, %v221
  %v239 = vld [vmem:[%s5] sm:$0x1]
  %v241 = vperm.slane %v239, 0
  %v243 = vadd.f32 %v223, %v241
  %v244 = vadd.f32 %v224, %v241
  %v245 = vadd.f32 %v225, %v241
  %v246 = vadd.f32 %v226, %v241
  %v247 = vadd.f32 %v227, %v241
  %v248 = vadd.f32 %v228, %v241
  %v249 = vadd.f32 %v229, %v241
  %v250 = vadd.f32 %v230, %v241
  %v251 = vadd.f32 %v231, %v241
  %v252 = vadd.f32 %v232, %v241
  %v253 = vadd.f32 %v233, %v241
  %v254 = vadd.f32 %v234, %v241
  %v255 = vadd.f32 %v235, %v241
  %v256 = vadd.f32 %v236, %v241
  %v257 = vadd.f32 %v237, %v241
  %v258 = vadd.f32 %v238, %v241
  %v259 = vld [vmem:[%s6] sm:$0xff]
  %v260 = vld [vmem:[%s6 + $0x8] sm:$0xff]
  %v261 = vld [vmem:[%s6 + $0x10] sm:$0xff]
  %v262 = vld [vmem:[%s6 + $0x18] sm:$0xff]
  %v263 = vld [vmem:[%s6 + $0x20] sm:$0xff]
  %v264 = vld [vmem:[%s6 + $0x28] sm:$0xff]
  %v265 = vld [vmem:[%s6 + $0x30] sm:$0xff]
  %v266 = vld [vmem:[%s6 + $0x38] sm:$0xff]
  %v267 = vld [vmem:[%s6 + $0x40] sm:$0xff]
  %v268 = vld [vmem:[%s6 + $0x48] sm:$0xff]
  %v269 = vld [vmem:[%s6 + $0x50] sm:$0xff]
  %v270 = vld [vmem:[%s6 + $0x58] sm:$0xff]
  %v271 = vld [vmem:[%s6 + $0x60] sm:$0xff]
  %v272 = vld [vmem:[%s6 + $0x68] sm:$0xff]
  %v273 = vld [vmem:[%s6 + $0x70] sm:$0xff]
  %v274 = vld [vmem:[%s6 + $0x78] sm:$0xff]
  %v275 = vadd.f32 %v243, %v259
  %v276 = vadd.f32 %v244, %v260
  %v277 = vadd.f32 %v245, %v261
  %v278 = vadd.f32 %v246, %v262
  %v279 = vadd.f32 %v247, %v263
  %v280 = vadd.f32 %v248, %v264
  %v281 = vadd.f32 %v249, %v265
  %v282 = vadd.f32 %v250, %v266
  %v283 = vadd.f32 %v251, %v267
  %v284 = vadd.f32 %v252, %v268
  %v285 = vadd.f32 %v253, %v269
  %v286 = vadd.f32 %v254, %v270
  %v287 = vadd.f32 %v255, %v271
  %v288 = vadd.f32 %v256, %v272
  %v289 = vadd.f32 %v257, %v273
  %v290 = vadd.f32 %v258, %v274
  %v291 = vmax.f32 %v275, 0.0
  %v292 = vmax.f32 %v276, 0.0
  %v293 = vmax.f32 %v277, 0.0
  %v294 = vmax.f32 %v278, 0.0
  %v295 = vmax.f32 %v279, 0.0
  %v296 = vmax.f32 %v280, 0.0
  %v297 = vmax.f32 %v281, 0.0
  %v298 = vmax.f32 %v282, 0.0
  %v299 = vmax.f32 %v283, 0.0
  %v300 = vmax.f32 %v284, 0.0
  %v301 = vmax.f32 %v285, 0.0
  %v302 = vmax.f32 %v286, 0.0
  %v303 = vmax.f32 %v287, 0.0
  %v304 = vmax.f32 %v288, 0.0
  %v305 = vmax.f32 %v289, 0.0
  %v306 = vmax.f32 %v290, 0.0
  %307 = vst [vmem:[%s7] sm:$0xff] %v291
  %308 = vst [vmem:[%s7 + $0x8] sm:$0xff] %v292
  %309 = vst [vmem:[%s7 + $0x10] sm:$0xff] %v293
  %310 = vst [vmem:[%s7 + $0x18] sm:$0xff] %v294
  %311 = vst [vmem:[%s7 + $0x20] sm:$0xff] %v295
  %312 = vst [vmem:[%s7 + $0x28] sm:$0xff] %v296
  %313 = vst [vmem:[%s7 + $0x30] sm:$0xff] %v297
  %314 = vst [vmem:[%s7 + $0x38] sm:$0xff] %v298
  %315 = vst [vmem:[%s7 + $0x40] sm:$0xff] %v299
  %316 = vst [vmem:[%s7 + $0x48] sm:$0xff] %v300
  %317 = vst [vmem:[%s7 + $0x50] sm:$0xff] %v301
  %318 = vst [vmem:[%s7 + $0x58] sm:$0xff] %v302
  %319 = vst [vmem:[%s7 + $0x60] sm:$0xff] %v303
  %320 = vst [vmem:[%s7 + $0x68] sm:$0xff] %v304
  %321 = vst [vmem:[%s7 + $0x70] sm:$0xff] %v305
  %322 = vst [vmem:[%s7 + $0x78] sm:$0xff] %v306
  // Predicated region
  $region30: #{_lambda_.9} parent=0 // pred_check
    _
  $region31: #{_lambda_.9} parent=0 // pred_check_branch
    %324 = sbr.rel (0) target = $region33
  $region32: #{_lambda_.9} parent=0 // pred_region
    _
  $region33: #{_lambda_.9} parent=0 // pred_fallthru
    _
  // Predicated region
  $region34: #{_lambda_.9} parent=0 // pred_check
    _
  $region35: #{_lambda_.9} parent=0 // pred_check_branch
    %326 = sbr.rel (0) target = $region37
  $region36: #{_lambda_.9} parent=0 // pred_region
    _
  $region37: #{_lambda_.9} parent=0 // pred_fallthru
    _

// kernel: _lambda_.8
$region0: #{_lambda_.8}
  #allocation0 [shape = 'u32[]', space=smem, size = 0x4, offset = 0x4, fixed_abs, tag = 'smem constant byte address 0x4 - core index']
  #allocation1 [shape = 'u32[72,128]{1,0:T(1,128)}', space=vmem, size = 0x9000, scoped, tag = 'internal scratch']
  %s0 = inlined_call_operand.vmem [shape: f32[2,2,8192], index: 0, kind: input, shape index: {}]
  %s1 = inlined_call_operand.vmem [shape: f32[2,8192], index: 1, kind: input, shape index: {}]
  %s2 = inlined_call_operand.vmem [shape: f32[2,1,8192], index: 2, kind: output, shape index: {}]
  %s3 = sld [smem:[#allocation0]]
  $region41: #{_lambda_.8} parent=0
    _
  %s5 = ssub.s32 1, %s3
  %s6 = scalar_select 0, %s5, %s3
  loop: start=0, step=1, limit=4
  $region2: #{_lambda_.8} parent=0 // loop_pre_header
    _
  $region3: #{_lambda_.8} parent=0 // loop_header
    %s8 = sphi 0, %s12
    %p9 = scmp.ge.s32.totalorder %s8, 4
    %s15 = sphi 0, %s27
    %s16 = sphi 0, %s23
    %s17 = sphi 0, %s15
    %s18 = sphi 0, %s16
    %s19 = sphi 0, %s17
    %s20 = sphi 0, %s18
    %s32 = sphi 0, %s34
    %s35 = sphi 0, %s32
    %s36 = sphi 0, %s35
    %s52 = sphi 0, %s36
    %s58 = sphi 0, %s60
    %s61 = sphi 0, %s58
    %s62 = sphi 0, %s61
    %s78 = sphi 0, %s62
    %s86 = sphi 0, %s88
    %s89 = sphi 0, %s86
    %s90 = sphi 0, %s89
    %s106 = sphi 0, %s90
  $region4: #{_lambda_.8} parent=0 // loop_header_branch
    %11 = sbr.rel (%p9) target = $region8
  $region5: #{_lambda_.8} parent=0 // loop_body
    %s13 = ssub.s32 %s8, 1
    %s14 = ssub.s32 %s8, 2
    %s21 = sadd.s32 1, %s16
    %p22 = scmp.ge.s32.totalorder %s21, 1
    %s23 = scalar_select %p22, 0, %s21
    %s24 = sadd.s32 1, %s15
    %s25 = scalar_select %p22, %s24, %s15
    %p26 = scmp.ge.s32.totalorder %s25, 2
    %s27 = scalar_select %p26, 0, %s25
    %s28 = ssub.s32 %s15, %s27
    %s29 = ssub.s32 %s16, %s23
    %s30 = sor.u32 %s28, %s29
    %p31 = scmp.eq.s32.totalorder %s30, 0
    %s33 = sadd.s32 %s32, 1
    %s34 = scalar_select %p31, %s32, %s33
    %p37 = pneg %p31
    %p38 = scmp.eq.s32.totalorder %s8, 1
    %p39 = por %p37, %p38
    %p40 = scmp.ne.s32.totalorder %s32, %s35
    %p41 = scmp.eq.s32.totalorder %s8, 0
    %p42 = por %p40, %p41
    %p43 = scmp.ne.s32.totalorder %s32, %s35
    %p44 = scmp.eq.s32.totalorder %s13, 1
    %p45 = por %p43, %p44
    %p46 = scmp.ne.s32.totalorder %s35, %s36
    %p47 = scmp.eq.s32.totalorder %s13, 0
    %p48 = por %p46, %p47
    %p49 = scmp.ne.s32.totalorder %s35, %s36
    %p50 = scmp.eq.s32.totalorder %s14, 1
    %p51 = por %p49, %p50
    %p53 = scmp.ne.s32.totalorder %s36, %s52
    %p54 = scmp.eq.s32.totalorder %s14, 0
    %p55 = por %p53, %p54
    %s56 = ssub.s32 %s16, %s23
    %p57 = scmp.eq.s32.totalorder %s56, 0
    %s59 = sadd.s32 %s58, 1
    %s60 = scalar_select %p57, %s58, %s59
    %p63 = pneg %p57
    %p64 = scmp.eq.s32.totalorder %s8, 1
    %p65 = por %p63, %p64
    %p66 = scmp.ne.s32.totalorder %s58, %s61
    %p67 = scmp.eq.s32.totalorder %s8, 0
    %p68 = por %p66, %p67
    %p69 = scmp.ne.s32.totalorder %s58, %s61
    %p70 = scmp.eq.s32.totalorder %s13, 1
    %p71 = por %p69, %p70
    %p72 = scmp.ne.s32.totalorder %s61, %s62
    %p73 = scmp.eq.s32.totalorder %s13, 0
    %p74 = por %p72, %p73
    %p75 = scmp.ne.s32.totalorder %s61, %s62
    %p76 = scmp.eq.s32.totalorder %s14, 1
    %p77 = por %p75, %p76
    %p79 = scmp.ne.s32.totalorder %s62, %s78
    %p80 = scmp.eq.s32.totalorder %s14, 0
    %p81 = por %p79, %p80
    %s82 = ssub.s32 %s15, %s27
    %s83 = ssub.s32 %s16, %s23
    %s84 = sor.u32 %s82, %s83
    %p85 = scmp.eq.s32.totalorder %s84, 0
    %s87 = sadd.s32 %s86, 1
    %s88 = scalar_select %p85, %s86, %s87
    %p91 = pneg %p85
    %p92 = scmp.eq.s32.totalorder %s8, 1
    %p93 = por %p91, %p92
    %p94 = scmp.ne.s32.totalorder %s86, %s89
    %p95 = scmp.eq.s32.totalorder %s8, 0
    %p96 = por %p94, %p95
    %p97 = scmp.ne.s32.totalorder %s86, %s89
    %p98 = scmp.eq.s32.totalorder %s13, 1
    %p99 = por %p97, %p98
    %p100 = scmp.ne.s32.totalorder %s89, %s90
    %p101 = scmp.eq.s32.totalorder %s13, 0
    %p102 = por %p100, %p101
    %p103 = scmp.ne.s32.totalorder %s89, %s90
    %p104 = scmp.eq.s32.totalorder %s14, 1
    %p105 = por %p103, %p104
    %p107 = scmp.ne.s32.totalorder %s90, %s106
    %p108 = scmp.eq.s32.totalorder %s14, 0
    %p109 = por %p107, %p108
    %p110 = scmp.le.s32.totalorder 1, %s8
    %p111 = scmp.lt.s32.totalorder %s8, 3
    %p112 = pnand %p110, %p111
    %p113 = pneg %p112
    // Predicated region
    $region9: #{_lambda_.8} parent=5 // pred_check
      _
    $region10: #{_lambda_.8} parent=5 // pred_check_branch
      %115 = sbr.rel (%p112) target = $region12
    $region11: #{_lambda_.8} parent=5 // pred_region
      %s116 = ssub.s32 %s8, 1
      // Predicated region
      $region13: #{_lambda_.8} parent=11 // pred_check
        %p117 = pneg %p74
      $region14: #{_lambda_.8} parent=11 // pred_check_branch
        %119 = sbr.rel (%p117) target = $region16
      $region15: #{_lambda_.8} parent=11 // pred_region
        %s120 = smul.u32 64, %s18
        %p121 = scmp.lt.s32.totalorder %s120, 63
        %s122 = scalar_select %p121, %s120, 63
        %s123 = smul.addr %s122, 2
        %s124 = scalar_lea.vmem %s1, %s123
        %s125 = smul.u32 64, %s18
      $region16: #{_lambda_.8} parent=11 // pred_fallthru
        _
    $region12: #{_lambda_.8} parent=5 // pred_fallthru
      _
    %p126 = scmp.lt.s32.totalorder %s8, 2
    // Predicated region
    $region17: #{_lambda_.8} parent=5 // pred_check
      %p127 = pneg %p126
    $region18: #{_lambda_.8} parent=5 // pred_check_branch
      %129 = sbr.rel (%p127) target = $region20
    $region19: #{_lambda_.8} parent=5 // pred_region
      // Predicated region
      $region21: #{_lambda_.8} parent=19 // pred_check
        %p130 = pneg %p42
      $region22: #{_lambda_.8} parent=19 // pred_check_branch
        %132 = sbr.rel (%p130) target = $region24
      $region23: #{_lambda_.8} parent=19 // pred_region
        %s133 = smul.u32 64, %s16
        %p134 = scmp.lt.s32.totalorder %s15, 1
        %s135 = scalar_select %p134, %s15, 1
        %p136 = scmp.lt.s32.totalorder %s133, 63
        %s137 = scalar_select %p136, %s133, 63
        %s138 = smul.addr %s135, 64
        %s139 = sadd.s32 %s137, %s138
        %s140 = smul.addr %s139, 2
        %s141 = scalar_lea.vmem %s0, %s140
        %s142 = smul.u32 64, %s16
      $region24: #{_lambda_.8} parent=19 // pred_fallthru
        _
    $region20: #{_lambda_.8} parent=5 // pred_fallthru
      _
    %p143 = scmp.le.s32.totalorder 1, %s8
    %p144 = scmp.lt.s32.totalorder %s8, 3
    %p145 = pnand %p143, %p144
    %p146 = pneg %p145
    // Predicated region
    $region25: #{_lambda_.8} parent=5 // pred_check
      _
    $region26: #{_lambda_.8} parent=5 // pred_check_branch
      %148 = sbr.rel (%p145) target = $region28
    $region27: #{_lambda_.8} parent=5 // pred_region
      %s149 = ssub.s32 %s8, 1
      %s150 = smul.u32 64, %s18
      %p151 = scmp.lt.s32.totalorder %s17, 1
      %s152 = scalar_select %p151, %s17, 1
      %p153 = scmp.lt.s32.totalorder %s150, 63
      %s154 = scalar_select %p153, %s150, 63
      %s155 = smul.addr %s152, 64
      %s156 = sadd.s32 %s154, %s155
      %s157 = smul.addr %s156, 2
      %s158 = scalar_lea.vmem %s0, %s157
      %p159 = pneg %p48
      %p160 = pneg %p45
      %s161 = smul.u32 64, %s18
      %p162 = scmp.lt.s32.totalorder %s161, 63
      %s163 = scalar_select %p162, %s161, 63
      %s164 = smul.addr %s163, 2
      %s165 = scalar_lea.vmem %s1, %s164
      %p166 = pneg %p74
      %p167 = pneg %p71
      %p168 = pneg %p102
      %p169 = pneg %p99
      %s170 = smul.u32 64, %s18
      %p171 = scmp.lt.s32.totalorder %s17, 1
      %s172 = scalar_select %p171, %s17, 1
      %p173 = scmp.lt.s32.totalorder %s170, 63
      %s174 = scalar_select %p173, %s170, 63
      %s175 = smul.addr %s172, 64
      %s176 = sadd.s32 %s174, %s175
      %s177 = scalar_lea.vmem %s2, %s176
      %s178 = smul.u32 64, %s18
      %p179 = scmp.lt.s32.totalorder %s17, 1
      %s180 = scalar_select %p179, %s17, 1
      %p181 = scmp.lt.s32.totalorder %s178, 63
      %s182 = scalar_select %p181, %s178, 63
      %s183 = smul.addr %s180, 64
      %s184 = sadd.s32 %s182, %s183
      %s185 = smul.addr %s184, 2
      %s186 = scalar_lea.vmem %s0, %s185
      %s187 = smul.u32 64, %s18
      %s188 = smul.u32 64, %s18
      %p189 = scmp.lt.s32.totalorder %s188, 63
      %s190 = scalar_select %p189, %s188, 63
      %s191 = smul.addr %s190, 2
      %s192 = scalar_lea.vmem %s1, %s191
      %s193 = smul.u32 64, %s18
      %s194 = smul.u32 64, %s18
      %p195 = scmp.lt.s32.totalorder %s17, 1
      %s196 = scalar_select %p195, %s17, 1
      %p197 = scmp.lt.s32.totalorder %s194, 63
      %s198 = scalar_select %p197, %s194, 63
      %s199 = smul.addr %s196, 64
      %s200 = sadd.s32 %s198, %s199
      %s201 = scalar_lea.vmem %s2, %s200
      %s202 = smul.u32 64, %s18
      %v203 = vld [vmem:[%s186] sm:$0xff]
      %v204 = vld [vmem:[%s186 + $0x8] sm:$0xff]
      %v205 = vld [vmem:[%s186 + $0x10] sm:$0xff]
      %v206 = vld [vmem:[%s186 + $0x18] sm:$0xff]
      %v207 = vld [vmem:[%s186 + $0x20] sm:$0xff]
      %v208 = vld [vmem:[%s186 + $0x28] sm:$0xff]
      %v209 = vld [vmem:[%s186 + $0x30] sm:$0xff]
      %v210 = vld [vmem:[%s186 + $0x38] sm:$0xff]
      %v211 = vld [vmem:[%s186 + $0x40] sm:$0xff]
      %v212 = vld [vmem:[%s186 + $0x48] sm:$0xff]
      %v213 = vld [vmem:[%s186 + $0x50] sm:$0xff]
      %v214 = vld [vmem:[%s186 + $0x58] sm:$0xff]
      %v215 = vld [vmem:[%s186 + $0x60] sm:$0xff]
      %v216 = vld [vmem:[%s186 + $0x68] sm:$0xff]
      %v217 = vld [vmem:[%s186 + $0x70] sm:$0xff]
      %v218 = vld [vmem:[%s186 + $0x78] sm:$0xff]
      %v219 = vld [vmem:[%s192] sm:$0xff]
      %v220 = vld [vmem:[%s192 + $0x8] sm:$0xff]
      %v221 = vld [vmem:[%s192 + $0x10] sm:$0xff]
      %v222 = vld [vmem:[%s192 + $0x18] sm:$0xff]
      %v223 = vld [vmem:[%s192 + $0x20] sm:$0xff]
      %v224 = vld [vmem:[%s192 + $0x28] sm:$0xff]
      %v225 = vld [vmem:[%s192 + $0x30] sm:$0xff]
      %v226 = vld [vmem:[%s192 + $0x38] sm:$0xff]
      %v227 = vld [vmem:[%s192 + $0x40] sm:$0xff]
      %v228 = vld [vmem:[%s192 + $0x48] sm:$0xff]
      %v229 = vld [vmem:[%s192 + $0x50] sm:$0xff]
      %v230 = vld [vmem:[%s192 + $0x58] sm:$0xff]
      %v231 = vld [vmem:[%s192 + $0x60] sm:$0xff]
      %v232 = vld [vmem:[%s192 + $0x68] sm:$0xff]
      %v233 = vld [vmem:[%s192 + $0x70] sm:$0xff]
      %v234 = vld [vmem:[%s192 + $0x78] sm:$0xff]
      %251 = vst [vmem:[#allocation1] ss:$4 sm:$0xff] %v203
      %s252 = scalar_lea.vmem [#allocation1], 32
      %253 = vst [vmem:[%s252] ss:$4 sm:$0xff] %v204
      %v254 = vld.sshfl [vmem:[#allocation1] sm:$0xff pattern:$0x73625140]
      %v255 = vld.sshfl [vmem:[#allocation1 + $0x8] sm:$0xff pattern:$0x73625140]
      %v256 = vld.sshfl [vmem:[#allocation1 + $0x10] sm:$0xff pattern:$0x73625140]
      %v257 = vld.sshfl [vmem:[#allocation1 + $0x18] sm:$0xff pattern:$0x73625140]
      %v258 = vld.sshfl [vmem:[#allocation1 + $0x20] sm:$0xff pattern:$0x73625140]
      %v259 = vld.sshfl [vmem:[#allocation1 + $0x28] sm:$0xff pattern:$0x73625140]
      %v260 = vld.sshfl [vmem:[#allocation1 + $0x30] sm:$0xff pattern:$0x73625140]
      %v261 = vld.sshfl [vmem:[#allocation1 + $0x38] sm:$0xff pattern:$0x73625140]
      %262 = vst [vmem:[#allocation1] ss:$4 sm:$0xff] %v205
      %263 = vst [vmem:[%s252] ss:$4 sm:$0xff] %v206
      %v264 = vld.sshfl [vmem:[#allocation1] sm:$0xff pattern:$0x73625140]
      %v265 = vld.sshfl [vmem:[#allocation1 + $0x8] sm:$0xff pattern:$0x73625140]
      %v266 = vld.sshfl [vmem:[#allocation1 + $0x10] sm:$0xff pattern:$0x73625140]
      %v267 = vld.sshfl [vmem:[#allocation1 + $0x18] sm:$0xff pattern:$0x73625140]
      %v268 = vld.sshfl [vmem:[#allocation1 + $0x20] sm:$0xff pattern:$0x73625140]
      %v269 = vld.sshfl [vmem:[#allocation1 + $0x28] sm:$0xff pattern:$0x73625140]
      %v270 = vld.sshfl [vmem:[#allocation1 + $0x30] sm:$0xff pattern:$0x73625140]
      %v271 = vld.sshfl [vmem:[#allocation1 + $0x38] sm:$0xff pattern:$0x73625140]
      %272 = vst [vmem:[#allocation1] ss:$4 sm:$0xff] %v207
      %273 = vst [vmem:[%s252] ss:$4 sm:$0xff] %v208
      %v274 = vld.sshfl [vmem:[#allocation1] sm:$0xff pattern:$0x73625140]
      %v275 = vld.sshfl [vmem:[#allocation1 + $0x8] sm:$0xff pattern:$0x73625140]
      %v276 = vld.sshfl [vmem:[#allocation1 + $0x10] sm:$0xff pattern:$0x73625140]
      %v277 = vld.sshfl [vmem:[#allocation1 + $0x18] sm:$0xff pattern:$0x73625140]
      %v278 = vld.sshfl [vmem:[#allocation1 + $0x20] sm:$0xff pattern:$0x73625140]
      %v279 = vld.sshfl [vmem:[#allocation1 + $0x28] sm:$0xff pattern:$0x73625140]
      %v280 = vld.sshfl [vmem:[#allocation1 + $0x30] sm:$0xff pattern:$0x73625140]
      %v281 = vld.sshfl [vmem:[#allocation1 + $0x38] sm:$0xff pattern:$0x73625140]
      %282 = vst [vmem:[#allocation1] ss:$4 sm:$0xff] %v209
      %283 = vst [vmem:[%s252] ss:$4 sm:$0xff] %v210
      %v284 = vld.sshfl [vmem:[#allocation1] sm:$0xff pattern:$0x73625140]
      %v285 = vld.sshfl [vmem:[#allocation1 + $0x8] sm:$0xff pattern:$0x73625140]
      %v286 = vld.sshfl [vmem:[#allocation1 + $0x10] sm:$0xff pattern:$0x73625140]
      %v287 = vld.sshfl [vmem:[#allocation1 + $0x18] sm:$0xff pattern:$0x73625140]
      %v288 = vld.sshfl [vmem:[#allocation1 + $0x20] sm:$0xff pattern:$0x73625140]
      %v289 = vld.sshfl [vmem:[#allocation1 + $0x28] sm:$0xff pattern:$0x73625140]
      %v290 = vld.sshfl [vmem:[#allocation1 + $0x30] sm:$0xff pattern:$0x73625140]
      %v291 = vld.sshfl [vmem:[#allocation1 + $0x38] sm:$0xff pattern:$0x73625140]
      %292 = vst [vmem:[#allocation1] ss:$4 sm:$0xff] %v211
      %293 = vst [vmem:[%s252] ss:$4 sm:$0xff] %v212
      %v294 = vld.sshfl [vmem:[#allocation1] sm:$0xff pattern:$0x73625140]
      %v295 = vld.sshfl [vmem:[#allocation1 + $0x8] sm:$0xff pattern:$0x73625140]
      %v296 = vld.sshfl [vmem:[#allocation1 + $0x10] sm:$0xff pattern:$0x73625140]
      %v297 = vld.sshfl [vmem:[#allocation1 + $0x18] sm:$0xff pattern:$0x73625140]
      %v298 = vld.sshfl [vmem:[#allocation1 + $0x20] sm:$0xff pattern:$0x73625140]
      %v299 = vld.sshfl [vmem:[#allocation1 + $0x28] sm:$0xff pattern:$0x73625140]
      %v300 = vld.sshfl [vmem:[#allocation1 + $0x30] sm:$0xff pattern:$0x73625140]
      %v301 = vld.sshfl [vmem:[#allocation1 + $0x38] sm:$0xff pattern:$0x73625140]
      %302 = vst [vmem:[#allocation1] ss:$4 sm:$0xff] %v213
      %303 = vst [vmem:[%s252] ss:$4 sm:$0xff] %v214
      %v304 = vld.sshfl [vmem:[#allocation1] sm:$0xff pattern:$0x73625140]
      %v305 = vld.sshfl [vmem:[#allocation1 + $0x8] sm:$0xff pattern:$0x73625140]
      %v306 = vld.sshfl [vmem:[#allocation1 + $0x10] sm:$0xff pattern:$0x73625140]
      %v307 = vld.sshfl [vmem:[#allocation1 + $0x18] sm:$0xff pattern:$0x73625140]
      %v308 = vld.sshfl [vmem:[#allocation1 + $0x20] sm:$0xff pattern:$0x73625140]
      %v309 = vld.sshfl [vmem:[#allocation1 + $0x28] sm:$0xff pattern:$0x73625140]
      %v310 = vld.sshfl [vmem:[#allocation1 + $0x30] sm:$0xff pattern:$0x73625140]
      %v311 = vld.sshfl [vmem:[#allocation1 + $0x38] sm:$0xff pattern:$0x73625140]
      %312 = vst [vmem:[#allocation1] ss:$4 sm:$0xff] %v215
      %313 = vst [vmem:[%s252] ss:$4 sm:$0xff] %v216
      %v314 = vld.sshfl [vmem:[#allocation1] sm:$0xff pattern:$0x73625140]
      %v315 = vld.sshfl [vmem:[#allocation1 + $0x8] sm:$0xff pattern:$0x73625140]
      %v316 = vld.sshfl [vmem:[#allocation1 + $0x10] sm:$0xff pattern:$0x73625140]
      %v317 = vld.sshfl [vmem:[#allocation1 + $0x18] sm:$0xff pattern:$0x73625140]
      %v318 = vld.sshfl [vmem:[#allocation1 + $0x20] sm:$0xff pattern:$0x73625140]
      %v319 = vld.sshfl [vmem:[#allocation1 + $0x28] sm:$0xff pattern:$0x73625140]
      %v320 = vld.sshfl [vmem:[#allocation1 + $0x30] sm:$0xff pattern:$0x73625140]
      %v321 = vld.sshfl [vmem:[#allocation1 + $0x38] sm:$0xff pattern:$0x73625140]
      %322 = vst [vmem:[#allocation1] ss:$4 sm:$0xff] %v217
      %323 = vst [vmem:[%s252] ss:$4 sm:$0xff] %v218
      %v324 = vld.sshfl [vmem:[#allocation1] sm:$0xff pattern:$0x73625140]
      %v325 = vld.sshfl [vmem:[#allocation1 + $0x8] sm:$0xff pattern:$0x73625140]
      %v326 = vld.sshfl [vmem:[#allocation1 + $0x10] sm:$0xff pattern:$0x73625140]
      %v327 = vld.sshfl [vmem:[#allocation1 + $0x18] sm:$0xff pattern:$0x73625140]
      %v328 = vld.sshfl [vmem:[#allocation1 + $0x20] sm:$0xff pattern:$0x73625140]
      %v329 = vld.sshfl [vmem:[#allocation1 + $0x28] sm:$0xff pattern:$0x73625140]
      %v330 = vld.sshfl [vmem:[#allocation1 + $0x30] sm:$0xff pattern:$0x73625140]
      %v331 = vld.sshfl [vmem:[#allocation1 + $0x38] sm:$0xff pattern:$0x73625140]
      %vm396 = vcmask 1041408
      %v397 = vsel %vm396, %v254, -inf
      %v398 = vrot.slane %v397, 4
      %v399 = vmax.f32 %v397, %v398
      %v400 = vrot.slane %v399, 2
      %v401 = vmax.f32 %v399, %v400
      %v402 = vrot.slane %v401, 1
      %v403 = vmax.f32 %v401, %v402
      %v404 = vsel %vm396, %v255, -inf
      %v405 = vrot.slane %v404, 4
      %v406 = vmax.f32 %v404, %v405
      %v407 = vrot.slane %v406, 2
      %v408 = vmax.f32 %v406, %v407
      %v409 = vrot.slane %v408, 1
      %v410 = vmax.f32 %v408, %v409
      %v411 = vsel %vm396, %v256, -inf
      %v412 = vrot.slane %v411, 4
      %v413 = vmax.f32 %v411, %v412
      %v414 = vrot.slane %v413, 2
      %v415 = vmax.f32 %v413, %v414
      %v416 = vrot.slane %v415, 1
      %v417 = vmax.f32 %v415, %v416
      %v418 = vsel %vm396, %v257, -inf
      %v419 = vrot.slane %v418, 4
      %v420 = vmax.f32 %v418, %v419
      %v421 = vrot.slane %v420, 2
      %v422 = vmax.f32 %v420, %v421
      %v423 = vrot.slane %v422, 1
      %v424 = vmax.f32 %v422, %v423
      %v425 = vsel %vm396, %v258, -inf
      %v426 = vrot.slane %v425, 4
      %v427 = vmax.f32 %v425, %v426
      %v428 = vrot.slane %v427, 2
      %v429 = vmax.f32 %v427, %v428
      %v430 = vrot.slane %v429, 1
      %v431 = vmax.f32 %v429, %v430
      %v432 = vsel %vm396, %v259, -inf
      %v433 = vrot.slane %v432, 4
      %v434 = vmax.f32 %v432, %v433
      %v435 = vrot.slane %v434, 2
      %v436 = vmax.f32 %v434, %v435
      %v437 = vrot.slane %v436, 1
      %v438 = vmax.f32 %v436, %v437
      %v439 = vsel %vm396, %v260, -inf
      %v440 = vrot.slane %v439, 4
      %v441 = vmax.f32 %v439, %v440
      %v442 = vrot.slane %v441, 2
      %v443 = vmax.f32 %v441, %v442
      %v444 = vrot.slane %v443, 1
      %v445 = vmax.f32 %v443, %v444
      %v446 = vsel %vm396, %v261, -inf
      %v447 = vrot.slane %v446, 4
      %v448 = vmax.f32 %v446, %v447
      %v449 = vrot.slane %v448, 2
      %v450 = vmax.f32 %v448, %v449
      %v451 = vrot.slane %v450, 1
      %v452 = vmax.f32 %v450, %v451
      %v453 = vsel %vm396, %v264, -inf
      %v454 = vrot.slane %v453, 4
      %v455 = vmax.f32 %v453, %v454
      %v456 = vrot.slane %v455, 2
      %v457 = vmax.f32 %v455, %v456
      %v458 = vrot.slane %v457, 1
      %v459 = vmax.f32 %v457, %v458
      %v460 = vsel %vm396, %v265, -inf
      %v461 = vrot.slane %v460, 4
      %v462 = vmax.f32 %v460, %v461
      %v463 = vrot.slane %v462, 2
      %v464 = vmax.f32 %v462, %v463
      %v465 = vrot.slane %v464, 1
      %v466 = vmax.f32 %v464, %v465
      %v467 = vsel %vm396, %v266, -inf
      %v468 = vrot.slane %v467, 4
      %v469 = vmax.f32 %v467, %v468
      %v470 = vrot.slane %v469, 2
      %v471 = vmax.f32 %v469, %v470
      %v472 = vrot.slane %v471, 1
      %v473 = vmax.f32 %v471, %v472
      %v474 = vsel %vm396, %v267, -inf
      %v475 = vrot.slane %v474, 4
      %v476 = vmax.f32 %v474, %v475
      %v477 = vrot.slane %v476, 2
      %v478 = vmax.f32 %v476, %v477
      %v479 = vrot.slane %v478, 1
      %v480 = vmax.f32 %v478, %v479
      %v481 = vsel %vm396, %v268, -inf
      %v482 = vrot.slane %v481, 4
      %v483 = vmax.f32 %v481, %v482
      %v484 = vrot.slane %v483, 2
      %v485 = vmax.f32 %v483, %v484
      %v486 = vrot.slane %v485, 1
      %v487 = vmax.f32 %v485, %v486
      %v488 = vsel %vm396, %v269, -inf
      %v489 = vrot.slane %v488, 4
      %v490 = vmax.f32 %v488, %v489
      %v491 = vrot.slane %v490, 2
      %v492 = vmax.f32 %v490, %v491
      %v493 = vrot.slane %v492, 1
      %v494 = vmax.f32 %v492, %v493
      %v495 = vsel %vm396, %v270, -inf
      %v496 = vrot.slane %v495, 4
      %v497 = vmax.f32 %v495, %v496
      %v498 = vrot.slane %v497, 2
      %v499 = vmax.f32 %v497, %v498
      %v500 = vrot.slane %v499, 1
      %v501 = vmax.f32 %v499, %v500
      %v502 = vsel %vm396, %v271, -inf
      %v503 = vrot.slane %v502, 4
      %v504 = vmax.f32 %v502, %v503
      %v505 = vrot.slane %v504, 2
      %v506 = vmax.f32 %v504, %v505
      %v507 = vrot.slane %v506, 1
      %v508 = vmax.f32 %v506, %v507
      %v509 = vsel %vm396, %v274, -inf
      %v510 = vrot.slane %v509, 4
      %v511 = vmax.f32 %v509, %v510
      %v512 = vrot.slane %v511, 2
      %v513 = vmax.f32 %v511, %v512
      %v514 = vrot.slane %v513, 1
      %v515 = vmax.f32 %v513, %v514
      %v516 = vsel %vm396, %v275, -inf
      %v517 = vrot.slane %v516, 4
      %v518 = vmax.f32 %v516, %v517
      %v519 = vrot.slane %v518, 2
      %v520 = vmax.f32 %v518, %v519
      %v521 = vrot.slane %v520, 1
      %v522 = vmax.f32 %v520, %v521
      %v523 = vsel %vm396, %v276, -inf
      %v524 = vrot.slane %v523, 4
      %v525 = vmax.f32 %v523, %v524
      %v526 = vrot.slane %v525, 2
      %v527 = vmax.f32 %v525, %v526
      %v528 = vrot.slane %v527, 1
      %v529 = vmax.f32 %v527, %v528
      %v530 = vsel %vm396, %v277, -inf
      %v531 = vrot.slane %v530, 4
      %v532 = vmax.f32 %v530, %v531
      %v533 = vrot.slane %v532, 2
      %v534 = vmax.f32 %v532, %v533
      %v535 = vrot.slane %v534, 1
      %v536 = vmax.f32 %v534, %v535
      %v537 = vsel %vm396, %v278, -inf
      %v538 = vrot.slane %v537, 4
      %v539 = vmax.f32 %v537, %v538
      %v540 = vrot.slane %v539, 2
      %v541 = vmax.f32 %v539, %v540
      %v542 = vrot.slane %v541, 1
      %v543 = vmax.f32 %v541, %v542
      %v544 = vsel %vm396, %v279, -inf
      %v545 = vrot.slane %v544, 4
      %v546 = vmax.f32 %v544, %v545
      %v547 = vrot.slane %v546, 2
      %v548 = vmax.f32 %v546, %v547
      %v549 = vrot.slane %v548, 1
      %v550 = vmax.f32 %v548, %v549
      %v551 = vsel %vm396, %v280, -inf
      %v552 = vrot.slane %v551, 4
      %v553 = vmax.f32 %v551, %v552
      %v554 = vrot.slane %v553, 2
      %v555 = vmax.f32 %v553, %v554
      %v556 = vrot.slane %v555, 1
      %v557 = vmax.f32 %v555, %v556
      %v558 = vsel %vm396, %v281, -inf
      %v559 = vrot.slane %v558, 4
      %v560 = vmax.f32 %v558, %v559
      %v561 = vrot.slane %v560, 2
      %v562 = vmax.f32 %v560, %v561
      %v563 = vrot.slane %v562, 1
      %v564 = vmax.f32 %v562, %v563
      %v565 = vsel %vm396, %v284, -inf
      %v566 = vrot.slane %v565, 4
      %v567 = vmax.f32 %v565, %v566
      %v568 = vrot.slane %v567, 2
      %v569 = vmax.f32 %v567, %v568
      %v570 = vrot.slane %v569, 1
      %v571 = vmax.f32 %v569, %v570
      %v572 = vsel %vm396, %v285, -inf
      %v573 = vrot.slane %v572, 4
      %v574 = vmax.f32 %v572, %v573
      %v575 = vrot.slane %v574, 2
      %v576 = vmax.f32 %v574, %v575
      %v577 = vrot.slane %v576, 1
      %v578 = vmax.f32 %v576, %v577
      %v579 = vsel %vm396, %v286, -inf
      %v580 = vrot.slane %v579, 4
      %v581 = vmax.f32 %v579, %v580
      %v582 = vrot.slane %v581, 2
      %v583 = vmax.f32 %v581, %v582
      %v584 = vrot.slane %v583, 1
      %v585 = vmax.f32 %v583, %v584
      %v586 = vsel %vm396, %v287, -inf
      %v587 = vrot.slane %v586, 4
      %v588 = vmax.f32 %v586, %v587
      %v589 = vrot.slane %v588, 2
      %v590 = vmax.f32 %v588, %v589
      %v591 = vrot.slane %v590, 1
      %v592 = vmax.f32 %v590, %v591
      %v593 = vsel %vm396, %v288, -inf
      %v594 = vrot.slane %v593, 4
      %v595 = vmax.f32 %v593, %v594
      %v596 = vrot.slane %v595, 2
      %v597 = vmax.f32 %v595, %v596
      %v598 = vrot.slane %v597, 1
      %v599 = vmax.f32 %v597, %v598
      %v600 = vsel %vm396, %v289, -inf
      %v601 = vrot.slane %v600, 4
      %v602 = vmax.f32 %v600, %v601
      %v603 = vrot.slane %v602, 2
      %v604 = vmax.f32 %v602, %v603
      %v605 = vrot.slane %v604, 1
      %v606 = vmax.f32 %v604, %v605
      %v607 = vsel %vm396, %v290, -inf
      %v608 = vrot.slane %v607, 4
      %v609 = vmax.f32 %v607, %v608
      %v610 = vrot.slane %v609, 2
      %v611 = vmax.f32 %v609, %v610
      %v612 = vrot.slane %v611, 1
      %v613 = vmax.f32 %v611, %v612
      %v614 = vsel %vm396, %v291, -inf
      %v615 = vrot.slane %v614, 4
      %v616 = vmax.f32 %v614, %v615
      %v617 = vrot.slane %v616, 2
      %v618 = vmax.f32 %v616, %v617
      %v619 = vrot.slane %v618, 1
      %v620 = vmax.f32 %v618, %v619
      %v621 = vsel %vm396, %v294, -inf
      %v622 = vrot.slane %v621, 4
      %v623 = vmax.f32 %v621, %v622
      %v624 = vrot.slane %v623, 2
      %v625 = vmax.f32 %v623, %v624
      %v626 = vrot.slane %v625, 1
      %v627 = vmax.f32 %v625, %v626
      %v628 = vsel %vm396, %v295, -inf
      %v629 = vrot.slane %v628, 4
      %v630 = vmax.f32 %v628, %v629
      %v631 = vrot.slane %v630, 2
      %v632 = vmax.f32 %v630, %v631
      %v633 = vrot.slane %v632, 1
      %v634 = vmax.f32 %v632, %v633
      %v635 = vsel %vm396, %v296, -inf
      %v636 = vrot.slane %v635, 4
      %v637 = vmax.f32 %v635, %v636
      %v638 = vrot.slane %v637, 2
      %v639 = vmax.f32 %v637, %v638
      %v640 = vrot.slane %v639, 1
      %v641 = vmax.f32 %v639, %v640
      %v642 = vsel %vm396, %v297, -inf
      %v643 = vrot.slane %v642, 4
      %v644 = vmax.f32 %v642, %v643
      %v645 = vrot.slane %v644, 2
      %v646 = vmax.f32 %v644, %v645
      %v647 = vrot.slane %v646, 1
      %v648 = vmax.f32 %v646, %v647
      %v649 = vsel %vm396, %v298, -inf
      %v650 = vrot.slane %v649, 4
      %v651 = vmax.f32 %v649, %v650
      %v652 = vrot.slane %v651, 2
      %v653 = vmax.f32 %v651, %v652
      %v654 = vrot.slane %v653, 1
      %v655 = vmax.f32 %v653, %v654
      %v656 = vsel %vm396, %v299, -inf
      %v657 = vrot.slane %v656, 4
      %v658 = vmax.f32 %v656, %v657
      %v659 = vrot.slane %v658, 2
      %v660 = vmax.f32 %v658, %v659
      %v661 = vrot.slane %v660, 1
      %v662 = vmax.f32 %v660, %v661
      %v663 = vsel %vm396, %v300, -inf
      %v664 = vrot.slane %v663, 4
      %v665 = vmax.f32 %v663, %v664
      %v666 = vrot.slane %v665, 2
      %v667 = vmax.f32 %v665, %v666
      %v668 = vrot.slane %v667, 1
      %v669 = vmax.f32 %v667, %v668
      %v670 = vsel %vm396, %v301, -inf
      %v671 = vrot.slane %v670, 4
      %v672 = vmax.f32 %v670, %v671
      %v673 = vrot.slane %v672, 2
      %v674 = vmax.f32 %v672, %v673
      %v675 = vrot.slane %v674, 1
      %v676 = vmax.f32 %v674, %v675
      %v677 = vsel %vm396, %v304, -inf
      %v678 = vrot.slane %v677, 4
      %v679 = vmax.f32 %v677, %v678
      %v680 = vrot.slane %v679, 2
      %v681 = vmax.f32 %v679, %v680
      %v682 = vrot.slane %v681, 1
      %v683 = vmax.f32 %v681, %v682
      %v684 = vsel %vm396, %v305, -inf
      %v685 = vrot.slane %v684, 4
      %v686 = vmax.f32 %v684, %v685
      %v687 = vrot.slane %v686, 2
      %v688 = vmax.f32 %v686, %v687
      %v689 = vrot.slane %v688, 1
      %v690 = vmax.f32 %v688, %v689
      %v691 = vsel %vm396, %v306, -inf
      %v692 = vrot.slane %v691, 4
      %v693 = vmax.f32 %v691, %v692
      %v694 = vrot.slane %v693, 2
      %v695 = vmax.f32 %v693, %v694
      %v696 = vrot.slane %v695, 1
      %v697 = vmax.f32 %v695, %v696
      %v698 = vsel %vm396, %v307, -inf
      %v699 = vrot.slane %v698, 4
      %v700 = vmax.f32 %v698, %v699
      %v701 = vrot.slane %v700, 2
      %v702 = vmax.f32 %v700, %v701
      %v703 = vrot.slane %v702, 1
      %v704 = vmax.f32 %v702, %v703
      %v705 = vsel %vm396, %v308, -inf
      %v706 = vrot.slane %v705, 4
      %v707 = vmax.f32 %v705, %v706
      %v708 = vrot.slane %v707, 2
      %v709 = vmax.f32 %v707, %v708
      %v710 = vrot.slane %v709, 1
      %v711 = vmax.f32 %v709, %v710
      %v712 = vsel %vm396, %v309, -inf
      %v713 = vrot.slane %v712, 4
      %v714 = vmax.f32 %v712, %v713
      %v715 = vrot.slane %v714, 2
      %v716 = vmax.f32 %v714, %v715
      %v717 = vrot.slane %v716, 1
      %v718 = vmax.f32 %v716, %v717
      %v719 = vsel %vm396, %v310, -inf
      %v720 = vrot.slane %v719, 4
      %v721 = vmax.f32 %v719, %v720
      %v722 = vrot.slane %v721, 2
      %v723 = vmax.f32 %v721, %v722
      %v724 = vrot.slane %v723, 1
      %v725 = vmax.f32 %v723, %v724
      %v726 = vsel %vm396, %v311, -inf
      %v727 = vrot.slane %v726, 4
      %v728 = vmax.f32 %v726, %v727
      %v729 = vrot.slane %v728, 2
      %v730 = vmax.f32 %v728, %v729
      %v731 = vrot.slane %v730, 1
      %v732 = vmax.f32 %v730, %v731
      %v733 = vsel %vm396, %v314, -inf
      %v734 = vrot.slane %v733, 4
      %v735 = vmax.f32 %v733, %v734
      %v736 = vrot.slane %v735, 2
      %v737 = vmax.f32 %v735, %v736
      %v738 = vrot.slane %v737, 1
      %v739 = vmax.f32 %v737, %v738
      %v740 = vsel %vm396, %v315, -inf
      %v741 = vrot.slane %v740, 4
      %v742 = vmax.f32 %v740, %v741
      %v743 = vrot.slane %v742, 2
      %v744 = vmax.f32 %v742, %v743
      %v745 = vrot.slane %v744, 1
      %v746 = vmax.f32 %v744, %v745
      %v747 = vsel %vm396, %v316, -inf
      %v748 = vrot.slane %v747, 4
      %v749 = vmax.f32 %v747, %v748
      %v750 = vrot.slane %v749, 2
      %v751 = vmax.f32 %v749, %v750
      %v752 = vrot.slane %v751, 1
      %v753 = vmax.f32 %v751, %v752
      %v754 = vsel %vm396, %v317, -inf
      %v755 = vrot.slane %v754, 4
      %v756 = vmax.f32 %v754, %v755
      %v757 = vrot.slane %v756, 2
      %v758 = vmax.f32 %v756, %v757
      %v759 = vrot.slane %v758, 1
      %v760 = vmax.f32 %v758, %v759
      %v761 = vsel %vm396, %v318, -inf
      %v762 = vrot.slane %v761, 4
      %v763 = vmax.f32 %v761, %v762
      %v764 = vrot.slane %v763, 2
      %v765 = vmax.f32 %v763, %v764
      %v766 = vrot.slane %v765, 1
      %v767 = vmax.f32 %v765, %v766
      %v768 = vsel %vm396, %v319, -inf
      %v769 = vrot.slane %v768, 4
      %v770 = vmax.f32 %v768, %v769
      %v771 = vrot.slane %v770, 2
      %v772 = vmax.f32 %v770, %v771
      %v773 = vrot.slane %v772, 1
      %v774 = vmax.f32 %v772, %v773
      %v775 = vsel %vm396, %v320, -inf
      %v776 = vrot.slane %v775, 4
      %v777 = vmax.f32 %v775, %v776
      %v778 = vrot.slane %v777, 2
      %v779 = vmax.f32 %v777, %v778
      %v780 = vrot.slane %v779, 1
      %v781 = vmax.f32 %v779, %v780
      %v782 = vsel %vm396, %v321, -inf
      %v783 = vrot.slane %v782, 4
      %v784 = vmax.f32 %v782, %v783
      %v785 = vrot.slane %v784, 2
      %v786 = vmax.f32 %v784, %v785
      %v787 = vrot.slane %v786, 1
      %v788 = vmax.f32 %v786, %v787
      %v789 = vsel %vm396, %v324, -inf
      %v790 = vrot.slane %v789, 4
      %v791 = vmax.f32 %v789, %v790
      %v792 = vrot.slane %v791, 2
      %v793 = vmax.f32 %v791, %v792
      %v794 = vrot.slane %v793, 1
      %v795 = vmax.f32 %v793, %v794
      %v796 = vsel %vm396, %v325, -inf
      %v797 = vrot.slane %v796, 4
      %v798 = vmax.f32 %v796, %v797
      %v799 = vrot.slane %v798, 2
      %v800 = vmax.f32 %v798, %v799
      %v801 = vrot.slane %v800, 1
      %v802 = vmax.f32 %v800, %v801
      %v803 = vsel %vm396, %v326, -inf
      %v804 = vrot.slane %v803, 4
      %v805 = vmax.f32 %v803, %v804
      %v806 = vrot.slane %v805, 2
      %v807 = vmax.f32 %v805, %v806
      %v808 = vrot.slane %v807, 1
      %v809 = vmax.f32 %v807, %v808
      %v810 = vsel %vm396, %v327, -inf
      %v811 = vrot.slane %v810, 4
      %v812 = vmax.f32 %v810, %v811
      %v813 = vrot.slane %v812, 2
      %v814 = vmax.f32 %v812, %v813
      %v815 = vrot.slane %v814, 1
      %v816 = vmax.f32 %v814, %v815
      %v817 = vsel %vm396, %v328, -inf
      %v818 = vrot.slane %v817, 4
      %v819 = vmax.f32 %v817, %v818
      %v820 = vrot.slane %v819, 2
      %v821 = vmax.f32 %v819, %v820
      %v822 = vrot.slane %v821, 1
      %v823 = vmax.f32 %v821, %v822
      %v824 = vsel %vm396, %v329, -inf
      %v825 = vrot.slane %v824, 4
      %v826 = vmax.f32 %v824, %v825
      %v827 = vrot.slane %v826, 2
      %v828 = vmax.f32 %v826, %v827
      %v829 = vrot.slane %v828, 1
      %v830 = vmax.f32 %v828, %v829
      %v831 = vsel %vm396, %v330, -inf
      %v832 = vrot.slane %v831, 4
      %v833 = vmax.f32 %v831, %v832
      %v834 = vrot.slane %v833, 2
      %v835 = vmax.f32 %v833, %v834
      %v836 = vrot.slane %v835, 1
      %v837 = vmax.f32 %v835, %v836
      %v838 = vsel %vm396, %v331, -inf
      %v839 = vrot.slane %v838, 4
      %v840 = vmax.f32 %v838, %v839
      %v841 = vrot.slane %v840, 2
      %v842 = vmax.f32 %v840, %v841
      %v843 = vrot.slane %v842, 1
      %v844 = vmax.f32 %v842, %v843
      %v909 = vrot.slane %v410, 6
      %v910 = vrot.slane %v417, 4
      %v911 = vrot.slane %v424, 2
      %v912 = vrot.slane %v438, 6
      %v913 = vrot.slane %v445, 4
      %v914 = vrot.slane %v452, 2
      %v915 = vrot.slane %v466, 6
      %v916 = vrot.slane %v473, 4
      %v917 = vrot.slane %v480, 2
      %v918 = vrot.slane %v494, 6
      %v919 = vrot.slane %v501, 4
      %v920 = vrot.slane %v508, 2
      %v921 = vrot.slane %v522, 6
      %v922 = vrot.slane %v529, 4
      %v923 = vrot.slane %v536, 2
      %v924 = vrot.slane %v550, 6
      %v925 = vrot.slane %v557, 4
      %v926 = vrot.slane %v564, 2
      %v927 = vrot.slane %v578, 6
      %v928 = vrot.slane %v585, 4
      %v929 = vrot.slane %v592, 2
      %v930 = vrot.slane %v606, 6
      %v931 = vrot.slane %v613, 4
      %v932 = vrot.slane %v620, 2
      %v933 = vrot.slane %v634, 6
      %v934 = vrot.slane %v641, 4
      %v935 = vrot.slane %v648, 2
      %v936 = vrot.slane %v662, 6
      %v937 = vrot.slane %v669, 4
      %v938 = vrot.slane %v676, 2
      %v939 = vrot.slane %v690, 6
      %v940 = vrot.slane %v697, 4
      %v941 = vrot.slane %v704, 2
      %v942 = vrot.slane %v718, 6
      %v943 = vrot.slane %v725, 4
      %v944 = vrot.slane %v732, 2
      %v945 = vrot.slane %v746, 6
      %v946 = vrot.slane %v753, 4
      %v947 = vrot.slane %v760, 2
      %v948 = vrot.slane %v774, 6
      %v949 = vrot.slane %v781, 4
      %v950 = vrot.slane %v788, 2
      %v951 = vrot.slane %v802, 6
      %v952 = vrot.slane %v809, 4
      %v953 = vrot.slane %v816, 2
      %v954 = vrot.slane %v830, 6
      %v955 = vrot.slane %v837, 4
      %v956 = vrot.slane %v844, 2
      %v957 = vsel %vm396, %v403, %v909
      %vm958 = vcmask 1045508
      %v959 = vsel %vm958, %v910, %v911
      %vm960 = vcmask 1043456
      %v961 = vsel %vm960, %v957, %v959
      %v962 = vsel %vm396, %v431, %v912
      %v963 = vsel %vm958, %v913, %v914
      %v964 = vsel %vm960, %v962, %v963
      %v965 = vsel %vm396, %v459, %v915
      %v966 = vsel %vm958, %v916, %v917
      %v967 = vsel %vm960, %v965, %v966
      %v968 = vsel %vm396, %v487, %v918
      %v969 = vsel %vm958, %v919, %v920
      %v970 = vsel %vm960, %v968, %v969
      %v971 = vsel %vm396, %v515, %v921
      %v972 = vsel %vm958, %v922, %v923
      %v973 = vsel %vm960, %v971, %v972
      %v974 = vsel %vm396, %v543, %v924
      %v975 = vsel %vm958, %v925, %v926
      %v976 = vsel %vm960, %v974, %v975
      %v977 = vsel %vm396, %v571, %v927
      %v978 = vsel %vm958, %v928, %v929
      %v979 = vsel %vm960, %v977, %v978
      %v980 = vsel %vm396, %v599, %v930
      %v981 = vsel %vm958, %v931, %v932
      %v982 = vsel %vm960, %v980, %v981
      %v983 = vsel %vm396, %v627, %v933
      %v984 = vsel %vm958, %v934, %v935
      %v985 = vsel %vm960, %v983, %v984
      %v986 = vsel %vm396, %v655, %v936
      %v987 = vsel %vm958, %v937, %v938
      %v988 = vsel %vm960, %v986, %v987
      %v989 = vsel %vm396, %v683, %v939
      %v990 = vsel %vm958, %v940, %v941
      %v991 = vsel %vm960, %v989, %v990
      %v992 = vsel %vm396, %v711, %v942
      %v993 = vsel %vm958, %v943, %v944
      %v994 = vsel %vm960, %v992, %v993
      %v995 = vsel %vm396, %v739, %v945
      %v996 = vsel %vm958, %v946, %v947
      %v997 = vsel %vm960, %v995, %v996
      %v998 = vsel %vm396, %v767, %v948
      %v999 = vsel %vm958, %v949, %v950
      %v1000 = vsel %vm960, %v998, %v999
      %v1001 = vsel %vm396, %v795, %v951
      %v1002 = vsel %vm958, %v952, %v953
      %v1003 = vsel %vm960, %v1001, %v1002
      %v1004 = vsel %vm396, %v823, %v954
      %v1005 = vsel %vm958, %v955, %v956
      %v1006 = vsel %vm960, %v1004, %v1005
      %v1023 = vsub.f32 %v203, %v961
      %v1024 = vsub.f32 %v204, %v964
      %v1025 = vsub.f32 %v205, %v967
      %v1026 = vsub.f32 %v206, %v970
      %v1027 = vsub.f32 %v207, %v973
      %v1028 = vsub.f32 %v208, %v976
      %v1029 = vsub.f32 %v209, %v979
      %v1030 = vsub.f32 %v210, %v982
      %v1031 = vsub.f32 %v211, %v985
      %v1032 = vsub.f32 %v212, %v988
      %v1033 = vsub.f32 %v213, %v991
      %v1034 = vsub.f32 %v214, %v994
      %v1035 = vsub.f32 %v215, %v997
      %v1036 = vsub.f32 %v216, %v1000
      %v1037 = vsub.f32 %v217, %v1003
      %v1038 = vsub.f32 %v218, %v1006
      %v1039 = vmul.f32 %v1023, 1.442695
      %v1040 = vpow.pop %v1039
      %v1041 = vmul.f32 %v1024, 1.442695
      %v1042 = vpow.pop %v1041
      %v1043 = vmul.f32 %v1025, 1.442695
      %v1044 = vpow.pop %v1043
      %v1045 = vmul.f32 %v1026, 1.442695
      %v1046 = vpow.pop %v1045
      %v1047 = vmul.f32 %v1027, 1.442695
      %v1048 = vpow.pop %v1047
      %v1049 = vmul.f32 %v1028, 1.442695
      %v1050 = vpow.pop %v1049
      %v1051 = vmul.f32 %v1029, 1.442695
      %v1052 = vpow.pop %v1051
      %v1053 = vmul.f32 %v1030, 1.442695
      %v1054 = vpow.pop %v1053
      %v1055 = vmul.f32 %v1031, 1.442695
      %v1056 = vpow.pop %v1055
      %v1057 = vmul.f32 %v1032, 1.442695
      %v1058 = vpow.pop %v1057
      %v1059 = vmul.f32 %v1033, 1.442695
      %v1060 = vpow.pop %v1059
      %v1061 = vmul.f32 %v1034, 1.442695
      %v1062 = vpow.pop %v1061
      %v1063 = vmul.f32 %v1035, 1.442695
      %v1064 = vpow.pop %v1063
      %v1065 = vmul.f32 %v1036, 1.442695
      %v1066 = vpow.pop %v1065
      %v1067 = vmul.f32 %v1037, 1.442695
      %v1068 = vpow.pop %v1067
      %v1069 = vmul.f32 %v1038, 1.442695
      %v1070 = vpow.pop %v1069
      %1087 = vst [vmem:[#allocation1] ss:$4 sm:$0xff] %v1040
      %s1088 = scalar_lea.vmem [#allocation1], 32
      %1089 = vst [vmem:[%s1088] ss:$4 sm:$0xff] %v1042
      %v1090 = vld.sshfl [vmem:[#allocation1] sm:$0xff pattern:$0x73625140]
      %v1091 = vld.sshfl [vmem:[#allocation1 + $0x8] sm:$0xff pattern:$0x73625140]
      %v1092 = vld.sshfl [vmem:[#allocation1 + $0x10] sm:$0xff pattern:$0x73625140]
      %v1093 = vld.sshfl [vmem:[#allocation1 + $0x18] sm:$0xff pattern:$0x73625140]
      %v1094 = vld.sshfl [vmem:[#allocation1 + $0x20] sm:$0xff pattern:$0x73625140]
      %v1095 = vld.sshfl [vmem:[#allocation1 + $0x28] sm:$0xff pattern:$0x73625140]
      %v1096 = vld.sshfl [vmem:[#allocation1 + $0x30] sm:$0xff pattern:$0x73625140]
      %v1097 = vld.sshfl [vmem:[#allocation1 + $0x38] sm:$0xff pattern:$0x73625140]
      %1098 = vst [vmem:[#allocation1] ss:$4 sm:$0xff] %v1044
      %1099 = vst [vmem:[%s1088] ss:$4 sm:$0xff] %v1046
      %v1100 = vld.sshfl [vmem:[#allocation1] sm:$0xff pattern:$0x73625140]
      %v1101 = vld.sshfl [vmem:[#allocation1 + $0x8] sm:$0xff pattern:$0x73625140]
      %v1102 = vld.sshfl [vmem:[#allocation1 + $0x10] sm:$0xff pattern:$0x73625140]
      %v1103 = vld.sshfl [vmem:[#allocation1 + $0x18] sm:$0xff pattern:$0x73625140]
      %v1104 = vld.sshfl [vmem:[#allocation1 + $0x20] sm:$0xff pattern:$0x73625140]
      %v1105 = vld.sshfl [vmem:[#allocation1 + $0x28] sm:$0xff pattern:$0x73625140]
      %v1106 = vld.sshfl [vmem:[#allocation1 + $0x30] sm:$0xff pattern:$0x73625140]
      %v1107 = vld.sshfl [vmem:[#allocation1 + $0x38] sm:$0xff pattern:$0x73625140]
      %1108 = vst [vmem:[#allocation1] ss:$4 sm:$0xff] %v1048
      %1109 = vst [vmem:[%s1088] ss:$4 sm:$0xff] %v1050
      %v1110 = vld.sshfl [vmem:[#allocation1] sm:$0xff pattern:$0x73625140]
      %v1111 = vld.sshfl [vmem:[#allocation1 + $0x8] sm:$0xff pattern:$0x73625140]
      %v1112 = vld.sshfl [vmem:[#allocation1 + $0x10] sm:$0xff pattern:$0x73625140]
      %v1113 = vld.sshfl [vmem:[#allocation1 + $0x18] sm:$0xff pattern:$0x73625140]
      %v1114 = vld.sshfl [vmem:[#allocation1 + $0x20] sm:$0xff pattern:$0x73625140]
      %v1115 = vld.sshfl [vmem:[#allocation1 + $0x28] sm:$0xff pattern:$0x73625140]
      %v1116 = vld.sshfl [vmem:[#allocation1 + $0x30] sm:$0xff pattern:$0x73625140]
      %v1117 = vld.sshfl [vmem:[#allocation1 + $0x38] sm:$0xff pattern:$0x73625140]
      %1118 = vst [vmem:[#allocation1] ss:$4 sm:$0xff] %v1052
      %1119 = vst [vmem:[%s1088] ss:$4 sm:$0xff] %v1054
      %v1120 = vld.sshfl [vmem:[#allocation1] sm:$0xff pattern:$0x73625140]
      %v1121 = vld.sshfl [vmem:[#allocation1 + $0x8] sm:$0xff pattern:$0x73625140]
      %v1122 = vld.sshfl [vmem:[#allocation1 + $0x10] sm:$0xff pattern:$0x73625140]
      %v1123 = vld.sshfl [vmem:[#allocation1 + $0x18] sm:$0xff pattern:$0x73625140]
      %v1124 = vld.sshfl [vmem:[#allocation1 + $0x20] sm:$0xff pattern:$0x73625140]
      %v1125 = vld.sshfl [vmem:[#allocation1 + $0x28] sm:$0xff pattern:$0x73625140]
      %v1126 = vld.sshfl [vmem:[#allocation1 + $0x30] sm:$0xff pattern:$0x73625140]
      %v1127 = vld.sshfl [vmem:[#allocation1 + $0x38] sm:$0xff pattern:$0x73625140]
      %1128 = vst [vmem:[#allocation1] ss:$4 sm:$0xff] %v1056
      %1129 = vst [vmem:[%s1088] ss:$4 sm:$0xff] %v1058
      %v1130 = vld.sshfl [vmem:[#allocation1] sm:$0xff pattern:$0x73625140]
      %v1131 = vld.sshfl [vmem:[#allocation1 + $0x8] sm:$0xff pattern:$0x73625140]
      %v1132 = vld.sshfl [vmem:[#allocation1 + $0x10] sm:$0xff pattern:$0x73625140]
      %v1133 = vld.sshfl [vmem:[#allocation1 + $0x18] sm:$0xff pattern:$0x73625140]
      %v1134 = vld.sshfl [vmem:[#allocation1 + $0x20] sm:$0xff pattern:$0x73625140]
      %v1135 = vld.sshfl [vmem:[#allocation1 + $0x28] sm:$0xff pattern:$0x73625140]
      %v1136 = vld.sshfl [vmem:[#allocation1 + $0x30] sm:$0xff pattern:$0x73625140]
      %v1137 = vld.sshfl [vmem:[#allocation1 + $0x38] sm:$0xff pattern:$0x73625140]
      %1138 = vst [vmem:[#allocation1] ss:$4 sm:$0xff] %v1060
      %1139 = vst [vmem:[%s1088] ss:$4 sm:$0xff] %v1062
      %v1140 = vld.sshfl [vmem:[#allocation1] sm:$0xff pattern:$0x73625140]
      %v1141 = vld.sshfl [vmem:[#allocation1 + $0x8] sm:$0xff pattern:$0x73625140]
      %v1142 = vld.sshfl [vmem:[#allocation1 + $0x10] sm:$0xff pattern:$0x73625140]
      %v1143 = vld.sshfl [vmem:[#allocation1 + $0x18] sm:$0xff pattern:$0x73625140]
      %v1144 = vld.sshfl [vmem:[#allocation1 + $0x20] sm:$0xff pattern:$0x73625140]
      %v1145 = vld.sshfl [vmem:[#allocation1 + $0x28] sm:$0xff pattern:$0x73625140]
      %v1146 = vld.sshfl [vmem:[#allocation1 + $0x30] sm:$0xff pattern:$0x73625140]
      %v1147 = vld.sshfl [vmem:[#allocation1 + $0x38] sm:$0xff pattern:$0x73625140]
      %1148 = vst [vmem:[#allocation1] ss:$4 sm:$0xff] %v1064
      %1149 = vst [vmem:[%s1088] ss:$4 sm:$0xff] %v1066
      %v1150 = vld.sshfl [vmem:[#allocation1] sm:$0xff pattern:$0x73625140]
      %v1151 = vld.sshfl [vmem:[#allocation1 + $0x8] sm:$0xff pattern:$0x73625140]
      %v1152 = vld.sshfl [vmem:[#allocation1 + $0x10] sm:$0xff pattern:$0x73625140]
      %v1153 = vld.sshfl [vmem:[#allocation1 + $0x18] sm:$0xff pattern:$0x73625140]
      %v1154 = vld.sshfl [vmem:[#allocation1 + $0x20] sm:$0xff pattern:$0x73625140]
      %v1155 = vld.sshfl [vmem:[#allocation1 + $0x28] sm:$0xff pattern:$0x73625140]
      %v1156 = vld.sshfl [vmem:[#allocation1 + $0x30] sm:$0xff pattern:$0x73625140]
      %v1157 = vld.sshfl [vmem:[#allocation1 + $0x38] sm:$0xff pattern:$0x73625140]
      %1158 = vst [vmem:[#allocation1] ss:$4 sm:$0xff] %v1068
      %1159 = vst [vmem:[%s1088] ss:$4 sm:$0xff] %v1070
      %v1160 = vld.sshfl [vmem:[#allocation1] sm:$0xff pattern:$0x73625140]
      %v1161 = vld.sshfl [vmem:[#allocation1 + $0x8] sm:$0xff pattern:$0x73625140]
      %v1162 = vld.sshfl [vmem:[#allocation1 + $0x10] sm:$0xff pattern:$0x73625140]
      %v1163 = vld.sshfl [vmem:[#allocation1 + $0x18] sm:$0xff pattern:$0x73625140]
      %v1164 = vld.sshfl [vmem:[#allocation1 + $0x20] sm:$0xff pattern:$0x73625140]
      %v1165 = vld.sshfl [vmem:[#allocation1 + $0x28] sm:$0xff pattern:$0x73625140]
      %v1166 = vld.sshfl [vmem:[#allocation1 + $0x30] sm:$0xff pattern:$0x73625140]
      %v1167 = vld.sshfl [vmem:[#allocation1 + $0x38] sm:$0xff pattern:$0x73625140]
      %v1232 = vsel %vm396, %v1090, 0.0
      %v1233 = vrot.slane %v1232, 4
      %v1234 = vadd.f32 %v1232, %v1233
      %v1235 = vrot.slane %v1234, 2
      %v1236 = vadd.f32 %v1234, %v1235
      %v1237 = vrot.slane %v1236, 1
      %v1238 = vadd.f32 %v1236, %v1237
      %v1239 = vsel %vm396, %v1091, 0.0
      %v1240 = vrot.slane %v1239, 4
      %v1241 = vadd.f32 %v1239, %v1240
      %v1242 = vrot.slane %v1241, 2
      %v1243 = vadd.f32 %v1241, %v1242
      %v1244 = vrot.slane %v1243, 1
      %v1245 = vadd.f32 %v1243, %v1244
      %v1246 = vsel %vm396, %v1092, 0.0
      %v1247 = vrot.slane %v1246, 4
      %v1248 = vadd.f32 %v1246, %v1247
      %v1249 = vrot.slane %v1248, 2
      %v1250 = vadd.f32 %v1248, %v1249
      %v1251 = vrot.slane %v1250, 1
      %v1252 = vadd.f32 %v1250, %v1251
      %v1253 = vsel %vm396, %v1093, 0.0
      %v1254 = vrot.slane %v1253, 4
      %v1255 = vadd.f32 %v1253, %v1254
      %v1256 = vrot.slane %v1255, 2
      %v1257 = vadd.f32 %v1255, %v1256
      %v1258 = vrot.slane %v1257, 1
      %v1259 = vadd.f32 %v1257, %v1258
      %v1260 = vsel %vm396, %v1094, 0.0
      %v1261 = vrot.slane %v1260, 4
      %v1262 = vadd.f32 %v1260, %v1261
      %v1263 = vrot.slane %v1262, 2
      %v1264 = vadd.f32 %v1262, %v1263
      %v1265 = vrot.slane %v1264, 1
      %v1266 = vadd.f32 %v1264, %v1265
      %v1267 = vsel %vm396, %v1095, 0.0
      %v1268 = vrot.slane %v1267, 4
      %v1269 = vadd.f32 %v1267, %v1268
      %v1270 = vrot.slane %v1269, 2
      %v1271 = vadd.f32 %v1269, %v1270
      %v1272 = vrot.slane %v1271, 1
      %v1273 = vadd.f32 %v1271, %v1272
      %v1274 = vsel %vm396, %v1096, 0.0
      %v1275 = vrot.slane %v1274, 4
      %v1276 = vadd.f32 %v1274, %v1275
      %v1277 = vrot.slane %v1276, 2
      %v1278 = vadd.f32 %v1276, %v1277
      %v1279 = vrot.slane %v1278, 1
      %v1280 = vadd.f32 %v1278, %v1279
      %v1281 = vsel %vm396, %v1097, 0.0
      %v1282 = vrot.slane %v1281, 4
      %v1283 = vadd.f32 %v1281, %v1282
      %v1284 = vrot.slane %v1283, 2
      %v1285 = vadd.f32 %v1283, %v1284
      %v1286 = vrot.slane %v1285, 1
      %v1287 = vadd.f32 %v1285, %v1286
      %v1288 = vsel %vm396, %v1100, 0.0
      %v1289 = vrot.slane %v1288, 4
      %v1290 = vadd.f32 %v1288, %v1289
      %v1291 = vrot.slane %v1290, 2
      %v1292 = vadd.f32 %v1290, %v1291
      %v1293 = vrot.slane %v1292, 1
      %v1294 = vadd.f32 %v1292, %v1293
      %v1295 = vsel %vm396, %v1101, 0.0
      %v1296 = vrot.slane %v1295, 4
      %v1297 = vadd.f32 %v1295, %v1296
      %v1298 = vrot.slane %v1297, 2
      %v1299 = vadd.f32 %v1297, %v1298
      %v1300 = vrot.slane %v1299, 1
      %v1301 = vadd.f32 %v1299, %v1300
      %v1302 = vsel %vm396, %v1102, 0.0
      %v1303 = vrot.slane %v1302, 4
      %v1304 = vadd.f32 %v1302, %v1303
      %v1305 = vrot.slane %v1304, 2
      %v1306 = vadd.f32 %v1304, %v1305
      %v1307 = vrot.slane %v1306, 1
      %v1308 = vadd.f32 %v1306, %v1307
      %v1309 = vsel %vm396, %v1103, 0.0
      %v1310 = vrot.slane %v1309, 4
      %v1311 = vadd.f32 %v1309, %v1310
      %v1312 = vrot.slane %v1311, 2
      %v1313 = vadd.f32 %v1311, %v1312
      %v1314 = vrot.slane %v1313, 1
      %v1315 = vadd.f32 %v1313, %v1314
      %v1316 = vsel %vm396, %v1104, 0.0
      %v1317 = vrot.slane %v1316, 4
      %v1318 = vadd.f32 %v1316, %v1317
      %v1319 = vrot.slane %v1318, 2
      %v1320 = vadd.f32 %v1318, %v1319
      %v1321 = vrot.slane %v1320, 1
      %v1322 = vadd.f32 %v1320, %v1321
      %v1323 = vsel %vm396, %v1105, 0.0
      %v1324 = vrot.slane %v1323, 4
      %v1325 = vadd.f32 %v1323, %v1324
      %v1326 = vrot.slane %v1325, 2
      %v1327 = vadd.f32 %v1325, %v1326
      %v1328 = vrot.slane %v1327, 1
      %v1329 = vadd.f32 %v1327, %v1328
      %v1330 = vsel %vm396, %v1106, 0.0
      %v1331 = vrot.slane %v1330, 4
      %v1332 = vadd.f32 %v1330, %v1331
      %v1333 = vrot.slane %v1332, 2
      %v1334 = vadd.f32 %v1332, %v1333
      %v1335 = vrot.slane %v1334, 1
      %v1336 = vadd.f32 %v1334, %v1335
      %v1337 = vsel %vm396, %v1107, 0.0
      %v1338 = vrot.slane %v1337, 4
      %v1339 = vadd.f32 %v1337, %v1338
      %v1340 = vrot.slane %v1339, 2
      %v1341 = vadd.f32 %v1339, %v1340
      %v1342 = vrot.slane %v1341, 1
      %v1343 = vadd.f32 %v1341, %v1342
      %v1344 = vsel %vm396, %v1110, 0.0
      %v1345 = vrot.slane %v1344, 4
      %v1346 = vadd.f32 %v1344, %v1345
      %v1347 = vrot.slane %v1346, 2
      %v1348 = vadd.f32 %v1346, %v1347
      %v1349 = vrot.slane %v1348, 1
      %v1350 = vadd.f32 %v1348, %v1349
      %v1351 = vsel %vm396, %v1111, 0.0
      %v1352 = vrot.slane %v1351, 4
      %v1353 = vadd.f32 %v1351, %v1352
      %v1354 = vrot.slane %v1353, 2
      %v1355 = vadd.f32 %v1353, %v1354
      %v1356 = vrot.slane %v1355, 1
      %v1357 = vadd.f32 %v1355, %v1356
      %v1358 = vsel %vm396, %v1112, 0.0
      %v1359 = vrot.slane %v1358, 4
      %v1360 = vadd.f32 %v1358, %v1359
      %v1361 = vrot.slane %v1360, 2
      %v1362 = vadd.f32 %v1360, %v1361
      %v1363 = vrot.slane %v1362, 1
      %v1364 = vadd.f32 %v1362, %v1363
      %v1365 = vsel %vm396, %v1113, 0.0
      %v1366 = vrot.slane %v1365, 4
      %v1367 = vadd.f32 %v1365, %v1366
      %v1368 = vrot.slane %v1367, 2
      %v1369 = vadd.f32 %v1367, %v1368
      %v1370 = vrot.slane %v1369, 1
      %v1371 = vadd.f32 %v1369, %v1370
      %v1372 = vsel %vm396, %v1114, 0.0
      %v1373 = vrot.slane %v1372, 4
      %v1374 = vadd.f32 %v1372, %v1373
      %v1375 = vrot.slane %v1374, 2
      %v1376 = vadd.f32 %v1374, %v1375
      %v1377 = vrot.slane %v1376, 1
      %v1378 = vadd.f32 %v1376, %v1377
      %v1379 = vsel %vm396, %v1115, 0.0
      %v1380 = vrot.slane %v1379, 4
      %v1381 = vadd.f32 %v1379, %v1380
      %v1382 = vrot.slane %v1381, 2
      %v1383 = vadd.f32 %v1381, %v1382
      %v1384 = vrot.slane %v1383, 1
      %v1385 = vadd.f32 %v1383, %v1384
      %v1386 = vsel %vm396, %v1116, 0.0
      %v1387 = vrot.slane %v1386, 4
      %v1388 = vadd.f32 %v1386, %v1387
      %v1389 = vrot.slane %v1388, 2
      %v1390 = vadd.f32 %v1388, %v1389
      %v1391 = vrot.slane %v1390, 1
      %v1392 = vadd.f32 %v1390, %v1391
      %v1393 = vsel %vm396, %v1117, 0.0
      %v1394 = vrot.slane %v1393, 4
      %v1395 = vadd.f32 %v1393, %v1394
      %v1396 = vrot.slane %v1395, 2
      %v1397 = vadd.f32 %v1395, %v1396
      %v1398 = vrot.slane %v1397, 1
      %v1399 = vadd.f32 %v1397, %v1398
      %v1400 = vsel %vm396, %v1120, 0.0
      %v1401 = vrot.slane %v1400, 4
      %v1402 = vadd.f32 %v1400, %v1401
      %v1403 = vrot.slane %v1402, 2
      %v1404 = vadd.f32 %v1402, %v1403
      %v1405 = vrot.slane %v1404, 1
      %v1406 = vadd.f32 %v1404, %v1405
      %v1407 = vsel %vm396, %v1121, 0.0
      %v1408 = vrot.slane %v1407, 4
      %v1409 = vadd.f32 %v1407, %v1408
      %v1410 = vrot.slane %v1409, 2
      %v1411 = vadd.f32 %v1409, %v1410
      %v1412 = vrot.slane %v1411, 1
      %v1413 = vadd.f32 %v1411, %v1412
      %v1414 = vsel %vm396, %v1122, 0.0
      %v1415 = vrot.slane %v1414, 4
      %v1416 = vadd.f32 %v1414, %v1415
      %v1417 = vrot.slane %v1416, 2
      %v1418 = vadd.f32 %v1416, %v1417
      %v1419 = vrot.slane %v1418, 1
      %v1420 = vadd.f32 %v1418, %v1419
      %v1421 = vsel %vm396, %v1123, 0.0
      %v1422 = vrot.slane %v1421, 4
      %v1423 = vadd.f32 %v1421, %v1422
      %v1424 = vrot.slane %v1423, 2
      %v1425 = vadd.f32 %v1423, %v1424
      %v1426 = vrot.slane %v1425, 1
      %v1427 = vadd.f32 %v1425, %v1426
      %v1428 = vsel %vm396, %v1124, 0.0
      %v1429 = vrot.slane %v1428, 4
      %v1430 = vadd.f32 %v1428, %v1429
      %v1431 = vrot.slane %v1430, 2
      %v1432 = vadd.f32 %v1430, %v1431
      %v1433 = vrot.slane %v1432, 1
      %v1434 = vadd.f32 %v1432, %v1433
      %v1435 = vsel %vm396, %v1125, 0.0
      %v1436 = vrot.slane %v1435, 4
      %v1437 = vadd.f32 %v1435, %v1436
      %v1438 = vrot.slane %v1437, 2
      %v1439 = vadd.f32 %v1437, %v1438
      %v1440 = vrot.slane %v1439, 1
      %v1441 = vadd.f32 %v1439, %v1440
      %v1442 = vsel %vm396, %v1126, 0.0
      %v1443 = vrot.slane %v1442, 4
      %v1444 = vadd.f32 %v1442, %v1443
      %v1445 = vrot.slane %v1444, 2
      %v1446 = vadd.f32 %v1444, %v1445
      %v1447 = vrot.slane %v1446, 1
      %v1448 = vadd.f32 %v1446, %v1447
      %v1449 = vsel %vm396, %v1127, 0.0
      %v1450 = vrot.slane %v1449, 4
      %v1451 = vadd.f32 %v1449, %v1450
      %v1452 = vrot.slane %v1451, 2
      %v1453 = vadd.f32 %v1451, %v1452
      %v1454 = vrot.slane %v1453, 1
      %v1455 = vadd.f32 %v1453, %v1454
      %v1456 = vsel %vm396, %v1130, 0.0
      %v1457 = vrot.slane %v1456, 4
      %v1458 = vadd.f32 %v1456, %v1457
      %v1459 = vrot.slane %v1458, 2
      %v1460 = vadd.f32 %v1458, %v1459
      %v1461 = vrot.slane %v1460, 1
      %v1462 = vadd.f32 %v1460, %v1461
      %v1463 = vsel %vm396, %v1131, 0.0
      %v1464 = vrot.slane %v1463, 4
      %v1465 = vadd.f32 %v1463, %v1464
      %v1466 = vrot.slane %v1465, 2
      %v1467 = vadd.f32 %v1465, %v1466
      %v1468 = vrot.slane %v1467, 1
      %v1469 = vadd.f32 %v1467, %v1468
      %v1470 = vsel %vm396, %v1132, 0.0
      %v1471 = vrot.slane %v1470, 4
      %v1472 = vadd.f32 %v1470, %v1471
      %v1473 = vrot.slane %v1472, 2
      %v1474 = vadd.f32 %v1472, %v1473
      %v1475 = vrot.slane %v1474, 1
      %v1476 = vadd.f32 %v1474, %v1475
      %v1477 = vsel %vm396, %v1133, 0.0
      %v1478 = vrot.slane %v1477, 4
      %v1479 = vadd.f32 %v1477, %v1478
      %v1480 = vrot.slane %v1479, 2
      %v1481 = vadd.f32 %v1479, %v1480
      %v1482 = vrot.slane %v1481, 1
      %v1483 = vadd.f32 %v1481, %v1482
      %v1484 = vsel %vm396, %v1134, 0.0
      %v1485 = vrot.slane %v1484, 4
      %v1486 = vadd.f32 %v1484, %v1485
      %v1487 = vrot.slane %v1486, 2
      %v1488 = vadd.f32 %v1486, %v1487
      %v1489 = vrot.slane %v1488, 1
      %v1490 = vadd.f32 %v1488, %v1489
      %v1491 = vsel %vm396, %v1135, 0.0
      %v1492 = vrot.slane %v1491, 4
      %v1493 = vadd.f32 %v1491, %v1492
      %v1494 = vrot.slane %v1493, 2
      %v1495 = vadd.f32 %v1493, %v1494
      %v1496 = vrot.slane %v1495, 1
      %v1497 = vadd.f32 %v1495, %v1496
      %v1498 = vsel %vm396, %v1136, 0.0
      %v1499 = vrot.slane %v1498, 4
      %v1500 = vadd.f32 %v1498, %v1499
      %v1501 = vrot.slane %v1500, 2
      %v1502 = vadd.f32 %v1500, %v1501
      %v1503 = vrot.slane %v1502, 1
      %v1504 = vadd.f32 %v1502, %v1503
      %v1505 = vsel %vm396, %v1137, 0.0
      %v1506 = vrot.slane %v1505, 4
      %v1507 = vadd.f32 %v1505, %v1506
      %v1508 = vrot.slane %v1507, 2
      %v1509 = vadd.f32 %v1507, %v1508
      %v1510 = vrot.slane %v1509, 1
      %v1511 = vadd.f32 %v1509, %v1510
      %v1512 = vsel %vm396, %v1140, 0.0
      %v1513 = vrot.slane %v1512, 4
      %v1514 = vadd.f32 %v1512, %v1513
      %v1515 = vrot.slane %v1514, 2
      %v1516 = vadd.f32 %v1514, %v1515
      %v1517 = vrot.slane %v1516, 1
      %v1518 = vadd.f32 %v1516, %v1517
      %v1519 = vsel %vm396, %v1141, 0.0
      %v1520 = vrot.slane %v1519, 4
      %v1521 = vadd.f32 %v1519, %v1520
      %v1522 = vrot.slane %v1521, 2
      %v1523 = vadd.f32 %v1521, %v1522
      %v1524 = vrot.slane %v1523, 1
      %v1525 = vadd.f32 %v1523, %v1524
      %v1526 = vsel %vm396, %v1142, 0.0
      %v1527 = vrot.slane %v1526, 4
      %v1528 = vadd.f32 %v1526, %v1527
      %v1529 = vrot.slane %v1528, 2
      %v1530 = vadd.f32 %v1528, %v1529
      %v1531 = vrot.slane %v1530, 1
      %v1532 = vadd.f32 %v1530, %v1531
      %v1533 = vsel %vm396, %v1143, 0.0
      %v1534 = vrot.slane %v1533, 4
      %v1535 = vadd.f32 %v1533, %v1534
      %v1536 = vrot.slane %v1535, 2
      %v1537 = vadd.f32 %v1535, %v1536
      %v1538 = vrot.slane %v1537, 1
      %v1539 = vadd.f32 %v1537, %v1538
      %v1540 = vsel %vm396, %v1144, 0.0
      %v1541 = vrot.slane %v1540, 4
      %v1542 = vadd.f32 %v1540, %v1541
      %v1543 = vrot.slane %v1542, 2
      %v1544 = vadd.f32 %v1542, %v1543
      %v1545 = vrot.slane %v1544, 1
      %v1546 = vadd.f32 %v1544, %v1545
      %v1547 = vsel %vm396, %v1145, 0.0
      %v1548 = vrot.slane %v1547, 4
      %v1549 = vadd.f32 %v1547, %v1548
      %v1550 = vrot.slane %v1549, 2
      %v1551 = vadd.f32 %v1549, %v1550
      %v1552 = vrot.slane %v1551, 1
      %v1553 = vadd.f32 %v1551, %v1552
      %v1554 = vsel %vm396, %v1146, 0.0
      %v1555 = vrot.slane %v1554, 4
      %v1556 = vadd.f32 %v1554, %v1555
      %v1557 = vrot.slane %v1556, 2
      %v1558 = vadd.f32 %v1556, %v1557
      %v1559 = vrot.slane %v1558, 1
      %v1560 = vadd.f32 %v1558, %v1559
      %v1561 = vsel %vm396, %v1147, 0.0
      %v1562 = vrot.slane %v1561, 4
      %v1563 = vadd.f32 %v1561, %v1562
      %v1564 = vrot.slane %v1563, 2
      %v1565 = vadd.f32 %v1563, %v1564
      %v1566 = vrot.slane %v1565, 1
      %v1567 = vadd.f32 %v1565, %v1566
      %v1568 = vsel %vm396, %v1150, 0.0
      %v1569 = vrot.slane %v1568, 4
      %v1570 = vadd.f32 %v1568, %v1569
      %v1571 = vrot.slane %v1570, 2
      %v1572 = vadd.f32 %v1570, %v1571
      %v1573 = vrot.slane %v1572, 1
      %v1574 = vadd.f32 %v1572, %v1573
      %v1575 = vsel %vm396, %v1151, 0.0
      %v1576 = vrot.slane %v1575, 4
      %v1577 = vadd.f32 %v1575, %v1576
      %v1578 = vrot.slane %v1577, 2
      %v1579 = vadd.f32 %v1577, %v1578
      %v1580 = vrot.slane %v1579, 1
      %v1581 = vadd.f32 %v1579, %v1580
      %v1582 = vsel %vm396, %v1152, 0.0
      %v1583 = vrot.slane %v1582, 4
      %v1584 = vadd.f32 %v1582, %v1583
      %v1585 = vrot.slane %v1584, 2
      %v1586 = vadd.f32 %v1584, %v1585
      %v1587 = vrot.slane %v1586, 1
      %v1588 = vadd.f32 %v1586, %v1587
      %v1589 = vsel %vm396, %v1153, 0.0
      %v1590 = vrot.slane %v1589, 4
      %v1591 = vadd.f32 %v1589, %v1590
      %v1592 = vrot.slane %v1591, 2
      %v1593 = vadd.f32 %v1591, %v1592
      %v1594 = vrot.slane %v1593, 1
      %v1595 = vadd.f32 %v1593, %v1594
      %v1596 = vsel %vm396, %v1154, 0.0
      %v1597 = vrot.slane %v1596, 4
      %v1598 = vadd.f32 %v1596, %v1597
      %v1599 = vrot.slane %v1598, 2
      %v1600 = vadd.f32 %v1598, %v1599
      %v1601 = vrot.slane %v1600, 1
      %v1602 = vadd.f32 %v1600, %v1601
      %v1603 = vsel %vm396, %v1155, 0.0
      %v1604 = vrot.slane %v1603, 4
      %v1605 = vadd.f32 %v1603, %v1604
      %v1606 = vrot.slane %v1605, 2
      %v1607 = vadd.f32 %v1605, %v1606
      %v1608 = vrot.slane %v1607, 1
      %v1609 = vadd.f32 %v1607, %v1608
      %v1610 = vsel %vm396, %v1156, 0.0
      %v1611 = vrot.slane %v1610, 4
      %v1612 = vadd.f32 %v1610, %v1611
      %v1613 = vrot.slane %v1612, 2
      %v1614 = vadd.f32 %v1612, %v1613
      %v1615 = vrot.slane %v1614, 1
      %v1616 = vadd.f32 %v1614, %v1615
      %v1617 = vsel %vm396, %v1157, 0.0
      %v1618 = vrot.slane %v1617, 4
      %v1619 = vadd.f32 %v1617, %v1618
      %v1620 = vrot.slane %v1619, 2
      %v1621 = vadd.f32 %v1619, %v1620
      %v1622 = vrot.slane %v1621, 1
      %v1623 = vadd.f32 %v1621, %v1622
      %v1624 = vsel %vm396, %v1160, 0.0
      %v1625 = vrot.slane %v1624, 4
      %v1626 = vadd.f32 %v1624, %v1625
      %v1627 = vrot.slane %v1626, 2
      %v1628 = vadd.f32 %v1626, %v1627
      %v1629 = vrot.slane %v1628, 1
      %v1630 = vadd.f32 %v1628, %v1629
      %v1631 = vsel %vm396, %v1161, 0.0
      %v1632 = vrot.slane %v1631, 4
      %v1633 = vadd.f32 %v1631, %v1632
      %v1634 = vrot.slane %v1633, 2
      %v1635 = vadd.f32 %v1633, %v1634
      %v1636 = vrot.slane %v1635, 1
      %v1637 = vadd.f32 %v1635, %v1636
      %v1638 = vsel %vm396, %v1162, 0.0
      %v1639 = vrot.slane %v1638, 4
      %v1640 = vadd.f32 %v1638, %v1639
      %v1641 = vrot.slane %v1640, 2
      %v1642 = vadd.f32 %v1640, %v1641
      %v1643 = vrot.slane %v1642, 1
      %v1644 = vadd.f32 %v1642, %v1643
      %v1645 = vsel %vm396, %v1163, 0.0
      %v1646 = vrot.slane %v1645, 4
      %v1647 = vadd.f32 %v1645, %v1646
      %v1648 = vrot.slane %v1647, 2
      %v1649 = vadd.f32 %v1647, %v1648
      %v1650 = vrot.slane %v1649, 1
      %v1651 = vadd.f32 %v1649, %v1650
      %v1652 = vsel %vm396, %v1164, 0.0
      %v1653 = vrot.slane %v1652, 4
      %v1654 = vadd.f32 %v1652, %v1653
      %v1655 = vrot.slane %v1654, 2
      %v1656 = vadd.f32 %v1654, %v1655
      %v1657 = vrot.slane %v1656, 1
      %v1658 = vadd.f32 %v1656, %v1657
      %v1659 = vsel %vm396, %v1165, 0.0
      %v1660 = vrot.slane %v1659, 4
      %v1661 = vadd.f32 %v1659, %v1660
      %v1662 = vrot.slane %v1661, 2
      %v1663 = vadd.f32 %v1661, %v1662
      %v1664 = vrot.slane %v1663, 1
      %v1665 = vadd.f32 %v1663, %v1664
      %v1666 = vsel %vm396, %v1166, 0.0
      %v1667 = vrot.slane %v1666, 4
      %v1668 = vadd.f32 %v1666, %v1667
      %v1669 = vrot.slane %v1668, 2
      %v1670 = vadd.f32 %v1668, %v1669
      %v1671 = vrot.slane %v1670, 1
      %v1672 = vadd.f32 %v1670, %v1671
      %v1673 = vsel %vm396, %v1167, 0.0
      %v1674 = vrot.slane %v1673, 4
      %v1675 = vadd.f32 %v1673, %v1674
      %v1676 = vrot.slane %v1675, 2
      %v1677 = vadd.f32 %v1675, %v1676
      %v1678 = vrot.slane %v1677, 1
      %v1679 = vadd.f32 %v1677, %v1678
      %v1680 = vmul.f32 %v1040, %v219
      %v1681 = vmul.f32 %v1042, %v220
      %v1682 = vmul.f32 %v1044, %v221
      %v1683 = vmul.f32 %v1046, %v222
      %v1684 = vmul.f32 %v1048, %v223
      %v1685 = vmul.f32 %v1050, %v224
      %v1686 = vmul.f32 %v1052, %v225
      %v1687 = vmul.f32 %v1054, %v226
      %v1688 = vmul.f32 %v1056, %v227
      %v1689 = vmul.f32 %v1058, %v228
      %v1690 = vmul.f32 %v1060, %v229
      %v1691 = vmul.f32 %v1062, %v230
      %v1692 = vmul.f32 %v1064, %v231
      %v1693 = vmul.f32 %v1066, %v232
      %v1694 = vmul.f32 %v1068, %v233
      %v1695 = vmul.f32 %v1070, %v234
      %1712 = vst [vmem:[#allocation1] ss:$4 sm:$0xff] %v1680
      %s1713 = scalar_lea.vmem [#allocation1], 32
      %1714 = vst [vmem:[%s1713] ss:$4 sm:$0xff] %v1681
      %v1715 = vld.sshfl [vmem:[#allocation1] sm:$0xff pattern:$0x73625140]
      %v1716 = vld.sshfl [vmem:[#allocation1 + $0x8] sm:$0xff pattern:$0x73625140]
      %v1717 = vld.sshfl [vmem:[#allocation1 + $0x10] sm:$0xff pattern:$0x73625140]
      %v1718 = vld.sshfl [vmem:[#allocation1 + $0x18] sm:$0xff pattern:$0x73625140]
      %v1719 = vld.sshfl [vmem:[#allocation1 + $0x20] sm:$0xff pattern:$0x73625140]
      %v1720 = vld.sshfl [vmem:[#allocation1 + $0x28] sm:$0xff pattern:$0x73625140]
      %v1721 = vld.sshfl [vmem:[#allocation1 + $0x30] sm:$0xff pattern:$0x73625140]
      %v1722 = vld.sshfl [vmem:[#allocation1 + $0x38] sm:$0xff pattern:$0x73625140]
      %1723 = vst [vmem:[#allocation1] ss:$4 sm:$0xff] %v1682
      %1724 = vst [vmem:[%s1713] ss:$4 sm:$0xff] %v1683
      %v1725 = vld.sshfl [vmem:[#allocation1] sm:$0xff pattern:$0x73625140]
      %v1726 = vld.sshfl [vmem:[#allocation1 + $0x8] sm:$0xff pattern:$0x73625140]
      %v1727 = vld.sshfl [vmem:[#allocation1 + $0x10] sm:$0xff pattern:$0x73625140]
      %v1728 = vld.sshfl [vmem:[#allocation1 + $0x18] sm:$0xff pattern:$0x73625140]
      %v1729 = vld.sshfl [vmem:[#allocation1 + $0x20] sm:$0xff pattern:$0x73625140]
      %v1730 = vld.sshfl [vmem:[#allocation1 + $0x28] sm:$0xff pattern:$0x73625140]
      %v1731 = vld.sshfl [vmem:[#allocation1 + $0x30] sm:$0xff pattern:$0x73625140]
      %v1732 = vld.sshfl [vmem:[#allocation1 + $0x38] sm:$0xff pattern:$0x73625140]
      %1733 = vst [vmem:[#allocation1] ss:$4 sm:$0xff] %v1684
      %1734 = vst [vmem:[%s1713] ss:$4 sm:$0xff] %v1685
      %v1735 = vld.sshfl [vmem:[#allocation1] sm:$0xff pattern:$0x73625140]
      %v1736 = vld.sshfl [vmem:[#allocation1 + $0x8] sm:$0xff pattern:$0x73625140]
      %v1737 = vld.sshfl [vmem:[#allocation1 + $0x10] sm:$0xff pattern:$0x73625140]
      %v1738 = vld.sshfl [vmem:[#allocation1 + $0x18] sm:$0xff pattern:$0x73625140]
      %v1739 = vld.sshfl [vmem:[#allocation1 + $0x20] sm:$0xff pattern:$0x73625140]
      %v1740 = vld.sshfl [vmem:[#allocation1 + $0x28] sm:$0xff pattern:$0x73625140]
      %v1741 = vld.sshfl [vmem:[#allocation1 + $0x30] sm:$0xff pattern:$0x73625140]
      %v1742 = vld.sshfl [vmem:[#allocation1 + $0x38] sm:$0xff pattern:$0x73625140]
      %1743 = vst [vmem:[#allocation1] ss:$4 sm:$0xff] %v1686
      %1744 = vst [vmem:[%s1713] ss:$4 sm:$0xff] %v1687
      %v1745 = vld.sshfl [vmem:[#allocation1] sm:$0xff pattern:$0x73625140]
      %v1746 = vld.sshfl [vmem:[#allocation1 + $0x8] sm:$0xff pattern:$0x73625140]
      %v1747 = vld.sshfl [vmem:[#allocation1 + $0x10] sm:$0xff pattern:$0x73625140]
      %v1748 = vld.sshfl [vmem:[#allocation1 + $0x18] sm:$0xff pattern:$0x73625140]
      %v1749 = vld.sshfl [vmem:[#allocation1 + $0x20] sm:$0xff pattern:$0x73625140]
      %v1750 = vld.sshfl [vmem:[#allocation1 + $0x28] sm:$0xff pattern:$0x73625140]
      %v1751 = vld.sshfl [vmem:[#allocation1 + $0x30] sm:$0xff pattern:$0x73625140]
      %v1752 = vld.sshfl [vmem:[#allocation1 + $0x38] sm:$0xff pattern:$0x73625140]
      %1753 = vst [vmem:[#allocation1] ss:$4 sm:$0xff] %v1688
      %1754 = vst [vmem:[%s1713] ss:$4 sm:$0xff] %v1689
      %v1755 = vld.sshfl [vmem:[#allocation1] sm:$0xff pattern:$0x73625140]
      %v1756 = vld.sshfl [vmem:[#allocation1 + $0x8] sm:$0xff pattern:$0x73625140]
      %v1757 = vld.sshfl [vmem:[#allocation1 + $0x10] sm:$0xff pattern:$0x73625140]
      %v1758 = vld.sshfl [vmem:[#allocation1 + $0x18] sm:$0xff pattern:$0x73625140]
      %v1759 = vld.sshfl [vmem:[#allocation1 + $0x20] sm:$0xff pattern:$0x73625140]
      %v1760 = vld.sshfl [vmem:[#allocation1 + $0x28] sm:$0xff pattern:$0x73625140]
      %v1761 = vld.sshfl [vmem:[#allocation1 + $0x30] sm:$0xff pattern:$0x73625140]
      %v1762 = vld.sshfl [vmem:[#allocation1 + $0x38] sm:$0xff pattern:$0x73625140]
      %1763 = vst [vmem:[#allocation1] ss:$4 sm:$0xff] %v1690
      %1764 = vst [vmem:[%s1713] ss:$4 sm:$0xff] %v1691
      %v1765 = vld.sshfl [vmem:[#allocation1] sm:$0xff pattern:$0x73625140]
      %v1766 = vld.sshfl [vmem:[#allocation1 + $0x8] sm:$0xff pattern:$0x73625140]
      %v1767 = vld.sshfl [vmem:[#allocation1 + $0x10] sm:$0xff pattern:$0x73625140]
      %v1768 = vld.sshfl [vmem:[#allocation1 + $0x18] sm:$0xff pattern:$0x73625140]
      %v1769 = vld.sshfl [vmem:[#allocation1 + $0x20] sm:$0xff pattern:$0x73625140]
      %v1770 = vld.sshfl [vmem:[#allocation1 + $0x28] sm:$0xff pattern:$0x73625140]
      %v1771 = vld.sshfl [vmem:[#allocation1 + $0x30] sm:$0xff pattern:$0x73625140]
      %v1772 = vld.sshfl [vmem:[#allocation1 + $0x38] sm:$0xff pattern:$0x73625140]
      %1773 = vst [vmem:[#allocation1] ss:$4 sm:$0xff] %v1692
      %1774 = vst [vmem:[%s1713] ss:$4 sm:$0xff] %v1693
      %v1775 = vld.sshfl [vmem:[#allocation1] sm:$0xff pattern:$0x73625140]
      %v1776 = vld.sshfl [vmem:[#allocation1 + $0x8] sm:$0xff pattern:$0x73625140]
      %v1777 = vld.sshfl [vmem:[#allocation1 + $0x10] sm:$0xff pattern:$0x73625140]
      %v1778 = vld.sshfl [vmem:[#allocation1 + $0x18] sm:$0xff pattern:$0x73625140]
      %v1779 = vld.sshfl [vmem:[#allocation1 + $0x20] sm:$0xff pattern:$0x73625140]
      %v1780 = vld.sshfl [vmem:[#allocation1 + $0x28] sm:$0xff pattern:$0x73625140]
      %v1781 = vld.sshfl [vmem:[#allocation1 + $0x30] sm:$0xff pattern:$0x73625140]
      %v1782 = vld.sshfl [vmem:[#allocation1 + $0x38] sm:$0xff pattern:$0x73625140]
      %1783 = vst [vmem:[#allocation1] ss:$4 sm:$0xff] %v1694
      %1784 = vst [vmem:[%s1713] ss:$4 sm:$0xff] %v1695
      %v1785 = vld.sshfl [vmem:[#allocation1] sm:$0xff pattern:$0x73625140]
      %v1786 = vld.sshfl [vmem:[#allocation1 + $0x8] sm:$0xff pattern:$0x73625140]
      %v1787 = vld.sshfl [vmem:[#allocation1 + $0x10] sm:$0xff pattern:$0x73625140]
      %v1788 = vld.sshfl [vmem:[#allocation1 + $0x18] sm:$0xff pattern:$0x73625140]
      %v1789 = vld.sshfl [vmem:[#allocation1 + $0x20] sm:$0xff pattern:$0x73625140]
      %v1790 = vld.sshfl [vmem:[#allocation1 + $0x28] sm:$0xff pattern:$0x73625140]
      %v1791 = vld.sshfl [vmem:[#allocation1 + $0x30] sm:$0xff pattern:$0x73625140]
      %v1792 = vld.sshfl [vmem:[#allocation1 + $0x38] sm:$0xff pattern:$0x73625140]
      %v1857 = vsel %vm396, %v1715, 0.0
      %v1858 = vrot.slane %v1857, 4
      %v1859 = vadd.f32 %v1857, %v1858
      %v1860 = vrot.slane %v1859, 2
      %v1861 = vadd.f32 %v1859, %v1860
      %v1862 = vrot.slane %v1861, 1
      %v1863 = vadd.f32 %v1861, %v1862
      %v1864 = vsel %vm396, %v1716, 0.0
      %v1865 = vrot.slane %v1864, 4
      %v1866 = vadd.f32 %v1864, %v1865
      %v1867 = vrot.slane %v1866, 2
      %v1868 = vadd.f32 %v1866, %v1867
      %v1869 = vrot.slane %v1868, 1
      %v1870 = vadd.f32 %v1868, %v1869
      %v1871 = vsel %vm396, %v1717, 0.0
      %v1872 = vrot.slane %v1871, 4
      %v1873 = vadd.f32 %v1871, %v1872
      %v1874 = vrot.slane %v1873, 2
      %v1875 = vadd.f32 %v1873, %v1874
      %v1876 = vrot.slane %v1875, 1
      %v1877 = vadd.f32 %v1875, %v1876
      %v1878 = vsel %vm396, %v1718, 0.0
      %v1879 = vrot.slane %v1878, 4
      %v1880 = vadd.f32 %v1878, %v1879
      %v1881 = vrot.slane %v1880, 2
      %v1882 = vadd.f32 %v1880, %v1881
      %v1883 = vrot.slane %v1882, 1
      %v1884 = vadd.f32 %v1882, %v1883
      %v1885 = vsel %vm396, %v1719, 0.0
      %v1886 = vrot.slane %v1885, 4
      %v1887 = vadd.f32 %v1885, %v1886
      %v1888 = vrot.slane %v1887, 2
      %v1889 = vadd.f32 %v1887, %v1888
      %v1890 = vrot.slane %v1889, 1
      %v1891 = vadd.f32 %v1889, %v1890
      %v1892 = vsel %vm396, %v1720, 0.0
      %v1893 = vrot.slane %v1892, 4
      %v1894 = vadd.f32 %v1892, %v1893
      %v1895 = vrot.slane %v1894, 2
      %v1896 = vadd.f32 %v1894, %v1895
      %v1897 = vrot.slane %v1896, 1
      %v1898 = vadd.f32 %v1896, %v1897
      %v1899 = vsel %vm396, %v1721, 0.0
      %v1900 = vrot.slane %v1899, 4
      %v1901 = vadd.f32 %v1899, %v1900
      %v1902 = vrot.slane %v1901, 2
      %v1903 = vadd.f32 %v1901, %v1902
      %v1904 = vrot.slane %v1903, 1
      %v1905 = vadd.f32 %v1903, %v1904
      %v1906 = vsel %vm396, %v1722, 0.0
      %v1907 = vrot.slane %v1906, 4
      %v1908 = vadd.f32 %v1906, %v1907
      %v1909 = vrot.slane %v1908, 2
      %v1910 = vadd.f32 %v1908, %v1909
      %v1911 = vrot.slane %v1910, 1
      %v1912 = vadd.f32 %v1910, %v1911
      %v1913 = vsel %vm396, %v1725, 0.0
      %v1914 = vrot.slane %v1913, 4
      %v1915 = vadd.f32 %v1913, %v1914
      %v1916 = vrot.slane %v1915, 2
      %v1917 = vadd.f32 %v1915, %v1916
      %v1918 = vrot.slane %v1917, 1
      %v1919 = vadd.f32 %v1917, %v1918
      %v1920 = vsel %vm396, %v1726, 0.0
      %v1921 = vrot.slane %v1920, 4
      %v1922 = vadd.f32 %v1920, %v1921
      %v1923 = vrot.slane %v1922, 2
      %v1924 = vadd.f32 %v1922, %v1923
      %v1925 = vrot.slane %v1924, 1
      %v1926 = vadd.f32 %v1924, %v1925
      %v1927 = vsel %vm396, %v1727, 0.0
      %v1928 = vrot.slane %v1927, 4
      %v1929 = vadd.f32 %v1927, %v1928
      %v1930 = vrot.slane %v1929, 2
      %v1931 = vadd.f32 %v1929, %v1930
      %v1932 = vrot.slane %v1931, 1
      %v1933 = vadd.f32 %v1931, %v1932
      %v1934 = vsel %vm396, %v1728, 0.0
      %v1935 = vrot.slane %v1934, 4
      %v1936 = vadd.f32 %v1934, %v1935
      %v1937 = vrot.slane %v1936, 2
      %v1938 = vadd.f32 %v1936, %v1937
      %v1939 = vrot.slane %v1938, 1
      %v1940 = vadd.f32 %v1938, %v1939
      %v1941 = vsel %vm396, %v1729, 0.0
      %v1942 = vrot.slane %v1941, 4
      %v1943 = vadd.f32 %v1941, %v1942
      %v1944 = vrot.slane %v1943, 2
      %v1945 = vadd.f32 %v1943, %v1944
      %v1946 = vrot.slane %v1945, 1
      %v1947 = vadd.f32 %v1945, %v1946
      %v1948 = vsel %vm396, %v1730, 0.0
      %v1949 = vrot.slane %v1948, 4
      %v1950 = vadd.f32 %v1948, %v1949
      %v1951 = vrot.slane %v1950, 2
      %v1952 = vadd.f32 %v1950, %v1951
      %v1953 = vrot.slane %v1952, 1
      %v1954 = vadd.f32 %v1952, %v1953
      %v1955 = vsel %vm396, %v1731, 0.0
      %v1956 = vrot.slane %v1955, 4
      %v1957 = vadd.f32 %v1955, %v1956
      %v1958 = vrot.slane %v1957, 2
      %v1959 = vadd.f32 %v1957, %v1958
      %v1960 = vrot.slane %v1959, 1
      %v1961 = vadd.f32 %v1959, %v1960
      %v1962 = vsel %vm396, %v1732, 0.0
      %v1963 = vrot.slane %v1962, 4
      %v1964 = vadd.f32 %v1962, %v1963
      %v1965 = vrot.slane %v1964, 2
      %v1966 = vadd.f32 %v1964, %v1965
      %v1967 = vrot.slane %v1966, 1
      %v1968 = vadd.f32 %v1966, %v1967
      %v1969 = vsel %vm396, %v1735, 0.0
      %v1970 = vrot.slane %v1969, 4
      %v1971 = vadd.f32 %v1969, %v1970
      %v1972 = vrot.slane %v1971, 2
      %v1973 = vadd.f32 %v1971, %v1972
      %v1974 = vrot.slane %v1973, 1
      %v1975 = vadd.f32 %v1973, %v1974
      %v1976 = vsel %vm396, %v1736, 0.0
      %v1977 = vrot.slane %v1976, 4
      %v1978 = vadd.f32 %v1976, %v1977
      %v1979 = vrot.slane %v1978, 2
      %v1980 = vadd.f32 %v1978, %v1979
      %v1981 = vrot.slane %v1980, 1
      %v1982 = vadd.f32 %v1980, %v1981
      %v1983 = vsel %vm396, %v1737, 0.0
      %v1984 = vrot.slane %v1983, 4
      %v1985 = vadd.f32 %v1983, %v1984
      %v1986 = vrot.slane %v1985, 2
      %v1987 = vadd.f32 %v1985, %v1986
      %v1988 = vrot.slane %v1987, 1
      %v1989 = vadd.f32 %v1987, %v1988
      %v1990 = vsel %vm396, %v1738, 0.0
      %v1991 = vrot.slane %v1990, 4
      %v1992 = vadd.f32 %v1990, %v1991
      %v1993 = vrot.slane %v1992, 2
      %v1994 = vadd.f32 %v1992, %v1993
      %v1995 = vrot.slane %v1994, 1
      %v1996 = vadd.f32 %v1994, %v1995
      %v1997 = vsel %vm396, %v1739, 0.0
      %v1998 = vrot.slane %v1997, 4
      %v1999 = vadd.f32 %v1997, %v1998
      %v2000 = vrot.slane %v1999, 2
      %v2001 = vadd.f32 %v1999, %v2000
      %v2002 = vrot.slane %v2001, 1
      %v2003 = vadd.f32 %v2001, %v2002
      %v2004 = vsel %vm396, %v1740, 0.0
      %v2005 = vrot.slane %v2004, 4
      %v2006 = vadd.f32 %v2004, %v2005
      %v2007 = vrot.slane %v2006, 2
      %v2008 = vadd.f32 %v2006, %v2007
      %v2009 = vrot.slane %v2008, 1
      %v2010 = vadd.f32 %v2008, %v2009
      %v2011 = vsel %vm396, %v1741, 0.0
      %v2012 = vrot.slane %v2011, 4
      %v2013 = vadd.f32 %v2011, %v2012
      %v2014 = vrot.slane %v2013, 2
      %v2015 = vadd.f32 %v2013, %v2014
      %v2016 = vrot.slane %v2015, 1
      %v2017 = vadd.f32 %v2015, %v2016
      %v2018 = vsel %vm396, %v1742, 0.0
      %v2019 = vrot.slane %v2018, 4
      %v2020 = vadd.f32 %v2018, %v2019
      %v2021 = vrot.slane %v2020, 2
      %v2022 = vadd.f32 %v2020, %v2021
      %v2023 = vrot.slane %v2022, 1
      %v2024 = vadd.f32 %v2022, %v2023
      %v2025 = vsel %vm396, %v1745, 0.0
      %v2026 = vrot.slane %v2025, 4
      %v2027 = vadd.f32 %v2025, %v2026
      %v2028 = vrot.slane %v2027, 2
      %v2029 = vadd.f32 %v2027, %v2028
      %v2030 = vrot.slane %v2029, 1
      %v2031 = vadd.f32 %v2029, %v2030
      %v2032 = vsel %vm396, %v1746, 0.0
      %v2033 = vrot.slane %v2032, 4
      %v2034 = vadd.f32 %v2032, %v2033
      %v2035 = vrot.slane %v2034, 2
      %v2036 = vadd.f32 %v2034, %v2035
      %v2037 = vrot.slane %v2036, 1
      %v2038 = vadd.f32 %v2036, %v2037
      %v2039 = vsel %vm396, %v1747, 0.0
      %v2040 = vrot.slane %v2039, 4
      %v2041 = vadd.f32 %v2039, %v2040
      %v2042 = vrot.slane %v2041, 2
      %v2043 = vadd.f32 %v2041, %v2042
      %v2044 = vrot.slane %v2043, 1
      %v2045 = vadd.f32 %v2043, %v2044
      %v2046 = vsel %vm396, %v1748, 0.0
      %v2047 = vrot.slane %v2046, 4
      %v2048 = vadd.f32 %v2046, %v2047
      %v2049 = vrot.slane %v2048, 2
      %v2050 = vadd.f32 %v2048, %v2049
      %v2051 = vrot.slane %v2050, 1
      %v2052 = vadd.f32 %v2050, %v2051
      %v2053 = vsel %vm396, %v1749, 0.0
      %v2054 = vrot.slane %v2053, 4
      %v2055 = vadd.f32 %v2053, %v2054
      %v2056 = vrot.slane %v2055, 2
      %v2057 = vadd.f32 %v2055, %v2056
      %v2058 = vrot.slane %v2057, 1
      %v2059 = vadd.f32 %v2057, %v2058
      %v2060 = vsel %vm396, %v1750, 0.0
      %v2061 = vrot.slane %v2060, 4
      %v2062 = vadd.f32 %v2060, %v2061
      %v2063 = vrot.slane %v2062, 2
      %v2064 = vadd.f32 %v2062, %v2063
      %v2065 = vrot.slane %v2064, 1
      %v2066 = vadd.f32 %v2064, %v2065
      %v2067 = vsel %vm396, %v1751, 0.0
      %v2068 = vrot.slane %v2067, 4
      %v2069 = vadd.f32 %v2067, %v2068
      %v2070 = vrot.slane %v2069, 2
      %v2071 = vadd.f32 %v2069, %v2070
      %v2072 = vrot.slane %v2071, 1
      %v2073 = vadd.f32 %v2071, %v2072
      %v2074 = vsel %vm396, %v1752, 0.0
      %v2075 = vrot.slane %v2074, 4
      %v2076 = vadd.f32 %v2074, %v2075
      %v2077 = vrot.slane %v2076, 2
      %v2078 = vadd.f32 %v2076, %v2077
      %v2079 = vrot.slane %v2078, 1
      %v2080 = vadd.f32 %v2078, %v2079
      %v2081 = vsel %vm396, %v1755, 0.0
      %v2082 = vrot.slane %v2081, 4
      %v2083 = vadd.f32 %v2081, %v2082
      %v2084 = vrot.slane %v2083, 2
      %v2085 = vadd.f32 %v2083, %v2084
      %v2086 = vrot.slane %v2085, 1
      %v2087 = vadd.f32 %v2085, %v2086
      %v2088 = vsel %vm396, %v1756, 0.0
      %v2089 = vrot.slane %v2088, 4
      %v2090 = vadd.f32 %v2088, %v2089
      %v2091 = vrot.slane %v2090, 2
      %v2092 = vadd.f32 %v2090, %v2091
      %v2093 = vrot.slane %v2092, 1
      %v2094 = vadd.f32 %v2092, %v2093
      %v2095 = vsel %vm396, %v1757, 0.0
      %v2096 = vrot.slane %v2095, 4
      %v2097 = vadd.f32 %v2095, %v2096
      %v2098 = vrot.slane %v2097, 2
      %v2099 = vadd.f32 %v2097, %v2098
      %v2100 = vrot.slane %v2099, 1
      %v2101 = vadd.f32 %v2099, %v2100
      %v2102 = vsel %vm396, %v1758, 0.0
      %v2103 = vrot.slane %v2102, 4
      %v2104 = vadd.f32 %v2102, %v2103
      %v2105 = vrot.slane %v2104, 2
      %v2106 = vadd.f32 %v2104, %v2105
      %v2107 = vrot.slane %v2106, 1
      %v2108 = vadd.f32 %v2106, %v2107
      %v2109 = vsel %vm396, %v1759, 0.0
      %v2110 = vrot.slane %v2109, 4
      %v2111 = vadd.f32 %v2109, %v2110
      %v2112 = vrot.slane %v2111, 2
      %v2113 = vadd.f32 %v2111, %v2112
      %v2114 = vrot.slane %v2113, 1
      %v2115 = vadd.f32 %v2113, %v2114
      %v2116 = vsel %vm396, %v1760, 0.0
      %v2117 = vrot.slane %v2116, 4
      %v2118 = vadd.f32 %v2116, %v2117
      %v2119 = vrot.slane %v2118, 2
      %v2120 = vadd.f32 %v2118, %v2119
      %v2121 = vrot.slane %v2120, 1
      %v2122 = vadd.f32 %v2120, %v2121
      %v2123 = vsel %vm396, %v1761, 0.0
      %v2124 = vrot.slane %v2123, 4
      %v2125 = vadd.f32 %v2123, %v2124
      %v2126 = vrot.slane %v2125, 2
      %v2127 = vadd.f32 %v2125, %v2126
      %v2128 = vrot.slane %v2127, 1
      %v2129 = vadd.f32 %v2127, %v2128
      %v2130 = vsel %vm396, %v1762, 0.0
      %v2131 = vrot.slane %v2130, 4
      %v2132 = vadd.f32 %v2130, %v2131
      %v2133 = vrot.slane %v2132, 2
      %v2134 = vadd.f32 %v2132, %v2133
      %v2135 = vrot.slane %v2134, 1
      %v2136 = vadd.f32 %v2134, %v2135
      %v2137 = vsel %vm396, %v1765, 0.0
      %v2138 = vrot.slane %v2137, 4
      %v2139 = vadd.f32 %v2137, %v2138
      %v2140 = vrot.slane %v2139, 2
      %v2141 = vadd.f32 %v2139, %v2140
      %v2142 = vrot.slane %v2141, 1
      %v2143 = vadd.f32 %v2141, %v2142
      %v2144 = vsel %vm396, %v1766, 0.0
      %v2145 = vrot.slane %v2144, 4
      %v2146 = vadd.f32 %v2144, %v2145
      %v2147 = vrot.slane %v2146, 2
      %v2148 = vadd.f32 %v2146, %v2147
      %v2149 = vrot.slane %v2148, 1
      %v2150 = vadd.f32 %v2148, %v2149
      %v2151 = vsel %vm396, %v1767, 0.0
      %v2152 = vrot.slane %v2151, 4
      %v2153 = vadd.f32 %v2151, %v2152
      %v2154 = vrot.slane %v2153, 2
      %v2155 = vadd.f32 %v2153, %v2154
      %v2156 = vrot.slane %v2155, 1
      %v2157 = vadd.f32 %v2155, %v2156
      %v2158 = vsel %vm396, %v1768, 0.0
      %v2159 = vrot.slane %v2158, 4
      %v2160 = vadd.f32 %v2158, %v2159
      %v2161 = vrot.slane %v2160, 2
      %v2162 = vadd.f32 %v2160, %v2161
      %v2163 = vrot.slane %v2162, 1
      %v2164 = vadd.f32 %v2162, %v2163
      %v2165 = vsel %vm396, %v1769, 0.0
      %v2166 = vrot.slane %v2165, 4
      %v2167 = vadd.f32 %v2165, %v2166
      %v2168 = vrot.slane %v2167, 2
      %v2169 = vadd.f32 %v2167, %v2168
      %v2170 = vrot.slane %v2169, 1
      %v2171 = vadd.f32 %v2169, %v2170
      %v2172 = vsel %vm396, %v1770, 0.0
      %v2173 = vrot.slane %v2172, 4
      %v2174 = vadd.f32 %v2172, %v2173
      %v2175 = vrot.slane %v2174, 2
      %v2176 = vadd.f32 %v2174, %v2175
      %v2177 = vrot.slane %v2176, 1
      %v2178 = vadd.f32 %v2176, %v2177
      %v2179 = vsel %vm396, %v1771, 0.0
      %v2180 = vrot.slane %v2179, 4
      %v2181 = vadd.f32 %v2179, %v2180
      %v2182 = vrot.slane %v2181, 2
      %v2183 = vadd.f32 %v2181, %v2182
      %v2184 = vrot.slane %v2183, 1
      %v2185 = vadd.f32 %v2183, %v2184
      %v2186 = vsel %vm396, %v1772, 0.0
      %v2187 = vrot.slane %v2186, 4
      %v2188 = vadd.f32 %v2186, %v2187
      %v2189 = vrot.slane %v2188, 2
      %v2190 = vadd.f32 %v2188, %v2189
      %v2191 = vrot.slane %v2190, 1
      %v2192 = vadd.f32 %v2190, %v2191
      %v2193 = vsel %vm396, %v1775, 0.0
      %v2194 = vrot.slane %v2193, 4
      %v2195 = vadd.f32 %v2193, %v2194
      %v2196 = vrot.slane %v2195, 2
      %v2197 = vadd.f32 %v2195, %v2196
      %v2198 = vrot.slane %v2197, 1
      %v2199 = vadd.f32 %v2197, %v2198
      %v2200 = vsel %vm396, %v1776, 0.0
      %v2201 = vrot.slane %v2200, 4
      %v2202 = vadd.f32 %v2200, %v2201
      %v2203 = vrot.slane %v2202, 2
      %v2204 = vadd.f32 %v2202, %v2203
      %v2205 = vrot.slane %v2204, 1
      %v2206 = vadd.f32 %v2204, %v2205
      %v2207 = vsel %vm396, %v1777, 0.0
      %v2208 = vrot.slane %v2207, 4
      %v2209 = vadd.f32 %v2207, %v2208
      %v2210 = vrot.slane %v2209, 2
      %v2211 = vadd.f32 %v2209, %v2210
      %v2212 = vrot.slane %v2211, 1
      %v2213 = vadd.f32 %v2211, %v2212
      %v2214 = vsel %vm396, %v1778, 0.0
      %v2215 = vrot.slane %v2214, 4
      %v2216 = vadd.f32 %v2214, %v2215
      %v2217 = vrot.slane %v2216, 2
      %v2218 = vadd.f32 %v2216, %v2217
      %v2219 = vrot.slane %v2218, 1
      %v2220 = vadd.f32 %v2218, %v2219
      %v2221 = vsel %vm396, %v1779, 0.0
      %v2222 = vrot.slane %v2221, 4
      %v2223 = vadd.f32 %v2221, %v2222
      %v2224 = vrot.slane %v2223, 2
      %v2225 = vadd.f32 %v2223, %v2224
      %v2226 = vrot.slane %v2225, 1
      %v2227 = vadd.f32 %v2225, %v2226
      %v2228 = vsel %vm396, %v1780, 0.0
      %v2229 = vrot.slane %v2228, 4
      %v2230 = vadd.f32 %v2228, %v2229
      %v2231 = vrot.slane %v2230, 2
      %v2232 = vadd.f32 %v2230, %v2231
      %v2233 = vrot.slane %v2232, 1
      %v2234 = vadd.f32 %v2232, %v2233
      %v2235 = vsel %vm396, %v1781, 0.0
      %v2236 = vrot.slane %v2235, 4
      %v2237 = vadd.f32 %v2235, %v2236
      %v2238 = vrot.slane %v2237, 2
      %v2239 = vadd.f32 %v2237, %v2238
      %v2240 = vrot.slane %v2239, 1
      %v2241 = vadd.f32 %v2239, %v2240
      %v2242 = vsel %vm396, %v1782, 0.0
      %v2243 = vrot.slane %v2242, 4
      %v2244 = vadd.f32 %v2242, %v2243
      %v2245 = vrot.slane %v2244, 2
      %v2246 = vadd.f32 %v2244, %v2245
      %v2247 = vrot.slane %v2246, 1
      %v2248 = vadd.f32 %v2246, %v2247
      %v2249 = vsel %vm396, %v1785, 0.0
      %v2250 = vrot.slane %v2249, 4
      %v2251 = vadd.f32 %v2249, %v2250
      %v2252 = vrot.slane %v2251, 2
      %v2253 = vadd.f32 %v2251, %v2252
      %v2254 = vrot.slane %v2253, 1
      %v2255 = vadd.f32 %v2253, %v2254
      %v2256 = vsel %vm396, %v1786, 0.0
      %v2257 = vrot.slane %v2256, 4
      %v2258 = vadd.f32 %v2256, %v2257
      %v2259 = vrot.slane %v2258, 2
      %v2260 = vadd.f32 %v2258, %v2259
      %v2261 = vrot.slane %v2260, 1
      %v2262 = vadd.f32 %v2260, %v2261
      %v2263 = vsel %vm396, %v1787, 0.0
      %v2264 = vrot.slane %v2263, 4
      %v2265 = vadd.f32 %v2263, %v2264
      %v2266 = vrot.slane %v2265, 2
      %v2267 = vadd.f32 %v2265, %v2266
      %v2268 = vrot.slane %v2267, 1
      %v2269 = vadd.f32 %v2267, %v2268
      %v2270 = vsel %vm396, %v1788, 0.0
      %v2271 = vrot.slane %v2270, 4
      %v2272 = vadd.f32 %v2270, %v2271
      %v2273 = vrot.slane %v2272, 2
      %v2274 = vadd.f32 %v2272, %v2273
      %v2275 = vrot.slane %v2274, 1
      %v2276 = vadd.f32 %v2274, %v2275
      %v2277 = vsel %vm396, %v1789, 0.0
      %v2278 = vrot.slane %v2277, 4
      %v2279 = vadd.f32 %v2277, %v2278
      %v2280 = vrot.slane %v2279, 2
      %v2281 = vadd.f32 %v2279, %v2280
      %v2282 = vrot.slane %v2281, 1
      %v2283 = vadd.f32 %v2281, %v2282
      %v2284 = vsel %vm396, %v1790, 0.0
      %v2285 = vrot.slane %v2284, 4
      %v2286 = vadd.f32 %v2284, %v2285
      %v2287 = vrot.slane %v2286, 2
      %v2288 = vadd.f32 %v2286, %v2287
      %v2289 = vrot.slane %v2288, 1
      %v2290 = vadd.f32 %v2288, %v2289
      %v2291 = vsel %vm396, %v1791, 0.0
      %v2292 = vrot.slane %v2291, 4
      %v2293 = vadd.f32 %v2291, %v2292
      %v2294 = vrot.slane %v2293, 2
      %v2295 = vadd.f32 %v2293, %v2294
      %v2296 = vrot.slane %v2295, 1
      %v2297 = vadd.f32 %v2295, %v2296
      %v2298 = vsel %vm396, %v1792, 0.0
      %v2299 = vrot.slane %v2298, 4
      %v2300 = vadd.f32 %v2298, %v2299
      %v2301 = vrot.slane %v2300, 2
      %v2302 = vadd.f32 %v2300, %v2301
      %v2303 = vrot.slane %v2302, 1
      %v2304 = vadd.f32 %v2302, %v2303
      %v2305 = vrcp.pop %v1238
      %v2306 = vrcp.pop %v1245
      %v2307 = vrcp.pop %v1252
      %v2308 = vrcp.pop %v1259
      %v2309 = vrcp.pop %v1266
      %v2310 = vrcp.pop %v1273
      %v2311 = vrcp.pop %v1280
      %v2312 = vrcp.pop %v1287
      %v2313 = vrcp.pop %v1294
      %v2314 = vrcp.pop %v1301
      %v2315 = vrcp.pop %v1308
      %v2316 = vrcp.pop %v1315
      %v2317 = vrcp.pop %v1322
      %v2318 = vrcp.pop %v1329
      %v2319 = vrcp.pop %v1336
      %v2320 = vrcp.pop %v1343
      %v2321 = vrcp.pop %v1350
      %v2322 = vrcp.pop %v1357
      %v2323 = vrcp.pop %v1364
      %v2324 = vrcp.pop %v1371
      %v2325 = vrcp.pop %v1378
      %v2326 = vrcp.pop %v1385
      %v2327 = vrcp.pop %v1392
      %v2328 = vrcp.pop %v1399
      %v2329 = vrcp.pop %v1406
      %v2330 = vrcp.pop %v1413
      %v2331 = vrcp.pop %v1420
      %v2332 = vrcp.pop %v1427
      %v2333 = vrcp.pop %v1434
      %v2334 = vrcp.pop %v1441
      %v2335 = vrcp.pop %v1448
      %v2336 = vrcp.pop %v1455
      %v2337 = vrcp.pop %v1462
      %v2338 = vrcp.pop %v1469
      %v2339 = vrcp.pop %v1476
      %v2340 = vrcp.pop %v1483
      %v2341 = vrcp.pop %v1490
      %v2342 = vrcp.pop %v1497
      %v2343 = vrcp.pop %v1504
      %v2344 = vrcp.pop %v1511
      %v2345 = vrcp.pop %v1518
      %v2346 = vrcp.pop %v1525
      %v2347 = vrcp.pop %v1532
      %v2348 = vrcp.pop %v1539
      %v2349 = vrcp.pop %v1546
      %v2350 = vrcp.pop %v1553
      %v2351 = vrcp.pop %v1560
      %v2352 = vrcp.pop %v1567
      %v2353 = vrcp.pop %v1574
      %v2354 = vrcp.pop %v1581
      %v2355 = vrcp.pop %v1588
      %v2356 = vrcp.pop %v1595
      %v2357 = vrcp.pop %v1602
      %v2358 = vrcp.pop %v1609
      %v2359 = vrcp.pop %v1616
      %v2360 = vrcp.pop %v1623
      %v2361 = vrcp.pop %v1630
      %v2362 = vrcp.pop %v1637
      %v2363 = vrcp.pop %v1644
      %v2364 = vrcp.pop %v1651
      %v2365 = vrcp.pop %v1658
      %v2366 = vrcp.pop %v1665
      %v2367 = vrcp.pop %v1672
      %v2368 = vrcp.pop %v1679
      %v2369 = vmul.f32 %v1863, %v2305
      %v2370 = vmul.f32 %v1870, %v2306
      %v2371 = vmul.f32 %v1877, %v2307
      %v2372 = vmul.f32 %v1884, %v2308
      %v2373 = vmul.f32 %v1891, %v2309
      %v2374 = vmul.f32 %v1898, %v2310
      %v2375 = vmul.f32 %v1905, %v2311
      %v2376 = vmul.f32 %v1912, %v2312
      %v2377 = vmul.f32 %v1919, %v2313
      %v2378 = vmul.f32 %v1926, %v2314
      %v2379 = vmul.f32 %v1933, %v2315
      %v2380 = vmul.f32 %v1940, %v2316
      %v2381 = vmul.f32 %v1947, %v2317
      %v2382 = vmul.f32 %v1954, %v2318
      %v2383 = vmul.f32 %v1961, %v2319
      %v2384 = vmul.f32 %v1968, %v2320
      %v2385 = vmul.f32 %v1975, %v2321
      %v2386 = vmul.f32 %v1982, %v2322
      %v2387 = vmul.f32 %v1989, %v2323
      %v2388 = vmul.f32 %v1996, %v2324
      %v2389 = vmul.f32 %v2003, %v2325
      %v2390 = vmul.f32 %v2010, %v2326
      %v2391 = vmul.f32 %v2017, %v2327
      %v2392 = vmul.f32 %v2024, %v2328
      %v2393 = vmul.f32 %v2031, %v2329
      %v2394 = vmul.f32 %v2038, %v2330
      %v2395 = vmul.f32 %v2045, %v2331
      %v2396 = vmul.f32 %v2052, %v2332
      %v2397 = vmul.f32 %v2059, %v2333
      %v2398 = vmul.f32 %v2066, %v2334
      %v2399 = vmul.f32 %v2073, %v2335
      %v2400 = vmul.f32 %v2080, %v2336
      %v2401 = vmul.f32 %v2087, %v2337
      %v2402 = vmul.f32 %v2094, %v2338
      %v2403 = vmul.f32 %v2101, %v2339
      %v2404 = vmul.f32 %v2108, %v2340
      %v2405 = vmul.f32 %v2115, %v2341
      %v2406 = vmul.f32 %v2122, %v2342
      %v2407 = vmul.f32 %v2129, %v2343
      %v2408 = vmul.f32 %v2136, %v2344
      %v2409 = vmul.f32 %v2143, %v2345
      %v2410 = vmul.f32 %v2150, %v2346
      %v2411 = vmul.f32 %v2157, %v2347
      %v2412 = vmul.f32 %v2164, %v2348
      %v2413 = vmul.f32 %v2171, %v2349
      %v2414 = vmul.f32 %v2178, %v2350
      %v2415 = vmul.f32 %v2185, %v2351
      %v2416 = vmul.f32 %v2192, %v2352
      %v2417 = vmul.f32 %v2199, %v2353
      %v2418 = vmul.f32 %v2206, %v2354
      %v2419 = vmul.f32 %v2213, %v2355
      %v2420 = vmul.f32 %v2220, %v2356
      %v2421 = vmul.f32 %v2227, %v2357
      %v2422 = vmul.f32 %v2234, %v2358
      %v2423 = vmul.f32 %v2241, %v2359
      %v2424 = vmul.f32 %v2248, %v2360
      %v2425 = vmul.f32 %v2255, %v2361
      %v2426 = vmul.f32 %v2262, %v2362
      %v2427 = vmul.f32 %v2269, %v2363
      %v2428 = vmul.f32 %v2276, %v2364
      %v2429 = vmul.f32 %v2283, %v2365
      %v2430 = vmul.f32 %v2290, %v2366
      %v2431 = vmul.f32 %v2297, %v2367
      %v2432 = vmul.f32 %v2304, %v2368
      %v2497 = vrot.slane %v2370, 7
      %v2498 = vrot.slane %v2371, 6
      %v2499 = vrot.slane %v2372, 5
      %v2500 = vrot.slane %v2373, 4
      %v2501 = vrot.slane %v2374, 3
      %v2502 = vrot.slane %v2375, 2
      %v2503 = vrot.slane %v2376, 1
      %v2504 = vrot.slane %v2378, 7
      %v2505 = vrot.slane %v2379, 6
      %v2506 = vrot.slane %v2380, 5
      %v2507 = vrot.slane %v2381, 4
      %v2508 = vrot.slane %v2382, 3
      %v2509 = vrot.slane %v2383, 2
      %v2510 = vrot.slane %v2384, 1
      %v2511 = vrot.slane %v2386, 7
      %v2512 = vrot.slane %v2387, 6
      %v2513 = vrot.slane %v2388, 5
      %v2514 = vrot.slane %v2389, 4
      %v2515 = vrot.slane %v2390, 3
      %v2516 = vrot.slane %v2391, 2
      %v2517 = vrot.slane %v2392, 1
      %v2518 = vrot.slane %v2394, 7
      %v2519 = vrot.slane %v2395, 6
      %v2520 = vrot.slane %v2396, 5
      %v2521 = vrot.slane %v2397, 4
      %v2522 = vrot.slane %v2398, 3
      %v2523 = vrot.slane %v2399, 2
      %v2524 = vrot.slane %v2400, 1
      %v2525 = vrot.slane %v2402, 7
      %v2526 = vrot.slane %v2403, 6
      %v2527 = vrot.slane %v2404, 5
      %v2528 = vrot.slane %v2405, 4
      %v2529 = vrot.slane %v2406, 3
      %v2530 = vrot.slane %v2407, 2
      %v2531 = vrot.slane %v2408, 1
      %v2532 = vrot.slane %v2410, 7
      %v2533 = vrot.slane %v2411, 6
      %v2534 = vrot.slane %v2412, 5
      %v2535 = vrot.slane %v2413, 4
      %v2536 = vrot.slane %v2414, 3
      %v2537 = vrot.slane %v2415, 2
      %v2538 = vrot.slane %v2416, 1
      %v2539 = vrot.slane %v2418, 7
      %v2540 = vrot.slane %v2419, 6
      %v2541 = vrot.slane %v2420, 5
      %v2542 = vrot.slane %v2421, 4
      %v2543 = vrot.slane %v2422, 3
      %v2544 = vrot.slane %v2423, 2
      %v2545 = vrot.slane %v2424, 1
      %v2546 = vrot.slane %v2426, 7
      %v2547 = vrot.slane %v2427, 6
      %v2548 = vrot.slane %v2428, 5
      %v2549 = vrot.slane %v2429, 4
      %v2550 = vrot.slane %v2430, 3
      %v2551 = vrot.slane %v2431, 2
      %v2552 = vrot.slane %v2432, 1
      %vm2553 = vcmask 1040384
      %v2554 = vsel %vm2553, %v2369, %v2497
      %vm2555 = vcmask 1042434
      %v2556 = vsel %vm2555, %v2498, %v2499
      %v2557 = vsel %vm396, %v2554, %v2556
      %vm2558 = vcmask 1044484
      %v2559 = vsel %vm2558, %v2500, %v2501
      %vm2560 = vcmask 1046534
      %v2561 = vsel %vm2560, %v2502, %v2503
      %v2562 = vsel %vm958, %v2559, %v2561
      %v2563 = vsel %vm960, %v2557, %v2562
      %v2564 = vsel %vm2553, %v2377, %v2504
      %v2565 = vsel %vm2555, %v2505, %v2506
      %v2566 = vsel %vm396, %v2564, %v2565
      %v2567 = vsel %vm2558, %v2507, %v2508
      %v2568 = vsel %vm2560, %v2509, %v2510
      %v2569 = vsel %vm958, %v2567, %v2568
      %v2570 = vsel %vm960, %v2566, %v2569
      %v2571 = vsel %vm2553, %v2385, %v2511
      %v2572 = vsel %vm2555, %v2512, %v2513
      %v2573 = vsel %vm396, %v2571, %v2572
      %v2574 = vsel %vm2558, %v2514, %v2515
      %v2575 = vsel %vm2560, %v2516, %v2517
      %v2576 = vsel %vm958, %v2574, %v2575
      %v2577 = vsel %vm960, %v2573, %v2576
      %v2578 = vsel %vm2553, %v2393, %v2518
      %v2579 = vsel %vm2555, %v2519, %v2520
      %v2580 = vsel %vm396, %v2578, %v2579
      %v2581 = vsel %vm2558, %v2521, %v2522
      %v2582 = vsel %vm2560, %v2523, %v2524
      %v2583 = vsel %vm958, %v2581, %v2582
      %v2584 = vsel %vm960, %v2580, %v2583
      %v2585 = vsel %vm2553, %v2401, %v2525
      %v2586 = vsel %vm2555, %v2526, %v2527
      %v2587 = vsel %vm396, %v2585, %v2586
      %v2588 = vsel %vm2558, %v2528, %v2529
      %v2589 = vsel %vm2560, %v2530, %v2531
      %v2590 = vsel %vm958, %v2588, %v2589
      %v2591 = vsel %vm960, %v2587, %v2590
      %v2592 = vsel %vm2553, %v2409, %v2532
      %v2593 = vsel %vm2555, %v2533, %v2534
      %v2594 = vsel %vm396, %v2592, %v2593
      %v2595 = vsel %vm2558, %v2535, %v2536
      %v2596 = vsel %vm2560, %v2537, %v2538
      %v2597 = vsel %vm958, %v2595, %v2596
      %v2598 = vsel %vm960, %v2594, %v2597
      %v2599 = vsel %vm2553, %v2417, %v2539
      %v2600 = vsel %vm2555, %v2540, %v2541
      %v2601 = vsel %vm396, %v2599, %v2600
      %v2602 = vsel %vm2558, %v2542, %v2543
      %v2603 = vsel %vm2560, %v2544, %v2545
      %v2604 = vsel %vm958, %v2602, %v2603
      %v2605 = vsel %vm960, %v2601, %v2604
      %v2606 = vsel %vm2553, %v2425, %v2546
      %v2607 = vsel %vm2555, %v2547, %v2548
      %v2608 = vsel %vm396, %v2606, %v2607
      %v2609 = vsel %vm2558, %v2549, %v2550
      %v2610 = vsel %vm2560, %v2551, %v2552
      %v2611 = vsel %vm958, %v2609, %v2610
      %v2612 = vsel %vm960, %v2608, %v2611
      %2621 = vst [vmem:[%s201] sm:$0xff] %v2563
      %2622 = vst [vmem:[%s201 + $0x8] sm:$0xff] %v2570
      %2623 = vst [vmem:[%s201 + $0x10] sm:$0xff] %v2577
      %2624 = vst [vmem:[%s201 + $0x18] sm:$0xff] %v2584
      %2625 = vst [vmem:[%s201 + $0x20] sm:$0xff] %v2591
      %2626 = vst [vmem:[%s201 + $0x28] sm:$0xff] %v2598
      %2627 = vst [vmem:[%s201 + $0x30] sm:$0xff] %v2605
      %2628 = vst [vmem:[%s201 + $0x38] sm:$0xff] %v2612
      %s2629 = smul.u32 64, %s18
      %p2630 = scmp.lt.s32.totalorder %s17, 1
      %s2631 = scalar_select %p2630, %s17, 1
      %p2632 = scmp.lt.s32.totalorder %s2629, 63
      %s2633 = scalar_select %p2632, %s2629, 63
      %s2634 = smul.addr %s2631, 64
      %s2635 = sadd.s32 %s2633, %s2634
      %s2636 = scalar_lea.vmem %s2, %s2635
      // Predicated region
      $region29: #{_lambda_.8} parent=27 // pred_check
        %p2637 = pneg %p99
      $region30: #{_lambda_.8} parent=27 // pred_check_branch
        %2639 = sbr.rel (%p2637) target = $region32
      $region31: #{_lambda_.8} parent=27 // pred_region
        %s2640 = smul.u32 64, %s18
      $region32: #{_lambda_.8} parent=27 // pred_fallthru
        _
    $region28: #{_lambda_.8} parent=5 // pred_fallthru
      _
    %p2641 = scmp.le.s32.totalorder 2, %s8
    // Predicated region
    $region33: #{_lambda_.8} parent=5 // pred_check
      %p2642 = pneg %p2641
    $region34: #{_lambda_.8} parent=5 // pred_check_branch
      %2644 = sbr.rel (%p2642) target = $region36
    $region35: #{_lambda_.8} parent=5 // pred_region
      %s2645 = ssub.s32 %s8, 2
      // Predicated region
      $region37: #{_lambda_.8} parent=35 // pred_check
        %p2646 = pneg %p105
      $region38: #{_lambda_.8} parent=35 // pred_check_branch
        %2648 = sbr.rel (%p2646) target = $region40
      $region39: #{_lambda_.8} parent=35 // pred_region
        %s2649 = smul.u32 64, %s20
        %p2650 = scmp.lt.s32.totalorder %s19, 1
        %s2651 = scalar_select %p2650, %s19, 1
        %p2652 = scmp.lt.s32.totalorder %s2649, 63
        %s2653 = scalar_select %p2652, %s2649, 63
        %s2654 = smul.addr %s2651, 64
        %s2655 = sadd.s32 %s2653, %s2654
        %s2656 = scalar_lea.vmem %s2, %s2655
      $region40: #{_lambda_.8} parent=35 // pred_fallthru
        _
    $region36: #{_lambda_.8} parent=5 // pred_fallthru
      _
  $region6: #{_lambda_.8} parent=0 // loop_footer
    %s12 = sadd.s32 1, %s8
  $region7: #{_lambda_.8} parent=0 // loop_footer_branch
    %7 = sbr.rel target = $region3
  $region8: #{_lambda_.8} parent=0 // loop_exit
    _

// kernel: _lambda_.7
$region0: #{_lambda_.7}
  #allocation0 [shape = 'u32[]', space=smem, size = 0x4, offset = 0x4, fixed_abs, tag = 'smem constant byte address 0x4 - core index']
  #allocation1 [shape = 'u32[72,128]{1,0:T(1,128)}', space=vmem, size = 0x9000, scoped, tag = 'internal scratch']
  %s0 = inlined_call_operand.vmem [shape: bf16[256,1152], index: 0, kind: input, shape index: {}]
  %s1 = inlined_call_operand.vmem [shape: bf16[1152,128], index: 1, kind: input, shape index: {}]
  %s2 = inlined_call_operand.vmem [shape: f32[1,128], index: 2, kind: input, shape index: {}]
  %s3 = inlined_call_operand.vmem [shape: f32[1,128], index: 3, kind: input, shape index: {}]
  %s4 = inlined_call_operand.vmem [shape: f32[256,128], index: 4, kind: output, shape index: {}]
  %s5 = sld [smem:[#allocation0]]
  $region26: #{_lambda_.7} parent=0
    _
  %s7 = ssub.s32 1, %s5
  %s8 = scalar_select 0, %s7, %s5
  // Predicated region
  $region2: #{_lambda_.7} parent=0 // pred_check
    _
  $region3: #{_lambda_.7} parent=0 // pred_check_branch
    %10 = sbr.rel (0) target = $region5
  $region4: #{_lambda_.7} parent=0 // pred_region
    _
  $region5: #{_lambda_.7} parent=0 // pred_fallthru
    _
  // Predicated region
  $region6: #{_lambda_.7} parent=0 // pred_check
    _
  $region7: #{_lambda_.7} parent=0 // pred_check_branch
    %12 = sbr.rel (0) target = $region9
  $region8: #{_lambda_.7} parent=0 // pred_region
    _
  $region9: #{_lambda_.7} parent=0 // pred_fallthru
    _
  // Predicated region
  $region10: #{_lambda_.7} parent=0 // pred_check
    _
  $region11: #{_lambda_.7} parent=0 // pred_check_branch
    %14 = sbr.rel (0) target = $region13
  $region12: #{_lambda_.7} parent=0 // pred_region
    _
  $region13: #{_lambda_.7} parent=0 // pred_fallthru
    _
  // Predicated region
  $region14: #{_lambda_.7} parent=0 // pred_check
    _
  $region15: #{_lambda_.7} parent=0 // pred_check_branch
    %16 = sbr.rel (0) target = $region17
  $region16: #{_lambda_.7} parent=0 // pred_region
    _
  $region17: #{_lambda_.7} parent=0 // pred_fallthru
    _
  %v17 = vld [vmem:[%s0] sm:$0xff]
  %v18 = vld [vmem:[%s0 + $0x8] sm:$0xff]
  %v19 = vld [vmem:[%s0 + $0x10] sm:$0xff]
  %v20 = vld [vmem:[%s0 + $0x18] sm:$0xff]
  %v21 = vld [vmem:[%s0 + $0x20] sm:$0xf]
  %v22 = vld [vmem:[%s0 + $0x24] sm:$0xff]
  %v23 = vld [vmem:[%s0 + $0x2c] sm:$0xff]
  %v24 = vld [vmem:[%s0 + $0x34] sm:$0xff]
  %v25 = vld [vmem:[%s0 + $0x3c] sm:$0xff]
  %v26 = vld [vmem:[%s0 + $0x44] sm:$0xf]
  %v27 = vld [vmem:[%s0 + $0x48] sm:$0xff]
  %v28 = vld [vmem:[%s0 + $0x50] sm:$0xff]
  %v29 = vld [vmem:[%s0 + $0x58] sm:$0xff]
  %v30 = vld [vmem:[%s0 + $0x60] sm:$0xff]
  %v31 = vld [vmem:[%s0 + $0x68] sm:$0xf]
  %v32 = vld [vmem:[%s0 + $0x6c] sm:$0xff]
  %v33 = vld [vmem:[%s0 + $0x74] sm:$0xff]
  %v34 = vld [vmem:[%s0 + $0x7c] sm:$0xff]
  %v35 = vld [vmem:[%s0 + $0x84] sm:$0xff]
  %v36 = vld [vmem:[%s0 + $0x8c] sm:$0xf]
  %v37 = vld [vmem:[%s0 + $0x90] sm:$0xff]
  %v38 = vld [vmem:[%s0 + $0x98] sm:$0xff]
  %v39 = vld [vmem:[%s0 + $0xa0] sm:$0xff]
  %v40 = vld [vmem:[%s0 + $0xa8] sm:$0xff]
  %v41 = vld [vmem:[%s0 + $0xb0] sm:$0xf]
  %v42 = vld [vmem:[%s0 + $0xb4] sm:$0xff]
  %v43 = vld [vmem:[%s0 + $0xbc] sm:$0xff]
  %v44 = vld [vmem:[%s0 + $0xc4] sm:$0xff]
  %v45 = vld [vmem:[%s0 + $0xcc] sm:$0xff]
  %v46 = vld [vmem:[%s0 + $0xd4] sm:$0xf]
  %v47 = vld [vmem:[%s0 + $0xd8] sm:$0xff]
  %v48 = vld [vmem:[%s0 + $0xe0] sm:$0xff]
  %v49 = vld [vmem:[%s0 + $0xe8] sm:$0xff]
  %v50 = vld [vmem:[%s0 + $0xf0] sm:$0xff]
  %v51 = vld [vmem:[%s0 + $0xf8] sm:$0xf]
  %v52 = vld [vmem:[%s0 + $0xfc] sm:$0xff]
  %v53 = vld [vmem:[%s0 + $0x104] sm:$0xff]
  %v54 = vld [vmem:[%s0 + $0x10c] sm:$0xff]
  %v55 = vld [vmem:[%s0 + $0x114] sm:$0xff]
  %v56 = vld [vmem:[%s0 + $0x11c] sm:$0xf]
  %v57 = vld [vmem:[%s0 + $0x120] sm:$0xff]
  %v58 = vld [vmem:[%s0 + $0x128] sm:$0xff]
  %v59 = vld [vmem:[%s0 + $0x130] sm:$0xff]
  %v60 = vld [vmem:[%s0 + $0x138] sm:$0xff]
  %v61 = vld [vmem:[%s0 + $0x140] sm:$0xf]
  %v62 = vld [vmem:[%s0 + $0x144] sm:$0xff]
  %v63 = vld [vmem:[%s0 + $0x14c] sm:$0xff]
  %v64 = vld [vmem:[%s0 + $0x154] sm:$0xff]
  %v65 = vld [vmem:[%s0 + $0x15c] sm:$0xff]
  %v66 = vld [vmem:[%s0 + $0x164] sm:$0xf]
  %v67 = vld [vmem:[%s0 + $0x168] sm:$0xff]
  %v68 = vld [vmem:[%s0 + $0x170] sm:$0xff]
  %v69 = vld [vmem:[%s0 + $0x178] sm:$0xff]
  %v70 = vld [vmem:[%s0 + $0x180] sm:$0xff]
  %v71 = vld [vmem:[%s0 + $0x188] sm:$0xf]
  %v72 = vld [vmem:[%s0 + $0x18c] sm:$0xff]
  %v73 = vld [vmem:[%s0 + $0x194] sm:$0xff]
  %v74 = vld [vmem:[%s0 + $0x19c] sm:$0xff]
  %v75 = vld [vmem:[%s0 + $0x1a4] sm:$0xff]
  %v76 = vld [vmem:[%s0 + $0x1ac] sm:$0xf]
  %v77 = vld [vmem:[%s0 + $0x1b0] sm:$0xff]
  %v78 = vld [vmem:[%s0 + $0x1b8] sm:$0xff]
  %v79 = vld [vmem:[%s0 + $0x1c0] sm:$0xff]
  %v80 = vld [vmem:[%s0 + $0x1c8] sm:$0xff]
  %v81 = vld [vmem:[%s0 + $0x1d0] sm:$0xf]
  %v82 = vld [vmem:[%s0 + $0x1d4] sm:$0xff]
  %v83 = vld [vmem:[%s0 + $0x1dc] sm:$0xff]
  %v84 = vld [vmem:[%s0 + $0x1e4] sm:$0xff]
  %v85 = vld [vmem:[%s0 + $0x1ec] sm:$0xff]
  %v86 = vld [vmem:[%s0 + $0x1f4] sm:$0xf]
  %v87 = vld [vmem:[%s0 + $0x1f8] sm:$0xff]
  %v88 = vld [vmem:[%s0 + $0x200] sm:$0xff]
  %v89 = vld [vmem:[%s0 + $0x208] sm:$0xff]
  %v90 = vld [vmem:[%s0 + $0x210] sm:$0xff]
  %v91 = vld [vmem:[%s0 + $0x218] sm:$0xf]
  %v92 = vld [vmem:[%s0 + $0x21c] sm:$0xff]
  %v93 = vld [vmem:[%s0 + $0x224] sm:$0xff]
  %v94 = vld [vmem:[%s0 + $0x22c] sm:$0xff]
  %v95 = vld [vmem:[%s0 + $0x234] sm:$0xff]
  %v96 = vld [vmem:[%s0 + $0x23c] sm:$0xf]
  %v97 = vld [vmem:[%s0 + $0x240] sm:$0xff]
  %v98 = vld [vmem:[%s0 + $0x248] sm:$0xff]
  %v99 = vld [vmem:[%s0 + $0x250] sm:$0xff]
  %v100 = vld [vmem:[%s0 + $0x258] sm:$0xff]
  %v101 = vld [vmem:[%s0 + $0x260] sm:$0xf]
  %v102 = vld [vmem:[%s0 + $0x264] sm:$0xff]
  %v103 = vld [vmem:[%s0 + $0x26c] sm:$0xff]
  %v104 = vld [vmem:[%s0 + $0x274] sm:$0xff]
  %v105 = vld [vmem:[%s0 + $0x27c] sm:$0xff]
  %v106 = vld [vmem:[%s0 + $0x284] sm:$0xf]
  %v107 = vld [vmem:[%s0 + $0x288] sm:$0xff]
  %v108 = vld [vmem:[%s0 + $0x290] sm:$0xff]
  %v109 = vld [vmem:[%s0 + $0x298] sm:$0xff]
  %v110 = vld [vmem:[%s0 + $0x2a0] sm:$0xff]
  %v111 = vld [vmem:[%s0 + $0x2a8] sm:$0xf]
  %v112 = vld [vmem:[%s0 + $0x2ac] sm:$0xff]
  %v113 = vld [vmem:[%s0 + $0x2b4] sm:$0xff]
  %v114 = vld [vmem:[%s0 + $0x2bc] sm:$0xff]
  %v115 = vld [vmem:[%s0 + $0x2c4] sm:$0xff]
  %v116 = vld [vmem:[%s0 + $0x2cc] sm:$0xf]
  %v117 = vld [vmem:[%s0 + $0x2d0] sm:$0xff]
  %v118 = vld [vmem:[%s0 + $0x2d8] sm:$0xff]
  %v119 = vld [vmem:[%s0 + $0x2e0] sm:$0xff]
  %v120 = vld [vmem:[%s0 + $0x2e8] sm:$0xff]
  %v121 = vld [vmem:[%s0 + $0x2f0] sm:$0xf]
  %v122 = vld [vmem:[%s0 + $0x2f4] sm:$0xff]
  %v123 = vld [vmem:[%s0 + $0x2fc] sm:$0xff]
  %v124 = vld [vmem:[%s0 + $0x304] sm:$0xff]
  %v125 = vld [vmem:[%s0 + $0x30c] sm:$0xff]
  %v126 = vld [vmem:[%s0 + $0x314] sm:$0xf]
  %v127 = vld [vmem:[%s0 + $0x318] sm:$0xff]
  %v128 = vld [vmem:[%s0 + $0x320] sm:$0xff]
  %v129 = vld [vmem:[%s0 + $0x328] sm:$0xff]
  %v130 = vld [vmem:[%s0 + $0x330] sm:$0xff]
  %v131 = vld [vmem:[%s0 + $0x338] sm:$0xf]
  %v132 = vld [vmem:[%s0 + $0x33c] sm:$0xff]
  %v133 = vld [vmem:[%s0 + $0x344] sm:$0xff]
  %v134 = vld [vmem:[%s0 + $0x34c] sm:$0xff]
  %v135 = vld [vmem:[%s0 + $0x354] sm:$0xff]
  %v136 = vld [vmem:[%s0 + $0x35c] sm:$0xf]
  %v137 = vld [vmem:[%s0 + $0x360] sm:$0xff]
  %v138 = vld [vmem:[%s0 + $0x368] sm:$0xff]
  %v139 = vld [vmem:[%s0 + $0x370] sm:$0xff]
  %v140 = vld [vmem:[%s0 + $0x378] sm:$0xff]
  %v141 = vld [vmem:[%s0 + $0x380] sm:$0xf]
  %v142 = vld [vmem:[%s0 + $0x384] sm:$0xff]
  %v143 = vld [vmem:[%s0 + $0x38c] sm:$0xff]
  %v144 = vld [vmem:[%s0 + $0x394] sm:$0xff]
  %v145 = vld [vmem:[%s0 + $0x39c] sm:$0xff]
  %v146 = vld [vmem:[%s0 + $0x3a4] sm:$0xf]
  %v147 = vld [vmem:[%s0 + $0x3a8] sm:$0xff]
  %v148 = vld [vmem:[%s0 + $0x3b0] sm:$0xff]
  %v149 = vld [vmem:[%s0 + $0x3b8] sm:$0xff]
  %v150 = vld [vmem:[%s0 + $0x3c0] sm:$0xff]
  %v151 = vld [vmem:[%s0 + $0x3c8] sm:$0xf]
  %v152 = vld [vmem:[%s0 + $0x3cc] sm:$0xff]
  %v153 = vld [vmem:[%s0 + $0x3d4] sm:$0xff]
  %v154 = vld [vmem:[%s0 + $0x3dc] sm:$0xff]
  %v155 = vld [vmem:[%s0 + $0x3e4] sm:$0xff]
  %v156 = vld [vmem:[%s0 + $0x3ec] sm:$0xf]
  %v157 = vld [vmem:[%s0 + $0x3f0] sm:$0xff]
  %v158 = vld [vmem:[%s0 + $0x3f8] sm:$0xff]
  %v159 = vld [vmem:[%s0 + $0x400] sm:$0xff]
  %v160 = vld [vmem:[%s0 + $0x408] sm:$0xff]
  %v161 = vld [vmem:[%s0 + $0x410] sm:$0xf]
  %v162 = vld [vmem:[%s0 + $0x414] sm:$0xff]
  %v163 = vld [vmem:[%s0 + $0x41c] sm:$0xff]
  %v164 = vld [vmem:[%s0 + $0x424] sm:$0xff]
  %v165 = vld [vmem:[%s0 + $0x42c] sm:$0xff]
  %v166 = vld [vmem:[%s0 + $0x434] sm:$0xf]
  %v167 = vld [vmem:[%s0 + $0x438] sm:$0xff]
  %v168 = vld [vmem:[%s0 + $0x440] sm:$0xff]
  %v169 = vld [vmem:[%s0 + $0x448] sm:$0xff]
  %v170 = vld [vmem:[%s0 + $0x450] sm:$0xff]
  %v171 = vld [vmem:[%s0 + $0x458] sm:$0xf]
  %v172 = vld [vmem:[%s0 + $0x45c] sm:$0xff]
  %v173 = vld [vmem:[%s0 + $0x464] sm:$0xff]
  %v174 = vld [vmem:[%s0 + $0x46c] sm:$0xff]
  %v175 = vld [vmem:[%s0 + $0x474] sm:$0xff]
  %v176 = vld [vmem:[%s0 + $0x47c] sm:$0xf]
  %v177 = vld [vmem:[%s1] sm:$0xf]
  %v178 = vld [vmem:[%s1 + $0x4] sm:$0xf]
  %v179 = vld [vmem:[%s1 + $0x8] sm:$0xf]
  %v180 = vld [vmem:[%s1 + $0xc] sm:$0xf]
  %v181 = vld [vmem:[%s1 + $0x10] sm:$0xf]
  %v182 = vld [vmem:[%s1 + $0x14] sm:$0xf]
  %v183 = vld [vmem:[%s1 + $0x18] sm:$0xf]
  %v184 = vld [vmem:[%s1 + $0x1c] sm:$0xf]
  %v185 = vld [vmem:[%s1 + $0x20] sm:$0xf]
  %v186 = vld [vmem:[%s1 + $0x24] sm:$0xf]
  %v187 = vld [vmem:[%s1 + $0x28] sm:$0xf]
  %v188 = vld [vmem:[%s1 + $0x2c] sm:$0xf]
  %v189 = vld [vmem:[%s1 + $0x30] sm:$0xf]
  %v190 = vld [vmem:[%s1 + $0x34] sm:$0xf]
  %v191 = vld [vmem:[%s1 + $0x38] sm:$0xf]
  %v192 = vld [vmem:[%s1 + $0x3c] sm:$0xf]
  %v193 = vld [vmem:[%s1 + $0x40] sm:$0xf]
  %v194 = vld [vmem:[%s1 + $0x44] sm:$0xf]
  %v195 = vld [vmem:[%s1 + $0x48] sm:$0xf]
  %v196 = vld [vmem:[%s1 + $0x4c] sm:$0xf]
  %v197 = vld [vmem:[%s1 + $0x50] sm:$0xf]
  %v198 = vld [vmem:[%s1 + $0x54] sm:$0xf]
  %v199 = vld [vmem:[%s1 + $0x58] sm:$0xf]
  %v200 = vld [vmem:[%s1 + $0x5c] sm:$0xf]
  %v201 = vld [vmem:[%s1 + $0x60] sm:$0xf]
  %v202 = vld [vmem:[%s1 + $0x64] sm:$0xf]
  %v203 = vld [vmem:[%s1 + $0x68] sm:$0xf]
  %v204 = vld [vmem:[%s1 + $0x6c] sm:$0xf]
  %v205 = vld [vmem:[%s1 + $0x70] sm:$0xf]
  %v206 = vld [vmem:[%s1 + $0x74] sm:$0xf]
  %v207 = vld [vmem:[%s1 + $0x78] sm:$0xf]
  %v208 = vld [vmem:[%s1 + $0x7c] sm:$0xf]
  %v209 = vld [vmem:[%s1 + $0x80] sm:$0xf]
  %v210 = vld [vmem:[%s1 + $0x84] sm:$0xf]
  %v211 = vld [vmem:[%s1 + $0x88] sm:$0xf]
  %v212 = vld [vmem:[%s1 + $0x8c] sm:$0xf]
  %v213 = vld [vmem:[%s1 + $0x90] sm:$0xf]
  %v214 = vld [vmem:[%s1 + $0x94] sm:$0xf]
  %v215 = vld [vmem:[%s1 + $0x98] sm:$0xf]
  %v216 = vld [vmem:[%s1 + $0x9c] sm:$0xf]
  %v217 = vld [vmem:[%s1 + $0xa0] sm:$0xf]
  %v218 = vld [vmem:[%s1 + $0xa4] sm:$0xf]
  %v219 = vld [vmem:[%s1 + $0xa8] sm:$0xf]
  %v220 = vld [vmem:[%s1 + $0xac] sm:$0xf]
  %v221 = vld [vmem:[%s1 + $0xb0] sm:$0xf]
  %v222 = vld [vmem:[%s1 + $0xb4] sm:$0xf]
  %v223 = vld [vmem:[%s1 + $0xb8] sm:$0xf]
  %v224 = vld [vmem:[%s1 + $0xbc] sm:$0xf]
  %v225 = vld [vmem:[%s1 + $0xc0] sm:$0xf]
  %v226 = vld [vmem:[%s1 + $0xc4] sm:$0xf]
  %v227 = vld [vmem:[%s1 + $0xc8] sm:$0xf]
  %v228 = vld [vmem:[%s1 + $0xcc] sm:$0xf]
  %v229 = vld [vmem:[%s1 + $0xd0] sm:$0xf]
  %v230 = vld [vmem:[%s1 + $0xd4] sm:$0xf]
  %v231 = vld [vmem:[%s1 + $0xd8] sm:$0xf]
  %v232 = vld [vmem:[%s1 + $0xdc] sm:$0xf]
  %v233 = vld [vmem:[%s1 + $0xe0] sm:$0xf]
  %v234 = vld [vmem:[%s1 + $0xe4] sm:$0xf]
  %v235 = vld [vmem:[%s1 + $0xe8] sm:$0xf]
  %v236 = vld [vmem:[%s1 + $0xec] sm:$0xf]
  %v237 = vld [vmem:[%s1 + $0xf0] sm:$0xf]
  %v238 = vld [vmem:[%s1 + $0xf4] sm:$0xf]
  %v239 = vld [vmem:[%s1 + $0xf8] sm:$0xf]
  %v240 = vld [vmem:[%s1 + $0xfc] sm:$0xf]
  %v241 = vld [vmem:[%s1 + $0x100] sm:$0xf]
  %v242 = vld [vmem:[%s1 + $0x104] sm:$0xf]
  %v243 = vld [vmem:[%s1 + $0x108] sm:$0xf]
  %v244 = vld [vmem:[%s1 + $0x10c] sm:$0xf]
  %v245 = vld [vmem:[%s1 + $0x110] sm:$0xf]
  %v246 = vld [vmem:[%s1 + $0x114] sm:$0xf]
  %v247 = vld [vmem:[%s1 + $0x118] sm:$0xf]
  %v248 = vld [vmem:[%s1 + $0x11c] sm:$0xf]
  %v249 = vld [vmem:[%s1 + $0x120] sm:$0xf]
  %v250 = vld [vmem:[%s1 + $0x124] sm:$0xf]
  %v251 = vld [vmem:[%s1 + $0x128] sm:$0xf]
  %v252 = vld [vmem:[%s1 + $0x12c] sm:$0xf]
  %v253 = vld [vmem:[%s1 + $0x130] sm:$0xf]
  %v254 = vld [vmem:[%s1 + $0x134] sm:$0xf]
  %v255 = vld [vmem:[%s1 + $0x138] sm:$0xf]
  %v256 = vld [vmem:[%s1 + $0x13c] sm:$0xf]
  %v257 = vld [vmem:[%s1 + $0x140] sm:$0xf]
  %v258 = vld [vmem:[%s1 + $0x144] sm:$0xf]
  %v259 = vld [vmem:[%s1 + $0x148] sm:$0xf]
  %v260 = vld [vmem:[%s1 + $0x14c] sm:$0xf]
  %v261 = vld [vmem:[%s1 + $0x150] sm:$0xf]
  %v262 = vld [vmem:[%s1 + $0x154] sm:$0xf]
  %v263 = vld [vmem:[%s1 + $0x158] sm:$0xf]
  %v264 = vld [vmem:[%s1 + $0x15c] sm:$0xf]
  %v265 = vld [vmem:[%s1 + $0x160] sm:$0xf]
  %v266 = vld [vmem:[%s1 + $0x164] sm:$0xf]
  %v267 = vld [vmem:[%s1 + $0x168] sm:$0xf]
  %v268 = vld [vmem:[%s1 + $0x16c] sm:$0xf]
  %v269 = vld [vmem:[%s1 + $0x170] sm:$0xf]
  %v270 = vld [vmem:[%s1 + $0x174] sm:$0xf]
  %v271 = vld [vmem:[%s1 + $0x178] sm:$0xf]
  %v272 = vld [vmem:[%s1 + $0x17c] sm:$0xf]
  %v273 = vld [vmem:[%s1 + $0x180] sm:$0xf]
  %v274 = vld [vmem:[%s1 + $0x184] sm:$0xf]
  %v275 = vld [vmem:[%s1 + $0x188] sm:$0xf]
  %v276 = vld [vmem:[%s1 + $0x18c] sm:$0xf]
  %v277 = vld [vmem:[%s1 + $0x190] sm:$0xf]
  %v278 = vld [vmem:[%s1 + $0x194] sm:$0xf]
  %v279 = vld [vmem:[%s1 + $0x198] sm:$0xf]
  %v280 = vld [vmem:[%s1 + $0x19c] sm:$0xf]
  %v281 = vld [vmem:[%s1 + $0x1a0] sm:$0xf]
  %v282 = vld [vmem:[%s1 + $0x1a4] sm:$0xf]
  %v283 = vld [vmem:[%s1 + $0x1a8] sm:$0xf]
  %v284 = vld [vmem:[%s1 + $0x1ac] sm:$0xf]
  %v285 = vld [vmem:[%s1 + $0x1b0] sm:$0xf]
  %v286 = vld [vmem:[%s1 + $0x1b4] sm:$0xf]
  %v287 = vld [vmem:[%s1 + $0x1b8] sm:$0xf]
  %v288 = vld [vmem:[%s1 + $0x1bc] sm:$0xf]
  %v289 = vld [vmem:[%s1 + $0x1c0] sm:$0xf]
  %v290 = vld [vmem:[%s1 + $0x1c4] sm:$0xf]
  %v291 = vld [vmem:[%s1 + $0x1c8] sm:$0xf]
  %v292 = vld [vmem:[%s1 + $0x1cc] sm:$0xf]
  %v293 = vld [vmem:[%s1 + $0x1d0] sm:$0xf]
  %v294 = vld [vmem:[%s1 + $0x1d4] sm:$0xf]
  %v295 = vld [vmem:[%s1 + $0x1d8] sm:$0xf]
  %v296 = vld [vmem:[%s1 + $0x1dc] sm:$0xf]
  %v297 = vld [vmem:[%s1 + $0x1e0] sm:$0xf]
  %v298 = vld [vmem:[%s1 + $0x1e4] sm:$0xf]
  %v299 = vld [vmem:[%s1 + $0x1e8] sm:$0xf]
  %v300 = vld [vmem:[%s1 + $0x1ec] sm:$0xf]
  %v301 = vld [vmem:[%s1 + $0x1f0] sm:$0xf]
  %v302 = vld [vmem:[%s1 + $0x1f4] sm:$0xf]
  %v303 = vld [vmem:[%s1 + $0x1f8] sm:$0xf]
  %v304 = vld [vmem:[%s1 + $0x1fc] sm:$0xf]
  %v305 = vld [vmem:[%s1 + $0x200] sm:$0xf]
  %v306 = vld [vmem:[%s1 + $0x204] sm:$0xf]
  %v307 = vld [vmem:[%s1 + $0x208] sm:$0xf]
  %v308 = vld [vmem:[%s1 + $0x20c] sm:$0xf]
  %v309 = vld [vmem:[%s1 + $0x210] sm:$0xf]
  %v310 = vld [vmem:[%s1 + $0x214] sm:$0xf]
  %v311 = vld [vmem:[%s1 + $0x218] sm:$0xf]
  %v312 = vld [vmem:[%s1 + $0x21c] sm:$0xf]
  %v313 = vld [vmem:[%s1 + $0x220] sm:$0xf]
  %v314 = vld [vmem:[%s1 + $0x224] sm:$0xf]
  %v315 = vld [vmem:[%s1 + $0x228] sm:$0xf]
  %v316 = vld [vmem:[%s1 + $0x22c] sm:$0xf]
  %v317 = vld [vmem:[%s1 + $0x230] sm:$0xf]
  %v318 = vld [vmem:[%s1 + $0x234] sm:$0xf]
  %v319 = vld [vmem:[%s1 + $0x238] sm:$0xf]
  %v320 = vld [vmem:[%s1 + $0x23c] sm:$0xf]
  %v481 = vunpack.c.l.b16 %v17
  %v482 = vunpack.c.h.b16 %v17
  %v483 = vunpack.c.l.b16 %v18
  %v484 = vunpack.c.h.b16 %v18
  %v485 = vunpack.c.l.b16 %v19
  %v486 = vunpack.c.h.b16 %v19
  %v487 = vunpack.c.l.b16 %v20
  %v488 = vunpack.c.h.b16 %v20
  %v489 = vunpack.c.l.b16 %v21
  %v490 = vunpack.c.l.b16 %v22
  %v491 = vunpack.c.h.b16 %v22
  %v492 = vunpack.c.l.b16 %v23
  %v493 = vunpack.c.h.b16 %v23
  %v494 = vunpack.c.l.b16 %v24
  %v495 = vunpack.c.h.b16 %v24
  %v496 = vunpack.c.l.b16 %v25
  %v497 = vunpack.c.h.b16 %v25
  %v498 = vunpack.c.l.b16 %v26
  %v499 = vunpack.c.l.b16 %v27
  %v500 = vunpack.c.h.b16 %v27
  %v501 = vunpack.c.l.b16 %v28
  %v502 = vunpack.c.h.b16 %v28
  %v503 = vunpack.c.l.b16 %v29
  %v504 = vunpack.c.h.b16 %v29
  %v505 = vunpack.c.l.b16 %v30
  %v506 = vunpack.c.h.b16 %v30
  %v507 = vunpack.c.l.b16 %v31
  %v508 = vunpack.c.l.b16 %v32
  %v509 = vunpack.c.h.b16 %v32
  %v510 = vunpack.c.l.b16 %v33
  %v511 = vunpack.c.h.b16 %v33
  %v512 = vunpack.c.l.b16 %v34
  %v513 = vunpack.c.h.b16 %v34
  %v514 = vunpack.c.l.b16 %v35
  %v515 = vunpack.c.h.b16 %v35
  %v516 = vunpack.c.l.b16 %v36
  %v517 = vunpack.c.l.b16 %v37
  %v518 = vunpack.c.h.b16 %v37
  %v519 = vunpack.c.l.b16 %v38
  %v520 = vunpack.c.h.b16 %v38
  %v521 = vunpack.c.l.b16 %v39
  %v522 = vunpack.c.h.b16 %v39
  %v523 = vunpack.c.l.b16 %v40
  %v524 = vunpack.c.h.b16 %v40
  %v525 = vunpack.c.l.b16 %v41
  %v526 = vunpack.c.l.b16 %v42
  %v527 = vunpack.c.h.b16 %v42
  %v528 = vunpack.c.l.b16 %v43
  %v529 = vunpack.c.h.b16 %v43
  %v530 = vunpack.c.l.b16 %v44
  %v531 = vunpack.c.h.b16 %v44
  %v532 = vunpack.c.l.b16 %v45
  %v533 = vunpack.c.h.b16 %v45
  %v534 = vunpack.c.l.b16 %v46
  %v535 = vunpack.c.l.b16 %v47
  %v536 = vunpack.c.h.b16 %v47
  %v537 = vunpack.c.l.b16 %v48
  %v538 = vunpack.c.h.b16 %v48
  %v539 = vunpack.c.l.b16 %v49
  %v540 = vunpack.c.h.b16 %v49
  %v541 = vunpack.c.l.b16 %v50
  %v542 = vunpack.c.h.b16 %v50
  %v543 = vunpack.c.l.b16 %v51
  %v544 = vunpack.c.l.b16 %v52
  %v545 = vunpack.c.h.b16 %v52
  %v546 = vunpack.c.l.b16 %v53
  %v547 = vunpack.c.h.b16 %v53
  %v548 = vunpack.c.l.b16 %v54
  %v549 = vunpack.c.h.b16 %v54
  %v550 = vunpack.c.l.b16 %v55
  %v551 = vunpack.c.h.b16 %v55
  %v552 = vunpack.c.l.b16 %v56
  %v553 = vunpack.c.l.b16 %v57
  %v554 = vunpack.c.h.b16 %v57
  %v555 = vunpack.c.l.b16 %v58
  %v556 = vunpack.c.h.b16 %v58
  %v557 = vunpack.c.l.b16 %v59
  %v558 = vunpack.c.h.b16 %v59
  %v559 = vunpack.c.l.b16 %v60
  %v560 = vunpack.c.h.b16 %v60
  %v561 = vunpack.c.l.b16 %v61
  %v562 = vunpack.c.l.b16 %v62
  %v563 = vunpack.c.h.b16 %v62
  %v564 = vunpack.c.l.b16 %v63
  %v565 = vunpack.c.h.b16 %v63
  %v566 = vunpack.c.l.b16 %v64
  %v567 = vunpack.c.h.b16 %v64
  %v568 = vunpack.c.l.b16 %v65
  %v569 = vunpack.c.h.b16 %v65
  %v570 = vunpack.c.l.b16 %v66
  %v571 = vunpack.c.l.b16 %v67
  %v572 = vunpack.c.h.b16 %v67
  %v573 = vunpack.c.l.b16 %v68
  %v574 = vunpack.c.h.b16 %v68
  %v575 = vunpack.c.l.b16 %v69
  %v576 = vunpack.c.h.b16 %v69
  %v577 = vunpack.c.l.b16 %v70
  %v578 = vunpack.c.h.b16 %v70
  %v579 = vunpack.c.l.b16 %v71
  %v580 = vunpack.c.l.b16 %v72
  %v581 = vunpack.c.h.b16 %v72
  %v582 = vunpack.c.l.b16 %v73
  %v583 = vunpack.c.h.b16 %v73
  %v584 = vunpack.c.l.b16 %v74
  %v585 = vunpack.c.h.b16 %v74
  %v586 = vunpack.c.l.b16 %v75
  %v587 = vunpack.c.h.b16 %v75
  %v588 = vunpack.c.l.b16 %v76
  %v589 = vunpack.c.l.b16 %v77
  %v590 = vunpack.c.h.b16 %v77
  %v591 = vunpack.c.l.b16 %v78
  %v592 = vunpack.c.h.b16 %v78
  %v593 = vunpack.c.l.b16 %v79
  %v594 = vunpack.c.h.b16 %v79
  %v595 = vunpack.c.l.b16 %v80
  %v596 = vunpack.c.h.b16 %v80
  %v597 = vunpack.c.l.b16 %v81
  %v598 = vunpack.c.l.b16 %v82
  %v599 = vunpack.c.h.b16 %v82
  %v600 = vunpack.c.l.b16 %v83
  %v601 = vunpack.c.h.b16 %v83
  %v602 = vunpack.c.l.b16 %v84
  %v603 = vunpack.c.h.b16 %v84
  %v604 = vunpack.c.l.b16 %v85
  %v605 = vunpack.c.h.b16 %v85
  %v606 = vunpack.c.l.b16 %v86
  %v607 = vunpack.c.l.b16 %v87
  %v608 = vunpack.c.h.b16 %v87
  %v609 = vunpack.c.l.b16 %v88
  %v610 = vunpack.c.h.b16 %v88
  %v611 = vunpack.c.l.b16 %v89
  %v612 = vunpack.c.h.b16 %v89
  %v613 = vunpack.c.l.b16 %v90
  %v614 = vunpack.c.h.b16 %v90
  %v615 = vunpack.c.l.b16 %v91
  %v616 = vunpack.c.l.b16 %v92
  %v617 = vunpack.c.h.b16 %v92
  %v618 = vunpack.c.l.b16 %v93
  %v619 = vunpack.c.h.b16 %v93
  %v620 = vunpack.c.l.b16 %v94
  %v621 = vunpack.c.h.b16 %v94
  %v622 = vunpack.c.l.b16 %v95
  %v623 = vunpack.c.h.b16 %v95
  %v624 = vunpack.c.l.b16 %v96
  %v625 = vunpack.c.l.b16 %v97
  %v626 = vunpack.c.h.b16 %v97
  %v627 = vunpack.c.l.b16 %v98
  %v628 = vunpack.c.h.b16 %v98
  %v629 = vunpack.c.l.b16 %v99
  %v630 = vunpack.c.h.b16 %v99
  %v631 = vunpack.c.l.b16 %v100
  %v632 = vunpack.c.h.b16 %v100
  %v633 = vunpack.c.l.b16 %v101
  %v634 = vunpack.c.l.b16 %v102
  %v635 = vunpack.c.h.b16 %v102
  %v636 = vunpack.c.l.b16 %v103
  %v637 = vunpack.c.h.b16 %v103
  %v638 = vunpack.c.l.b16 %v104
  %v639 = vunpack.c.h.b16 %v104
  %v640 = vunpack.c.l.b16 %v105
  %v641 = vunpack.c.h.b16 %v105
  %v642 = vunpack.c.l.b16 %v106
  %v643 = vunpack.c.l.b16 %v107
  %v644 = vunpack.c.h.b16 %v107
  %v645 = vunpack.c.l.b16 %v108
  %v646 = vunpack.c.h.b16 %v108
  %v647 = vunpack.c.l.b16 %v109
  %v648 = vunpack.c.h.b16 %v109
  %v649 = vunpack.c.l.b16 %v110
  %v650 = vunpack.c.h.b16 %v110
  %v651 = vunpack.c.l.b16 %v111
  %v652 = vunpack.c.l.b16 %v112
  %v653 = vunpack.c.h.b16 %v112
  %v654 = vunpack.c.l.b16 %v113
  %v655 = vunpack.c.h.b16 %v113
  %v656 = vunpack.c.l.b16 %v114
  %v657 = vunpack.c.h.b16 %v114
  %v658 = vunpack.c.l.b16 %v115
  %v659 = vunpack.c.h.b16 %v115
  %v660 = vunpack.c.l.b16 %v116
  %v661 = vunpack.c.l.b16 %v117
  %v662 = vunpack.c.h.b16 %v117
  %v663 = vunpack.c.l.b16 %v118
  %v664 = vunpack.c.h.b16 %v118
  %v665 = vunpack.c.l.b16 %v119
  %v666 = vunpack.c.h.b16 %v119
  %v667 = vunpack.c.l.b16 %v120
  %v668 = vunpack.c.h.b16 %v120
  %v669 = vunpack.c.l.b16 %v121
  %v670 = vunpack.c.l.b16 %v122
  %v671 = vunpack.c.h.b16 %v122
  %v672 = vunpack.c.l.b16 %v123
  %v673 = vunpack.c.h.b16 %v123
  %v674 = vunpack.c.l.b16 %v124
  %v675 = vunpack.c.h.b16 %v124
  %v676 = vunpack.c.l.b16 %v125
  %v677 = vunpack.c.h.b16 %v125
  %v678 = vunpack.c.l.b16 %v126
  %v679 = vunpack.c.l.b16 %v127
  %v680 = vunpack.c.h.b16 %v127
  %v681 = vunpack.c.l.b16 %v128
  %v682 = vunpack.c.h.b16 %v128
  %v683 = vunpack.c.l.b16 %v129
  %v684 = vunpack.c.h.b16 %v129
  %v685 = vunpack.c.l.b16 %v130
  %v686 = vunpack.c.h.b16 %v130
  %v687 = vunpack.c.l.b16 %v131
  %v688 = vunpack.c.l.b16 %v132
  %v689 = vunpack.c.h.b16 %v132
  %v690 = vunpack.c.l.b16 %v133
  %v691 = vunpack.c.h.b16 %v133
  %v692 = vunpack.c.l.b16 %v134
  %v693 = vunpack.c.h.b16 %v134
  %v694 = vunpack.c.l.b16 %v135
  %v695 = vunpack.c.h.b16 %v135
  %v696 = vunpack.c.l.b16 %v136
  %v697 = vunpack.c.l.b16 %v137
  %v698 = vunpack.c.h.b16 %v137
  %v699 = vunpack.c.l.b16 %v138
  %v700 = vunpack.c.h.b16 %v138
  %v701 = vunpack.c.l.b16 %v139
  %v702 = vunpack.c.h.b16 %v139
  %v703 = vunpack.c.l.b16 %v140
  %v704 = vunpack.c.h.b16 %v140
  %v705 = vunpack.c.l.b16 %v141
  %v706 = vunpack.c.l.b16 %v142
  %v707 = vunpack.c.h.b16 %v142
  %v708 = vunpack.c.l.b16 %v143
  %v709 = vunpack.c.h.b16 %v143
  %v710 = vunpack.c.l.b16 %v144
  %v711 = vunpack.c.h.b16 %v144
  %v712 = vunpack.c.l.b16 %v145
  %v713 = vunpack.c.h.b16 %v145
  %v714 = vunpack.c.l.b16 %v146
  %v715 = vunpack.c.l.b16 %v147
  %v716 = vunpack.c.h.b16 %v147
  %v717 = vunpack.c.l.b16 %v148
  %v718 = vunpack.c.h.b16 %v148
  %v719 = vunpack.c.l.b16 %v149
  %v720 = vunpack.c.h.b16 %v149
  %v721 = vunpack.c.l.b16 %v150
  %v722 = vunpack.c.h.b16 %v150
  %v723 = vunpack.c.l.b16 %v151
  %v724 = vunpack.c.l.b16 %v152
  %v725 = vunpack.c.h.b16 %v152
  %v726 = vunpack.c.l.b16 %v153
  %v727 = vunpack.c.h.b16 %v153
  %v728 = vunpack.c.l.b16 %v154
  %v729 = vunpack.c.h.b16 %v154
  %v730 = vunpack.c.l.b16 %v155
  %v731 = vunpack.c.h.b16 %v155
  %v732 = vunpack.c.l.b16 %v156
  %v733 = vunpack.c.l.b16 %v157
  %v734 = vunpack.c.h.b16 %v157
  %v735 = vunpack.c.l.b16 %v158
  %v736 = vunpack.c.h.b16 %v158
  %v737 = vunpack.c.l.b16 %v159
  %v738 = vunpack.c.h.b16 %v159
  %v739 = vunpack.c.l.b16 %v160
  %v740 = vunpack.c.h.b16 %v160
  %v741 = vunpack.c.l.b16 %v161
  %v742 = vunpack.c.l.b16 %v162
  %v743 = vunpack.c.h.b16 %v162
  %v744 = vunpack.c.l.b16 %v163
  %v745 = vunpack.c.h.b16 %v163
  %v746 = vunpack.c.l.b16 %v164
  %v747 = vunpack.c.h.b16 %v164
  %v748 = vunpack.c.l.b16 %v165
  %v749 = vunpack.c.h.b16 %v165
  %v750 = vunpack.c.l.b16 %v166
  %v751 = vunpack.c.l.b16 %v167
  %v752 = vunpack.c.h.b16 %v167
  %v753 = vunpack.c.l.b16 %v168
  %v754 = vunpack.c.h.b16 %v168
  %v755 = vunpack.c.l.b16 %v169
  %v756 = vunpack.c.h.b16 %v169
  %v757 = vunpack.c.l.b16 %v170
  %v758 = vunpack.c.h.b16 %v170
  %v759 = vunpack.c.l.b16 %v171
  %v760 = vunpack.c.l.b16 %v172
  %v761 = vunpack.c.h.b16 %v172
  %v762 = vunpack.c.l.b16 %v173
  %v763 = vunpack.c.h.b16 %v173
  %v764 = vunpack.c.l.b16 %v174
  %v765 = vunpack.c.h.b16 %v174
  %v766 = vunpack.c.l.b16 %v175
  %v767 = vunpack.c.h.b16 %v175
  %v768 = vunpack.c.l.b16 %v176
  %v769 = vpack.c.b16 %v490, %v481
  %v770 = vpack.c.b16 %v491, %v482
  %v771 = vpack.c.b16 %v492, %v483
  %v772 = vpack.c.b16 %v493, %v484
  %v773 = vpack.c.b16 %v494, %v485
  %v774 = vpack.c.b16 %v495, %v486
  %v775 = vpack.c.b16 %v496, %v487
  %v776 = vpack.c.b16 %v497, %v488
  %v777 = vpack.c.b16 %v498, %v489
  %v778 = vpack.c.b16 %v508, %v499
  %v779 = vpack.c.b16 %v509, %v500
  %v780 = vpack.c.b16 %v510, %v501
  %v781 = vpack.c.b16 %v511, %v502
  %v782 = vpack.c.b16 %v512, %v503
  %v783 = vpack.c.b16 %v513, %v504
  %v784 = vpack.c.b16 %v514, %v505
  %v785 = vpack.c.b16 %v515, %v506
  %v786 = vpack.c.b16 %v516, %v507
  %v787 = vpack.c.b16 %v526, %v517
  %v788 = vpack.c.b16 %v527, %v518
  %v789 = vpack.c.b16 %v528, %v519
  %v790 = vpack.c.b16 %v529, %v520
  %v791 = vpack.c.b16 %v530, %v521
  %v792 = vpack.c.b16 %v531, %v522
  %v793 = vpack.c.b16 %v532, %v523
  %v794 = vpack.c.b16 %v533, %v524
  %v795 = vpack.c.b16 %v534, %v525
  %v796 = vpack.c.b16 %v544, %v535
  %v797 = vpack.c.b16 %v545, %v536
  %v798 = vpack.c.b16 %v546, %v537
  %v799 = vpack.c.b16 %v547, %v538
  %v800 = vpack.c.b16 %v548, %v539
  %v801 = vpack.c.b16 %v549, %v540
  %v802 = vpack.c.b16 %v550, %v541
  %v803 = vpack.c.b16 %v551, %v542
  %v804 = vpack.c.b16 %v552, %v543
  %v805 = vpack.c.b16 %v562, %v553
  %v806 = vpack.c.b16 %v563, %v554
  %v807 = vpack.c.b16 %v564, %v555
  %v808 = vpack.c.b16 %v565, %v556
  %v809 = vpack.c.b16 %v566, %v557
  %v810 = vpack.c.b16 %v567, %v558
  %v811 = vpack.c.b16 %v568, %v559
  %v812 = vpack.c.b16 %v569, %v560
  %v813 = vpack.c.b16 %v570, %v561
  %v814 = vpack.c.b16 %v580, %v571
  %v815 = vpack.c.b16 %v581, %v572
  %v816 = vpack.c.b16 %v582, %v573
  %v817 = vpack.c.b16 %v583, %v574
  %v818 = vpack.c.b16 %v584, %v575
  %v819 = vpack.c.b16 %v585, %v576
  %v820 = vpack.c.b16 %v586, %v577
  %v821 = vpack.c.b16 %v587, %v578
  %v822 = vpack.c.b16 %v588, %v579
  %v823 = vpack.c.b16 %v598, %v589
  %v824 = vpack.c.b16 %v599, %v590
  %v825 = vpack.c.b16 %v600, %v591
  %v826 = vpack.c.b16 %v601, %v592
  %v827 = vpack.c.b16 %v602, %v593
  %v828 = vpack.c.b16 %v603, %v594
  %v829 = vpack.c.b16 %v604, %v595
  %v830 = vpack.c.b16 %v605, %v596
  %v831 = vpack.c.b16 %v606, %v597
  %v832 = vpack.c.b16 %v616, %v607
  %v833 = vpack.c.b16 %v617, %v608
  %v834 = vpack.c.b16 %v618, %v609
  %v835 = vpack.c.b16 %v619, %v610
  %v836 = vpack.c.b16 %v620, %v611
  %v837 = vpack.c.b16 %v621, %v612
  %v838 = vpack.c.b16 %v622, %v613
  %v839 = vpack.c.b16 %v623, %v614
  %v840 = vpack.c.b16 %v624, %v615
  %v841 = vpack.c.b16 %v634, %v625
  %v842 = vpack.c.b16 %v635, %v626
  %v843 = vpack.c.b16 %v636, %v627
  %v844 = vpack.c.b16 %v637, %v628
  %v845 = vpack.c.b16 %v638, %v629
  %v846 = vpack.c.b16 %v639, %v630
  %v847 = vpack.c.b16 %v640, %v631
  %v848 = vpack.c.b16 %v641, %v632
  %v849 = vpack.c.b16 %v642, %v633
  %v850 = vpack.c.b16 %v652, %v643
  %v851 = vpack.c.b16 %v653, %v644
  %v852 = vpack.c.b16 %v654, %v645
  %v853 = vpack.c.b16 %v655, %v646
  %v854 = vpack.c.b16 %v656, %v647
  %v855 = vpack.c.b16 %v657, %v648
  %v856 = vpack.c.b16 %v658, %v649
  %v857 = vpack.c.b16 %v659, %v650
  %v858 = vpack.c.b16 %v660, %v651
  %v859 = vpack.c.b16 %v670, %v661
  %v860 = vpack.c.b16 %v671, %v662
  %v861 = vpack.c.b16 %v672, %v663
  %v862 = vpack.c.b16 %v673, %v664
  %v863 = vpack.c.b16 %v674, %v665
  %v864 = vpack.c.b16 %v675, %v666
  %v865 = vpack.c.b16 %v676, %v667
  %v866 = vpack.c.b16 %v677, %v668
  %v867 = vpack.c.b16 %v678, %v669
  %v868 = vpack.c.b16 %v688, %v679
  %v869 = vpack.c.b16 %v689, %v680
  %v870 = vpack.c.b16 %v690, %v681
  %v871 = vpack.c.b16 %v691, %v682
  %v872 = vpack.c.b16 %v692, %v683
  %v873 = vpack.c.b16 %v693, %v684
  %v874 = vpack.c.b16 %v694, %v685
  %v875 = vpack.c.b16 %v695, %v686
  %v876 = vpack.c.b16 %v696, %v687
  %v877 = vpack.c.b16 %v706, %v697
  %v878 = vpack.c.b16 %v707, %v698
  %v879 = vpack.c.b16 %v708, %v699
  %v880 = vpack.c.b16 %v709, %v700
  %v881 = vpack.c.b16 %v710, %v701
  %v882 = vpack.c.b16 %v711, %v702
  %v883 = vpack.c.b16 %v712, %v703
  %v884 = vpack.c.b16 %v713, %v704
  %v885 = vpack.c.b16 %v714, %v705
  %v886 = vpack.c.b16 %v724, %v715
  %v887 = vpack.c.b16 %v725, %v716
  %v888 = vpack.c.b16 %v726, %v717
  %v889 = vpack.c.b16 %v727, %v718
  %v890 = vpack.c.b16 %v728, %v719
  %v891 = vpack.c.b16 %v729, %v720
  %v892 = vpack.c.b16 %v730, %v721
  %v893 = vpack.c.b16 %v731, %v722
  %v894 = vpack.c.b16 %v732, %v723
  %v895 = vpack.c.b16 %v742, %v733
  %v896 = vpack.c.b16 %v743, %v734
  %v897 = vpack.c.b16 %v744, %v735
  %v898 = vpack.c.b16 %v745, %v736
  %v899 = vpack.c.b16 %v746, %v737
  %v900 = vpack.c.b16 %v747, %v738
  %v901 = vpack.c.b16 %v748, %v739
  %v902 = vpack.c.b16 %v749, %v740
  %v903 = vpack.c.b16 %v750, %v741
  %v904 = vpack.c.b16 %v760, %v751
  %v905 = vpack.c.b16 %v761, %v752
  %v906 = vpack.c.b16 %v762, %v753
  %v907 = vpack.c.b16 %v763, %v754
  %v908 = vpack.c.b16 %v764, %v755
  %v909 = vpack.c.b16 %v765, %v756
  %v910 = vpack.c.b16 %v766, %v757
  %v911 = vpack.c.b16 %v767, %v758
  %v912 = vpack.c.b16 %v768, %v759
  %v1201 = vunpack.c.l.b16 %v177
  %v1202 = vunpack.c.l.b16 %v178
  %v1203 = vunpack.c.l.b16 %v179
  %v1204 = vunpack.c.l.b16 %v180
  %v1205 = vunpack.c.l.b16 %v181
  %v1206 = vunpack.c.l.b16 %v182
  %v1207 = vunpack.c.l.b16 %v183
  %v1208 = vunpack.c.l.b16 %v184
  %v1209 = vunpack.c.l.b16 %v185
  %v1210 = vunpack.c.l.b16 %v186
  %v1211 = vunpack.c.l.b16 %v187
  %v1212 = vunpack.c.l.b16 %v188
  %v1213 = vunpack.c.l.b16 %v189
  %v1214 = vunpack.c.l.b16 %v190
  %v1215 = vunpack.c.l.b16 %v191
  %v1216 = vunpack.c.l.b16 %v192
  %v1217 = vunpack.c.l.b16 %v193
  %v1218 = vunpack.c.l.b16 %v194
  %v1219 = vunpack.c.l.b16 %v195
  %v1220 = vunpack.c.l.b16 %v196
  %v1221 = vunpack.c.l.b16 %v197
  %v1222 = vunpack.c.l.b16 %v198
  %v1223 = vunpack.c.l.b16 %v199
  %v1224 = vunpack.c.l.b16 %v200
  %v1225 = vunpack.c.l.b16 %v201
  %v1226 = vunpack.c.l.b16 %v202
  %v1227 = vunpack.c.l.b16 %v203
  %v1228 = vunpack.c.l.b16 %v204
  %v1229 = vunpack.c.l.b16 %v205
  %v1230 = vunpack.c.l.b16 %v206
  %v1231 = vunpack.c.l.b16 %v207
  %v1232 = vunpack.c.l.b16 %v208
  %v1233 = vunpack.c.l.b16 %v209
  %v1234 = vunpack.c.l.b16 %v210
  %v1235 = vunpack.c.l.b16 %v211
  %v1236 = vunpack.c.l.b16 %v212
  %v1237 = vunpack.c.l.b16 %v213
  %v1238 = vunpack.c.l.b16 %v214
  %v1239 = vunpack.c.l.b16 %v215
  %v1240 = vunpack.c.l.b16 %v216
  %v1241 = vunpack.c.l.b16 %v217
  %v1242 = vunpack.c.l.b16 %v218
  %v1243 = vunpack.c.l.b16 %v219
  %v1244 = vunpack.c.l.b16 %v220
  %v1245 = vunpack.c.l.b16 %v221
  %v1246 = vunpack.c.l.b16 %v222
  %v1247 = vunpack.c.l.b16 %v223
  %v1248 = vunpack.c.l.b16 %v224
  %v1249 = vunpack.c.l.b16 %v225
  %v1250 = vunpack.c.l.b16 %v226
  %v1251 = vunpack.c.l.b16 %v227
  %v1252 = vunpack.c.l.b16 %v228
  %v1253 = vunpack.c.l.b16 %v229
  %v1254 = vunpack.c.l.b16 %v230
  %v1255 = vunpack.c.l.b16 %v231
  %v1256 = vunpack.c.l.b16 %v232
  %v1257 = vunpack.c.l.b16 %v233
  %v1258 = vunpack.c.l.b16 %v234
  %v1259 = vunpack.c.l.b16 %v235
  %v1260 = vunpack.c.l.b16 %v236
  %v1261 = vunpack.c.l.b16 %v237
  %v1262 = vunpack.c.l.b16 %v238
  %v1263 = vunpack.c.l.b16 %v239
  %v1264 = vunpack.c.l.b16 %v240
  %v1265 = vunpack.c.l.b16 %v241
  %v1266 = vunpack.c.l.b16 %v242
  %v1267 = vunpack.c.l.b16 %v243
  %v1268 = vunpack.c.l.b16 %v244
  %v1269 = vunpack.c.l.b16 %v245
  %v1270 = vunpack.c.l.b16 %v246
  %v1271 = vunpack.c.l.b16 %v247
  %v1272 = vunpack.c.l.b16 %v248
  %v1273 = vunpack.c.l.b16 %v249
  %v1274 = vunpack.c.l.b16 %v250
  %v1275 = vunpack.c.l.b16 %v251
  %v1276 = vunpack.c.l.b16 %v252
  %v1277 = vunpack.c.l.b16 %v253
  %v1278 = vunpack.c.l.b16 %v254
  %v1279 = vunpack.c.l.b16 %v255
  %v1280 = vunpack.c.l.b16 %v256
  %v1281 = vunpack.c.l.b16 %v257
  %v1282 = vunpack.c.l.b16 %v258
  %v1283 = vunpack.c.l.b16 %v259
  %v1284 = vunpack.c.l.b16 %v260
  %v1285 = vunpack.c.l.b16 %v261
  %v1286 = vunpack.c.l.b16 %v262
  %v1287 = vunpack.c.l.b16 %v263
  %v1288 = vunpack.c.l.b16 %v264
  %v1289 = vunpack.c.l.b16 %v265
  %v1290 = vunpack.c.l.b16 %v266
  %v1291 = vunpack.c.l.b16 %v267
  %v1292 = vunpack.c.l.b16 %v268
  %v1293 = vunpack.c.l.b16 %v269
  %v1294 = vunpack.c.l.b16 %v270
  %v1295 = vunpack.c.l.b16 %v271
  %v1296 = vunpack.c.l.b16 %v272
  %v1297 = vunpack.c.l.b16 %v273
  %v1298 = vunpack.c.l.b16 %v274
  %v1299 = vunpack.c.l.b16 %v275
  %v1300 = vunpack.c.l.b16 %v276
  %v1301 = vunpack.c.l.b16 %v277
  %v1302 = vunpack.c.l.b16 %v278
  %v1303 = vunpack.c.l.b16 %v279
  %v1304 = vunpack.c.l.b16 %v280
  %v1305 = vunpack.c.l.b16 %v281
  %v1306 = vunpack.c.l.b16 %v282
  %v1307 = vunpack.c.l.b16 %v283
  %v1308 = vunpack.c.l.b16 %v284
  %v1309 = vunpack.c.l.b16 %v285
  %v1310 = vunpack.c.l.b16 %v286
  %v1311 = vunpack.c.l.b16 %v287
  %v1312 = vunpack.c.l.b16 %v288
  %v1313 = vunpack.c.l.b16 %v289
  %v1314 = vunpack.c.l.b16 %v290
  %v1315 = vunpack.c.l.b16 %v291
  %v1316 = vunpack.c.l.b16 %v292
  %v1317 = vunpack.c.l.b16 %v293
  %v1318 = vunpack.c.l.b16 %v294
  %v1319 = vunpack.c.l.b16 %v295
  %v1320 = vunpack.c.l.b16 %v296
  %v1321 = vunpack.c.l.b16 %v297
  %v1322 = vunpack.c.l.b16 %v298
  %v1323 = vunpack.c.l.b16 %v299
  %v1324 = vunpack.c.l.b16 %v300
  %v1325 = vunpack.c.l.b16 %v301
  %v1326 = vunpack.c.l.b16 %v302
  %v1327 = vunpack.c.l.b16 %v303
  %v1328 = vunpack.c.l.b16 %v304
  %v1329 = vunpack.c.l.b16 %v305
  %v1330 = vunpack.c.l.b16 %v306
  %v1331 = vunpack.c.l.b16 %v307
  %v1332 = vunpack.c.l.b16 %v308
  %v1333 = vunpack.c.l.b16 %v309
  %v1334 = vunpack.c.l.b16 %v310
  %v1335 = vunpack.c.l.b16 %v311
  %v1336 = vunpack.c.l.b16 %v312
  %v1337 = vunpack.c.l.b16 %v313
  %v1338 = vunpack.c.l.b16 %v314
  %v1339 = vunpack.c.l.b16 %v315
  %v1340 = vunpack.c.l.b16 %v316
  %v1341 = vunpack.c.l.b16 %v317
  %v1342 = vunpack.c.l.b16 %v318
  %v1343 = vunpack.c.l.b16 %v319
  %v1344 = vunpack.c.l.b16 %v320
  %v1345 = vpack.c.b16 %v1202, %v1201
  %v1346 = vpack.c.b16 %v1204, %v1203
  %v1347 = vpack.c.b16 %v1206, %v1205
  %v1348 = vpack.c.b16 %v1208, %v1207
  %v1349 = vpack.c.b16 %v1210, %v1209
  %v1350 = vpack.c.b16 %v1212, %v1211
  %v1351 = vpack.c.b16 %v1214, %v1213
  %v1352 = vpack.c.b16 %v1216, %v1215
  %v1353 = vpack.c.b16 %v1218, %v1217
  %v1354 = vpack.c.b16 %v1220, %v1219
  %v1355 = vpack.c.b16 %v1222, %v1221
  %v1356 = vpack.c.b16 %v1224, %v1223
  %v1357 = vpack.c.b16 %v1226, %v1225
  %v1358 = vpack.c.b16 %v1228, %v1227
  %v1359 = vpack.c.b16 %v1230, %v1229
  %v1360 = vpack.c.b16 %v1232, %v1231
  %v1361 = vpack.c.b16 %v1234, %v1233
  %v1362 = vpack.c.b16 %v1236, %v1235
  %v1363 = vpack.c.b16 %v1238, %v1237
  %v1364 = vpack.c.b16 %v1240, %v1239
  %v1365 = vpack.c.b16 %v1242, %v1241
  %v1366 = vpack.c.b16 %v1244, %v1243
  %v1367 = vpack.c.b16 %v1246, %v1245
  %v1368 = vpack.c.b16 %v1248, %v1247
  %v1369 = vpack.c.b16 %v1250, %v1249
  %v1370 = vpack.c.b16 %v1252, %v1251
  %v1371 = vpack.c.b16 %v1254, %v1253
  %v1372 = vpack.c.b16 %v1256, %v1255
  %v1373 = vpack.c.b16 %v1258, %v1257
  %v1374 = vpack.c.b16 %v1260, %v1259
  %v1375 = vpack.c.b16 %v1262, %v1261
  %v1376 = vpack.c.b16 %v1264, %v1263
  %v1377 = vpack.c.b16 %v1266, %v1265
  %v1378 = vpack.c.b16 %v1268, %v1267
  %v1379 = vpack.c.b16 %v1270, %v1269
  %v1380 = vpack.c.b16 %v1272, %v1271
  %v1381 = vpack.c.b16 %v1274, %v1273
  %v1382 = vpack.c.b16 %v1276, %v1275
  %v1383 = vpack.c.b16 %v1278, %v1277
  %v1384 = vpack.c.b16 %v1280, %v1279
  %v1385 = vpack.c.b16 %v1282, %v1281
  %v1386 = vpack.c.b16 %v1284, %v1283
  %v1387 = vpack.c.b16 %v1286, %v1285
  %v1388 = vpack.c.b16 %v1288, %v1287
  %v1389 = vpack.c.b16 %v1290, %v1289
  %v1390 = vpack.c.b16 %v1292, %v1291
  %v1391 = vpack.c.b16 %v1294, %v1293
  %v1392 = vpack.c.b16 %v1296, %v1295
  %v1393 = vpack.c.b16 %v1298, %v1297
  %v1394 = vpack.c.b16 %v1300, %v1299
  %v1395 = vpack.c.b16 %v1302, %v1301
  %v1396 = vpack.c.b16 %v1304, %v1303
  %v1397 = vpack.c.b16 %v1306, %v1305
  %v1398 = vpack.c.b16 %v1308, %v1307
  %v1399 = vpack.c.b16 %v1310, %v1309
  %v1400 = vpack.c.b16 %v1312, %v1311
  %v1401 = vpack.c.b16 %v1314, %v1313
  %v1402 = vpack.c.b16 %v1316, %v1315
  %v1403 = vpack.c.b16 %v1318, %v1317
  %v1404 = vpack.c.b16 %v1320, %v1319
  %v1405 = vpack.c.b16 %v1322, %v1321
  %v1406 = vpack.c.b16 %v1324, %v1323
  %v1407 = vpack.c.b16 %v1326, %v1325
  %v1408 = vpack.c.b16 %v1328, %v1327
  %v1409 = vpack.c.b16 %v1330, %v1329
  %v1410 = vpack.c.b16 %v1332, %v1331
  %v1411 = vpack.c.b16 %v1334, %v1333
  %v1412 = vpack.c.b16 %v1336, %v1335
  %v1413 = vpack.c.b16 %v1338, %v1337
  %v1414 = vpack.c.b16 %v1340, %v1339
  %v1415 = vpack.c.b16 %v1342, %v1341
  %v1416 = vpack.c.b16 %v1344, %v1343
  %1489 = vmatpush.bf16.msra.mxu0 %v1352
  %1490 = vmatpush.bf16.msra.mxu0 %v1351
  %1491 = vmatpush.bf16.msra.mxu0 %v1350
  %1492 = vmatpush.bf16.msra.mxu0 %v1349
  %1493 = vmatpush.bf16.msra.mxu0 %v1348
  %1494 = vmatpush.bf16.msra.mxu0 %v1347
  %1495 = vmatpush.bf16.msra.mxu0 %v1346
  %1496 = vmatpush.bf16.msra.mxu0 %v1345
  %1497 = vmatmul.bf16.gmra.mxu0 %v769
  %v1498 = vpop.f32.mrf.mxu0
  %v1499 = vadd.f32 0.0, %v1498
  %v1500 = vpop.f32.mrf.mxu0
  %v1501 = vadd.f32 0.0, %v1500
  %1502 = vmatmul.bf16.gmra.mxu0 %v778
  %v1503 = vpop.f32.mrf.mxu0
  %v1504 = vadd.f32 0.0, %v1503
  %v1505 = vpop.f32.mrf.mxu0
  %v1506 = vadd.f32 0.0, %v1505
  %1507 = vmatmul.bf16.gmra.mxu0 %v787
  %v1508 = vpop.f32.mrf.mxu0
  %v1509 = vadd.f32 0.0, %v1508
  %v1510 = vpop.f32.mrf.mxu0
  %v1511 = vadd.f32 0.0, %v1510
  %1512 = vmatmul.bf16.gmra.mxu0 %v796
  %v1513 = vpop.f32.mrf.mxu0
  %v1514 = vadd.f32 0.0, %v1513
  %v1515 = vpop.f32.mrf.mxu0
  %v1516 = vadd.f32 0.0, %v1515
  %1517 = vmatmul.bf16.gmra.mxu0 %v805
  %v1518 = vpop.f32.mrf.mxu0
  %v1519 = vadd.f32 0.0, %v1518
  %v1520 = vpop.f32.mrf.mxu0
  %v1521 = vadd.f32 0.0, %v1520
  %1522 = vmatmul.bf16.gmra.mxu0 %v814
  %v1523 = vpop.f32.mrf.mxu0
  %v1524 = vadd.f32 0.0, %v1523
  %v1525 = vpop.f32.mrf.mxu0
  %v1526 = vadd.f32 0.0, %v1525
  %1527 = vmatmul.bf16.gmra.mxu0 %v823
  %v1528 = vpop.f32.mrf.mxu0
  %v1529 = vadd.f32 0.0, %v1528
  %v1530 = vpop.f32.mrf.mxu0
  %v1531 = vadd.f32 0.0, %v1530
  %1532 = vmatmul.bf16.gmra.mxu0 %v832
  %v1533 = vpop.f32.mrf.mxu0
  %v1534 = vadd.f32 0.0, %v1533
  %v1535 = vpop.f32.mrf.mxu0
  %v1536 = vadd.f32 0.0, %v1535
  %1537 = vmatmul.bf16.gmra.mxu0 %v841
  %v1538 = vpop.f32.mrf.mxu0
  %v1539 = vadd.f32 0.0, %v1538
  %v1540 = vpop.f32.mrf.mxu0
  %v1541 = vadd.f32 0.0, %v1540
  %1542 = vmatmul.bf16.gmra.mxu0 %v850
  %v1543 = vpop.f32.mrf.mxu0
  %v1544 = vadd.f32 0.0, %v1543
  %v1545 = vpop.f32.mrf.mxu0
  %v1546 = vadd.f32 0.0, %v1545
  %1547 = vmatmul.bf16.gmra.mxu0 %v859
  %v1548 = vpop.f32.mrf.mxu0
  %v1549 = vadd.f32 0.0, %v1548
  %v1550 = vpop.f32.mrf.mxu0
  %v1551 = vadd.f32 0.0, %v1550
  %1552 = vmatmul.bf16.gmra.mxu0 %v868
  %v1553 = vpop.f32.mrf.mxu0
  %v1554 = vadd.f32 0.0, %v1553
  %v1555 = vpop.f32.mrf.mxu0
  %v1556 = vadd.f32 0.0, %v1555
  %1557 = vmatmul.bf16.gmra.mxu0 %v877
  %v1558 = vpop.f32.mrf.mxu0
  %v1559 = vadd.f32 0.0, %v1558
  %v1560 = vpop.f32.mrf.mxu0
  %v1561 = vadd.f32 0.0, %v1560
  %1562 = vmatmul.bf16.gmra.mxu0 %v886
  %v1563 = vpop.f32.mrf.mxu0
  %v1564 = vadd.f32 0.0, %v1563
  %v1565 = vpop.f32.mrf.mxu0
  %v1566 = vadd.f32 0.0, %v1565
  %1567 = vmatmul.bf16.gmra.mxu0 %v895
  %v1568 = vpop.f32.mrf.mxu0
  %v1569 = vadd.f32 0.0, %v1568
  %v1570 = vpop.f32.mrf.mxu0
  %v1571 = vadd.f32 0.0, %v1570
  %1572 = vmatmul.bf16.gmra.mxu0 %v904
  %v1573 = vpop.f32.mrf.mxu0
  %v1574 = vadd.f32 0.0, %v1573
  %v1575 = vpop.f32.mrf.mxu0
  %v1576 = vadd.f32 0.0, %v1575
  %1577 = vdwg.mxu0
  %1578 = vmatpush.bf16.msra.mxu0 %v1360
  %1579 = vmatpush.bf16.msra.mxu0 %v1359
  %1580 = vmatpush.bf16.msra.mxu0 %v1358
  %1581 = vmatpush.bf16.msra.mxu0 %v1357
  %1582 = vmatpush.bf16.msra.mxu0 %v1356
  %1583 = vmatpush.bf16.msra.mxu0 %v1355
  %1584 = vmatpush.bf16.msra.mxu0 %v1354
  %1585 = vmatpush.bf16.msra.mxu0 %v1353
  %1586 = vmatmul.bf16.gmra.mxu0 %v770
  %v1587 = vpop.f32.mrf.mxu0
  %v1588 = vadd.f32 %v1499, %v1587
  %v1589 = vpop.f32.mrf.mxu0
  %v1590 = vadd.f32 %v1501, %v1589
  %1591 = vmatmul.bf16.gmra.mxu0 %v779
  %v1592 = vpop.f32.mrf.mxu0
  %v1593 = vadd.f32 %v1504, %v1592
  %v1594 = vpop.f32.mrf.mxu0
  %v1595 = vadd.f32 %v1506, %v1594
  %1596 = vmatmul.bf16.gmra.mxu0 %v788
  %v1597 = vpop.f32.mrf.mxu0
  %v1598 = vadd.f32 %v1509, %v1597
  %v1599 = vpop.f32.mrf.mxu0
  %v1600 = vadd.f32 %v1511, %v1599
  %1601 = vmatmul.bf16.gmra.mxu0 %v797
  %v1602 = vpop.f32.mrf.mxu0
  %v1603 = vadd.f32 %v1514, %v1602
  %v1604 = vpop.f32.mrf.mxu0
  %v1605 = vadd.f32 %v1516, %v1604
  %1606 = vmatmul.bf16.gmra.mxu0 %v806
  %v1607 = vpop.f32.mrf.mxu0
  %v1608 = vadd.f32 %v1519, %v1607
  %v1609 = vpop.f32.mrf.mxu0
  %v1610 = vadd.f32 %v1521, %v1609
  %1611 = vmatmul.bf16.gmra.mxu0 %v815
  %v1612 = vpop.f32.mrf.mxu0
  %v1613 = vadd.f32 %v1524, %v1612
  %v1614 = vpop.f32.mrf.mxu0
  %v1615 = vadd.f32 %v1526, %v1614
  %1616 = vmatmul.bf16.gmra.mxu0 %v824
  %v1617 = vpop.f32.mrf.mxu0
  %v1618 = vadd.f32 %v1529, %v1617
  %v1619 = vpop.f32.mrf.mxu0
  %v1620 = vadd.f32 %v1531, %v1619
  %1621 = vmatmul.bf16.gmra.mxu0 %v833
  %v1622 = vpop.f32.mrf.mxu0
  %v1623 = vadd.f32 %v1534, %v1622
  %v1624 = vpop.f32.mrf.mxu0
  %v1625 = vadd.f32 %v1536, %v1624
  %1626 = vmatmul.bf16.gmra.mxu0 %v842
  %v1627 = vpop.f32.mrf.mxu0
  %v1628 = vadd.f32 %v1539, %v1627
  %v1629 = vpop.f32.mrf.mxu0
  %v1630 = vadd.f32 %v1541, %v1629
  %1631 = vmatmul.bf16.gmra.mxu0 %v851
  %v1632 = vpop.f32.mrf.mxu0
  %v1633 = vadd.f32 %v1544, %v1632
  %v1634 = vpop.f32.mrf.mxu0
  %v1635 = vadd.f32 %v1546, %v1634
  %1636 = vmatmul.bf16.gmra.mxu0 %v860
  %v1637 = vpop.f32.mrf.mxu0
  %v1638 = vadd.f32 %v1549, %v1637
  %v1639 = vpop.f32.mrf.mxu0
  %v1640 = vadd.f32 %v1551, %v1639
  %1641 = vmatmul.bf16.gmra.mxu0 %v869
  %v1642 = vpop.f32.mrf.mxu0
  %v1643 = vadd.f32 %v1554, %v1642
  %v1644 = vpop.f32.mrf.mxu0
  %v1645 = vadd.f32 %v1556, %v1644
  %1646 = vmatmul.bf16.gmra.mxu0 %v878
  %v1647 = vpop.f32.mrf.mxu0
  %v1648 = vadd.f32 %v1559, %v1647
  %v1649 = vpop.f32.mrf.mxu0
  %v1650 = vadd.f32 %v1561, %v1649
  %1651 = vmatmul.bf16.gmra.mxu0 %v887
  %v1652 = vpop.f32.mrf.mxu0
  %v1653 = vadd.f32 %v1564, %v1652
  %v1654 = vpop.f32.mrf.mxu0
  %v1655 = vadd.f32 %v1566, %v1654
  %1656 = vmatmul.bf16.gmra.mxu0 %v896
  %v1657 = vpop.f32.mrf.mxu0
  %v1658 = vadd.f32 %v1569, %v1657
  %v1659 = vpop.f32.mrf.mxu0
  %v1660 = vadd.f32 %v1571, %v1659
  %1661 = vmatmul.bf16.gmra.mxu0 %v905
  %v1662 = vpop.f32.mrf.mxu0
  %v1663 = vadd.f32 %v1574, %v1662
  %v1664 = vpop.f32.mrf.mxu0
  %v1665 = vadd.f32 %v1576, %v1664
  %1666 = vdwg.mxu0
  %1667 = vmatpush.bf16.msra.mxu0 %v1368
  %1668 = vmatpush.bf16.msra.mxu0 %v1367
  %1669 = vmatpush.bf16.msra.mxu0 %v1366
  %1670 = vmatpush.bf16.msra.mxu0 %v1365
  %1671 = vmatpush.bf16.msra.mxu0 %v1364
  %1672 = vmatpush.bf16.msra.mxu0 %v1363
  %1673 = vmatpush.bf16.msra.mxu0 %v1362
  %1674 = vmatpush.bf16.msra.mxu0 %v1361
  %1675 = vmatmul.bf16.gmra.mxu0 %v771
  %v1676 = vpop.f32.mrf.mxu0
  %v1677 = vadd.f32 %v1588, %v1676
  %v1678 = vpop.f32.mrf.mxu0
  %v1679 = vadd.f32 %v1590, %v1678
  %1680 = vmatmul.bf16.gmra.mxu0 %v780
  %v1681 = vpop.f32.mrf.mxu0
  %v1682 = vadd.f32 %v1593, %v1681
  %v1683 = vpop.f32.mrf.mxu0
  %v1684 = vadd.f32 %v1595, %v1683
  %1685 = vmatmul.bf16.gmra.mxu0 %v789
  %v1686 = vpop.f32.mrf.mxu0
  %v1687 = vadd.f32 %v1598, %v1686
  %v1688 = vpop.f32.mrf.mxu0
  %v1689 = vadd.f32 %v1600, %v1688
  %1690 = vmatmul.bf16.gmra.mxu0 %v798
  %v1691 = vpop.f32.mrf.mxu0
  %v1692 = vadd.f32 %v1603, %v1691
  %v1693 = vpop.f32.mrf.mxu0
  %v1694 = vadd.f32 %v1605, %v1693
  %1695 = vmatmul.bf16.gmra.mxu0 %v807
  %v1696 = vpop.f32.mrf.mxu0
  %v1697 = vadd.f32 %v1608, %v1696
  %v1698 = vpop.f32.mrf.mxu0
  %v1699 = vadd.f32 %v1610, %v1698
  %1700 = vmatmul.bf16.gmra.mxu0 %v816
  %v1701 = vpop.f32.mrf.mxu0
  %v1702 = vadd.f32 %v1613, %v1701
  %v1703 = vpop.f32.mrf.mxu0
  %v1704 = vadd.f32 %v1615, %v1703
  %1705 = vmatmul.bf16.gmra.mxu0 %v825
  %v1706 = vpop.f32.mrf.mxu0
  %v1707 = vadd.f32 %v1618, %v1706
  %v1708 = vpop.f32.mrf.mxu0
  %v1709 = vadd.f32 %v1620, %v1708
  %1710 = vmatmul.bf16.gmra.mxu0 %v834
  %v1711 = vpop.f32.mrf.mxu0
  %v1712 = vadd.f32 %v1623, %v1711
  %v1713 = vpop.f32.mrf.mxu0
  %v1714 = vadd.f32 %v1625, %v1713
  %1715 = vmatmul.bf16.gmra.mxu0 %v843
  %v1716 = vpop.f32.mrf.mxu0
  %v1717 = vadd.f32 %v1628, %v1716
  %v1718 = vpop.f32.mrf.mxu0
  %v1719 = vadd.f32 %v1630, %v1718
  %1720 = vmatmul.bf16.gmra.mxu0 %v852
  %v1721 = vpop.f32.mrf.mxu0
  %v1722 = vadd.f32 %v1633, %v1721
  %v1723 = vpop.f32.mrf.mxu0
  %v1724 = vadd.f32 %v1635, %v1723
  %1725 = vmatmul.bf16.gmra.mxu0 %v861
  %v1726 = vpop.f32.mrf.mxu0
  %v1727 = vadd.f32 %v1638, %v1726
  %v1728 = vpop.f32.mrf.mxu0
  %v1729 = vadd.f32 %v1640, %v1728
  %1730 = vmatmul.bf16.gmra.mxu0 %v870
  %v1731 = vpop.f32.mrf.mxu0
  %v1732 = vadd.f32 %v1643, %v1731
  %v1733 = vpop.f32.mrf.mxu0
  %v1734 = vadd.f32 %v1645, %v1733
  %1735 = vmatmul.bf16.gmra.mxu0 %v879
  %v1736 = vpop.f32.mrf.mxu0
  %v1737 = vadd.f32 %v1648, %v1736
  %v1738 = vpop.f32.mrf.mxu0
  %v1739 = vadd.f32 %v1650, %v1738
  %1740 = vmatmul.bf16.gmra.mxu0 %v888
  %v1741 = vpop.f32.mrf.mxu0
  %v1742 = vadd.f32 %v1653, %v1741
  %v1743 = vpop.f32.mrf.mxu0
  %v1744 = vadd.f32 %v1655, %v1743
  %1745 = vmatmul.bf16.gmra.mxu0 %v897
  %v1746 = vpop.f32.mrf.mxu0
  %v1747 = vadd.f32 %v1658, %v1746
  %v1748 = vpop.f32.mrf.mxu0
  %v1749 = vadd.f32 %v1660, %v1748
  %1750 = vmatmul.bf16.gmra.mxu0 %v906
  %v1751 = vpop.f32.mrf.mxu0
  %v1752 = vadd.f32 %v1663, %v1751
  %v1753 = vpop.f32.mrf.mxu0
  %v1754 = vadd.f32 %v1665, %v1753
  %1755 = vdwg.mxu0
  %1756 = vmatpush.bf16.msra.mxu0 %v1376
  %1757 = vmatpush.bf16.msra.mxu0 %v1375
  %1758 = vmatpush.bf16.msra.mxu0 %v1374
  %1759 = vmatpush.bf16.msra.mxu0 %v1373
  %1760 = vmatpush.bf16.msra.mxu0 %v1372
  %1761 = vmatpush.bf16.msra.mxu0 %v1371
  %1762 = vmatpush.bf16.msra.mxu0 %v1370
  %1763 = vmatpush.bf16.msra.mxu0 %v1369
  %1764 = vmatmul.bf16.gmra.mxu0 %v772
  %v1765 = vpop.f32.mrf.mxu0
  %v1766 = vadd.f32 %v1677, %v1765
  %v1767 = vpop.f32.mrf.mxu0
  %v1768 = vadd.f32 %v1679, %v1767
  %1769 = vmatmul.bf16.gmra.mxu0 %v781
  %v1770 = vpop.f32.mrf.mxu0
  %v1771 = vadd.f32 %v1682, %v1770
  %v1772 = vpop.f32.mrf.mxu0
  %v1773 = vadd.f32 %v1684, %v1772
  %1774 = vmatmul.bf16.gmra.mxu0 %v790
  %v1775 = vpop.f32.mrf.mxu0
  %v1776 = vadd.f32 %v1687, %v1775
  %v1777 = vpop.f32.mrf.mxu0
  %v1778 = vadd.f32 %v1689, %v1777
  %1779 = vmatmul.bf16.gmra.mxu0 %v799
  %v1780 = vpop.f32.mrf.mxu0
  %v1781 = vadd.f32 %v1692, %v1780
  %v1782 = vpop.f32.mrf.mxu0
  %v1783 = vadd.f32 %v1694, %v1782
  %1784 = vmatmul.bf16.gmra.mxu0 %v808
  %v1785 = vpop.f32.mrf.mxu0
  %v1786 = vadd.f32 %v1697, %v1785
  %v1787 = vpop.f32.mrf.mxu0
  %v1788 = vadd.f32 %v1699, %v1787
  %1789 = vmatmul.bf16.gmra.mxu0 %v817
  %v1790 = vpop.f32.mrf.mxu0
  %v1791 = vadd.f32 %v1702, %v1790
  %v1792 = vpop.f32.mrf.mxu0
  %v1793 = vadd.f32 %v1704, %v1792
  %1794 = vmatmul.bf16.gmra.mxu0 %v826
  %v1795 = vpop.f32.mrf.mxu0
  %v1796 = vadd.f32 %v1707, %v1795
  %v1797 = vpop.f32.mrf.mxu0
  %v1798 = vadd.f32 %v1709, %v1797
  %1799 = vmatmul.bf16.gmra.mxu0 %v835
  %v1800 = vpop.f32.mrf.mxu0
  %v1801 = vadd.f32 %v1712, %v1800
  %v1802 = vpop.f32.mrf.mxu0
  %v1803 = vadd.f32 %v1714, %v1802
  %1804 = vmatmul.bf16.gmra.mxu0 %v844
  %v1805 = vpop.f32.mrf.mxu0
  %v1806 = vadd.f32 %v1717, %v1805
  %v1807 = vpop.f32.mrf.mxu0
  %v1808 = vadd.f32 %v1719, %v1807
  %1809 = vmatmul.bf16.gmra.mxu0 %v853
  %v1810 = vpop.f32.mrf.mxu0
  %v1811 = vadd.f32 %v1722, %v1810
  %v1812 = vpop.f32.mrf.mxu0
  %v1813 = vadd.f32 %v1724, %v1812
  %1814 = vmatmul.bf16.gmra.mxu0 %v862
  %v1815 = vpop.f32.mrf.mxu0
  %v1816 = vadd.f32 %v1727, %v1815
  %v1817 = vpop.f32.mrf.mxu0
  %v1818 = vadd.f32 %v1729, %v1817
  %1819 = vmatmul.bf16.gmra.mxu0 %v871
  %v1820 = vpop.f32.mrf.mxu0
  %v1821 = vadd.f32 %v1732, %v1820
  %v1822 = vpop.f32.mrf.mxu0
  %v1823 = vadd.f32 %v1734, %v1822
  %1824 = vmatmul.bf16.gmra.mxu0 %v880
  %v1825 = vpop.f32.mrf.mxu0
  %v1826 = vadd.f32 %v1737, %v1825
  %v1827 = vpop.f32.mrf.mxu0
  %v1828 = vadd.f32 %v1739, %v1827
  %1829 = vmatmul.bf16.gmra.mxu0 %v889
  %v1830 = vpop.f32.mrf.mxu0
  %v1831 = vadd.f32 %v1742, %v1830
  %v1832 = vpop.f32.mrf.mxu0
  %v1833 = vadd.f32 %v1744, %v1832
  %1834 = vmatmul.bf16.gmra.mxu0 %v898
  %v1835 = vpop.f32.mrf.mxu0
  %v1836 = vadd.f32 %v1747, %v1835
  %v1837 = vpop.f32.mrf.mxu0
  %v1838 = vadd.f32 %v1749, %v1837
  %1839 = vmatmul.bf16.gmra.mxu0 %v907
  %v1840 = vpop.f32.mrf.mxu0
  %v1841 = vadd.f32 %v1752, %v1840
  %v1842 = vpop.f32.mrf.mxu0
  %v1843 = vadd.f32 %v1754, %v1842
  %1844 = vdwg.mxu0
  %1845 = vmatpush.bf16.msra.mxu0 %v1384
  %1846 = vmatpush.bf16.msra.mxu0 %v1383
  %1847 = vmatpush.bf16.msra.mxu0 %v1382
  %1848 = vmatpush.bf16.msra.mxu0 %v1381
  %1849 = vmatpush.bf16.msra.mxu0 %v1380
  %1850 = vmatpush.bf16.msra.mxu0 %v1379
  %1851 = vmatpush.bf16.msra.mxu0 %v1378
  %1852 = vmatpush.bf16.msra.mxu0 %v1377
  %1853 = vmatmul.bf16.gmra.mxu0 %v773
  %v1854 = vpop.f32.mrf.mxu0
  %v1855 = vadd.f32 %v1766, %v1854
  %v1856 = vpop.f32.mrf.mxu0
  %v1857 = vadd.f32 %v1768, %v1856
  %1858 = vmatmul.bf16.gmra.mxu0 %v782
  %v1859 = vpop.f32.mrf.mxu0
  %v1860 = vadd.f32 %v1771, %v1859
  %v1861 = vpop.f32.mrf.mxu0
  %v1862 = vadd.f32 %v1773, %v1861
  %1863 = vmatmul.bf16.gmra.mxu0 %v791
  %v1864 = vpop.f32.mrf.mxu0
  %v1865 = vadd.f32 %v1776, %v1864
  %v1866 = vpop.f32.mrf.mxu0
  %v1867 = vadd.f32 %v1778, %v1866
  %1868 = vmatmul.bf16.gmra.mxu0 %v800
  %v1869 = vpop.f32.mrf.mxu0
  %v1870 = vadd.f32 %v1781, %v1869
  %v1871 = vpop.f32.mrf.mxu0
  %v1872 = vadd.f32 %v1783, %v1871
  %1873 = vmatmul.bf16.gmra.mxu0 %v809
  %v1874 = vpop.f32.mrf.mxu0
  %v1875 = vadd.f32 %v1786, %v1874
  %v1876 = vpop.f32.mrf.mxu0
  %v1877 = vadd.f32 %v1788, %v1876
  %1878 = vmatmul.bf16.gmra.mxu0 %v818
  %v1879 = vpop.f32.mrf.mxu0
  %v1880 = vadd.f32 %v1791, %v1879
  %v1881 = vpop.f32.mrf.mxu0
  %v1882 = vadd.f32 %v1793, %v1881
  %1883 = vmatmul.bf16.gmra.mxu0 %v827
  %v1884 = vpop.f32.mrf.mxu0
  %v1885 = vadd.f32 %v1796, %v1884
  %v1886 = vpop.f32.mrf.mxu0
  %v1887 = vadd.f32 %v1798, %v1886
  %1888 = vmatmul.bf16.gmra.mxu0 %v836
  %v1889 = vpop.f32.mrf.mxu0
  %v1890 = vadd.f32 %v1801, %v1889
  %v1891 = vpop.f32.mrf.mxu0
  %v1892 = vadd.f32 %v1803, %v1891
  %1893 = vmatmul.bf16.gmra.mxu0 %v845
  %v1894 = vpop.f32.mrf.mxu0
  %v1895 = vadd.f32 %v1806, %v1894
  %v1896 = vpop.f32.mrf.mxu0
  %v1897 = vadd.f32 %v1808, %v1896
  %1898 = vmatmul.bf16.gmra.mxu0 %v854
  %v1899 = vpop.f32.mrf.mxu0
  %v1900 = vadd.f32 %v1811, %v1899
  %v1901 = vpop.f32.mrf.mxu0
  %v1902 = vadd.f32 %v1813, %v1901
  %1903 = vmatmul.bf16.gmra.mxu0 %v863
  %v1904 = vpop.f32.mrf.mxu0
  %v1905 = vadd.f32 %v1816, %v1904
  %v1906 = vpop.f32.mrf.mxu0
  %v1907 = vadd.f32 %v1818, %v1906
  %1908 = vmatmul.bf16.gmra.mxu0 %v872
  %v1909 = vpop.f32.mrf.mxu0
  %v1910 = vadd.f32 %v1821, %v1909
  %v1911 = vpop.f32.mrf.mxu0
  %v1912 = vadd.f32 %v1823, %v1911
  %1913 = vmatmul.bf16.gmra.mxu0 %v881
  %v1914 = vpop.f32.mrf.mxu0
  %v1915 = vadd.f32 %v1826, %v1914
  %v1916 = vpop.f32.mrf.mxu0
  %v1917 = vadd.f32 %v1828, %v1916
  %1918 = vmatmul.bf16.gmra.mxu0 %v890
  %v1919 = vpop.f32.mrf.mxu0
  %v1920 = vadd.f32 %v1831, %v1919
  %v1921 = vpop.f32.mrf.mxu0
  %v1922 = vadd.f32 %v1833, %v1921
  %1923 = vmatmul.bf16.gmra.mxu0 %v899
  %v1924 = vpop.f32.mrf.mxu0
  %v1925 = vadd.f32 %v1836, %v1924
  %v1926 = vpop.f32.mrf.mxu0
  %v1927 = vadd.f32 %v1838, %v1926
  %1928 = vmatmul.bf16.gmra.mxu0 %v908
  %v1929 = vpop.f32.mrf.mxu0
  %v1930 = vadd.f32 %v1841, %v1929
  %v1931 = vpop.f32.mrf.mxu0
  %v1932 = vadd.f32 %v1843, %v1931
  %1933 = vdwg.mxu0
  %1934 = vmatpush.bf16.msra.mxu0 %v1392
  %1935 = vmatpush.bf16.msra.mxu0 %v1391
  %1936 = vmatpush.bf16.msra.mxu0 %v1390
  %1937 = vmatpush.bf16.msra.mxu0 %v1389
  %1938 = vmatpush.bf16.msra.mxu0 %v1388
  %1939 = vmatpush.bf16.msra.mxu0 %v1387
  %1940 = vmatpush.bf16.msra.mxu0 %v1386
  %1941 = vmatpush.bf16.msra.mxu0 %v1385
  %1942 = vmatmul.bf16.gmra.mxu0 %v774
  %v1943 = vpop.f32.mrf.mxu0
  %v1944 = vadd.f32 %v1855, %v1943
  %v1945 = vpop.f32.mrf.mxu0
  %v1946 = vadd.f32 %v1857, %v1945
  %1947 = vmatmul.bf16.gmra.mxu0 %v783
  %v1948 = vpop.f32.mrf.mxu0
  %v1949 = vadd.f32 %v1860, %v1948
  %v1950 = vpop.f32.mrf.mxu0
  %v1951 = vadd.f32 %v1862, %v1950
  %1952 = vmatmul.bf16.gmra.mxu0 %v792
  %v1953 = vpop.f32.mrf.mxu0
  %v1954 = vadd.f32 %v1865, %v1953
  %v1955 = vpop.f32.mrf.mxu0
  %v1956 = vadd.f32 %v1867, %v1955
  %1957 = vmatmul.bf16.gmra.mxu0 %v801
  %v1958 = vpop.f32.mrf.mxu0
  %v1959 = vadd.f32 %v1870, %v1958
  %v1960 = vpop.f32.mrf.mxu0
  %v1961 = vadd.f32 %v1872, %v1960
  %1962 = vmatmul.bf16.gmra.mxu0 %v810
  %v1963 = vpop.f32.mrf.mxu0
  %v1964 = vadd.f32 %v1875, %v1963
  %v1965 = vpop.f32.mrf.mxu0
  %v1966 = vadd.f32 %v1877, %v1965
  %1967 = vmatmul.bf16.gmra.mxu0 %v819
  %v1968 = vpop.f32.mrf.mxu0
  %v1969 = vadd.f32 %v1880, %v1968
  %v1970 = vpop.f32.mrf.mxu0
  %v1971 = vadd.f32 %v1882, %v1970
  %1972 = vmatmul.bf16.gmra.mxu0 %v828
  %v1973 = vpop.f32.mrf.mxu0
  %v1974 = vadd.f32 %v1885, %v1973
  %v1975 = vpop.f32.mrf.mxu0
  %v1976 = vadd.f32 %v1887, %v1975
  %1977 = vmatmul.bf16.gmra.mxu0 %v837
  %v1978 = vpop.f32.mrf.mxu0
  %v1979 = vadd.f32 %v1890, %v1978
  %v1980 = vpop.f32.mrf.mxu0
  %v1981 = vadd.f32 %v1892, %v1980
  %1982 = vmatmul.bf16.gmra.mxu0 %v846
  %v1983 = vpop.f32.mrf.mxu0
  %v1984 = vadd.f32 %v1895, %v1983
  %v1985 = vpop.f32.mrf.mxu0
  %v1986 = vadd.f32 %v1897, %v1985
  %1987 = vmatmul.bf16.gmra.mxu0 %v855
  %v1988 = vpop.f32.mrf.mxu0
  %v1989 = vadd.f32 %v1900, %v1988
  %v1990 = vpop.f32.mrf.mxu0
  %v1991 = vadd.f32 %v1902, %v1990
  %1992 = vmatmul.bf16.gmra.mxu0 %v864
  %v1993 = vpop.f32.mrf.mxu0
  %v1994 = vadd.f32 %v1905, %v1993
  %v1995 = vpop.f32.mrf.mxu0
  %v1996 = vadd.f32 %v1907, %v1995
  %1997 = vmatmul.bf16.gmra.mxu0 %v873
  %v1998 = vpop.f32.mrf.mxu0
  %v1999 = vadd.f32 %v1910, %v1998
  %v2000 = vpop.f32.mrf.mxu0
  %v2001 = vadd.f32 %v1912, %v2000
  %2002 = vmatmul.bf16.gmra.mxu0 %v882
  %v2003 = vpop.f32.mrf.mxu0
  %v2004 = vadd.f32 %v1915, %v2003
  %v2005 = vpop.f32.mrf.mxu0
  %v2006 = vadd.f32 %v1917, %v2005
  %2007 = vmatmul.bf16.gmra.mxu0 %v891
  %v2008 = vpop.f32.mrf.mxu0
  %v2009 = vadd.f32 %v1920, %v2008
  %v2010 = vpop.f32.mrf.mxu0
  %v2011 = vadd.f32 %v1922, %v2010
  %2012 = vmatmul.bf16.gmra.mxu0 %v900
  %v2013 = vpop.f32.mrf.mxu0
  %v2014 = vadd.f32 %v1925, %v2013
  %v2015 = vpop.f32.mrf.mxu0
  %v2016 = vadd.f32 %v1927, %v2015
  %2017 = vmatmul.bf16.gmra.mxu0 %v909
  %v2018 = vpop.f32.mrf.mxu0
  %v2019 = vadd.f32 %v1930, %v2018
  %v2020 = vpop.f32.mrf.mxu0
  %v2021 = vadd.f32 %v1932, %v2020
  %2022 = vdwg.mxu0
  %2023 = vmatpush.bf16.msra.mxu0 %v1400
  %2024 = vmatpush.bf16.msra.mxu0 %v1399
  %2025 = vmatpush.bf16.msra.mxu0 %v1398
  %2026 = vmatpush.bf16.msra.mxu0 %v1397
  %2027 = vmatpush.bf16.msra.mxu0 %v1396
  %2028 = vmatpush.bf16.msra.mxu0 %v1395
  %2029 = vmatpush.bf16.msra.mxu0 %v1394
  %2030 = vmatpush.bf16.msra.mxu0 %v1393
  %2031 = vmatmul.bf16.gmra.mxu0 %v775
  %v2032 = vpop.f32.mrf.mxu0
  %v2033 = vadd.f32 %v1944, %v2032
  %v2034 = vpop.f32.mrf.mxu0
  %v2035 = vadd.f32 %v1946, %v2034
  %2036 = vmatmul.bf16.gmra.mxu0 %v784
  %v2037 = vpop.f32.mrf.mxu0
  %v2038 = vadd.f32 %v1949, %v2037
  %v2039 = vpop.f32.mrf.mxu0
  %v2040 = vadd.f32 %v1951, %v2039
  %2041 = vmatmul.bf16.gmra.mxu0 %v793
  %v2042 = vpop.f32.mrf.mxu0
  %v2043 = vadd.f32 %v1954, %v2042
  %v2044 = vpop.f32.mrf.mxu0
  %v2045 = vadd.f32 %v1956, %v2044
  %2046 = vmatmul.bf16.gmra.mxu0 %v802
  %v2047 = vpop.f32.mrf.mxu0
  %v2048 = vadd.f32 %v1959, %v2047
  %v2049 = vpop.f32.mrf.mxu0
  %v2050 = vadd.f32 %v1961, %v2049
  %2051 = vmatmul.bf16.gmra.mxu0 %v811
  %v2052 = vpop.f32.mrf.mxu0
  %v2053 = vadd.f32 %v1964, %v2052
  %v2054 = vpop.f32.mrf.mxu0
  %v2055 = vadd.f32 %v1966, %v2054
  %2056 = vmatmul.bf16.gmra.mxu0 %v820
  %v2057 = vpop.f32.mrf.mxu0
  %v2058 = vadd.f32 %v1969, %v2057
  %v2059 = vpop.f32.mrf.mxu0
  %v2060 = vadd.f32 %v1971, %v2059
  %2061 = vmatmul.bf16.gmra.mxu0 %v829
  %v2062 = vpop.f32.mrf.mxu0
  %v2063 = vadd.f32 %v1974, %v2062
  %v2064 = vpop.f32.mrf.mxu0
  %v2065 = vadd.f32 %v1976, %v2064
  %2066 = vmatmul.bf16.gmra.mxu0 %v838
  %v2067 = vpop.f32.mrf.mxu0
  %v2068 = vadd.f32 %v1979, %v2067
  %v2069 = vpop.f32.mrf.mxu0
  %v2070 = vadd.f32 %v1981, %v2069
  %2071 = vmatmul.bf16.gmra.mxu0 %v847
  %v2072 = vpop.f32.mrf.mxu0
  %v2073 = vadd.f32 %v1984, %v2072
  %v2074 = vpop.f32.mrf.mxu0
  %v2075 = vadd.f32 %v1986, %v2074
  %2076 = vmatmul.bf16.gmra.mxu0 %v856
  %v2077 = vpop.f32.mrf.mxu0
  %v2078 = vadd.f32 %v1989, %v2077
  %v2079 = vpop.f32.mrf.mxu0
  %v2080 = vadd.f32 %v1991, %v2079
  %2081 = vmatmul.bf16.gmra.mxu0 %v865
  %v2082 = vpop.f32.mrf.mxu0
  %v2083 = vadd.f32 %v1994, %v2082
  %v2084 = vpop.f32.mrf.mxu0
  %v2085 = vadd.f32 %v1996, %v2084
  %2086 = vmatmul.bf16.gmra.mxu0 %v874
  %v2087 = vpop.f32.mrf.mxu0
  %v2088 = vadd.f32 %v1999, %v2087
  %v2089 = vpop.f32.mrf.mxu0
  %v2090 = vadd.f32 %v2001, %v2089
  %2091 = vmatmul.bf16.gmra.mxu0 %v883
  %v2092 = vpop.f32.mrf.mxu0
  %v2093 = vadd.f32 %v2004, %v2092
  %v2094 = vpop.f32.mrf.mxu0
  %v2095 = vadd.f32 %v2006, %v2094
  %2096 = vmatmul.bf16.gmra.mxu0 %v892
  %v2097 = vpop.f32.mrf.mxu0
  %v2098 = vadd.f32 %v2009, %v2097
  %v2099 = vpop.f32.mrf.mxu0
  %v2100 = vadd.f32 %v2011, %v2099
  %2101 = vmatmul.bf16.gmra.mxu0 %v901
  %v2102 = vpop.f32.mrf.mxu0
  %v2103 = vadd.f32 %v2014, %v2102
  %v2104 = vpop.f32.mrf.mxu0
  %v2105 = vadd.f32 %v2016, %v2104
  %2106 = vmatmul.bf16.gmra.mxu0 %v910
  %v2107 = vpop.f32.mrf.mxu0
  %v2108 = vadd.f32 %v2019, %v2107
  %v2109 = vpop.f32.mrf.mxu0
  %v2110 = vadd.f32 %v2021, %v2109
  %2111 = vdwg.mxu0
  %2112 = vmatpush.bf16.msra.mxu0 %v1408
  %2113 = vmatpush.bf16.msra.mxu0 %v1407
  %2114 = vmatpush.bf16.msra.mxu0 %v1406
  %2115 = vmatpush.bf16.msra.mxu0 %v1405
  %2116 = vmatpush.bf16.msra.mxu0 %v1404
  %2117 = vmatpush.bf16.msra.mxu0 %v1403
  %2118 = vmatpush.bf16.msra.mxu0 %v1402
  %2119 = vmatpush.bf16.msra.mxu0 %v1401
  %2120 = vmatmul.bf16.gmra.mxu0 %v776
  %v2121 = vpop.f32.mrf.mxu0
  %v2122 = vadd.f32 %v2033, %v2121
  %v2123 = vpop.f32.mrf.mxu0
  %v2124 = vadd.f32 %v2035, %v2123
  %2125 = vmatmul.bf16.gmra.mxu0 %v785
  %v2126 = vpop.f32.mrf.mxu0
  %v2127 = vadd.f32 %v2038, %v2126
  %v2128 = vpop.f32.mrf.mxu0
  %v2129 = vadd.f32 %v2040, %v2128
  %2130 = vmatmul.bf16.gmra.mxu0 %v794
  %v2131 = vpop.f32.mrf.mxu0
  %v2132 = vadd.f32 %v2043, %v2131
  %v2133 = vpop.f32.mrf.mxu0
  %v2134 = vadd.f32 %v2045, %v2133
  %2135 = vmatmul.bf16.gmra.mxu0 %v803
  %v2136 = vpop.f32.mrf.mxu0
  %v2137 = vadd.f32 %v2048, %v2136
  %v2138 = vpop.f32.mrf.mxu0
  %v2139 = vadd.f32 %v2050, %v2138
  %2140 = vmatmul.bf16.gmra.mxu0 %v812
  %v2141 = vpop.f32.mrf.mxu0
  %v2142 = vadd.f32 %v2053, %v2141
  %v2143 = vpop.f32.mrf.mxu0
  %v2144 = vadd.f32 %v2055, %v2143
  %2145 = vmatmul.bf16.gmra.mxu0 %v821
  %v2146 = vpop.f32.mrf.mxu0
  %v2147 = vadd.f32 %v2058, %v2146
  %v2148 = vpop.f32.mrf.mxu0
  %v2149 = vadd.f32 %v2060, %v2148
  %2150 = vmatmul.bf16.gmra.mxu0 %v830
  %v2151 = vpop.f32.mrf.mxu0
  %v2152 = vadd.f32 %v2063, %v2151
  %v2153 = vpop.f32.mrf.mxu0
  %v2154 = vadd.f32 %v2065, %v2153
  %2155 = vmatmul.bf16.gmra.mxu0 %v839
  %v2156 = vpop.f32.mrf.mxu0
  %v2157 = vadd.f32 %v2068, %v2156
  %v2158 = vpop.f32.mrf.mxu0
  %v2159 = vadd.f32 %v2070, %v2158
  %2160 = vmatmul.bf16.gmra.mxu0 %v848
  %v2161 = vpop.f32.mrf.mxu0
  %v2162 = vadd.f32 %v2073, %v2161
  %v2163 = vpop.f32.mrf.mxu0
  %v2164 = vadd.f32 %v2075, %v2163
  %2165 = vmatmul.bf16.gmra.mxu0 %v857
  %v2166 = vpop.f32.mrf.mxu0
  %v2167 = vadd.f32 %v2078, %v2166
  %v2168 = vpop.f32.mrf.mxu0
  %v2169 = vadd.f32 %v2080, %v2168
  %2170 = vmatmul.bf16.gmra.mxu0 %v866
  %v2171 = vpop.f32.mrf.mxu0
  %v2172 = vadd.f32 %v2083, %v2171
  %v2173 = vpop.f32.mrf.mxu0
  %v2174 = vadd.f32 %v2085, %v2173
  %2175 = vmatmul.bf16.gmra.mxu0 %v875
  %v2176 = vpop.f32.mrf.mxu0
  %v2177 = vadd.f32 %v2088, %v2176
  %v2178 = vpop.f32.mrf.mxu0
  %v2179 = vadd.f32 %v2090, %v2178
  %2180 = vmatmul.bf16.gmra.mxu0 %v884
  %v2181 = vpop.f32.mrf.mxu0
  %v2182 = vadd.f32 %v2093, %v2181
  %v2183 = vpop.f32.mrf.mxu0
  %v2184 = vadd.f32 %v2095, %v2183
  %2185 = vmatmul.bf16.gmra.mxu0 %v893
  %v2186 = vpop.f32.mrf.mxu0
  %v2187 = vadd.f32 %v2098, %v2186
  %v2188 = vpop.f32.mrf.mxu0
  %v2189 = vadd.f32 %v2100, %v2188
  %2190 = vmatmul.bf16.gmra.mxu0 %v902
  %v2191 = vpop.f32.mrf.mxu0
  %v2192 = vadd.f32 %v2103, %v2191
  %v2193 = vpop.f32.mrf.mxu0
  %v2194 = vadd.f32 %v2105, %v2193
  %2195 = vmatmul.bf16.gmra.mxu0 %v911
  %v2196 = vpop.f32.mrf.mxu0
  %v2197 = vadd.f32 %v2108, %v2196
  %v2198 = vpop.f32.mrf.mxu0
  %v2199 = vadd.f32 %v2110, %v2198
  %2200 = vdwg.mxu0
  %2201 = vmatpush.bf16.msra.mxu0 %v1416
  %2202 = vmatpush.bf16.msra.mxu0 %v1415
  %2203 = vmatpush.bf16.msra.mxu0 %v1414
  %2204 = vmatpush.bf16.msra.mxu0 %v1413
  %2205 = vmatpush.bf16.msra.mxu0 %v1412
  %2206 = vmatpush.bf16.msra.mxu0 %v1411
  %2207 = vmatpush.bf16.msra.mxu0 %v1410
  %2208 = vmatpush.bf16.msra.mxu0 %v1409
  %2209 = vmatmul.bf16.gmra.mxu0 %v777
  %v2210 = vpop.f32.mrf.mxu0
  %v2211 = vadd.f32 %v2122, %v2210
  %v2212 = vpop.f32.mrf.mxu0
  %v2213 = vadd.f32 %v2124, %v2212
  %2214 = vmatmul.bf16.gmra.mxu0 %v786
  %v2215 = vpop.f32.mrf.mxu0
  %v2216 = vadd.f32 %v2127, %v2215
  %v2217 = vpop.f32.mrf.mxu0
  %v2218 = vadd.f32 %v2129, %v2217
  %2219 = vmatmul.bf16.gmra.mxu0 %v795
  %v2220 = vpop.f32.mrf.mxu0
  %v2221 = vadd.f32 %v2132, %v2220
  %v2222 = vpop.f32.mrf.mxu0
  %v2223 = vadd.f32 %v2134, %v2222
  %2224 = vmatmul.bf16.gmra.mxu0 %v804
  %v2225 = vpop.f32.mrf.mxu0
  %v2226 = vadd.f32 %v2137, %v2225
  %v2227 = vpop.f32.mrf.mxu0
  %v2228 = vadd.f32 %v2139, %v2227
  %2229 = vmatmul.bf16.gmra.mxu0 %v813
  %v2230 = vpop.f32.mrf.mxu0
  %v2231 = vadd.f32 %v2142, %v2230
  %v2232 = vpop.f32.mrf.mxu0
  %v2233 = vadd.f32 %v2144, %v2232
  %2234 = vmatmul.bf16.gmra.mxu0 %v822
  %v2235 = vpop.f32.mrf.mxu0
  %v2236 = vadd.f32 %v2147, %v2235
  %v2237 = vpop.f32.mrf.mxu0
  %v2238 = vadd.f32 %v2149, %v2237
  %2239 = vmatmul.bf16.gmra.mxu0 %v831
  %v2240 = vpop.f32.mrf.mxu0
  %v2241 = vadd.f32 %v2152, %v2240
  %v2242 = vpop.f32.mrf.mxu0
  %v2243 = vadd.f32 %v2154, %v2242
  %2244 = vmatmul.bf16.gmra.mxu0 %v840
  %v2245 = vpop.f32.mrf.mxu0
  %v2246 = vadd.f32 %v2157, %v2245
  %v2247 = vpop.f32.mrf.mxu0
  %v2248 = vadd.f32 %v2159, %v2247
  %2249 = vmatmul.bf16.gmra.mxu0 %v849
  %v2250 = vpop.f32.mrf.mxu0
  %v2251 = vadd.f32 %v2162, %v2250
  %v2252 = vpop.f32.mrf.mxu0
  %v2253 = vadd.f32 %v2164, %v2252
  %2254 = vmatmul.bf16.gmra.mxu0 %v858
  %v2255 = vpop.f32.mrf.mxu0
  %v2256 = vadd.f32 %v2167, %v2255
  %v2257 = vpop.f32.mrf.mxu0
  %v2258 = vadd.f32 %v2169, %v2257
  %2259 = vmatmul.bf16.gmra.mxu0 %v867
  %v2260 = vpop.f32.mrf.mxu0
  %v2261 = vadd.f32 %v2172, %v2260
  %v2262 = vpop.f32.mrf.mxu0
  %v2263 = vadd.f32 %v2174, %v2262
  %2264 = vmatmul.bf16.gmra.mxu0 %v876
  %v2265 = vpop.f32.mrf.mxu0
  %v2266 = vadd.f32 %v2177, %v2265
  %v2267 = vpop.f32.mrf.mxu0
  %v2268 = vadd.f32 %v2179, %v2267
  %2269 = vmatmul.bf16.gmra.mxu0 %v885
  %v2270 = vpop.f32.mrf.mxu0
  %v2271 = vadd.f32 %v2182, %v2270
  %v2272 = vpop.f32.mrf.mxu0
  %v2273 = vadd.f32 %v2184, %v2272
  %2274 = vmatmul.bf16.gmra.mxu0 %v894
  %v2275 = vpop.f32.mrf.mxu0
  %v2276 = vadd.f32 %v2187, %v2275
  %v2277 = vpop.f32.mrf.mxu0
  %v2278 = vadd.f32 %v2189, %v2277
  %2279 = vmatmul.bf16.gmra.mxu0 %v903
  %v2280 = vpop.f32.mrf.mxu0
  %v2281 = vadd.f32 %v2192, %v2280
  %v2282 = vpop.f32.mrf.mxu0
  %v2283 = vadd.f32 %v2194, %v2282
  %2284 = vmatmul.bf16.gmra.mxu0 %v912
  %v2285 = vpop.f32.mrf.mxu0
  %v2286 = vadd.f32 %v2197, %v2285
  %v2287 = vpop.f32.mrf.mxu0
  %v2288 = vadd.f32 %v2199, %v2287
  %2289 = vdwg.mxu0
  %v2290 = vld [vmem:[%s2] sm:$0x1]
  %v2292 = vperm.slane %v2290, 0
  %v2294 = vmul.f32 %v2211, %v2292
  %v2295 = vmul.f32 %v2213, %v2292
  %v2296 = vmul.f32 %v2216, %v2292
  %v2297 = vmul.f32 %v2218, %v2292
  %v2298 = vmul.f32 %v2221, %v2292
  %v2299 = vmul.f32 %v2223, %v2292
  %v2300 = vmul.f32 %v2226, %v2292
  %v2301 = vmul.f32 %v2228, %v2292
  %v2302 = vmul.f32 %v2231, %v2292
  %v2303 = vmul.f32 %v2233, %v2292
  %v2304 = vmul.f32 %v2236, %v2292
  %v2305 = vmul.f32 %v2238, %v2292
  %v2306 = vmul.f32 %v2241, %v2292
  %v2307 = vmul.f32 %v2243, %v2292
  %v2308 = vmul.f32 %v2246, %v2292
  %v2309 = vmul.f32 %v2248, %v2292
  %v2310 = vmul.f32 %v2251, %v2292
  %v2311 = vmul.f32 %v2253, %v2292
  %v2312 = vmul.f32 %v2256, %v2292
  %v2313 = vmul.f32 %v2258, %v2292
  %v2314 = vmul.f32 %v2261, %v2292
  %v2315 = vmul.f32 %v2263, %v2292
  %v2316 = vmul.f32 %v2266, %v2292
  %v2317 = vmul.f32 %v2268, %v2292
  %v2318 = vmul.f32 %v2271, %v2292
  %v2319 = vmul.f32 %v2273, %v2292
  %v2320 = vmul.f32 %v2276, %v2292
  %v2321 = vmul.f32 %v2278, %v2292
  %v2322 = vmul.f32 %v2281, %v2292
  %v2323 = vmul.f32 %v2283, %v2292
  %v2324 = vmul.f32 %v2286, %v2292
  %v2325 = vmul.f32 %v2288, %v2292
  %v2326 = vld [vmem:[%s3] sm:$0x1]
  %v2328 = vperm.slane %v2326, 0
  %v2330 = vadd.f32 %v2294, %v2328
  %v2331 = vadd.f32 %v2295, %v2328
  %v2332 = vadd.f32 %v2296, %v2328
  %v2333 = vadd.f32 %v2297, %v2328
  %v2334 = vadd.f32 %v2298, %v2328
  %v2335 = vadd.f32 %v2299, %v2328
  %v2336 = vadd.f32 %v2300, %v2328
  %v2337 = vadd.f32 %v2301, %v2328
  %v2338 = vadd.f32 %v2302, %v2328
  %v2339 = vadd.f32 %v2303, %v2328
  %v2340 = vadd.f32 %v2304, %v2328
  %v2341 = vadd.f32 %v2305, %v2328
  %v2342 = vadd.f32 %v2306, %v2328
  %v2343 = vadd.f32 %v2307, %v2328
  %v2344 = vadd.f32 %v2308, %v2328
  %v2345 = vadd.f32 %v2309, %v2328
  %v2346 = vadd.f32 %v2310, %v2328
  %v2347 = vadd.f32 %v2311, %v2328
  %v2348 = vadd.f32 %v2312, %v2328
  %v2349 = vadd.f32 %v2313, %v2328
  %v2350 = vadd.f32 %v2314, %v2328
  %v2351 = vadd.f32 %v2315, %v2328
  %v2352 = vadd.f32 %v2316, %v2328
  %v2353 = vadd.f32 %v2317, %v2328
  %v2354 = vadd.f32 %v2318, %v2328
  %v2355 = vadd.f32 %v2319, %v2328
  %v2356 = vadd.f32 %v2320, %v2328
  %v2357 = vadd.f32 %v2321, %v2328
  %v2358 = vadd.f32 %v2322, %v2328
  %v2359 = vadd.f32 %v2323, %v2328
  %v2360 = vadd.f32 %v2324, %v2328
  %v2361 = vadd.f32 %v2325, %v2328
  %2362 = vst [vmem:[%s4] sm:$0xff] %v2330
  %2363 = vst [vmem:[%s4 + $0x8] sm:$0xff] %v2331
  %2364 = vst [vmem:[%s4 + $0x10] sm:$0xff] %v2332
  %2365 = vst [vmem:[%s4 + $0x18] sm:$0xff] %v2333
  %2366 = vst [vmem:[%s4 + $0x20] sm:$0xff] %v2334
  %2367 = vst [vmem:[%s4 + $0x28] sm:$0xff] %v2335
  %2368 = vst [vmem:[%s4 + $0x30] sm:$0xff] %v2336
  %2369 = vst [vmem:[%s4 + $0x38] sm:$0xff] %v2337
  %2370 = vst [vmem:[%s4 + $0x40] sm:$0xff] %v2338
  %2371 = vst [vmem:[%s4 + $0x48] sm:$0xff] %v2339
  %2372 = vst [vmem:[%s4 + $0x50] sm:$0xff] %v2340
  %2373 = vst [vmem:[%s4 + $0x58] sm:$0xff] %v2341
  %2374 = vst [vmem:[%s4 + $0x60] sm:$0xff] %v2342
  %2375 = vst [vmem:[%s4 + $0x68] sm:$0xff] %v2343
  %2376 = vst [vmem:[%s4 + $0x70] sm:$0xff] %v2344
  %2377 = vst [vmem:[%s4 + $0x78] sm:$0xff] %v2345
  %2378 = vst [vmem:[%s4 + $0x80] sm:$0xff] %v2346
  %2379 = vst [vmem:[%s4 + $0x88] sm:$0xff] %v2347
  %2380 = vst [vmem:[%s4 + $0x90] sm:$0xff] %v2348
  %2381 = vst [vmem:[%s4 + $0x98] sm:$0xff] %v2349
  %2382 = vst [vmem:[%s4 + $0xa0] sm:$0xff] %v2350
  %2383 = vst [vmem:[%s4 + $0xa8] sm:$0xff] %v2351
  %2384 = vst [vmem:[%s4 + $0xb0] sm:$0xff] %v2352
  %2385 = vst [vmem:[%s4 + $0xb8] sm:$0xff] %v2353
  %2386 = vst [vmem:[%s4 + $0xc0] sm:$0xff] %v2354
  %2387 = vst [vmem:[%s4 + $0xc8] sm:$0xff] %v2355
  %2388 = vst [vmem:[%s4 + $0xd0] sm:$0xff] %v2356
  %2389 = vst [vmem:[%s4 + $0xd8] sm:$0xff] %v2357
  %2390 = vst [vmem:[%s4 + $0xe0] sm:$0xff] %v2358
  %2391 = vst [vmem:[%s4 + $0xe8] sm:$0xff] %v2359
  %2392 = vst [vmem:[%s4 + $0xf0] sm:$0xff] %v2360
  %2393 = vst [vmem:[%s4 + $0xf8] sm:$0xff] %v2361
  // Predicated region
  $region18: #{_lambda_.7} parent=0 // pred_check
    _
  $region19: #{_lambda_.7} parent=0 // pred_check_branch
    %2395 = sbr.rel (0) target = $region21
  $region20: #{_lambda_.7} parent=0 // pred_region
    _
  $region21: #{_lambda_.7} parent=0 // pred_fallthru
    _
  // Predicated region
  $region22: #{_lambda_.7} parent=0 // pred_check
    _
  $region23: #{_lambda_.7} parent=0 // pred_check_branch
    %2397 = sbr.rel (0) target = $region25
  $region24: #{_lambda_.7} parent=0 // pred_region
    _
  $region25: #{_lambda_.7} parent=0 // pred_fallthru
    _

</llo_original>
